<compile_context>
chip_gen: v7x
topology: tpu7x:2x2x1
jax: 0.10.0
libtpu: 0.0.40
codegen_flags: <defaults>
</compile_context>

<pallas_src>
import math
import functools

import jax
import jax.numpy as jnp
from jax.experimental import pallas as pl
from jax.experimental.pallas import tpu as pltpu


# --------------------------- in-kernel helpers ------------------------------

def _ln(x, g, b, eps=1e-5):
    mu = jnp.mean(x, axis=-1, keepdims=True)
    var = jnp.mean(jnp.square(x - mu), axis=-1, keepdims=True)
    return (x - mu) * jax.lax.rsqrt(var + eps) * g + b


def _mm(a, w, b=None):
    # bf16 MXU matmul, f32 accumulate.
    r = jnp.dot(a.astype(jnp.bfloat16), w.astype(jnp.bfloat16),
                preferred_element_type=jnp.float32)
    return r if b is None else r + b


def _split_heads(x, H):
    L, D = x.shape
    return jnp.transpose(x.reshape(L, H, D // H), (1, 0, 2))      # [H, L, dk]


def _attend(q, k, v, mask, scale):
    # q: [H, Lq, dk]; k, v: [H, Lk, dk]; mask broadcastable to [Lq, Lk] (1 = attend).
    s = jnp.einsum('hqd,hkd->hqk',
                   q.astype(jnp.bfloat16), k.astype(jnp.bfloat16),
                   preferred_element_type=jnp.float32) * scale
    s = jnp.where(mask[None] > 0.0, s, -1e9)
    s = s - jnp.max(s, axis=-1, keepdims=True)
    p = jnp.exp(s)                                                # f32 softmax (v5e-safe)
    p = p * pl.reciprocal(jnp.sum(p, axis=-1, keepdims=True), approx=True)
    o = jnp.einsum('hqk,hkd->hqd',
                   p.astype(jnp.bfloat16), v.astype(jnp.bfloat16),
                   preferred_element_type=jnp.float32)            # [H, Lq, dk]
    H, Lq, dk = o.shape
    return jnp.transpose(o, (1, 0, 2)).reshape(Lq, H * dk)


# ----------------------------- fused kernels ---------------------------------

def _enc_layer_kernel(x_ref, m_ref,
                      ln1g, ln1b, wqkv, bqkv, wo, bo,
                      ln2g, ln2b, w1, b1, w2, b2, lnfg, lnfb,
                      o_ref, *, num_heads, scale, apply_final_ln):
    x = x_ref[0]                       # [L, D]
    L, D = x.shape
    key_mask = m_ref[0]                # [1, L]

    # --- self attention block ---
    xn = _ln(x, ln1g[0], ln1b[0])
    qkv = _mm(xn, wqkv[...], bqkv[0])  # [L, 3D]  (fused QKV -> lane-denser matmul)
    q = _split_heads(qkv[:, :D], num_heads)
    k = _split_heads(qkv[:, D:2 * D], num_heads)
    v = _split_heads(qkv[:, 2 * D:], num_heads)
    attn = _attend(q, k, v, key_mask, scale)
    x = x + _mm(attn, wo[...], bo[0])

    # --- feed forward block ---
    xn = _ln(x, ln2g[0], ln2b[0])
    h = jnp.maximum(_mm(xn, w1[...], b1[0]), 0.0)
    x = x + _mm(h, w2[...], b2[0])

    if apply_final_ln:                 # final encoder LN fused into the last layer
        x = _ln(x, lnfg[0], lnfb[0])
    o_ref[0] = x


def _dec_layer_kernel(y_ref, mem_ref, sm_ref, cm_ref,
                      ln1g, ln1b, s_wqkv, s_bqkv, s_wo, s_bo,
                      ln3g, ln3b, c_wq, c_bq, c_wkv, c_bkv, c_wo, c_bo,
                      ln2g, ln2b, w1, b1, w2, b2,
                      o_ref, *, num_heads, scale):
    y = y_ref[0]                       # [Ly, D]
    mem = mem_ref[0]                   # [Lx, D]
    Ly, D = y.shape
    Lx = mem.shape[0]
    self_mask = sm_ref[0]              # [Ly, Ly]
    cross_mask = cm_ref[0]             # [1, Lx]

    # --- masked self attention ---
    yn = _ln(y, ln1g[0], ln1b[0])
    qkv = _mm(yn, s_wqkv[...], s_bqkv[0])
    q = _split_heads(qkv[:, :D], num_heads)
    k = _split_heads(qkv[:, D:2 * D], num_heads)
    v = _split_heads(qkv[:, 2 * D:], num_heads)
    attn = _attend(q, k, v, self_mask, scale)
    y = y + _mm(attn, s_wo[...], s_bo[0])

    # --- cross attention over encoder memory ---
    yn = _ln(y, ln3g[0], ln3b[0])
    q = _split_heads(_mm(yn, c_wq[...], c_bq[0]), num_heads)
    kv = _mm(mem, c_wkv[...], c_bkv[0])                    # [Lx, 2D] fused K/V
    k = _split_heads(kv[:, :D], num_heads)
    v = _split_heads(kv[:, D:], num_heads)
    attn = _attend(q, k, v, cross_mask, scale)
    y = y + _mm(attn, c_wo[...], c_bo[0])

    # --- feed forward block ---
    yn = _ln(y, ln2g[0], ln2b[0])
    h = jnp.maximum(_mm(yn, w1[...], b1[0]), 0.0)
    y = y + _mm(h, w2[...], b2[0])

    o_ref[0] = y


def _out_head_kernel(h_ref, lab_ref, lng, lnb, w_ref, b_ref,
                     pred_ref, nll_ref):
    h = h_ref[0]                       # [Ly, D]
    hn = _ln(h, lng[0], lnb[0])        # final decoder LN fused here
    logits = _mm(hn, w_ref[...], b_ref[0])                 # [Ly, V]
    z = logits - jnp.max(logits, axis=-1, keepdims=True)
    e = jnp.exp(z)
    ssum = jnp.sum(e, axis=-1, keepdims=True)
    pred_ref[0] = e / ssum                                 # softmax distribution

    # fused log-softmax + label gather (no HBM one-hot)
    logp = z - jnp.log(ssum)                               # [Ly, V]
    lab = lab_ref[0]                                       # [Ly, 1] int32
    iota = jax.lax.broadcasted_iota(jnp.int32, logits.shape, 1)
    picked = jnp.sum(jnp.where(iota == lab, logp, 0.0), axis=-1, keepdims=True)
    nll_ref[0] = -picked                                   # [Ly, 1] per-token NLL


# ----------------------------- kernel wrappers -------------------------------

def _wspec(a):
    return pl.BlockSpec(a.shape, lambda b: (0, 0))


_PARALLEL = pltpu.CompilerParams(dimension_semantics=("parallel",))


def encoder_layer(x, key_mask, p, lnf_g, lnf_b, *, num_heads, final_ln):
    B, L, D = x.shape
    scale = 1.0 / math.sqrt(D // num_heads)
    row = lambda a: a.reshape(1, -1)
    sa = p['self_attn']
    weights = [row(p['ln1_g']), row(p['ln1_b']),
               sa['wqkv'], row(sa['bqkv']), sa['wo'], row(sa['bo']),
               row(p['ln2_g']), row(p['ln2_b']),
               p['ff_w1'], row(p['ff_b1']), p['ff_w2'], row(p['ff_b2']),
               row(lnf_g), row(lnf_b)]
    kern = functools.partial(_enc_layer_kernel, num_heads=num_heads,
                             scale=scale, apply_final_ln=final_ln)
    in_specs = [pl.BlockSpec((1, L, D), lambda b: (b, 0, 0)),
                pl.BlockSpec((1, 1, L), lambda b: (b, 0, 0))] + \
               [_wspec(w) for w in weights]
    return pl.pallas_call(
        kern,
        out_shape=jax.ShapeDtypeStruct((B, L, D), jnp.float32),
        grid=(B,),
        in_specs=in_specs,
        out_specs=pl.BlockSpec((1, L, D), lambda b: (b, 0, 0)),
        compiler_params=_PARALLEL,
    )(x, key_mask, *weights)


def decoder_layer(y, mem, self_mask, cross_mask, p, *, num_heads):
    B, Ly, D = y.shape
    Lx = mem.shape[1]
    scale = 1.0 / math.sqrt(D // num_heads)
    row = lambda a: a.reshape(1, -1)
    sa, ca = p['self_attn'], p['cross_attn']
    weights = [row(p['ln1_g']), row(p['ln1_b']),
               sa['wqkv'], row(sa['bqkv']), sa['wo'], row(sa['bo']),
               row(p['ln3_g']), row(p['ln3_b']),
               ca['wq'], row(ca['bq']), ca['wkv'], row(ca['bkv']),
               ca['wo'], row(ca['bo']),
               row(p['ln2_g']), row(p['ln2_b']),
               p['ff_w1'], row(p['ff_b1']), p['ff_w2'], row(p['ff_b2'])]
    kern = functools.partial(_dec_layer_kernel, num_heads=num_heads, scale=scale)
    in_specs = [pl.BlockSpec((1, Ly, D), lambda b: (b, 0, 0)),
                pl.BlockSpec((1, Lx, D), lambda b: (b, 0, 0)),
                pl.BlockSpec((1, Ly, Ly), lambda b: (b, 0, 0)),
                pl.BlockSpec((1, 1, Lx), lambda b: (b, 0, 0))] + \
               [_wspec(w) for w in weights]
    return pl.pallas_call(
        kern,
        out_shape=jax.ShapeDtypeStruct((B, Ly, D), jnp.float32),
        grid=(B,),
        in_specs=in_specs,
        out_specs=pl.BlockSpec((1, Ly, D), lambda b: (b, 0, 0)),
        compiler_params=_PARALLEL,
    )(y, mem, self_mask, cross_mask, *weights)


def decode_head(h, y_tgt, lnf_g, lnf_b, out_w, out_b):
    B, Ly, D = h.shape
    V = out_w.shape[1]
    lab = y_tgt.reshape(B, Ly, 1).astype(jnp.int32)
    pred, tok_nll = pl.pallas_call(
        _out_head_kernel,
        out_shape=(jax.ShapeDtypeStruct((B, Ly, V), jnp.float32),
                   jax.ShapeDtypeStruct((B, Ly, 1), jnp.float32)),
        grid=(B,),
        in_specs=[pl.BlockSpec((1, Ly, D), lambda b: (b, 0, 0)),
                  pl.BlockSpec((1, Ly, 1), lambda b: (b, 0, 0)),
                  _wspec(lnf_g.reshape(1, D)), _wspec(lnf_b.reshape(1, D)),
                  _wspec(out_w), _wspec(out_b.reshape(1, V))],
        out_specs=(pl.BlockSpec((1, Ly, V), lambda b: (b, 0, 0)),
                   pl.BlockSpec((1, Ly, 1), lambda b: (b, 0, 0))),
        compiler_params=_PARALLEL,
    )(h, lab, lnf_g.reshape(1, D), lnf_b.reshape(1, D), out_w, out_b.reshape(1, V))
    return pred, tok_nll.reshape(B, Ly)


# ----------------------------- model (JAX glue) ------------------------------

def embed(params, tok, pos_w, pos_s, d_model):
    e = params['word_emb'][tok] * math.sqrt(d_model)
    return e + params['pos_emb_w'][pos_w] + params['pos_emb_s'][pos_s]


def nll_from_tokens(tok_nll, mask_y, avg=True):
    B, Ly = tok_nll.shape
    m = mask_y.reshape(B, Ly).astype(jnp.float32)
    num = jnp.sum(tok_nll * m, axis=1)
    if avg:
        per_b = num / jnp.maximum(jnp.sum(m, axis=1), 1.0)
    else:
        per_b = num
    return jnp.mean(per_b)


def model_forward(params, x, px, pxs, mask_x, y, py, pys, mask_y_tri,
                  y_tgt, mask_y, x_ext, y_ext, max_ext_len,
                  *, num_heads, copy=False, avg_nll=True):
    B = x.shape[0]
    D = params['word_emb'].shape[1]

    # -------- encoder --------
    hx = embed(params, x, px, pxs, D)
    key_mask_x = mask_x.reshape(B, 1, -1).astype(jnp.float32)     # hoisted, reused
    n_enc = len(params['enc_layers'])
    for i, lp in enumerate(params['enc_layers']):
        hx = encoder_layer(hx, key_mask_x, lp,
                           params['enc_ln_g'], params['enc_ln_b'],
                           num_heads=num_heads, final_ln=(i == n_enc - 1))
    mem = hx

    # -------- decoder --------
    hy = embed(params, y, py, pys, D)
    self_mask = mask_y_tri.astype(jnp.float32)                    # [B, Ly, Ly]
    for lp in params['dec_layers']:
        hy = decoder_layer(hy, mem, self_mask, key_mask_x, lp, num_heads=num_heads)

    # TODO(synk): copy/pointer-generator and coverage paths not implemented (copy=False).
    tgt = y_ext if copy else y_tgt
    pred, tok_nll = decode_head(hy, tgt, params['dec_ln_g'], params['dec_ln_b'],
                                params['out_w'], params['out_b'])
    nll = nll_from_tokens(tok_nll, mask_y, avg_nll)
    ppl = jnp.exp(nll)
    return pred, ppl, None


# ----------------------------- parameter init --------------------------------

class KeyGen:
    def __init__(self, seed):
        self.key = jax.random.PRNGKey(seed)

    def __call__(self):
        self.key, sub = jax.random.split(self.key)
        return sub


def xavier(kg, shape):
    fan_in, fan_out = shape[0], shape[-1]
    a = math.sqrt(6.0 / (fan_in + fan_out))
    return jax.random.uniform(kg(), shape, jnp.float32, -a, a)


def make_self_attn_params(kg, d):
    wq, wk, wv, wo = (xavier(kg, (d, d)) for _ in range(4))
    return dict(wqkv=jnp.concatenate([wq, wk, wv], axis=1),
                bqkv=jnp.zeros((3 * d,), jnp.float32),
                wo=wo, bo=jnp.zeros((d,), jnp.float32))


def make_cross_attn_params(kg, d):
    wq, wk, wv, wo = (xavier(kg, (d, d)) for _ in range(4))
    return dict(wq=wq, bq=jnp.zeros((d,), jnp.float32),
                wkv=jnp.concatenate([wk, wv], axis=1),
                bkv=jnp.zeros((2 * d,), jnp.float32),
                wo=wo, bo=jnp.zeros((d,), jnp.float32))


def make_enc_layer(kg, d, d_ff):
    return dict(
        self_attn=make_self_attn_params(kg, d),
        ln1_g=jnp.ones((d,), jnp.float32), ln1_b=jnp.zeros((d,), jnp.float32),
        ff_w1=xavier(kg, (d, d_ff)), ff_b1=jnp.zeros((d_ff,), jnp.float32),
        ff_w2=xavier(kg, (d_ff, d)), ff_b2=jnp.zeros((d,), jnp.float32),
        ln2_g=jnp.ones((d,), jnp.float32), ln2_b=jnp.zeros((d,), jnp.float32),
    )


def make_dec_layer(kg, d, d_ff):
    p = make_enc_layer(kg, d, d_ff)
    p['cross_attn'] = make_cross_attn_params(kg, d)
    p['ln3_g'] = jnp.ones((d,), jnp.float32)
    p['ln3_b'] = jnp.zeros((d,), jnp.float32)
    return p


def make_params(kg, consts):
    d, d_ff = consts['hidden_size'], consts['d_ff']
    V, P, nl = consts['dict_size'], consts['word_pos_size'], consts['num_layers']
    return dict(
        word_emb=xavier(kg, (V, d)),
        pos_emb_w=xavier(kg, (P, d)),
        pos_emb_s=xavier(kg, (P, d)),
        enc_layers=[make_enc_layer(kg, d, d_ff) for _ in range(nl)],
        enc_ln_g=jnp.ones((d,), jnp.float32), enc_ln_b=jnp.zeros((d,), jnp.float32),
        dec_layers=[make_dec_layer(kg, d, d_ff) for _ in range(nl)],
        dec_ln_g=jnp.ones((d,), jnp.float32), dec_ln_b=jnp.zeros((d,), jnp.float32),
        out_w=xavier(kg, (d, V)), out_b=jnp.zeros((V,), jnp.float32),
    )


# ----------------------------------- main ------------------------------------

if __name__ == "__main__":
    consts = dict(dim_x=32, dim_y=32, len_x=16, len_y=8, hidden_size=32,
                  d_ff=64, num_heads=4, dropout=0.0, num_layers=2,
                  dict_size=64, pad_token_idx=0, word_pos_size=32)
    options = dict(is_predicting=False, beam_decoding=False, device=None,
                   copy=False, coverage=False, avg_nll=True)

    kg = KeyGen(0)
    params = make_params(kg, consts)

    B, Lx, Ly, V = 2, consts['len_x'], consts['len_y'], consts['dict_size']
    key = jax.random.PRNGKey(0)
    k1, k2, k3 = jax.random.split(key, 3)

    x = jax.random.randint(k1, (B, Lx), 1, V)
    y = jax.random.randint(k2, (B, Ly), 1, V)
    y_tgt = jax.random.randint(k3, (B, Ly), 1, V)
    px = jnp.broadcast_to(jnp.arange(Lx), (B, Lx))
    pxs = px // 4                      # sentence-position ids (4 tokens / sentence)
    py = jnp.broadcast_to(jnp.arange(Ly), (B, Ly))
    pys = py // 4

    # masks: 1 = real token, 0 = pad; second batch row has some padded positions.
    mask_x = jnp.ones((B, 1, Lx), jnp.float32).at[1, 0, Lx - 4:].set(0.0)
    mask_y = jnp.ones((B, Ly), jnp.float32).at[1, Ly - 2:].set(0.0)
    tri = jnp.tril(jnp.ones((Ly, Ly), jnp.float32))
    mask_y_tri = tri[None] * mask_y[:, None, :]          # causal AND key-pad mask

    x_ext, y_ext, max_ext_len = x, y_tgt, 0

    fwd = jax.jit(functools.partial(model_forward,
                                    num_heads=consts['num_heads'],
                                    copy=options['copy'],
                                    avg_nll=options['avg_nll']))
    pred, ppl, _ = fwd(params, x, px, pxs, mask_x, y, py, pys, mask_y_tri,
                       y_tgt, mask_y, x_ext, y_ext, max_ext_len)
    jax.block_until_ready((pred, ppl))

    assert pred.shape == (B, Ly, V)
    assert bool(jnp.isfinite(ppl))
    assert bool(jnp.all(jnp.isfinite(pred)))
    print("KERNEL_OK")
</pallas_src>

<mosaic_0001>
module attributes {stable_mosaic.version = 11 : i64} {
  func.func @_enc_layer_kernel(%arg0: i32, %arg1: memref<1x16x32xf32, #tpu.memory_space<vmem>>, %arg2: memref<1x1x16xf32, #tpu.memory_space<vmem>>, %arg3: memref<1x32xf32, #tpu.memory_space<vmem>>, %arg4: memref<1x32xf32, #tpu.memory_space<vmem>>, %arg5: memref<32x96xf32, #tpu.memory_space<vmem>>, %arg6: memref<1x96xf32, #tpu.memory_space<vmem>>, %arg7: memref<32x32xf32, #tpu.memory_space<vmem>>, %arg8: memref<1x32xf32, #tpu.memory_space<vmem>>, %arg9: memref<1x32xf32, #tpu.memory_space<vmem>>, %arg10: memref<1x32xf32, #tpu.memory_space<vmem>>, %arg11: memref<32x64xf32, #tpu.memory_space<vmem>>, %arg12: memref<1x64xf32, #tpu.memory_space<vmem>>, %arg13: memref<64x32xf32, #tpu.memory_space<vmem>>, %arg14: memref<1x32xf32, #tpu.memory_space<vmem>>, %arg15: memref<1x32xf32, #tpu.memory_space<vmem>>, %arg16: memref<1x32xf32, #tpu.memory_space<vmem>>, %arg17: memref<1x16x32xf32, #tpu.memory_space<vmem>>) attributes {dimension_semantics = [#tpu.dimension_semantics<parallel>], iteration_bounds = array<i64: 2>, scalar_prefetch = 0 : i64, scratch_operands = 0 : i64, tpu.core_type = #tpu.core_type<tc>, window_params = [{transform_indices = @transform_0, window_bounds = array<i64: 1, 16, 32>}, {transform_indices = @transform_1, window_bounds = array<i64: 1, 1, 16>}, {pipeline_mode = #tpu.pipeline_mode<synchronous>, transform_indices = @transform_2, window_bounds = array<i64: 1, 32>}, {pipeline_mode = #tpu.pipeline_mode<synchronous>, transform_indices = @transform_3, window_bounds = array<i64: 1, 32>}, {pipeline_mode = #tpu.pipeline_mode<synchronous>, transform_indices = @transform_4, window_bounds = array<i64: 32, 96>}, {pipeline_mode = #tpu.pipeline_mode<synchronous>, transform_indices = @transform_5, window_bounds = array<i64: 1, 96>}, {pipeline_mode = #tpu.pipeline_mode<synchronous>, transform_indices = @transform_6, window_bounds = array<i64: 32, 32>}, {pipeline_mode = #tpu.pipeline_mode<synchronous>, transform_indices = @transform_7, window_bounds = array<i64: 1, 32>}, {pipeline_mode = #tpu.pipeline_mode<synchronous>, transform_indices = @transform_8, window_bounds = array<i64: 1, 32>}, {pipeline_mode = #tpu.pipeline_mode<synchronous>, transform_indices = @transform_9, window_bounds = array<i64: 1, 32>}, {pipeline_mode = #tpu.pipeline_mode<synchronous>, transform_indices = @transform_10, window_bounds = array<i64: 32, 64>}, {pipeline_mode = #tpu.pipeline_mode<synchronous>, transform_indices = @transform_11, window_bounds = array<i64: 1, 64>}, {pipeline_mode = #tpu.pipeline_mode<synchronous>, transform_indices = @transform_12, window_bounds = array<i64: 64, 32>}, {pipeline_mode = #tpu.pipeline_mode<synchronous>, transform_indices = @transform_13, window_bounds = array<i64: 1, 32>}, {pipeline_mode = #tpu.pipeline_mode<synchronous>, transform_indices = @transform_14, window_bounds = array<i64: 1, 32>}, {pipeline_mode = #tpu.pipeline_mode<synchronous>, transform_indices = @transform_15, window_bounds = array<i64: 1, 32>}, {transform_indices = @transform_16, window_bounds = array<i64: 1, 16, 32>}]} {
    %c0 = arith.constant 0 : index
    %c0_0 = arith.constant 0 : index
    %c0_1 = arith.constant 0 : index
    %0 = vector.load %arg1[%c0, %c0_0, %c0_1] : memref<1x16x32xf32, #tpu.memory_space<vmem>>, vector<1x16x32xf32>
    %1 = vector.shape_cast %0 : vector<1x16x32xf32> to vector<16x32xf32>
    %c0_2 = arith.constant 0 : index
    %c0_3 = arith.constant 0 : index
    %c0_4 = arith.constant 0 : index
    %2 = vector.load %arg2[%c0_2, %c0_3, %c0_4] : memref<1x1x16xf32, #tpu.memory_space<vmem>>, vector<1x1x16xf32>
    %3 = vector.shape_cast %2 : vector<1x1x16xf32> to vector<1x16xf32>
    %c0_5 = arith.constant 0 : index
    %c0_6 = arith.constant 0 : index
    %4 = vector.load %arg3[%c0_5, %c0_6] : memref<1x32xf32, #tpu.memory_space<vmem>>, vector<1x32xf32>
    %5 = vector.shape_cast %4 : vector<1x32xf32> to vector<32xf32>
    %c0_7 = arith.constant 0 : index
    %c0_8 = arith.constant 0 : index
    %6 = vector.load %arg4[%c0_7, %c0_8] : memref<1x32xf32, #tpu.memory_space<vmem>>, vector<1x32xf32>
    %7 = vector.shape_cast %6 : vector<1x32xf32> to vector<32xf32>
    %cst = arith.constant dense<0.000000e+00> : vector<16xf32>
    %8 = vector.multi_reduction <add>, %1, %cst [1] : vector<16x32xf32> to vector<16xf32>
    %9 = vector.shape_cast %8 : vector<16xf32> to vector<16x1xf32>
    %cst_9 = arith.constant 3.200000e+01 : f32
    %10 = vector.broadcast %cst_9 : f32 to vector<16x1xf32>
    %11 = arith.divf %9, %10 : vector<16x1xf32>
    %12 = vector.broadcast %11 : vector<16x1xf32> to vector<16x32xf32>
    %13 = arith.subf %1, %12 : vector<16x32xf32>
    %14 = arith.mulf %13, %13 : vector<16x32xf32>
    %cst_10 = arith.constant dense<0.000000e+00> : vector<16xf32>
    %15 = vector.multi_reduction <add>, %14, %cst_10 [1] : vector<16x32xf32> to vector<16xf32>
    %16 = vector.shape_cast %15 : vector<16xf32> to vector<16x1xf32>
    %cst_11 = arith.constant 3.200000e+01 : f32
    %17 = vector.broadcast %cst_11 : f32 to vector<16x1xf32>
    %18 = arith.divf %16, %17 : vector<16x1xf32>
    %19 = vector.broadcast %11 : vector<16x1xf32> to vector<16x32xf32>
    %20 = arith.subf %1, %19 : vector<16x32xf32>
    %cst_12 = arith.constant 9.99999974E-6 : f32
    %21 = vector.broadcast %cst_12 : f32 to vector<16x1xf32>
    %22 = arith.addf %18, %21 : vector<16x1xf32>
    %23 = math.rsqrt %22 : vector<16x1xf32>
    %24 = vector.broadcast %23 : vector<16x1xf32> to vector<16x32xf32>
    %25 = arith.mulf %20, %24 : vector<16x32xf32>
    %26 = vector.shape_cast %5 : vector<32xf32> to vector<1x32xf32>
    %27 = vector.broadcast %26 : vector<1x32xf32> to vector<16x32xf32>
    %28 = arith.mulf %25, %27 : vector<16x32xf32>
    %29 = vector.shape_cast %7 : vector<32xf32> to vector<1x32xf32>
    %30 = vector.broadcast %29 : vector<1x32xf32> to vector<16x32xf32>
    %31 = arith.addf %28, %30 : vector<16x32xf32>
    %c0_13 = arith.constant 0 : index
    %c0_14 = arith.constant 0 : index
    %32 = vector.load %arg5[%c0_13, %c0_14] : memref<32x96xf32, #tpu.memory_space<vmem>>, vector<32x96xf32>
    %c0_15 = arith.constant 0 : index
    %c0_16 = arith.constant 0 : index
    %33 = vector.load %arg6[%c0_15, %c0_16] : memref<1x96xf32, #tpu.memory_space<vmem>>, vector<1x96xf32>
    %34 = vector.shape_cast %33 : vector<1x96xf32> to vector<96xf32>
    %35 = arith.truncf %31 : vector<16x32xf32> to vector<16x32xbf16>
    %36 = arith.truncf %32 : vector<32x96xf32> to vector<32x96xbf16>
    %cst_17 = arith.constant dense<0.000000e+00> : vector<16x96xf32>
    %37 = tpu.matmul %35, %36, %cst_17 {dimension_numbers = #tpu.dot_dimension_numbers<[1], [0], [0], [1], [0, 0, 1, 1], [], []>} : vector<16x32xbf16>, vector<32x96xbf16>, vector<16x96xf32> -> vector<16x96xf32>
    %38 = vector.shape_cast %34 : vector<96xf32> to vector<1x96xf32>
    %39 = vector.broadcast %38 : vector<1x96xf32> to vector<16x96xf32>
    %40 = arith.addf %37, %39 : vector<16x96xf32>
    %41 = vector.extract_strided_slice %40 {offsets = [0, 0], sizes = [16, 32], strides = [1, 1]} : vector<16x96xf32> to vector<16x32xf32>
    %42 = vector.shape_cast %41 : vector<16x32xf32> to vector<16x4x8xf32>
    %43 = tpu.transpose %42, [1, 0, 2] : vector<16x4x8xf32> -> vector<4x16x8xf32>
    %44 = vector.extract_strided_slice %40 {offsets = [0, 32], sizes = [16, 32], strides = [1, 1]} : vector<16x96xf32> to vector<16x32xf32>
    %45 = vector.shape_cast %44 : vector<16x32xf32> to vector<16x4x8xf32>
    %46 = tpu.transpose %45, [1, 0, 2] : vector<16x4x8xf32> -> vector<4x16x8xf32>
    %47 = vector.extract_strided_slice %40 {offsets = [0, 64], sizes = [16, 32], strides = [1, 1]} : vector<16x96xf32> to vector<16x32xf32>
    %48 = vector.shape_cast %47 : vector<16x32xf32> to vector<16x4x8xf32>
    %49 = tpu.transpose %48, [1, 0, 2] : vector<16x4x8xf32> -> vector<4x16x8xf32>
    %50 = arith.truncf %43 : vector<4x16x8xf32> to vector<4x16x8xbf16>
    %51 = arith.truncf %46 : vector<4x16x8xf32> to vector<4x16x8xbf16>
    "tpu.trace_start"() <{level = 10 : i32, message = "hqd,hkd->hqk"}> : () -> ()
    %cst_18 = arith.constant dense<0.000000e+00> : vector<4x16x16xf32>
    %52 = tpu.matmul %50, %51, %cst_18 {dimension_numbers = #tpu.dot_dimension_numbers<[2], [2], [1], [1], [0, 0, 0, 1, 1, 1], [0], [0]>} : vector<4x16x8xbf16>, vector<4x16x8xbf16>, vector<4x16x16xf32> -> vector<4x16x16xf32>
    "tpu.trace_stop"() : () -> ()
    %cst_19 = arith.constant 0.353553385 : f32
    %53 = vector.broadcast %cst_19 : f32 to vector<4x16x16xf32>
    %54 = arith.mulf %52, %53 : vector<4x16x16xf32>
    %55 = vector.shape_cast %3 : vector<1x16xf32> to vector<1x1x16xf32>
    %cst_20 = arith.constant 0.000000e+00 : f32
    %56 = vector.broadcast %cst_20 : f32 to vector<1x1x16xf32>
    %57 = arith.cmpf ogt, %55, %56 : vector<1x1x16xf32>
    %cst_21 = arith.constant -1.000000e+09 : f32
    %58 = vector.shape_cast %57 : vector<1x1x16xi1> to vector<1x1x16xi1>
    %59 = vector.broadcast %58 : vector<1x1x16xi1> to vector<4x16x16xi1>
    %60 = vector.broadcast %cst_21 : f32 to vector<4x16x16xf32>
    %61 = arith.select %59, %54, %60 : vector<4x16x16xi1>, vector<4x16x16xf32>
    %cst_22 = arith.constant dense<0xFF800000> : vector<4x16xf32>
    %62 = vector.multi_reduction <maximumf>, %61, %cst_22 [2] : vector<4x16x16xf32> to vector<4x16xf32>
    %63 = vector.shape_cast %62 : vector<4x16xf32> to vector<4x16x1xf32>
    %64 = vector.broadcast %63 : vector<4x16x1xf32> to vector<4x16x16xf32>
    %65 = arith.subf %61, %64 : vector<4x16x16xf32>
    %66 = math.exp %65 : vector<4x16x16xf32>
    %cst_23 = arith.constant dense<0.000000e+00> : vector<4x16xf32>
    %67 = vector.multi_reduction <add>, %66, %cst_23 [2] : vector<4x16x16xf32> to vector<4x16xf32>
    %68 = vector.shape_cast %67 : vector<4x16xf32> to vector<4x16x1xf32>
    %69 = tpu.reciprocal %68 {approx = true} : vector<4x16x1xf32> -> vector<4x16x1xf32>
    %70 = vector.broadcast %69 : vector<4x16x1xf32> to vector<4x16x16xf32>
    %71 = arith.mulf %66, %70 : vector<4x16x16xf32>
    %72 = arith.truncf %71 : vector<4x16x16xf32> to vector<4x16x16xbf16>
    %73 = arith.truncf %49 : vector<4x16x8xf32> to vector<4x16x8xbf16>
    "tpu.trace_start"() <{level = 10 : i32, message = "hqk,hkd->hqd"}> : () -> ()
    %cst_24 = arith.constant dense<0.000000e+00> : vector<4x16x8xf32>
    %74 = tpu.matmul %72, %73, %cst_24 {dimension_numbers = #tpu.dot_dimension_numbers<[2], [1], [1], [2], [0, 0, 0, 1, 1, 2], [0], [0]>} : vector<4x16x16xbf16>, vector<4x16x8xbf16>, vector<4x16x8xf32> -> vector<4x16x8xf32>
    "tpu.trace_stop"() : () -> ()
    %75 = tpu.transpose %74, [1, 0, 2] : vector<4x16x8xf32> -> vector<16x4x8xf32>
    %76 = vector.shape_cast %75 : vector<16x4x8xf32> to vector<16x32xf32>
    %c0_25 = arith.constant 0 : index
    %c0_26 = arith.constant 0 : index
    %77 = vector.load %arg7[%c0_25, %c0_26] : memref<32x32xf32, #tpu.memory_space<vmem>>, vector<32x32xf32>
    %c0_27 = arith.constant 0 : index
    %c0_28 = arith.constant 0 : index
    %78 = vector.load %arg8[%c0_27, %c0_28] : memref<1x32xf32, #tpu.memory_space<vmem>>, vector<1x32xf32>
    %79 = vector.shape_cast %78 : vector<1x32xf32> to vector<32xf32>
    %80 = arith.truncf %76 : vector<16x32xf32> to vector<16x32xbf16>
    %81 = arith.truncf %77 : vector<32x32xf32> to vector<32x32xbf16>
    %cst_29 = arith.constant dense<0.000000e+00> : vector<16x32xf32>
    %82 = tpu.matmul %80, %81, %cst_29 {dimension_numbers = #tpu.dot_dimension_numbers<[1], [0], [0], [1], [0, 0, 1, 1], [], []>} : vector<16x32xbf16>, vector<32x32xbf16>, vector<16x32xf32> -> vector<16x32xf32>
    %83 = vector.shape_cast %79 : vector<32xf32> to vector<1x32xf32>
    %84 = vector.broadcast %83 : vector<1x32xf32> to vector<16x32xf32>
    %85 = arith.addf %82, %84 : vector<16x32xf32>
    %86 = arith.addf %1, %85 : vector<16x32xf32>
    %c0_30 = arith.constant 0 : index
    %c0_31 = arith.constant 0 : index
    %87 = vector.load %arg9[%c0_30, %c0_31] : memref<1x32xf32, #tpu.memory_space<vmem>>, vector<1x32xf32>
    %88 = vector.shape_cast %87 : vector<1x32xf32> to vector<32xf32>
    %c0_32 = arith.constant 0 : index
    %c0_33 = arith.constant 0 : index
    %89 = vector.load %arg10[%c0_32, %c0_33] : memref<1x32xf32, #tpu.memory_space<vmem>>, vector<1x32xf32>
    %90 = vector.shape_cast %89 : vector<1x32xf32> to vector<32xf32>
    %cst_34 = arith.constant dense<0.000000e+00> : vector<16xf32>
    %91 = vector.multi_reduction <add>, %86, %cst_34 [1] : vector<16x32xf32> to vector<16xf32>
    %92 = vector.shape_cast %91 : vector<16xf32> to vector<16x1xf32>
    %cst_35 = arith.constant 3.200000e+01 : f32
    %93 = vector.broadcast %cst_35 : f32 to vector<16x1xf32>
    %94 = arith.divf %92, %93 : vector<16x1xf32>
    %95 = vector.broadcast %94 : vector<16x1xf32> to vector<16x32xf32>
    %96 = arith.subf %86, %95 : vector<16x32xf32>
    %97 = arith.mulf %96, %96 : vector<16x32xf32>
    %cst_36 = arith.constant dense<0.000000e+00> : vector<16xf32>
    %98 = vector.multi_reduction <add>, %97, %cst_36 [1] : vector<16x32xf32> to vector<16xf32>
    %99 = vector.shape_cast %98 : vector<16xf32> to vector<16x1xf32>
    %cst_37 = arith.constant 3.200000e+01 : f32
    %100 = vector.broadcast %cst_37 : f32 to vector<16x1xf32>
    %101 = arith.divf %99, %100 : vector<16x1xf32>
    %102 = vector.broadcast %94 : vector<16x1xf32> to vector<16x32xf32>
    %103 = arith.subf %86, %102 : vector<16x32xf32>
    %cst_38 = arith.constant 9.99999974E-6 : f32
    %104 = vector.broadcast %cst_38 : f32 to vector<16x1xf32>
    %105 = arith.addf %101, %104 : vector<16x1xf32>
    %106 = math.rsqrt %105 : vector<16x1xf32>
    %107 = vector.broadcast %106 : vector<16x1xf32> to vector<16x32xf32>
    %108 = arith.mulf %103, %107 : vector<16x32xf32>
    %109 = vector.shape_cast %88 : vector<32xf32> to vector<1x32xf32>
    %110 = vector.broadcast %109 : vector<1x32xf32> to vector<16x32xf32>
    %111 = arith.mulf %108, %110 : vector<16x32xf32>
    %112 = vector.shape_cast %90 : vector<32xf32> to vector<1x32xf32>
    %113 = vector.broadcast %112 : vector<1x32xf32> to vector<16x32xf32>
    %114 = arith.addf %111, %113 : vector<16x32xf32>
    %c0_39 = arith.constant 0 : index
    %c0_40 = arith.constant 0 : index
    %115 = vector.load %arg11[%c0_39, %c0_40] : memref<32x64xf32, #tpu.memory_space<vmem>>, vector<32x64xf32>
    %c0_41 = arith.constant 0 : index
    %c0_42 = arith.constant 0 : index
    %116 = vector.load %arg12[%c0_41, %c0_42] : memref<1x64xf32, #tpu.memory_space<vmem>>, vector<1x64xf32>
    %117 = vector.shape_cast %116 : vector<1x64xf32> to vector<64xf32>
    %118 = arith.truncf %114 : vector<16x32xf32> to vector<16x32xbf16>
    %119 = arith.truncf %115 : vector<32x64xf32> to vector<32x64xbf16>
    %cst_43 = arith.constant dense<0.000000e+00> : vector<16x64xf32>
    %120 = tpu.matmul %118, %119, %cst_43 {dimension_numbers = #tpu.dot_dimension_numbers<[1], [0], [0], [1], [0, 0, 1, 1], [], []>} : vector<16x32xbf16>, vector<32x64xbf16>, vector<16x64xf32> -> vector<16x64xf32>
    %121 = vector.shape_cast %117 : vector<64xf32> to vector<1x64xf32>
    %122 = vector.broadcast %121 : vector<1x64xf32> to vector<16x64xf32>
    %123 = arith.addf %120, %122 : vector<16x64xf32>
    %cst_44 = arith.constant 0.000000e+00 : f32
    %124 = vector.broadcast %cst_44 : f32 to vector<16x64xf32>
    %125 = arith.maximumf %123, %124 : vector<16x64xf32>
    %c0_45 = arith.constant 0 : index
    %c0_46 = arith.constant 0 : index
    %126 = vector.load %arg13[%c0_45, %c0_46] : memref<64x32xf32, #tpu.memory_space<vmem>>, vector<64x32xf32>
    %c0_47 = arith.constant 0 : index
    %c0_48 = arith.constant 0 : index
    %127 = vector.load %arg14[%c0_47, %c0_48] : memref<1x32xf32, #tpu.memory_space<vmem>>, vector<1x32xf32>
    %128 = vector.shape_cast %127 : vector<1x32xf32> to vector<32xf32>
    %129 = arith.truncf %125 : vector<16x64xf32> to vector<16x64xbf16>
    %130 = arith.truncf %126 : vector<64x32xf32> to vector<64x32xbf16>
    %cst_49 = arith.constant dense<0.000000e+00> : vector<16x32xf32>
    %131 = tpu.matmul %129, %130, %cst_49 {dimension_numbers = #tpu.dot_dimension_numbers<[1], [0], [0], [1], [0, 0, 1, 1], [], []>} : vector<16x64xbf16>, vector<64x32xbf16>, vector<16x32xf32> -> vector<16x32xf32>
    %132 = vector.shape_cast %128 : vector<32xf32> to vector<1x32xf32>
    %133 = vector.broadcast %132 : vector<1x32xf32> to vector<16x32xf32>
    %134 = arith.addf %131, %133 : vector<16x32xf32>
    %135 = arith.addf %86, %134 : vector<16x32xf32>
    %c0_50 = arith.constant 0 : index
    %c0_51 = arith.constant 0 : index
    %c0_52 = arith.constant 0 : index
    %136 = vector.load %arg17[%c0_50, %c0_51, %c0_52] : memref<1x16x32xf32, #tpu.memory_space<vmem>>, vector<1x16x32xf32>
    %137 = vector.shape_cast %136 : vector<1x16x32xf32> to vector<16x32xf32>
    %138 = vector.shape_cast %135 : vector<16x32xf32> to vector<1x16x32xf32>
    tpu.vector_store %arg17[%c0_50, %c0_51, %c0_52], %138 {strides = array<i32>} : memref<1x16x32xf32, #tpu.memory_space<vmem>>, vector<1x16x32xf32>,
    return
  }
  func.func @transform_0(%arg0: i32) -> (i32, i32, i32) {
    %c0_i32 = arith.constant 0 : i32
    %c0_i32_0 = arith.constant 0 : i32
    %c0_i32_1 = arith.constant 0 : i32
    return %arg0, %c0_i32, %c0_i32_0 : i32, i32, i32
  }
  func.func @transform_1(%arg0: i32) -> (i32, i32, i32) {
    %c0_i32 = arith.constant 0 : i32
    %c0_i32_0 = arith.constant 0 : i32
    %c0_i32_1 = arith.constant 0 : i32
    return %arg0, %c0_i32, %c0_i32_0 : i32, i32, i32
  }
  func.func @transform_2(%arg0: i32) -> (i32, i32) {
    %c0_i32 = arith.constant 0 : i32
    %c0_i32_0 = arith.constant 0 : i32
    %c0_i32_1 = arith.constant 0 : i32
    return %c0_i32, %c0_i32_0 : i32, i32
  }
  func.func @transform_3(%arg0: i32) -> (i32, i32) {
    %c0_i32 = arith.constant 0 : i32
    %c0_i32_0 = arith.constant 0 : i32
    %c0_i32_1 = arith.constant 0 : i32
    return %c0_i32, %c0_i32_0 : i32, i32
  }
  func.func @transform_4(%arg0: i32) -> (i32, i32) {
    %c0_i32 = arith.constant 0 : i32
    %c0_i32_0 = arith.constant 0 : i32
    %c0_i32_1 = arith.constant 0 : i32
    return %c0_i32, %c0_i32_0 : i32, i32
  }
  func.func @transform_5(%arg0: i32) -> (i32, i32) {
    %c0_i32 = arith.constant 0 : i32
    %c0_i32_0 = arith.constant 0 : i32
    %c0_i32_1 = arith.constant 0 : i32
    return %c0_i32, %c0_i32_0 : i32, i32
  }
  func.func @transform_6(%arg0: i32) -> (i32, i32) {
    %c0_i32 = arith.constant 0 : i32
    %c0_i32_0 = arith.constant 0 : i32
    %c0_i32_1 = arith.constant 0 : i32
    return %c0_i32, %c0_i32_0 : i32, i32
  }
  func.func @transform_7(%arg0: i32) -> (i32, i32) {
    %c0_i32 = arith.constant 0 : i32
    %c0_i32_0 = arith.constant 0 : i32
    %c0_i32_1 = arith.constant 0 : i32
    return %c0_i32, %c0_i32_0 : i32, i32
  }
  func.func @transform_8(%arg0: i32) -> (i32, i32) {
    %c0_i32 = arith.constant 0 : i32
    %c0_i32_0 = arith.constant 0 : i32
    %c0_i32_1 = arith.constant 0 : i32
    return %c0_i32, %c0_i32_0 : i32, i32
  }
  func.func @transform_9(%arg0: i32) -> (i32, i32) {
    %c0_i32 = arith.constant 0 : i32
    %c0_i32_0 = arith.constant 0 : i32
    %c0_i32_1 = arith.constant 0 : i32
    return %c0_i32, %c0_i32_0 : i32, i32
  }
  func.func @transform_10(%arg0: i32) -> (i32, i32) {
    %c0_i32 = arith.constant 0 : i32
    %c0_i32_0 = arith.constant 0 : i32
    %c0_i32_1 = arith.constant 0 : i32
    return %c0_i32, %c0_i32_0 : i32, i32
  }
  func.func @transform_11(%arg0: i32) -> (i32, i32) {
    %c0_i32 = arith.constant 0 : i32
    %c0_i32_0 = arith.constant 0 : i32
    %c0_i32_1 = arith.constant 0 : i32
    return %c0_i32, %c0_i32_0 : i32, i32
  }
  func.func @transform_12(%arg0: i32) -> (i32, i32) {
    %c0_i32 = arith.constant 0 : i32
    %c0_i32_0 = arith.constant 0 : i32
    %c0_i32_1 = arith.constant 0 : i32
    return %c0_i32, %c0_i32_0 : i32, i32
  }
  func.func @transform_13(%arg0: i32) -> (i32, i32) {
    %c0_i32 = arith.constant 0 : i32
    %c0_i32_0 = arith.constant 0 : i32
    %c0_i32_1 = arith.constant 0 : i32
    return %c0_i32, %c0_i32_0 : i32, i32
  }
  func.func @transform_14(%arg0: i32) -> (i32, i32) {
    %c0_i32 = arith.constant 0 : i32
    %c0_i32_0 = arith.constant 0 : i32
    %c0_i32_1 = arith.constant 0 : i32
    return %c0_i32, %c0_i32_0 : i32, i32
  }
  func.func @transform_15(%arg0: i32) -> (i32, i32) {
    %c0_i32 = arith.constant 0 : i32
    %c0_i32_0 = arith.constant 0 : i32
    %c0_i32_1 = arith.constant 0 : i32
    return %c0_i32, %c0_i32_0 : i32, i32
  }
  func.func @transform_16(%arg0: i32) -> (i32, i32, i32) {
    %c0_i32 = arith.constant 0 : i32
    %c0_i32_0 = arith.constant 0 : i32
    %c0_i32_1 = arith.constant 0 : i32
    return %arg0, %c0_i32, %c0_i32_0 : i32, i32, i32
  }
}

module attributes {stable_mosaic.version = 11 : i64} {
  func.func @_dec_layer_kernel(%arg0: i32, %arg1: memref<1x8x32xf32, #tpu.memory_space<vmem>>, %arg2: memref<1x16x32xf32, #tpu.memory_space<vmem>>, %arg3: memref<1x8x8xf32, #tpu.memory_space<vmem>>, %arg4: memref<1x1x16xf32, #tpu.memory_space<vmem>>, %arg5: memref<1x32xf32, #tpu.memory_space<vmem>>, %arg6: memref<1x32xf32, #tpu.memory_space<vmem>>, %arg7: memref<32x96xf32, #tpu.memory_space<vmem>>, %arg8: memref<1x96xf32, #tpu.memory_space<vmem>>, %arg9: memref<32x32xf32, #tpu.memory_space<vmem>>, %arg10: memref<1x32xf32, #tpu.memory_space<vmem>>, %arg11: memref<1x32xf32, #tpu.memory_space<vmem>>, %arg12: memref<1x32xf32, #tpu.memory_space<vmem>>, %arg13: memref<32x32xf32, #tpu.memory_space<vmem>>, %arg14: memref<1x32xf32, #tpu.memory_space<vmem>>, %arg15: memref<32x64xf32, #tpu.memory_space<vmem>>, %arg16: memref<1x64xf32, #tpu.memory_space<vmem>>, %arg17: memref<32x32xf32, #tpu.memory_space<vmem>>, %arg18: memref<1x32xf32, #tpu.memory_space<vmem>>, %arg19: memref<1x32xf32, #tpu.memory_space<vmem>>, %arg20: memref<1x32xf32, #tpu.memory_space<vmem>>, %arg21: memref<32x64xf32, #tpu.memory_space<vmem>>, %arg22: memref<1x64xf32, #tpu.memory_space<vmem>>, %arg23: memref<64x32xf32, #tpu.memory_space<vmem>>, %arg24: memref<1x32xf32, #tpu.memory_space<vmem>>, %arg25: memref<1x8x32xf32, #tpu.memory_space<vmem>>) attributes {dimension_semantics = [#tpu.dimension_semantics<parallel>], iteration_bounds = array<i64: 2>, scalar_prefetch = 0 : i64, scratch_operands = 0 : i64, tpu.core_type = #tpu.core_type<tc>, window_params = [{transform_indices = @transform_0, window_bounds = array<i64: 1, 8, 32>}, {transform_indices = @transform_1, window_bounds = array<i64: 1, 16, 32>}, {transform_indices = @transform_2, window_bounds = array<i64: 1, 8, 8>}, {transform_indices = @transform_3, window_bounds = array<i64: 1, 1, 16>}, {pipeline_mode = #tpu.pipeline_mode<synchronous>, transform_indices = @transform_4, window_bounds = array<i64: 1, 32>}, {pipeline_mode = #tpu.pipeline_mode<synchronous>, transform_indices = @transform_5, window_bounds = array<i64: 1, 32>}, {pipeline_mode = #tpu.pipeline_mode<synchronous>, transform_indices = @transform_6, window_bounds = array<i64: 32, 96>}, {pipeline_mode = #tpu.pipeline_mode<synchronous>, transform_indices = @transform_7, window_bounds = array<i64: 1, 96>}, {pipeline_mode = #tpu.pipeline_mode<synchronous>, transform_indices = @transform_8, window_bounds = array<i64: 32, 32>}, {pipeline_mode = #tpu.pipeline_mode<synchronous>, transform_indices = @transform_9, window_bounds = array<i64: 1, 32>}, {pipeline_mode = #tpu.pipeline_mode<synchronous>, transform_indices = @transform_10, window_bounds = array<i64: 1, 32>}, {pipeline_mode = #tpu.pipeline_mode<synchronous>, transform_indices = @transform_11, window_bounds = array<i64: 1, 32>}, {pipeline_mode = #tpu.pipeline_mode<synchronous>, transform_indices = @transform_12, window_bounds = array<i64: 32, 32>}, {pipeline_mode = #tpu.pipeline_mode<synchronous>, transform_indices = @transform_13, window_bounds = array<i64: 1, 32>}, {pipeline_mode = #tpu.pipeline_mode<synchronous>, transform_indices = @transform_14, window_bounds = array<i64: 32, 64>}, {pipeline_mode = #tpu.pipeline_mode<synchronous>, transform_indices = @transform_15, window_bounds = array<i64: 1, 64>}, {pipeline_mode = #tpu.pipeline_mode<synchronous>, transform_indices = @transform_16, window_bounds = array<i64: 32, 32>}, {pipeline_mode = #tpu.pipeline_mode<synchronous>, transform_indices = @transform_17, window_bounds = array<i64: 1, 32>}, {pipeline_mode = #tpu.pipeline_mode<synchronous>, transform_indices = @transform_18, window_bounds = array<i64: 1, 32>}, {pipeline_mode = #tpu.pipeline_mode<synchronous>, transform_indices = @transform_19, window_bounds = array<i64: 1, 32>}, {pipeline_mode = #tpu.pipeline_mode<synchronous>, transform_indices = @transform_20, window_bounds = array<i64: 32, 64>}, {pipeline_mode = #tpu.pipeline_mode<synchronous>, transform_indices = @transform_21, window_bounds = array<i64: 1, 64>}, {pipeline_mode = #tpu.pipeline_mode<synchronous>, transform_indices = @transform_22, window_bounds = array<i64: 64, 32>}, {pipeline_mode = #tpu.pipeline_mode<synchronous>, transform_indices = @transform_23, window_bounds = array<i64: 1, 32>}, {transform_indices = @transform_24, window_bounds = array<i64: 1, 8, 32>}]} {
    %c0 = arith.constant 0 : index
    %c0_0 = arith.constant 0 : index
    %c0_1 = arith.constant 0 : index
    %0 = vector.load %arg1[%c0, %c0_0, %c0_1] : memref<1x8x32xf32, #tpu.memory_space<vmem>>, vector<1x8x32xf32>
    %1 = vector.shape_cast %0 : vector<1x8x32xf32> to vector<8x32xf32>
    %c0_2 = arith.constant 0 : index
    %c0_3 = arith.constant 0 : index
    %c0_4 = arith.constant 0 : index
    %2 = vector.load %arg2[%c0_2, %c0_3, %c0_4] : memref<1x16x32xf32, #tpu.memory_space<vmem>>, vector<1x16x32xf32>
    %3 = vector.shape_cast %2 : vector<1x16x32xf32> to vector<16x32xf32>
    %c0_5 = arith.constant 0 : index
    %c0_6 = arith.constant 0 : index
    %c0_7 = arith.constant 0 : index
    %4 = vector.load %arg3[%c0_5, %c0_6, %c0_7] : memref<1x8x8xf32, #tpu.memory_space<vmem>>, vector<1x8x8xf32>
    %5 = vector.shape_cast %4 : vector<1x8x8xf32> to vector<8x8xf32>
    %c0_8 = arith.constant 0 : index
    %c0_9 = arith.constant 0 : index
    %c0_10 = arith.constant 0 : index
    %6 = vector.load %arg4[%c0_8, %c0_9, %c0_10] : memref<1x1x16xf32, #tpu.memory_space<vmem>>, vector<1x1x16xf32>
    %7 = vector.shape_cast %6 : vector<1x1x16xf32> to vector<1x16xf32>
    %c0_11 = arith.constant 0 : index
    %c0_12 = arith.constant 0 : index
    %8 = vector.load %arg5[%c0_11, %c0_12] : memref<1x32xf32, #tpu.memory_space<vmem>>, vector<1x32xf32>
    %9 = vector.shape_cast %8 : vector<1x32xf32> to vector<32xf32>
    %c0_13 = arith.constant 0 : index
    %c0_14 = arith.constant 0 : index
    %10 = vector.load %arg6[%c0_13, %c0_14] : memref<1x32xf32, #tpu.memory_space<vmem>>, vector<1x32xf32>
    %11 = vector.shape_cast %10 : vector<1x32xf32> to vector<32xf32>
    %cst = arith.constant dense<0.000000e+00> : vector<8xf32>
    %12 = vector.multi_reduction <add>, %1, %cst [1] : vector<8x32xf32> to vector<8xf32>
    %13 = vector.shape_cast %12 : vector<8xf32> to vector<8x1xf32>
    %cst_15 = arith.constant 3.200000e+01 : f32
    %14 = vector.broadcast %cst_15 : f32 to vector<8x1xf32>
    %15 = arith.divf %13, %14 : vector<8x1xf32>
    %16 = vector.broadcast %15 : vector<8x1xf32> to vector<8x32xf32>
    %17 = arith.subf %1, %16 : vector<8x32xf32>
    %18 = arith.mulf %17, %17 : vector<8x32xf32>
    %cst_16 = arith.constant dense<0.000000e+00> : vector<8xf32>
    %19 = vector.multi_reduction <add>, %18, %cst_16 [1] : vector<8x32xf32> to vector<8xf32>
    %20 = vector.shape_cast %19 : vector<8xf32> to vector<8x1xf32>
    %cst_17 = arith.constant 3.200000e+01 : f32
    %21 = vector.broadcast %cst_17 : f32 to vector<8x1xf32>
    %22 = arith.divf %20, %21 : vector<8x1xf32>
    %23 = vector.broadcast %15 : vector<8x1xf32> to vector<8x32xf32>
    %24 = arith.subf %1, %23 : vector<8x32xf32>
    %cst_18 = arith.constant 9.99999974E-6 : f32
    %25 = vector.broadcast %cst_18 : f32 to vector<8x1xf32>
    %26 = arith.addf %22, %25 : vector<8x1xf32>
    %27 = math.rsqrt %26 : vector<8x1xf32>
    %28 = vector.broadcast %27 : vector<8x1xf32> to vector<8x32xf32>
    %29 = arith.mulf %24, %28 : vector<8x32xf32>
    %30 = vector.shape_cast %9 : vector<32xf32> to vector<1x32xf32>
    %31 = vector.broadcast %30 : vector<1x32xf32> to vector<8x32xf32>
    %32 = arith.mulf %29, %31 : vector<8x32xf32>
    %33 = vector.shape_cast %11 : vector<32xf32> to vector<1x32xf32>
    %34 = vector.broadcast %33 : vector<1x32xf32> to vector<8x32xf32>
    %35 = arith.addf %32, %34 : vector<8x32xf32>
    %c0_19 = arith.constant 0 : index
    %c0_20 = arith.constant 0 : index
    %36 = vector.load %arg7[%c0_19, %c0_20] : memref<32x96xf32, #tpu.memory_space<vmem>>, vector<32x96xf32>
    %c0_21 = arith.constant 0 : index
    %c0_22 = arith.constant 0 : index
    %37 = vector.load %arg8[%c0_21, %c0_22] : memref<1x96xf32, #tpu.memory_space<vmem>>, vector<1x96xf32>
    %38 = vector.shape_cast %37 : vector<1x96xf32> to vector<96xf32>
    %39 = arith.truncf %35 : vector<8x32xf32> to vector<8x32xbf16>
    %40 = arith.truncf %36 : vector<32x96xf32> to vector<32x96xbf16>
    %cst_23 = arith.constant dense<0.000000e+00> : vector<8x96xf32>
    %41 = tpu.matmul %39, %40, %cst_23 {dimension_numbers = #tpu.dot_dimension_numbers<[1], [0], [0], [1], [0, 0, 1, 1], [], []>} : vector<8x32xbf16>, vector<32x96xbf16>, vector<8x96xf32> -> vector<8x96xf32>
    %42 = vector.shape_cast %38 : vector<96xf32> to vector<1x96xf32>
    %43 = vector.broadcast %42 : vector<1x96xf32> to vector<8x96xf32>
    %44 = arith.addf %41, %43 : vector<8x96xf32>
    %45 = vector.extract_strided_slice %44 {offsets = [0, 0], sizes = [8, 32], strides = [1, 1]} : vector<8x96xf32> to vector<8x32xf32>
    %46 = vector.shape_cast %45 : vector<8x32xf32> to vector<8x4x8xf32>
    %47 = tpu.transpose %46, [1, 0, 2] : vector<8x4x8xf32> -> vector<4x8x8xf32>
    %48 = vector.extract_strided_slice %44 {offsets = [0, 32], sizes = [8, 32], strides = [1, 1]} : vector<8x96xf32> to vector<8x32xf32>
    %49 = vector.shape_cast %48 : vector<8x32xf32> to vector<8x4x8xf32>
    %50 = tpu.transpose %49, [1, 0, 2] : vector<8x4x8xf32> -> vector<4x8x8xf32>
    %51 = vector.extract_strided_slice %44 {offsets = [0, 64], sizes = [8, 32], strides = [1, 1]} : vector<8x96xf32> to vector<8x32xf32>
    %52 = vector.shape_cast %51 : vector<8x32xf32> to vector<8x4x8xf32>
    %53 = tpu.transpose %52, [1, 0, 2] : vector<8x4x8xf32> -> vector<4x8x8xf32>
    %54 = arith.truncf %47 : vector<4x8x8xf32> to vector<4x8x8xbf16>
    %55 = arith.truncf %50 : vector<4x8x8xf32> to vector<4x8x8xbf16>
    "tpu.trace_start"() <{level = 10 : i32, message = "hqd,hkd->hqk"}> : () -> ()
    %cst_24 = arith.constant dense<0.000000e+00> : vector<4x8x8xf32>
    %56 = tpu.matmul %54, %55, %cst_24 {dimension_numbers = #tpu.dot_dimension_numbers<[2], [2], [1], [1], [0, 0, 0, 1, 1, 1], [0], [0]>} : vector<4x8x8xbf16>, vector<4x8x8xbf16>, vector<4x8x8xf32> -> vector<4x8x8xf32>
    "tpu.trace_stop"() : () -> ()
    %cst_25 = arith.constant 0.353553385 : f32
    %57 = vector.broadcast %cst_25 : f32 to vector<4x8x8xf32>
    %58 = arith.mulf %56, %57 : vector<4x8x8xf32>
    %59 = vector.shape_cast %5 : vector<8x8xf32> to vector<1x8x8xf32>
    %cst_26 = arith.constant 0.000000e+00 : f32
    %60 = vector.broadcast %cst_26 : f32 to vector<1x8x8xf32>
    %61 = arith.cmpf ogt, %59, %60 : vector<1x8x8xf32>
    %cst_27 = arith.constant -1.000000e+09 : f32
    %62 = vector.shape_cast %61 : vector<1x8x8xi1> to vector<1x8x8xi1>
    %63 = vector.broadcast %62 : vector<1x8x8xi1> to vector<4x8x8xi1>
    %64 = vector.broadcast %cst_27 : f32 to vector<4x8x8xf32>
    %65 = arith.select %63, %58, %64 : vector<4x8x8xi1>, vector<4x8x8xf32>
    %cst_28 = arith.constant dense<0xFF800000> : vector<4x8xf32>
    %66 = vector.multi_reduction <maximumf>, %65, %cst_28 [2] : vector<4x8x8xf32> to vector<4x8xf32>
    %67 = vector.shape_cast %66 : vector<4x8xf32> to vector<4x8x1xf32>
    %68 = vector.broadcast %67 : vector<4x8x1xf32> to vector<4x8x8xf32>
    %69 = arith.subf %65, %68 : vector<4x8x8xf32>
    %70 = math.exp %69 : vector<4x8x8xf32>
    %cst_29 = arith.constant dense<0.000000e+00> : vector<4x8xf32>
    %71 = vector.multi_reduction <add>, %70, %cst_29 [2] : vector<4x8x8xf32> to vector<4x8xf32>
    %72 = vector.shape_cast %71 : vector<4x8xf32> to vector<4x8x1xf32>
    %73 = tpu.reciprocal %72 {approx = true} : vector<4x8x1xf32> -> vector<4x8x1xf32>
    %74 = vector.broadcast %73 : vector<4x8x1xf32> to vector<4x8x8xf32>
    %75 = arith.mulf %70, %74 : vector<4x8x8xf32>
    %76 = arith.truncf %75 : vector<4x8x8xf32> to vector<4x8x8xbf16>
    %77 = arith.truncf %53 : vector<4x8x8xf32> to vector<4x8x8xbf16>
    "tpu.trace_start"() <{level = 10 : i32, message = "hqk,hkd->hqd"}> : () -> ()
    %cst_30 = arith.constant dense<0.000000e+00> : vector<4x8x8xf32>
    %78 = tpu.matmul %76, %77, %cst_30 {dimension_numbers = #tpu.dot_dimension_numbers<[2], [1], [1], [2], [0, 0, 0, 1, 1, 2], [0], [0]>} : vector<4x8x8xbf16>, vector<4x8x8xbf16>, vector<4x8x8xf32> -> vector<4x8x8xf32>
    "tpu.trace_stop"() : () -> ()
    %79 = tpu.transpose %78, [1, 0, 2] : vector<4x8x8xf32> -> vector<8x4x8xf32>
    %80 = vector.shape_cast %79 : vector<8x4x8xf32> to vector<8x32xf32>
    %c0_31 = arith.constant 0 : index
    %c0_32 = arith.constant 0 : index
    %81 = vector.load %arg9[%c0_31, %c0_32] : memref<32x32xf32, #tpu.memory_space<vmem>>, vector<32x32xf32>
    %c0_33 = arith.constant 0 : index
    %c0_34 = arith.constant 0 : index
    %82 = vector.load %arg10[%c0_33, %c0_34] : memref<1x32xf32, #tpu.memory_space<vmem>>, vector<1x32xf32>
    %83 = vector.shape_cast %82 : vector<1x32xf32> to vector<32xf32>
    %84 = arith.truncf %80 : vector<8x32xf32> to vector<8x32xbf16>
    %85 = arith.truncf %81 : vector<32x32xf32> to vector<32x32xbf16>
    %cst_35 = arith.constant dense<0.000000e+00> : vector<8x32xf32>
    %86 = tpu.matmul %84, %85, %cst_35 {dimension_numbers = #tpu.dot_dimension_numbers<[1], [0], [0], [1], [0, 0, 1, 1], [], []>} : vector<8x32xbf16>, vector<32x32xbf16>, vector<8x32xf32> -> vector<8x32xf32>
    %87 = vector.shape_cast %83 : vector<32xf32> to vector<1x32xf32>
    %88 = vector.broadcast %87 : vector<1x32xf32> to vector<8x32xf32>
    %89 = arith.addf %86, %88 : vector<8x32xf32>
    %90 = arith.addf %1, %89 : vector<8x32xf32>
    %c0_36 = arith.constant 0 : index
    %c0_37 = arith.constant 0 : index
    %91 = vector.load %arg11[%c0_36, %c0_37] : memref<1x32xf32, #tpu.memory_space<vmem>>, vector<1x32xf32>
    %92 = vector.shape_cast %91 : vector<1x32xf32> to vector<32xf32>
    %c0_38 = arith.constant 0 : index
    %c0_39 = arith.constant 0 : index
    %93 = vector.load %arg12[%c0_38, %c0_39] : memref<1x32xf32, #tpu.memory_space<vmem>>, vector<1x32xf32>
    %94 = vector.shape_cast %93 : vector<1x32xf32> to vector<32xf32>
    %cst_40 = arith.constant dense<0.000000e+00> : vector<8xf32>
    %95 = vector.multi_reduction <add>, %90, %cst_40 [1] : vector<8x32xf32> to vector<8xf32>
    %96 = vector.shape_cast %95 : vector<8xf32> to vector<8x1xf32>
    %cst_41 = arith.constant 3.200000e+01 : f32
    %97 = vector.broadcast %cst_41 : f32 to vector<8x1xf32>
    %98 = arith.divf %96, %97 : vector<8x1xf32>
    %99 = vector.broadcast %98 : vector<8x1xf32> to vector<8x32xf32>
    %100 = arith.subf %90, %99 : vector<8x32xf32>
    %101 = arith.mulf %100, %100 : vector<8x32xf32>
    %cst_42 = arith.constant dense<0.000000e+00> : vector<8xf32>
    %102 = vector.multi_reduction <add>, %101, %cst_42 [1] : vector<8x32xf32> to vector<8xf32>
    %103 = vector.shape_cast %102 : vector<8xf32> to vector<8x1xf32>
    %cst_43 = arith.constant 3.200000e+01 : f32
    %104 = vector.broadcast %cst_43 : f32 to vector<8x1xf32>
    %105 = arith.divf %103, %104 : vector<8x1xf32>
    %106 = vector.broadcast %98 : vector<8x1xf32> to vector<8x32xf32>
    %107 = arith.subf %90, %106 : vector<8x32xf32>
    %cst_44 = arith.constant 9.99999974E-6 : f32
    %108 = vector.broadcast %cst_44 : f32 to vector<8x1xf32>
    %109 = arith.addf %105, %108 : vector<8x1xf32>
    %110 = math.rsqrt %109 : vector<8x1xf32>
    %111 = vector.broadcast %110 : vector<8x1xf32> to vector<8x32xf32>
    %112 = arith.mulf %107, %111 : vector<8x32xf32>
    %113 = vector.shape_cast %92 : vector<32xf32> to vector<1x32xf32>
    %114 = vector.broadcast %113 : vector<1x32xf32> to vector<8x32xf32>
    %115 = arith.mulf %112, %114 : vector<8x32xf32>
    %116 = vector.shape_cast %94 : vector<32xf32> to vector<1x32xf32>
    %117 = vector.broadcast %116 : vector<1x32xf32> to vector<8x32xf32>
    %118 = arith.addf %115, %117 : vector<8x32xf32>
    %c0_45 = arith.constant 0 : index
    %c0_46 = arith.constant 0 : index
    %119 = vector.load %arg13[%c0_45, %c0_46] : memref<32x32xf32, #tpu.memory_space<vmem>>, vector<32x32xf32>
    %c0_47 = arith.constant 0 : index
    %c0_48 = arith.constant 0 : index
    %120 = vector.load %arg14[%c0_47, %c0_48] : memref<1x32xf32, #tpu.memory_space<vmem>>, vector<1x32xf32>
    %121 = vector.shape_cast %120 : vector<1x32xf32> to vector<32xf32>
    %122 = arith.truncf %118 : vector<8x32xf32> to vector<8x32xbf16>
    %123 = arith.truncf %119 : vector<32x32xf32> to vector<32x32xbf16>
    %cst_49 = arith.constant dense<0.000000e+00> : vector<8x32xf32>
    %124 = tpu.matmul %122, %123, %cst_49 {dimension_numbers = #tpu.dot_dimension_numbers<[1], [0], [0], [1], [0, 0, 1, 1], [], []>} : vector<8x32xbf16>, vector<32x32xbf16>, vector<8x32xf32> -> vector<8x32xf32>
    %125 = vector.shape_cast %121 : vector<32xf32> to vector<1x32xf32>
    %126 = vector.broadcast %125 : vector<1x32xf32> to vector<8x32xf32>
    %127 = arith.addf %124, %126 : vector<8x32xf32>
    %128 = vector.shape_cast %127 : vector<8x32xf32> to vector<8x4x8xf32>
    %129 = tpu.transpose %128, [1, 0, 2] : vector<8x4x8xf32> -> vector<4x8x8xf32>
    %c0_50 = arith.constant 0 : index
    %c0_51 = arith.constant 0 : index
    %130 = vector.load %arg15[%c0_50, %c0_51] : memref<32x64xf32, #tpu.memory_space<vmem>>, vector<32x64xf32>
    %c0_52 = arith.constant 0 : index
    %c0_53 = arith.constant 0 : index
    %131 = vector.load %arg16[%c0_52, %c0_53] : memref<1x64xf32, #tpu.memory_space<vmem>>, vector<1x64xf32>
    %132 = vector.shape_cast %131 : vector<1x64xf32> to vector<64xf32>
    %133 = arith.truncf %3 : vector<16x32xf32> to vector<16x32xbf16>
    %134 = arith.truncf %130 : vector<32x64xf32> to vector<32x64xbf16>
    %cst_54 = arith.constant dense<0.000000e+00> : vector<16x64xf32>
    %135 = tpu.matmul %133, %134, %cst_54 {dimension_numbers = #tpu.dot_dimension_numbers<[1], [0], [0], [1], [0, 0, 1, 1], [], []>} : vector<16x32xbf16>, vector<32x64xbf16>, vector<16x64xf32> -> vector<16x64xf32>
    %136 = vector.shape_cast %132 : vector<64xf32> to vector<1x64xf32>
    %137 = vector.broadcast %136 : vector<1x64xf32> to vector<16x64xf32>
    %138 = arith.addf %135, %137 : vector<16x64xf32>
    %139 = vector.extract_strided_slice %138 {offsets = [0, 0], sizes = [16, 32], strides = [1, 1]} : vector<16x64xf32> to vector<16x32xf32>
    %140 = vector.shape_cast %139 : vector<16x32xf32> to vector<16x4x8xf32>
    %141 = tpu.transpose %140, [1, 0, 2] : vector<16x4x8xf32> -> vector<4x16x8xf32>
    %142 = vector.extract_strided_slice %138 {offsets = [0, 32], sizes = [16, 32], strides = [1, 1]} : vector<16x64xf32> to vector<16x32xf32>
    %143 = vector.shape_cast %142 : vector<16x32xf32> to vector<16x4x8xf32>
    %144 = tpu.transpose %143, [1, 0, 2] : vector<16x4x8xf32> -> vector<4x16x8xf32>
    %145 = arith.truncf %129 : vector<4x8x8xf32> to vector<4x8x8xbf16>
    %146 = arith.truncf %141 : vector<4x16x8xf32> to vector<4x16x8xbf16>
    "tpu.trace_start"() <{level = 10 : i32, message = "hqd,hkd->hqk"}> : () -> ()
    %cst_55 = arith.constant dense<0.000000e+00> : vector<4x8x16xf32>
    %147 = tpu.matmul %145, %146, %cst_55 {dimension_numbers = #tpu.dot_dimension_numbers<[2], [2], [1], [1], [0, 0, 0, 1, 1, 1], [0], [0]>} : vector<4x8x8xbf16>, vector<4x16x8xbf16>, vector<4x8x16xf32> -> vector<4x8x16xf32>
    "tpu.trace_stop"() : () -> ()
    %cst_56 = arith.constant 0.353553385 : f32
    %148 = vector.broadcast %cst_56 : f32 to vector<4x8x16xf32>
    %149 = arith.mulf %147, %148 : vector<4x8x16xf32>
    %150 = vector.shape_cast %7 : vector<1x16xf32> to vector<1x1x16xf32>
    %cst_57 = arith.constant 0.000000e+00 : f32
    %151 = vector.broadcast %cst_57 : f32 to vector<1x1x16xf32>
    %152 = arith.cmpf ogt, %150, %151 : vector<1x1x16xf32>
    %cst_58 = arith.constant -1.000000e+09 : f32
    %153 = vector.shape_cast %152 : vector<1x1x16xi1> to vector<1x1x16xi1>
    %154 = vector.broadcast %153 : vector<1x1x16xi1> to vector<4x8x16xi1>
    %155 = vector.broadcast %cst_58 : f32 to vector<4x8x16xf32>
    %156 = arith.select %154, %149, %155 : vector<4x8x16xi1>, vector<4x8x16xf32>
    %cst_59 = arith.constant dense<0xFF800000> : vector<4x8xf32>
    %157 = vector.multi_reduction <maximumf>, %156, %cst_59 [2] : vector<4x8x16xf32> to vector<4x8xf32>
    %158 = vector.shape_cast %157 : vector<4x8xf32> to vector<4x8x1xf32>
    %159 = vector.broadcast %158 : vector<4x8x1xf32> to vector<4x8x16xf32>
    %160 = arith.subf %156, %159 : vector<4x8x16xf32>
    %161 = math.exp %160 : vector<4x8x16xf32>
    %cst_60 = arith.constant dense<0.000000e+00> : vector<4x8xf32>
    %162 = vector.multi_reduction <add>, %161, %cst_60 [2] : vector<4x8x16xf32> to vector<4x8xf32>
    %163 = vector.shape_cast %162 : vector<4x8xf32> to vector<4x8x1xf32>
    %164 = tpu.reciprocal %163 {approx = true} : vector<4x8x1xf32> -> vector<4x8x1xf32>
    %165 = vector.broadcast %164 : vector<4x8x1xf32> to vector<4x8x16xf32>
    %166 = arith.mulf %161, %165 : vector<4x8x16xf32>
    %167 = arith.truncf %166 : vector<4x8x16xf32> to vector<4x8x16xbf16>
    %168 = arith.truncf %144 : vector<4x16x8xf32> to vector<4x16x8xbf16>
    "tpu.trace_start"() <{level = 10 : i32, message = "hqk,hkd->hqd"}> : () -> ()
    %cst_61 = arith.constant dense<0.000000e+00> : vector<4x8x8xf32>
    %169 = tpu.matmul %167, %168, %cst_61 {dimension_numbers = #tpu.dot_dimension_numbers<[2], [1], [1], [2], [0, 0, 0, 1, 1, 2], [0], [0]>} : vector<4x8x16xbf16>, vector<4x16x8xbf16>, vector<4x8x8xf32> -> vector<4x8x8xf32>
    "tpu.trace_stop"() : () -> ()
    %170 = tpu.transpose %169, [1, 0, 2] : vector<4x8x8xf32> -> vector<8x4x8xf32>
    %171 = vector.shape_cast %170 : vector<8x4x8xf32> to vector<8x32xf32>
    %c0_62 = arith.constant 0 : index
    %c0_63 = arith.constant 0 : index
    %172 = vector.load %arg17[%c0_62, %c0_63] : memref<32x32xf32, #tpu.memory_space<vmem>>, vector<32x32xf32>
    %c0_64 = arith.constant 0 : index
    %c0_65 = arith.constant 0 : index
    %173 = vector.load %arg18[%c0_64, %c0_65] : memref<1x32xf32, #tpu.memory_space<vmem>>, vector<1x32xf32>
    %174 = vector.shape_cast %173 : vector<1x32xf32> to vector<32xf32>
    %175 = arith.truncf %171 : vector<8x32xf32> to vector<8x32xbf16>
    %176 = arith.truncf %172 : vector<32x32xf32> to vector<32x32xbf16>
    %cst_66 = arith.constant dense<0.000000e+00> : vector<8x32xf32>
    %177 = tpu.matmul %175, %176, %cst_66 {dimension_numbers = #tpu.dot_dimension_numbers<[1], [0], [0], [1], [0, 0, 1, 1], [], []>} : vector<8x32xbf16>, vector<32x32xbf16>, vector<8x32xf32> -> vector<8x32xf32>
    %178 = vector.shape_cast %174 : vector<32xf32> to vector<1x32xf32>
    %179 = vector.broadcast %178 : vector<1x32xf32> to vector<8x32xf32>
    %180 = arith.addf %177, %179 : vector<8x32xf32>
    %181 = arith.addf %90, %180 : vector<8x32xf32>
    %c0_67 = arith.constant 0 : index
    %c0_68 = arith.constant 0 : index
    %182 = vector.load %arg19[%c0_67, %c0_68] : memref<1x32xf32, #tpu.memory_space<vmem>>, vector<1x32xf32>
    %183 = vector.shape_cast %182 : vector<1x32xf32> to vector<32xf32>
    %c0_69 = arith.constant 0 : index
    %c0_70 = arith.constant 0 : index
    %184 = vector.load %arg20[%c0_69, %c0_70] : memref<1x32xf32, #tpu.memory_space<vmem>>, vector<1x32xf32>
    %185 = vector.shape_cast %184 : vector<1x32xf32> to vector<32xf32>
    %cst_71 = arith.constant dense<0.000000e+00> : vector<8xf32>
    %186 = vector.multi_reduction <add>, %181, %cst_71 [1] : vector<8x32xf32> to vector<8xf32>
    %187 = vector.shape_cast %186 : vector<8xf32> to vector<8x1xf32>
    %cst_72 = arith.constant 3.200000e+01 : f32
    %188 = vector.broadcast %cst_72 : f32 to vector<8x1xf32>
    %189 = arith.divf %187, %188 : vector<8x1xf32>
    %190 = vector.broadcast %189 : vector<8x1xf32> to vector<8x32xf32>
    %191 = arith.subf %181, %190 : vector<8x32xf32>
    %192 = arith.mulf %191, %191 : vector<8x32xf32>
    %cst_73 = arith.constant dense<0.000000e+00> : vector<8xf32>
    %193 = vector.multi_reduction <add>, %192, %cst_73 [1] : vector<8x32xf32> to vector<8xf32>
    %194 = vector.shape_cast %193 : vector<8xf32> to vector<8x1xf32>
    %cst_74 = arith.constant 3.200000e+01 : f32
    %195 = vector.broadcast %cst_74 : f32 to vector<8x1xf32>
    %196 = arith.divf %194, %195 : vector<8x1xf32>
    %197 = vector.broadcast %189 : vector<8x1xf32> to vector<8x32xf32>
    %198 = arith.subf %181, %197 : vector<8x32xf32>
    %cst_75 = arith.constant 9.99999974E-6 : f32
    %199 = vector.broadcast %cst_75 : f32 to vector<8x1xf32>
    %200 = arith.addf %196, %199 : vector<8x1xf32>
    %201 = math.rsqrt %200 : vector<8x1xf32>
    %202 = vector.broadcast %201 : vector<8x1xf32> to vector<8x32xf32>
    %203 = arith.mulf %198, %202 : vector<8x32xf32>
    %204 = vector.shape_cast %183 : vector<32xf32> to vector<1x32xf32>
    %205 = vector.broadcast %204 : vector<1x32xf32> to vector<8x32xf32>
    %206 = arith.mulf %203, %205 : vector<8x32xf32>
    %207 = vector.shape_cast %185 : vector<32xf32> to vector<1x32xf32>
    %208 = vector.broadcast %207 : vector<1x32xf32> to vector<8x32xf32>
    %209 = arith.addf %206, %208 : vector<8x32xf32>
    %c0_76 = arith.constant 0 : index
    %c0_77 = arith.constant 0 : index
    %210 = vector.load %arg21[%c0_76, %c0_77] : memref<32x64xf32, #tpu.memory_space<vmem>>, vector<32x64xf32>
    %c0_78 = arith.constant 0 : index
    %c0_79 = arith.constant 0 : index
    %211 = vector.load %arg22[%c0_78, %c0_79] : memref<1x64xf32, #tpu.memory_space<vmem>>, vector<1x64xf32>
    %212 = vector.shape_cast %211 : vector<1x64xf32> to vector<64xf32>
    %213 = arith.truncf %209 : vector<8x32xf32> to vector<8x32xbf16>
    %214 = arith.truncf %210 : vector<32x64xf32> to vector<32x64xbf16>
    %cst_80 = arith.constant dense<0.000000e+00> : vector<8x64xf32>
    %215 = tpu.matmul %213, %214, %cst_80 {dimension_numbers = #tpu.dot_dimension_numbers<[1], [0], [0], [1], [0, 0, 1, 1], [], []>} : vector<8x32xbf16>, vector<32x64xbf16>, vector<8x64xf32> -> vector<8x64xf32>
    %216 = vector.shape_cast %212 : vector<64xf32> to vector<1x64xf32>
    %217 = vector.broadcast %216 : vector<1x64xf32> to vector<8x64xf32>
    %218 = arith.addf %215, %217 : vector<8x64xf32>
    %cst_81 = arith.constant 0.000000e+00 : f32
    %219 = vector.broadcast %cst_81 : f32 to vector<8x64xf32>
    %220 = arith.maximumf %218, %219 : vector<8x64xf32>
    %c0_82 = arith.constant 0 : index
    %c0_83 = arith.constant 0 : index
    %221 = vector.load %arg23[%c0_82, %c0_83] : memref<64x32xf32, #tpu.memory_space<vmem>>, vector<64x32xf32>
    %c0_84 = arith.constant 0 : index
    %c0_85 = arith.constant 0 : index
    %222 = vector.load %arg24[%c0_84, %c0_85] : memref<1x32xf32, #tpu.memory_space<vmem>>, vector<1x32xf32>
    %223 = vector.shape_cast %222 : vector<1x32xf32> to vector<32xf32>
    %224 = arith.truncf %220 : vector<8x64xf32> to vector<8x64xbf16>
    %225 = arith.truncf %221 : vector<64x32xf32> to vector<64x32xbf16>
    %cst_86 = arith.constant dense<0.000000e+00> : vector<8x32xf32>
    %226 = tpu.matmul %224, %225, %cst_86 {dimension_numbers = #tpu.dot_dimension_numbers<[1], [0], [0], [1], [0, 0, 1, 1], [], []>} : vector<8x64xbf16>, vector<64x32xbf16>, vector<8x32xf32> -> vector<8x32xf32>
    %227 = vector.shape_cast %223 : vector<32xf32> to vector<1x32xf32>
    %228 = vector.broadcast %227 : vector<1x32xf32> to vector<8x32xf32>
    %229 = arith.addf %226, %228 : vector<8x32xf32>
    %230 = arith.addf %181, %229 : vector<8x32xf32>
    %c0_87 = arith.constant 0 : index
    %c0_88 = arith.constant 0 : index
    %c0_89 = arith.constant 0 : index
    %231 = vector.load %arg25[%c0_87, %c0_88, %c0_89] : memref<1x8x32xf32, #tpu.memory_space<vmem>>, vector<1x8x32xf32>
    %232 = vector.shape_cast %231 : vector<1x8x32xf32> to vector<8x32xf32>
    %233 = vector.shape_cast %230 : vector<8x32xf32> to vector<1x8x32xf32>
    tpu.vector_store %arg25[%c0_87, %c0_88, %c0_89], %233 {strides = array<i32>} : memref<1x8x32xf32, #tpu.memory_space<vmem>>, vector<1x8x32xf32>,
    return
  }
  func.func @transform_0(%arg0: i32) -> (i32, i32, i32) {
    %c0_i32 = arith.constant 0 : i32
    %c0_i32_0 = arith.constant 0 : i32
    %c0_i32_1 = arith.constant 0 : i32
    return %arg0, %c0_i32, %c0_i32_0 : i32, i32, i32
  }
  func.func @transform_1(%arg0: i32) -> (i32, i32, i32) {
    %c0_i32 = arith.constant 0 : i32
    %c0_i32_0 = arith.constant 0 : i32
    %c0_i32_1 = arith.constant 0 : i32
    return %arg0, %c0_i32, %c0_i32_0 : i32, i32, i32
  }
  func.func @transform_2(%arg0: i32) -> (i32, i32, i32) {
    %c0_i32 = arith.constant 0 : i32
    %c0_i32_0 = arith.constant 0 : i32
    %c0_i32_1 = arith.constant 0 : i32
    return %arg0, %c0_i32, %c0_i32_0 : i32, i32, i32
  }
  func.func @transform_3(%arg0: i32) -> (i32, i32, i32) {
    %c0_i32 = arith.constant 0 : i32
    %c0_i32_0 = arith.constant 0 : i32
    %c0_i32_1 = arith.constant 0 : i32
    return %arg0, %c0_i32, %c0_i32_0 : i32, i32, i32
  }
  func.func @transform_4(%arg0: i32) -> (i32, i32) {
    %c0_i32 = arith.constant 0 : i32
    %c0_i32_0 = arith.constant 0 : i32
    %c0_i32_1 = arith.constant 0 : i32
    return %c0_i32, %c0_i32_0 : i32, i32
  }
  func.func @transform_5(%arg0: i32) -> (i32, i32) {
    %c0_i32 = arith.constant 0 : i32
    %c0_i32_0 = arith.constant 0 : i32
    %c0_i32_1 = arith.constant 0 : i32
    return %c0_i32, %c0_i32_0 : i32, i32
  }
  func.func @transform_6(%arg0: i32) -> (i32, i32) {
    %c0_i32 = arith.constant 0 : i32
    %c0_i32_0 = arith.constant 0 : i32
    %c0_i32_1 = arith.constant 0 : i32
    return %c0_i32, %c0_i32_0 : i32, i32
  }
  func.func @transform_7(%arg0: i32) -> (i32, i32) {
    %c0_i32 = arith.constant 0 : i32
    %c0_i32_0 = arith.constant 0 : i32
    %c0_i32_1 = arith.constant 0 : i32
    return %c0_i32, %c0_i32_0 : i32, i32
  }
  func.func @transform_8(%arg0: i32) -> (i32, i32) {
    %c0_i32 = arith.constant 0 : i32
    %c0_i32_0 = arith.constant 0 : i32
    %c0_i32_1 = arith.constant 0 : i32
    return %c0_i32, %c0_i32_0 : i32, i32
  }
  func.func @transform_9(%arg0: i32) -> (i32, i32) {
    %c0_i32 = arith.constant 0 : i32
    %c0_i32_0 = arith.constant 0 : i32
    %c0_i32_1 = arith.constant 0 : i32
    return %c0_i32, %c0_i32_0 : i32, i32
  }
  func.func @transform_10(%arg0: i32) -> (i32, i32) {
    %c0_i32 = arith.constant 0 : i32
    %c0_i32_0 = arith.constant 0 : i32
    %c0_i32_1 = arith.constant 0 : i32
    return %c0_i32, %c0_i32_0 : i32, i32
  }
  func.func @transform_11(%arg0: i32) -> (i32, i32) {
    %c0_i32 = arith.constant 0 : i32
    %c0_i32_0 = arith.constant 0 : i32
    %c0_i32_1 = arith.constant 0 : i32
    return %c0_i32, %c0_i32_0 : i32, i32
  }
  func.func @transform_12(%arg0: i32) -> (i32, i32) {
    %c0_i32 = arith.constant 0 : i32
    %c0_i32_0 = arith.constant 0 : i32
    %c0_i32_1 = arith.constant 0 : i32
    return %c0_i32, %c0_i32_0 : i32, i32
  }
  func.func @transform_13(%arg0: i32) -> (i32, i32) {
    %c0_i32 = arith.constant 0 : i32
    %c0_i32_0 = arith.constant 0 : i32
    %c0_i32_1 = arith.constant 0 : i32
    return %c0_i32, %c0_i32_0 : i32, i32
  }
  func.func @transform_14(%arg0: i32) -> (i32, i32) {
    %c0_i32 = arith.constant 0 : i32
    %c0_i32_0 = arith.constant 0 : i32
    %c0_i32_1 = arith.constant 0 : i32
    return %c0_i32, %c0_i32_0 : i32, i32
  }
  func.func @transform_15(%arg0: i32) -> (i32, i32) {
    %c0_i32 = arith.constant 0 : i32
    %c0_i32_0 = arith.constant 0 : i32
    %c0_i32_1 = arith.constant 0 : i32
    return %c0_i32, %c0_i32_0 : i32, i32
  }
  func.func @transform_16(%arg0: i32) -> (i32, i32) {
    %c0_i32 = arith.constant 0 : i32
    %c0_i32_0 = arith.constant 0 : i32
    %c0_i32_1 = arith.constant 0 : i32
    return %c0_i32, %c0_i32_0 : i32, i32
  }
  func.func @transform_17(%arg0: i32) -> (i32, i32) {
    %c0_i32 = arith.constant 0 : i32
    %c0_i32_0 = arith.constant 0 : i32
    %c0_i32_1 = arith.constant 0 : i32
    return %c0_i32, %c0_i32_0 : i32, i32
  }
  func.func @transform_18(%arg0: i32) -> (i32, i32) {
    %c0_i32 = arith.constant 0 : i32
    %c0_i32_0 = arith.constant 0 : i32
    %c0_i32_1 = arith.constant 0 : i32
    return %c0_i32, %c0_i32_0 : i32, i32
  }
  func.func @transform_19(%arg0: i32) -> (i32, i32) {
    %c0_i32 = arith.constant 0 : i32
    %c0_i32_0 = arith.constant 0 : i32
    %c0_i32_1 = arith.constant 0 : i32
    return %c0_i32, %c0_i32_0 : i32, i32
  }
  func.func @transform_20(%arg0: i32) -> (i32, i32) {
    %c0_i32 = arith.constant 0 : i32
    %c0_i32_0 = arith.constant 0 : i32
    %c0_i32_1 = arith.constant 0 : i32
    return %c0_i32, %c0_i32_0 : i32, i32
  }
  func.func @transform_21(%arg0: i32) -> (i32, i32) {
    %c0_i32 = arith.constant 0 : i32
    %c0_i32_0 = arith.constant 0 : i32
    %c0_i32_1 = arith.constant 0 : i32
    return %c0_i32, %c0_i32_0 : i32, i32
  }
  func.func @transform_22(%arg0: i32) -> (i32, i32) {
    %c0_i32 = arith.constant 0 : i32
    %c0_i32_0 = arith.constant 0 : i32
    %c0_i32_1 = arith.constant 0 : i32
    return %c0_i32, %c0_i32_0 : i32, i32
  }
  func.func @transform_23(%arg0: i32) -> (i32, i32) {
    %c0_i32 = arith.constant 0 : i32
    %c0_i32_0 = arith.constant 0 : i32
    %c0_i32_1 = arith.constant 0 : i32
    return %c0_i32, %c0_i32_0 : i32, i32
  }
  func.func @transform_24(%arg0: i32) -> (i32, i32, i32) {
    %c0_i32 = arith.constant 0 : i32
    %c0_i32_0 = arith.constant 0 : i32
    %c0_i32_1 = arith.constant 0 : i32
    return %arg0, %c0_i32, %c0_i32_0 : i32, i32, i32
  }
}

module attributes {stable_mosaic.version = 11 : i64} {
  func.func @_enc_layer_kernel(%arg0: i32, %arg1: memref<1x16x32xf32, #tpu.memory_space<vmem>>, %arg2: memref<1x1x16xf32, #tpu.memory_space<vmem>>, %arg3: memref<1x32xf32, #tpu.memory_space<vmem>>, %arg4: memref<1x32xf32, #tpu.memory_space<vmem>>, %arg5: memref<32x96xf32, #tpu.memory_space<vmem>>, %arg6: memref<1x96xf32, #tpu.memory_space<vmem>>, %arg7: memref<32x32xf32, #tpu.memory_space<vmem>>, %arg8: memref<1x32xf32, #tpu.memory_space<vmem>>, %arg9: memref<1x32xf32, #tpu.memory_space<vmem>>, %arg10: memref<1x32xf32, #tpu.memory_space<vmem>>, %arg11: memref<32x64xf32, #tpu.memory_space<vmem>>, %arg12: memref<1x64xf32, #tpu.memory_space<vmem>>, %arg13: memref<64x32xf32, #tpu.memory_space<vmem>>, %arg14: memref<1x32xf32, #tpu.memory_space<vmem>>, %arg15: memref<1x32xf32, #tpu.memory_space<vmem>>, %arg16: memref<1x32xf32, #tpu.memory_space<vmem>>, %arg17: memref<1x16x32xf32, #tpu.memory_space<vmem>>) attributes {dimension_semantics = [#tpu.dimension_semantics<parallel>], iteration_bounds = array<i64: 2>, scalar_prefetch = 0 : i64, scratch_operands = 0 : i64, tpu.core_type = #tpu.core_type<tc>, window_params = [{transform_indices = @transform_0, window_bounds = array<i64: 1, 16, 32>}, {transform_indices = @transform_1, window_bounds = array<i64: 1, 1, 16>}, {pipeline_mode = #tpu.pipeline_mode<synchronous>, transform_indices = @transform_2, window_bounds = array<i64: 1, 32>}, {pipeline_mode = #tpu.pipeline_mode<synchronous>, transform_indices = @transform_3, window_bounds = array<i64: 1, 32>}, {pipeline_mode = #tpu.pipeline_mode<synchronous>, transform_indices = @transform_4, window_bounds = array<i64: 32, 96>}, {pipeline_mode = #tpu.pipeline_mode<synchronous>, transform_indices = @transform_5, window_bounds = array<i64: 1, 96>}, {pipeline_mode = #tpu.pipeline_mode<synchronous>, transform_indices = @transform_6, window_bounds = array<i64: 32, 32>}, {pipeline_mode = #tpu.pipeline_mode<synchronous>, transform_indices = @transform_7, window_bounds = array<i64: 1, 32>}, {pipeline_mode = #tpu.pipeline_mode<synchronous>, transform_indices = @transform_8, window_bounds = array<i64: 1, 32>}, {pipeline_mode = #tpu.pipeline_mode<synchronous>, transform_indices = @transform_9, window_bounds = array<i64: 1, 32>}, {pipeline_mode = #tpu.pipeline_mode<synchronous>, transform_indices = @transform_10, window_bounds = array<i64: 32, 64>}, {pipeline_mode = #tpu.pipeline_mode<synchronous>, transform_indices = @transform_11, window_bounds = array<i64: 1, 64>}, {pipeline_mode = #tpu.pipeline_mode<synchronous>, transform_indices = @transform_12, window_bounds = array<i64: 64, 32>}, {pipeline_mode = #tpu.pipeline_mode<synchronous>, transform_indices = @transform_13, window_bounds = array<i64: 1, 32>}, {pipeline_mode = #tpu.pipeline_mode<synchronous>, transform_indices = @transform_14, window_bounds = array<i64: 1, 32>}, {pipeline_mode = #tpu.pipeline_mode<synchronous>, transform_indices = @transform_15, window_bounds = array<i64: 1, 32>}, {transform_indices = @transform_16, window_bounds = array<i64: 1, 16, 32>}]} {
    %c0 = arith.constant 0 : index
    %c0_0 = arith.constant 0 : index
    %c0_1 = arith.constant 0 : index
    %0 = vector.load %arg1[%c0, %c0_0, %c0_1] : memref<1x16x32xf32, #tpu.memory_space<vmem>>, vector<1x16x32xf32>
    %1 = vector.shape_cast %0 : vector<1x16x32xf32> to vector<16x32xf32>
    %c0_2 = arith.constant 0 : index
    %c0_3 = arith.constant 0 : index
    %c0_4 = arith.constant 0 : index
    %2 = vector.load %arg2[%c0_2, %c0_3, %c0_4] : memref<1x1x16xf32, #tpu.memory_space<vmem>>, vector<1x1x16xf32>
    %3 = vector.shape_cast %2 : vector<1x1x16xf32> to vector<1x16xf32>
    %c0_5 = arith.constant 0 : index
    %c0_6 = arith.constant 0 : index
    %4 = vector.load %arg3[%c0_5, %c0_6] : memref<1x32xf32, #tpu.memory_space<vmem>>, vector<1x32xf32>
    %5 = vector.shape_cast %4 : vector<1x32xf32> to vector<32xf32>
    %c0_7 = arith.constant 0 : index
    %c0_8 = arith.constant 0 : index
    %6 = vector.load %arg4[%c0_7, %c0_8] : memref<1x32xf32, #tpu.memory_space<vmem>>, vector<1x32xf32>
    %7 = vector.shape_cast %6 : vector<1x32xf32> to vector<32xf32>
    %cst = arith.constant dense<0.000000e+00> : vector<16xf32>
    %8 = vector.multi_reduction <add>, %1, %cst [1] : vector<16x32xf32> to vector<16xf32>
    %9 = vector.shape_cast %8 : vector<16xf32> to vector<16x1xf32>
    %cst_9 = arith.constant 3.200000e+01 : f32
    %10 = vector.broadcast %cst_9 : f32 to vector<16x1xf32>
    %11 = arith.divf %9, %10 : vector<16x1xf32>
    %12 = vector.broadcast %11 : vector<16x1xf32> to vector<16x32xf32>
    %13 = arith.subf %1, %12 : vector<16x32xf32>
    %14 = arith.mulf %13, %13 : vector<16x32xf32>
    %cst_10 = arith.constant dense<0.000000e+00> : vector<16xf32>
    %15 = vector.multi_reduction <add>, %14, %cst_10 [1] : vector<16x32xf32> to vector<16xf32>
    %16 = vector.shape_cast %15 : vector<16xf32> to vector<16x1xf32>
    %cst_11 = arith.constant 3.200000e+01 : f32
    %17 = vector.broadcast %cst_11 : f32 to vector<16x1xf32>
    %18 = arith.divf %16, %17 : vector<16x1xf32>
    %19 = vector.broadcast %11 : vector<16x1xf32> to vector<16x32xf32>
    %20 = arith.subf %1, %19 : vector<16x32xf32>
    %cst_12 = arith.constant 9.99999974E-6 : f32
    %21 = vector.broadcast %cst_12 : f32 to vector<16x1xf32>
    %22 = arith.addf %18, %21 : vector<16x1xf32>
    %23 = math.rsqrt %22 : vector<16x1xf32>
    %24 = vector.broadcast %23 : vector<16x1xf32> to vector<16x32xf32>
    %25 = arith.mulf %20, %24 : vector<16x32xf32>
    %26 = vector.shape_cast %5 : vector<32xf32> to vector<1x32xf32>
    %27 = vector.broadcast %26 : vector<1x32xf32> to vector<16x32xf32>
    %28 = arith.mulf %25, %27 : vector<16x32xf32>
    %29 = vector.shape_cast %7 : vector<32xf32> to vector<1x32xf32>
    %30 = vector.broadcast %29 : vector<1x32xf32> to vector<16x32xf32>
    %31 = arith.addf %28, %30 : vector<16x32xf32>
    %c0_13 = arith.constant 0 : index
    %c0_14 = arith.constant 0 : index
    %32 = vector.load %arg5[%c0_13, %c0_14] : memref<32x96xf32, #tpu.memory_space<vmem>>, vector<32x96xf32>
    %c0_15 = arith.constant 0 : index
    %c0_16 = arith.constant 0 : index
    %33 = vector.load %arg6[%c0_15, %c0_16] : memref<1x96xf32, #tpu.memory_space<vmem>>, vector<1x96xf32>
    %34 = vector.shape_cast %33 : vector<1x96xf32> to vector<96xf32>
    %35 = arith.truncf %31 : vector<16x32xf32> to vector<16x32xbf16>
    %36 = arith.truncf %32 : vector<32x96xf32> to vector<32x96xbf16>
    %cst_17 = arith.constant dense<0.000000e+00> : vector<16x96xf32>
    %37 = tpu.matmul %35, %36, %cst_17 {dimension_numbers = #tpu.dot_dimension_numbers<[1], [0], [0], [1], [0, 0, 1, 1], [], []>} : vector<16x32xbf16>, vector<32x96xbf16>, vector<16x96xf32> -> vector<16x96xf32>
    %38 = vector.shape_cast %34 : vector<96xf32> to vector<1x96xf32>
    %39 = vector.broadcast %38 : vector<1x96xf32> to vector<16x96xf32>
    %40 = arith.addf %37, %39 : vector<16x96xf32>
    %41 = vector.extract_strided_slice %40 {offsets = [0, 0], sizes = [16, 32], strides = [1, 1]} : vector<16x96xf32> to vector<16x32xf32>
    %42 = vector.shape_cast %41 : vector<16x32xf32> to vector<16x4x8xf32>
    %43 = tpu.transpose %42, [1, 0, 2] : vector<16x4x8xf32> -> vector<4x16x8xf32>
    %44 = vector.extract_strided_slice %40 {offsets = [0, 32], sizes = [16, 32], strides = [1, 1]} : vector<16x96xf32> to vector<16x32xf32>
    %45 = vector.shape_cast %44 : vector<16x32xf32> to vector<16x4x8xf32>
    %46 = tpu.transpose %45, [1, 0, 2] : vector<16x4x8xf32> -> vector<4x16x8xf32>
    %47 = vector.extract_strided_slice %40 {offsets = [0, 64], sizes = [16, 32], strides = [1, 1]} : vector<16x96xf32> to vector<16x32xf32>
    %48 = vector.shape_cast %47 : vector<16x32xf32> to vector<16x4x8xf32>
    %49 = tpu.transpose %48, [1, 0, 2] : vector<16x4x8xf32> -> vector<4x16x8xf32>
    %50 = arith.truncf %43 : vector<4x16x8xf32> to vector<4x16x8xbf16>
    %51 = arith.truncf %46 : vector<4x16x8xf32> to vector<4x16x8xbf16>
    "tpu.trace_start"() <{level = 10 : i32, message = "hqd,hkd->hqk"}> : () -> ()
    %cst_18 = arith.constant dense<0.000000e+00> : vector<4x16x16xf32>
    %52 = tpu.matmul %50, %51, %cst_18 {dimension_numbers = #tpu.dot_dimension_numbers<[2], [2], [1], [1], [0, 0, 0, 1, 1, 1], [0], [0]>} : vector<4x16x8xbf16>, vector<4x16x8xbf16>, vector<4x16x16xf32> -> vector<4x16x16xf32>
    "tpu.trace_stop"() : () -> ()
    %cst_19 = arith.constant 0.353553385 : f32
    %53 = vector.broadcast %cst_19 : f32 to vector<4x16x16xf32>
    %54 = arith.mulf %52, %53 : vector<4x16x16xf32>
    %55 = vector.shape_cast %3 : vector<1x16xf32> to vector<1x1x16xf32>
    %cst_20 = arith.constant 0.000000e+00 : f32
    %56 = vector.broadcast %cst_20 : f32 to vector<1x1x16xf32>
    %57 = arith.cmpf ogt, %55, %56 : vector<1x1x16xf32>
    %cst_21 = arith.constant -1.000000e+09 : f32
    %58 = vector.shape_cast %57 : vector<1x1x16xi1> to vector<1x1x16xi1>
    %59 = vector.broadcast %58 : vector<1x1x16xi1> to vector<4x16x16xi1>
    %60 = vector.broadcast %cst_21 : f32 to vector<4x16x16xf32>
    %61 = arith.select %59, %54, %60 : vector<4x16x16xi1>, vector<4x16x16xf32>
    %cst_22 = arith.constant dense<0xFF800000> : vector<4x16xf32>
    %62 = vector.multi_reduction <maximumf>, %61, %cst_22 [2] : vector<4x16x16xf32> to vector<4x16xf32>
    %63 = vector.shape_cast %62 : vector<4x16xf32> to vector<4x16x1xf32>
    %64 = vector.broadcast %63 : vector<4x16x1xf32> to vector<4x16x16xf32>
    %65 = arith.subf %61, %64 : vector<4x16x16xf32>
    %66 = math.exp %65 : vector<4x16x16xf32>
    %cst_23 = arith.constant dense<0.000000e+00> : vector<4x16xf32>
    %67 = vector.multi_reduction <add>, %66, %cst_23 [2] : vector<4x16x16xf32> to vector<4x16xf32>
    %68 = vector.shape_cast %67 : vector<4x16xf32> to vector<4x16x1xf32>
    %69 = tpu.reciprocal %68 {approx = true} : vector<4x16x1xf32> -> vector<4x16x1xf32>
    %70 = vector.broadcast %69 : vector<4x16x1xf32> to vector<4x16x16xf32>
    %71 = arith.mulf %66, %70 : vector<4x16x16xf32>
    %72 = arith.truncf %71 : vector<4x16x16xf32> to vector<4x16x16xbf16>
    %73 = arith.truncf %49 : vector<4x16x8xf32> to vector<4x16x8xbf16>
    "tpu.trace_start"() <{level = 10 : i32, message = "hqk,hkd->hqd"}> : () -> ()
    %cst_24 = arith.constant dense<0.000000e+00> : vector<4x16x8xf32>
    %74 = tpu.matmul %72, %73, %cst_24 {dimension_numbers = #tpu.dot_dimension_numbers<[2], [1], [1], [2], [0, 0, 0, 1, 1, 2], [0], [0]>} : vector<4x16x16xbf16>, vector<4x16x8xbf16>, vector<4x16x8xf32> -> vector<4x16x8xf32>
    "tpu.trace_stop"() : () -> ()
    %75 = tpu.transpose %74, [1, 0, 2] : vector<4x16x8xf32> -> vector<16x4x8xf32>
    %76 = vector.shape_cast %75 : vector<16x4x8xf32> to vector<16x32xf32>
    %c0_25 = arith.constant 0 : index
    %c0_26 = arith.constant 0 : index
    %77 = vector.load %arg7[%c0_25, %c0_26] : memref<32x32xf32, #tpu.memory_space<vmem>>, vector<32x32xf32>
    %c0_27 = arith.constant 0 : index
    %c0_28 = arith.constant 0 : index
    %78 = vector.load %arg8[%c0_27, %c0_28] : memref<1x32xf32, #tpu.memory_space<vmem>>, vector<1x32xf32>
    %79 = vector.shape_cast %78 : vector<1x32xf32> to vector<32xf32>
    %80 = arith.truncf %76 : vector<16x32xf32> to vector<16x32xbf16>
    %81 = arith.truncf %77 : vector<32x32xf32> to vector<32x32xbf16>
    %cst_29 = arith.constant dense<0.000000e+00> : vector<16x32xf32>
    %82 = tpu.matmul %80, %81, %cst_29 {dimension_numbers = #tpu.dot_dimension_numbers<[1], [0], [0], [1], [0, 0, 1, 1], [], []>} : vector<16x32xbf16>, vector<32x32xbf16>, vector<16x32xf32> -> vector<16x32xf32>
    %83 = vector.shape_cast %79 : vector<32xf32> to vector<1x32xf32>
    %84 = vector.broadcast %83 : vector<1x32xf32> to vector<16x32xf32>
    %85 = arith.addf %82, %84 : vector<16x32xf32>
    %86 = arith.addf %1, %85 : vector<16x32xf32>
    %c0_30 = arith.constant 0 : index
    %c0_31 = arith.constant 0 : index
    %87 = vector.load %arg9[%c0_30, %c0_31] : memref<1x32xf32, #tpu.memory_space<vmem>>, vector<1x32xf32>
    %88 = vector.shape_cast %87 : vector<1x32xf32> to vector<32xf32>
    %c0_32 = arith.constant 0 : index
    %c0_33 = arith.constant 0 : index
    %89 = vector.load %arg10[%c0_32, %c0_33] : memref<1x32xf32, #tpu.memory_space<vmem>>, vector<1x32xf32>
    %90 = vector.shape_cast %89 : vector<1x32xf32> to vector<32xf32>
    %cst_34 = arith.constant dense<0.000000e+00> : vector<16xf32>
    %91 = vector.multi_reduction <add>, %86, %cst_34 [1] : vector<16x32xf32> to vector<16xf32>
    %92 = vector.shape_cast %91 : vector<16xf32> to vector<16x1xf32>
    %cst_35 = arith.constant 3.200000e+01 : f32
    %93 = vector.broadcast %cst_35 : f32 to vector<16x1xf32>
    %94 = arith.divf %92, %93 : vector<16x1xf32>
    %95 = vector.broadcast %94 : vector<16x1xf32> to vector<16x32xf32>
    %96 = arith.subf %86, %95 : vector<16x32xf32>
    %97 = arith.mulf %96, %96 : vector<16x32xf32>
    %cst_36 = arith.constant dense<0.000000e+00> : vector<16xf32>
    %98 = vector.multi_reduction <add>, %97, %cst_36 [1] : vector<16x32xf32> to vector<16xf32>
    %99 = vector.shape_cast %98 : vector<16xf32> to vector<16x1xf32>
    %cst_37 = arith.constant 3.200000e+01 : f32
    %100 = vector.broadcast %cst_37 : f32 to vector<16x1xf32>
    %101 = arith.divf %99, %100 : vector<16x1xf32>
    %102 = vector.broadcast %94 : vector<16x1xf32> to vector<16x32xf32>
    %103 = arith.subf %86, %102 : vector<16x32xf32>
    %cst_38 = arith.constant 9.99999974E-6 : f32
    %104 = vector.broadcast %cst_38 : f32 to vector<16x1xf32>
    %105 = arith.addf %101, %104 : vector<16x1xf32>
    %106 = math.rsqrt %105 : vector<16x1xf32>
    %107 = vector.broadcast %106 : vector<16x1xf32> to vector<16x32xf32>
    %108 = arith.mulf %103, %107 : vector<16x32xf32>
    %109 = vector.shape_cast %88 : vector<32xf32> to vector<1x32xf32>
    %110 = vector.broadcast %109 : vector<1x32xf32> to vector<16x32xf32>
    %111 = arith.mulf %108, %110 : vector<16x32xf32>
    %112 = vector.shape_cast %90 : vector<32xf32> to vector<1x32xf32>
    %113 = vector.broadcast %112 : vector<1x32xf32> to vector<16x32xf32>
    %114 = arith.addf %111, %113 : vector<16x32xf32>
    %c0_39 = arith.constant 0 : index
    %c0_40 = arith.constant 0 : index
    %115 = vector.load %arg11[%c0_39, %c0_40] : memref<32x64xf32, #tpu.memory_space<vmem>>, vector<32x64xf32>
    %c0_41 = arith.constant 0 : index
    %c0_42 = arith.constant 0 : index
    %116 = vector.load %arg12[%c0_41, %c0_42] : memref<1x64xf32, #tpu.memory_space<vmem>>, vector<1x64xf32>
    %117 = vector.shape_cast %116 : vector<1x64xf32> to vector<64xf32>
    %118 = arith.truncf %114 : vector<16x32xf32> to vector<16x32xbf16>
    %119 = arith.truncf %115 : vector<32x64xf32> to vector<32x64xbf16>
    %cst_43 = arith.constant dense<0.000000e+00> : vector<16x64xf32>
    %120 = tpu.matmul %118, %119, %cst_43 {dimension_numbers = #tpu.dot_dimension_numbers<[1], [0], [0], [1], [0, 0, 1, 1], [], []>} : vector<16x32xbf16>, vector<32x64xbf16>, vector<16x64xf32> -> vector<16x64xf32>
    %121 = vector.shape_cast %117 : vector<64xf32> to vector<1x64xf32>
    %122 = vector.broadcast %121 : vector<1x64xf32> to vector<16x64xf32>
    %123 = arith.addf %120, %122 : vector<16x64xf32>
    %cst_44 = arith.constant 0.000000e+00 : f32
    %124 = vector.broadcast %cst_44 : f32 to vector<16x64xf32>
    %125 = arith.maximumf %123, %124 : vector<16x64xf32>
    %c0_45 = arith.constant 0 : index
    %c0_46 = arith.constant 0 : index
    %126 = vector.load %arg13[%c0_45, %c0_46] : memref<64x32xf32, #tpu.memory_space<vmem>>, vector<64x32xf32>
    %c0_47 = arith.constant 0 : index
    %c0_48 = arith.constant 0 : index
    %127 = vector.load %arg14[%c0_47, %c0_48] : memref<1x32xf32, #tpu.memory_space<vmem>>, vector<1x32xf32>
    %128 = vector.shape_cast %127 : vector<1x32xf32> to vector<32xf32>
    %129 = arith.truncf %125 : vector<16x64xf32> to vector<16x64xbf16>
    %130 = arith.truncf %126 : vector<64x32xf32> to vector<64x32xbf16>
    %cst_49 = arith.constant dense<0.000000e+00> : vector<16x32xf32>
    %131 = tpu.matmul %129, %130, %cst_49 {dimension_numbers = #tpu.dot_dimension_numbers<[1], [0], [0], [1], [0, 0, 1, 1], [], []>} : vector<16x64xbf16>, vector<64x32xbf16>, vector<16x32xf32> -> vector<16x32xf32>
    %132 = vector.shape_cast %128 : vector<32xf32> to vector<1x32xf32>
    %133 = vector.broadcast %132 : vector<1x32xf32> to vector<16x32xf32>
    %134 = arith.addf %131, %133 : vector<16x32xf32>
    %135 = arith.addf %86, %134 : vector<16x32xf32>
    %c0_50 = arith.constant 0 : index
    %c0_51 = arith.constant 0 : index
    %136 = vector.load %arg15[%c0_50, %c0_51] : memref<1x32xf32, #tpu.memory_space<vmem>>, vector<1x32xf32>
    %137 = vector.shape_cast %136 : vector<1x32xf32> to vector<32xf32>
    %c0_52 = arith.constant 0 : index
    %c0_53 = arith.constant 0 : index
    %138 = vector.load %arg16[%c0_52, %c0_53] : memref<1x32xf32, #tpu.memory_space<vmem>>, vector<1x32xf32>
    %139 = vector.shape_cast %138 : vector<1x32xf32> to vector<32xf32>
    %cst_54 = arith.constant dense<0.000000e+00> : vector<16xf32>
    %140 = vector.multi_reduction <add>, %135, %cst_54 [1] : vector<16x32xf32> to vector<16xf32>
    %141 = vector.shape_cast %140 : vector<16xf32> to vector<16x1xf32>
    %cst_55 = arith.constant 3.200000e+01 : f32
    %142 = vector.broadcast %cst_55 : f32 to vector<16x1xf32>
    %143 = arith.divf %141, %142 : vector<16x1xf32>
    %144 = vector.broadcast %143 : vector<16x1xf32> to vector<16x32xf32>
    %145 = arith.subf %135, %144 : vector<16x32xf32>
    %146 = arith.mulf %145, %145 : vector<16x32xf32>
    %cst_56 = arith.constant dense<0.000000e+00> : vector<16xf32>
    %147 = vector.multi_reduction <add>, %146, %cst_56 [1] : vector<16x32xf32> to vector<16xf32>
    %148 = vector.shape_cast %147 : vector<16xf32> to vector<16x1xf32>
    %cst_57 = arith.constant 3.200000e+01 : f32
    %149 = vector.broadcast %cst_57 : f32 to vector<16x1xf32>
    %150 = arith.divf %148, %149 : vector<16x1xf32>
    %151 = vector.broadcast %143 : vector<16x1xf32> to vector<16x32xf32>
    %152 = arith.subf %135, %151 : vector<16x32xf32>
    %cst_58 = arith.constant 9.99999974E-6 : f32
    %153 = vector.broadcast %cst_58 : f32 to vector<16x1xf32>
    %154 = arith.addf %150, %153 : vector<16x1xf32>
    %155 = math.rsqrt %154 : vector<16x1xf32>
    %156 = vector.broadcast %155 : vector<16x1xf32> to vector<16x32xf32>
    %157 = arith.mulf %152, %156 : vector<16x32xf32>
    %158 = vector.shape_cast %137 : vector<32xf32> to vector<1x32xf32>
    %159 = vector.broadcast %158 : vector<1x32xf32> to vector<16x32xf32>
    %160 = arith.mulf %157, %159 : vector<16x32xf32>
    %161 = vector.shape_cast %139 : vector<32xf32> to vector<1x32xf32>
    %162 = vector.broadcast %161 : vector<1x32xf32> to vector<16x32xf32>
    %163 = arith.addf %160, %162 : vector<16x32xf32>
    %c0_59 = arith.constant 0 : index
    %c0_60 = arith.constant 0 : index
    %c0_61 = arith.constant 0 : index
    %164 = vector.load %arg17[%c0_59, %c0_60, %c0_61] : memref<1x16x32xf32, #tpu.memory_space<vmem>>, vector<1x16x32xf32>
    %165 = vector.shape_cast %164 : vector<1x16x32xf32> to vector<16x32xf32>
    %166 = vector.shape_cast %163 : vector<16x32xf32> to vector<1x16x32xf32>
    tpu.vector_store %arg17[%c0_59, %c0_60, %c0_61], %166 {strides = array<i32>} : memref<1x16x32xf32, #tpu.memory_space<vmem>>, vector<1x16x32xf32>,
    return
  }
  func.func @transform_0(%arg0: i32) -> (i32, i32, i32) {
    %c0_i32 = arith.constant 0 : i32
    %c0_i32_0 = arith.constant 0 : i32
    %c0_i32_1 = arith.constant 0 : i32
    return %arg0, %c0_i32, %c0_i32_0 : i32, i32, i32
  }
  func.func @transform_1(%arg0: i32) -> (i32, i32, i32) {
    %c0_i32 = arith.constant 0 : i32
    %c0_i32_0 = arith.constant 0 : i32
    %c0_i32_1 = arith.constant 0 : i32
    return %arg0, %c0_i32, %c0_i32_0 : i32, i32, i32
  }
  func.func @transform_2(%arg0: i32) -> (i32, i32) {
    %c0_i32 = arith.constant 0 : i32
    %c0_i32_0 = arith.constant 0 : i32
    %c0_i32_1 = arith.constant 0 : i32
    return %c0_i32, %c0_i32_0 : i32, i32
  }
  func.func @transform_3(%arg0: i32) -> (i32, i32) {
    %c0_i32 = arith.constant 0 : i32
    %c0_i32_0 = arith.constant 0 : i32
    %c0_i32_1 = arith.constant 0 : i32
    return %c0_i32, %c0_i32_0 : i32, i32
  }
  func.func @transform_4(%arg0: i32) -> (i32, i32) {
    %c0_i32 = arith.constant 0 : i32
    %c0_i32_0 = arith.constant 0 : i32
    %c0_i32_1 = arith.constant 0 : i32
    return %c0_i32, %c0_i32_0 : i32, i32
  }
  func.func @transform_5(%arg0: i32) -> (i32, i32) {
    %c0_i32 = arith.constant 0 : i32
    %c0_i32_0 = arith.constant 0 : i32
    %c0_i32_1 = arith.constant 0 : i32
    return %c0_i32, %c0_i32_0 : i32, i32
  }
  func.func @transform_6(%arg0: i32) -> (i32, i32) {
    %c0_i32 = arith.constant 0 : i32
    %c0_i32_0 = arith.constant 0 : i32
    %c0_i32_1 = arith.constant 0 : i32
    return %c0_i32, %c0_i32_0 : i32, i32
  }
  func.func @transform_7(%arg0: i32) -> (i32, i32) {
    %c0_i32 = arith.constant 0 : i32
    %c0_i32_0 = arith.constant 0 : i32
    %c0_i32_1 = arith.constant 0 : i32
    return %c0_i32, %c0_i32_0 : i32, i32
  }
  func.func @transform_8(%arg0: i32) -> (i32, i32) {
    %c0_i32 = arith.constant 0 : i32
    %c0_i32_0 = arith.constant 0 : i32
    %c0_i32_1 = arith.constant 0 : i32
    return %c0_i32, %c0_i32_0 : i32, i32
  }
  func.func @transform_9(%arg0: i32) -> (i32, i32) {
    %c0_i32 = arith.constant 0 : i32
    %c0_i32_0 = arith.constant 0 : i32
    %c0_i32_1 = arith.constant 0 : i32
    return %c0_i32, %c0_i32_0 : i32, i32
  }
  func.func @transform_10(%arg0: i32) -> (i32, i32) {
    %c0_i32 = arith.constant 0 : i32
    %c0_i32_0 = arith.constant 0 : i32
    %c0_i32_1 = arith.constant 0 : i32
    return %c0_i32, %c0_i32_0 : i32, i32
  }
  func.func @transform_11(%arg0: i32) -> (i32, i32) {
    %c0_i32 = arith.constant 0 : i32
    %c0_i32_0 = arith.constant 0 : i32
    %c0_i32_1 = arith.constant 0 : i32
    return %c0_i32, %c0_i32_0 : i32, i32
  }
  func.func @transform_12(%arg0: i32) -> (i32, i32) {
    %c0_i32 = arith.constant 0 : i32
    %c0_i32_0 = arith.constant 0 : i32
    %c0_i32_1 = arith.constant 0 : i32
    return %c0_i32, %c0_i32_0 : i32, i32
  }
  func.func @transform_13(%arg0: i32) -> (i32, i32) {
    %c0_i32 = arith.constant 0 : i32
    %c0_i32_0 = arith.constant 0 : i32
    %c0_i32_1 = arith.constant 0 : i32
    return %c0_i32, %c0_i32_0 : i32, i32
  }
  func.func @transform_14(%arg0: i32) -> (i32, i32) {
    %c0_i32 = arith.constant 0 : i32
    %c0_i32_0 = arith.constant 0 : i32
    %c0_i32_1 = arith.constant 0 : i32
    return %c0_i32, %c0_i32_0 : i32, i32
  }
  func.func @transform_15(%arg0: i32) -> (i32, i32) {
    %c0_i32 = arith.constant 0 : i32
    %c0_i32_0 = arith.constant 0 : i32
    %c0_i32_1 = arith.constant 0 : i32
    return %c0_i32, %c0_i32_0 : i32, i32
  }
  func.func @transform_16(%arg0: i32) -> (i32, i32, i32) {
    %c0_i32 = arith.constant 0 : i32
    %c0_i32_0 = arith.constant 0 : i32
    %c0_i32_1 = arith.constant 0 : i32
    return %arg0, %c0_i32, %c0_i32_0 : i32, i32, i32
  }
}

module attributes {stable_mosaic.version = 11 : i64} {
  func.func @_out_head_kernel(%arg0: i32, %arg1: memref<1x8x32xf32, #tpu.memory_space<vmem>>, %arg2: memref<1x8x1xi32, #tpu.memory_space<vmem>>, %arg3: memref<1x32xf32, #tpu.memory_space<vmem>>, %arg4: memref<1x32xf32, #tpu.memory_space<vmem>>, %arg5: memref<32x64xf32, #tpu.memory_space<vmem>>, %arg6: memref<1x64xf32, #tpu.memory_space<vmem>>, %arg7: memref<1x8x64xf32, #tpu.memory_space<vmem>>, %arg8: memref<1x8x1xf32, #tpu.memory_space<vmem>>) attributes {dimension_semantics = [#tpu.dimension_semantics<parallel>], iteration_bounds = array<i64: 2>, scalar_prefetch = 0 : i64, scratch_operands = 0 : i64, tpu.core_type = #tpu.core_type<tc>, window_params = [{transform_indices = @transform_0, window_bounds = array<i64: 1, 8, 32>}, {transform_indices = @transform_1, window_bounds = array<i64: 1, 8, 1>}, {pipeline_mode = #tpu.pipeline_mode<synchronous>, transform_indices = @transform_2, window_bounds = array<i64: 1, 32>}, {pipeline_mode = #tpu.pipeline_mode<synchronous>, transform_indices = @transform_3, window_bounds = array<i64: 1, 32>}, {pipeline_mode = #tpu.pipeline_mode<synchronous>, transform_indices = @transform_4, window_bounds = array<i64: 32, 64>}, {pipeline_mode = #tpu.pipeline_mode<synchronous>, transform_indices = @transform_5, window_bounds = array<i64: 1, 64>}, {transform_indices = @transform_6, window_bounds = array<i64: 1, 8, 64>}, {transform_indices = @transform_7, window_bounds = array<i64: 1, 8, 1>}]} {
    %c0 = arith.constant 0 : index
    %c0_0 = arith.constant 0 : index
    %c0_1 = arith.constant 0 : index
    %0 = vector.load %arg1[%c0, %c0_0, %c0_1] : memref<1x8x32xf32, #tpu.memory_space<vmem>>, vector<1x8x32xf32>
    %1 = vector.shape_cast %0 : vector<1x8x32xf32> to vector<8x32xf32>
    %c0_2 = arith.constant 0 : index
    %c0_3 = arith.constant 0 : index
    %2 = vector.load %arg3[%c0_2, %c0_3] : memref<1x32xf32, #tpu.memory_space<vmem>>, vector<1x32xf32>
    %3 = vector.shape_cast %2 : vector<1x32xf32> to vector<32xf32>
    %c0_4 = arith.constant 0 : index
    %c0_5 = arith.constant 0 : index
    %4 = vector.load %arg4[%c0_4, %c0_5] : memref<1x32xf32, #tpu.memory_space<vmem>>, vector<1x32xf32>
    %5 = vector.shape_cast %4 : vector<1x32xf32> to vector<32xf32>
    %cst = arith.constant dense<0.000000e+00> : vector<8xf32>
    %6 = vector.multi_reduction <add>, %1, %cst [1] : vector<8x32xf32> to vector<8xf32>
    %7 = vector.shape_cast %6 : vector<8xf32> to vector<8x1xf32>
    %cst_6 = arith.constant 3.200000e+01 : f32
    %8 = vector.broadcast %cst_6 : f32 to vector<8x1xf32>
    %9 = arith.divf %7, %8 : vector<8x1xf32>
    %10 = vector.broadcast %9 : vector<8x1xf32> to vector<8x32xf32>
    %11 = arith.subf %1, %10 : vector<8x32xf32>
    %12 = arith.mulf %11, %11 : vector<8x32xf32>
    %cst_7 = arith.constant dense<0.000000e+00> : vector<8xf32>
    %13 = vector.multi_reduction <add>, %12, %cst_7 [1] : vector<8x32xf32> to vector<8xf32>
    %14 = vector.shape_cast %13 : vector<8xf32> to vector<8x1xf32>
    %cst_8 = arith.constant 3.200000e+01 : f32
    %15 = vector.broadcast %cst_8 : f32 to vector<8x1xf32>
    %16 = arith.divf %14, %15 : vector<8x1xf32>
    %17 = vector.broadcast %9 : vector<8x1xf32> to vector<8x32xf32>
    %18 = arith.subf %1, %17 : vector<8x32xf32>
    %cst_9 = arith.constant 9.99999974E-6 : f32
    %19 = vector.broadcast %cst_9 : f32 to vector<8x1xf32>
    %20 = arith.addf %16, %19 : vector<8x1xf32>
    %21 = math.rsqrt %20 : vector<8x1xf32>
    %22 = vector.broadcast %21 : vector<8x1xf32> to vector<8x32xf32>
    %23 = arith.mulf %18, %22 : vector<8x32xf32>
    %24 = vector.shape_cast %3 : vector<32xf32> to vector<1x32xf32>
    %25 = vector.broadcast %24 : vector<1x32xf32> to vector<8x32xf32>
    %26 = arith.mulf %23, %25 : vector<8x32xf32>
    %27 = vector.shape_cast %5 : vector<32xf32> to vector<1x32xf32>
    %28 = vector.broadcast %27 : vector<1x32xf32> to vector<8x32xf32>
    %29 = arith.addf %26, %28 : vector<8x32xf32>
    %c0_10 = arith.constant 0 : index
    %c0_11 = arith.constant 0 : index
    %30 = vector.load %arg5[%c0_10, %c0_11] : memref<32x64xf32, #tpu.memory_space<vmem>>, vector<32x64xf32>
    %c0_12 = arith.constant 0 : index
    %c0_13 = arith.constant 0 : index
    %31 = vector.load %arg6[%c0_12, %c0_13] : memref<1x64xf32, #tpu.memory_space<vmem>>, vector<1x64xf32>
    %32 = vector.shape_cast %31 : vector<1x64xf32> to vector<64xf32>
    %33 = arith.truncf %29 : vector<8x32xf32> to vector<8x32xbf16>
    %34 = arith.truncf %30 : vector<32x64xf32> to vector<32x64xbf16>
    %cst_14 = arith.constant dense<0.000000e+00> : vector<8x64xf32>
    %35 = tpu.matmul %33, %34, %cst_14 {dimension_numbers = #tpu.dot_dimension_numbers<[1], [0], [0], [1], [0, 0, 1, 1], [], []>} : vector<8x32xbf16>, vector<32x64xbf16>, vector<8x64xf32> -> vector<8x64xf32>
    %36 = vector.shape_cast %32 : vector<64xf32> to vector<1x64xf32>
    %37 = vector.broadcast %36 : vector<1x64xf32> to vector<8x64xf32>
    %38 = arith.addf %35, %37 : vector<8x64xf32>
    %cst_15 = arith.constant dense<0xFF800000> : vector<8xf32>
    %39 = vector.multi_reduction <maximumf>, %38, %cst_15 [1] : vector<8x64xf32> to vector<8xf32>
    %40 = vector.shape_cast %39 : vector<8xf32> to vector<8x1xf32>
    %41 = vector.broadcast %40 : vector<8x1xf32> to vector<8x64xf32>
    %42 = arith.subf %38, %41 : vector<8x64xf32>
    %43 = math.exp %42 : vector<8x64xf32>
    %cst_16 = arith.constant dense<0.000000e+00> : vector<8xf32>
    %44 = vector.multi_reduction <add>, %43, %cst_16 [1] : vector<8x64xf32> to vector<8xf32>
    %45 = vector.shape_cast %44 : vector<8xf32> to vector<8x1xf32>
    %46 = vector.broadcast %45 : vector<8x1xf32> to vector<8x64xf32>
    %47 = arith.divf %43, %46 : vector<8x64xf32>
    %c0_17 = arith.constant 0 : index
    %c0_18 = arith.constant 0 : index
    %c0_19 = arith.constant 0 : index
    %48 = vector.load %arg7[%c0_17, %c0_18, %c0_19] : memref<1x8x64xf32, #tpu.memory_space<vmem>>, vector<1x8x64xf32>
    %49 = vector.shape_cast %48 : vector<1x8x64xf32> to vector<8x64xf32>
    %50 = vector.shape_cast %47 : vector<8x64xf32> to vector<1x8x64xf32>
    tpu.vector_store %arg7[%c0_17, %c0_18, %c0_19], %50 {strides = array<i32>} : memref<1x8x64xf32, #tpu.memory_space<vmem>>, vector<1x8x64xf32>,
    %51 = math.log %45 : vector<8x1xf32>
    %52 = vector.broadcast %51 : vector<8x1xf32> to vector<8x64xf32>
    %53 = arith.subf %42, %52 : vector<8x64xf32>
    %c0_20 = arith.constant 0 : index
    %c0_21 = arith.constant 0 : index
    %c0_22 = arith.constant 0 : index
    %54 = vector.load %arg2[%c0_20, %c0_21, %c0_22] : memref<1x8x1xi32, #tpu.memory_space<vmem>>, vector<1x8x1xi32>
    %55 = vector.shape_cast %54 : vector<1x8x1xi32> to vector<8x1xi32>
    %56 = tpu.iota {dimensions = array<i32: 1>} : vector<8x64xi32>
    %57 = vector.broadcast %55 : vector<8x1xi32> to vector<8x64xi32>
    %58 = arith.cmpi eq, %56, %57 : vector<8x64xi32>
    %cst_23 = arith.constant 0.000000e+00 : f32
    %59 = vector.broadcast %cst_23 : f32 to vector<8x64xf32>
    %60 = arith.select %58, %53, %59 : vector<8x64xi1>, vector<8x64xf32>
    %cst_24 = arith.constant dense<0.000000e+00> : vector<8xf32>
    %61 = vector.multi_reduction <add>, %60, %cst_24 [1] : vector<8x64xf32> to vector<8xf32>
    %62 = vector.shape_cast %61 : vector<8xf32> to vector<8x1xf32>
    %cst_25 = arith.constant 0.000000e+00 : f32
    %63 = vector.broadcast %cst_25 : f32 to vector<8x1xf32>
    %64 = arith.subf %63, %62 : vector<8x1xf32>
    %c0_26 = arith.constant 0 : index
    %c0_27 = arith.constant 0 : index
    %c0_28 = arith.constant 0 : index
    %65 = vector.load %arg8[%c0_26, %c0_27, %c0_28] : memref<1x8x1xf32, #tpu.memory_space<vmem>>, vector<1x8x1xf32>
    %66 = vector.shape_cast %65 : vector<1x8x1xf32> to vector<8x1xf32>
    %67 = vector.shape_cast %64 : vector<8x1xf32> to vector<1x8x1xf32>
    tpu.vector_store %arg8[%c0_26, %c0_27, %c0_28], %67 {strides = array<i32>} : memref<1x8x1xf32, #tpu.memory_space<vmem>>, vector<1x8x1xf32>,
    return
  }
  func.func @transform_0(%arg0: i32) -> (i32, i32, i32) {
    %c0_i32 = arith.constant 0 : i32
    %c0_i32_0 = arith.constant 0 : i32
    %c0_i32_1 = arith.constant 0 : i32
    return %arg0, %c0_i32, %c0_i32_0 : i32, i32, i32
  }
  func.func @transform_1(%arg0: i32) -> (i32, i32, i32) {
    %c0_i32 = arith.constant 0 : i32
    %c0_i32_0 = arith.constant 0 : i32
    %c0_i32_1 = arith.constant 0 : i32
    return %arg0, %c0_i32, %c0_i32_0 : i32, i32, i32
  }
  func.func @transform_2(%arg0: i32) -> (i32, i32) {
    %c0_i32 = arith.constant 0 : i32
    %c0_i32_0 = arith.constant 0 : i32
    %c0_i32_1 = arith.constant 0 : i32
    return %c0_i32, %c0_i32_0 : i32, i32
  }
  func.func @transform_3(%arg0: i32) -> (i32, i32) {
    %c0_i32 = arith.constant 0 : i32
    %c0_i32_0 = arith.constant 0 : i32
    %c0_i32_1 = arith.constant 0 : i32
    return %c0_i32, %c0_i32_0 : i32, i32
  }
  func.func @transform_4(%arg0: i32) -> (i32, i32) {
    %c0_i32 = arith.constant 0 : i32
    %c0_i32_0 = arith.constant 0 : i32
    %c0_i32_1 = arith.constant 0 : i32
    return %c0_i32, %c0_i32_0 : i32, i32
  }
  func.func @transform_5(%arg0: i32) -> (i32, i32) {
    %c0_i32 = arith.constant 0 : i32
    %c0_i32_0 = arith.constant 0 : i32
    %c0_i32_1 = arith.constant 0 : i32
    return %c0_i32, %c0_i32_0 : i32, i32
  }
  func.func @transform_6(%arg0: i32) -> (i32, i32, i32) {
    %c0_i32 = arith.constant 0 : i32
    %c0_i32_0 = arith.constant 0 : i32
    %c0_i32_1 = arith.constant 0 : i32
    return %arg0, %c0_i32, %c0_i32_0 : i32, i32, i32
  }
  func.func @transform_7(%arg0: i32) -> (i32, i32, i32) {
    %c0_i32 = arith.constant 0 : i32
    %c0_i32_0 = arith.constant 0 : i32
    %c0_i32_1 = arith.constant 0 : i32
    return %arg0, %c0_i32, %c0_i32_0 : i32, i32, i32
  }
}

</mosaic_0001>

<llo_original>
// kernel: model_forward.9
$region0: #{model_forward.9}
  #allocation0 [shape = 'u32[]', space=smem, size = 0x4, offset = 0x4, fixed_abs, tag = 'smem constant byte address 0x4 - core index']
  #allocation1 [shape = 'u32[144,128]{1,0:T(1,128)}', space=vmem, size = 0x12000, scoped, tag = 'internal scratch']
  %s0 = inlined_call_operand.vmem [shape: f32[2,8,32], index: 0, kind: input, shape index: {}]
  %s1 = inlined_call_operand.vmem [shape: s32[2,8,1], index: 1, kind: input, shape index: {}]
  %s2 = inlined_call_operand.vmem [shape: f32[1,32], index: 2, kind: input, shape index: {}]
  %s3 = inlined_call_operand.vmem [shape: f32[1,32], index: 3, kind: input, shape index: {}]
  %s4 = inlined_call_operand.vmem [shape: f32[32,64], index: 4, kind: input, shape index: {}]
  %s5 = inlined_call_operand.vmem [shape: f32[1,64], index: 5, kind: input, shape index: {}]
  %s6 = inlined_call_operand.hbm [shape: f32[2,8,64], index: 6, kind: output, shape index: {0}]
  %s7 = inlined_call_operand.vmem [shape: f32[2,8,1], index: 7, kind: output, shape index: {1}]
  %8 = xla_tuple %s6, %s7
  %s9 = sld [smem:[#allocation0]]
  $region65: #{model_forward.9} parent=0
    _
  %s11 = ssub.s32 1, %s9
  %s12 = scalar_select 0, %s11, %s9
  $region1: #{model_forward.9} parent=0
    #allocation2 [shape = 'u8[8192]{0}', space=vmem, size = 0x2000, scoped, tag = 'output window, operand 0']
    #allocation3 [shape = 's32[2]{0}', space=sflag, size = 0x8, scoped, tag = 'scoped memory for model_forward.9']
    %13 = vsyncpa [#allocation3], 0
    %s14 = scalar_lea.sflag [#allocation3], 1
    %15 = vsyncpa %s14, 0
    loop: start=0, step=1, limit=4
    $region2: #{model_forward.9} parent=1 // loop_pre_header
      _
    $region3: #{model_forward.9} parent=1 // loop_header
      %s17 = sphi 0, %s21
      %p18 = scmp.ge.s32.totalorder %s17, 4
      %s27 = sphi 0, %s29
      %s30 = sphi 0, %s27
      %s31 = sphi 0, %s30
      %s47 = sphi 0, %s31
      %s53 = sphi 0, %s55
      %s56 = sphi 0, %s53
      %s57 = sphi 0, %s56
      %s73 = sphi 0, %s57
      %s77 = sphi 0, %s77
      %s79 = sphi 0, %s77
      %s80 = sphi 0, %s79
      %s94 = sphi 0, %s80
      %s98 = sphi 0, %s98
      %s100 = sphi 0, %s98
      %s101 = sphi 0, %s100
      %s115 = sphi 0, %s101
      %s119 = sphi 0, %s119
      %s121 = sphi 0, %s119
      %s122 = sphi 0, %s121
      %s136 = sphi 0, %s122
      %s140 = sphi 0, %s140
      %s142 = sphi 0, %s140
      %s143 = sphi 0, %s142
      %s157 = sphi 0, %s143
      %s163 = sphi 0, %s165
      %s166 = sphi 0, %s163
      %s167 = sphi 0, %s166
      %s183 = sphi 0, %s167
      %s189 = sphi 0, %s191
      %s192 = sphi 0, %s189
      %s193 = sphi 0, %s192
      %s209 = sphi 0, %s193
    $region4: #{model_forward.9} parent=1 // loop_header_branch
      %20 = sbr.rel (%p18) target = $region8
    $region5: #{model_forward.9} parent=1 // loop_body
      %s22 = ssub.s32 %s17, 1
      %s23 = ssub.s32 %s17, 2
      %s24 = sadd.s32 %s17, 1
      %s25 = ssub.s32 %s17, %s24
      %p26 = scmp.eq.s32.totalorder %s25, 0
      %s28 = sadd.s32 %s27, 1
      %s29 = scalar_select %p26, %s27, %s28
      %p32 = pneg %p26
      %p33 = scmp.eq.s32.totalorder %s17, 1
      %p34 = por %p32, %p33
      %p35 = scmp.ne.s32.totalorder %s27, %s30
      %p36 = scmp.eq.s32.totalorder %s17, 0
      %p37 = por %p35, %p36
      %p38 = scmp.ne.s32.totalorder %s27, %s30
      %p39 = scmp.eq.s32.totalorder %s22, 1
      %p40 = por %p38, %p39
      %p41 = scmp.ne.s32.totalorder %s30, %s31
      %p42 = scmp.eq.s32.totalorder %s22, 0
      %p43 = por %p41, %p42
      %p44 = scmp.ne.s32.totalorder %s30, %s31
      %p45 = scmp.eq.s32.totalorder %s23, 1
      %p46 = por %p44, %p45
      %p48 = scmp.ne.s32.totalorder %s31, %s47
      %p49 = scmp.eq.s32.totalorder %s23, 0
      %p50 = por %p48, %p49
      %s51 = ssub.s32 %s17, %s24
      %p52 = scmp.eq.s32.totalorder %s51, 0
      %s54 = sadd.s32 %s53, 1
      %s55 = scalar_select %p52, %s53, %s54
      %p58 = pneg %p52
      %p59 = scmp.eq.s32.totalorder %s17, 1
      %p60 = por %p58, %p59
      %p61 = scmp.ne.s32.totalorder %s53, %s56
      %p62 = scmp.eq.s32.totalorder %s17, 0
      %p63 = por %p61, %p62
      %p64 = scmp.ne.s32.totalorder %s53, %s56
      %p65 = scmp.eq.s32.totalorder %s22, 1
      %p66 = por %p64, %p65
      %p67 = scmp.ne.s32.totalorder %s56, %s57
      %p68 = scmp.eq.s32.totalorder %s22, 0
      %p69 = por %p67, %p68
      %p70 = scmp.ne.s32.totalorder %s56, %s57
      %p71 = scmp.eq.s32.totalorder %s23, 1
      %p72 = por %p70, %p71
      %p74 = scmp.ne.s32.totalorder %s57, %s73
      %p75 = scmp.eq.s32.totalorder %s23, 0
      %p76 = por %p74, %p75
      %s78 = sadd.s32 %s77, 1
      %p81 = scmp.eq.s32.totalorder %s17, 1
      %p82 = scmp.ne.s32.totalorder %s77, %s79
      %p83 = scmp.eq.s32.totalorder %s17, 0
      %p84 = por %p82, %p83
      %p85 = scmp.ne.s32.totalorder %s77, %s79
      %p86 = scmp.eq.s32.totalorder %s22, 1
      %p87 = por %p85, %p86
      %p88 = scmp.ne.s32.totalorder %s79, %s80
      %p89 = scmp.eq.s32.totalorder %s22, 0
      %p90 = por %p88, %p89
      %p91 = scmp.ne.s32.totalorder %s79, %s80
      %p92 = scmp.eq.s32.totalorder %s23, 1
      %p93 = por %p91, %p92
      %p95 = scmp.ne.s32.totalorder %s80, %s94
      %p96 = scmp.eq.s32.totalorder %s23, 0
      %p97 = por %p95, %p96
      %s99 = sadd.s32 %s98, 1
      %p102 = scmp.eq.s32.totalorder %s17, 1
      %p103 = scmp.ne.s32.totalorder %s98, %s100
      %p104 = scmp.eq.s32.totalorder %s17, 0
      %p105 = por %p103, %p104
      %p106 = scmp.ne.s32.totalorder %s98, %s100
      %p107 = scmp.eq.s32.totalorder %s22, 1
      %p108 = por %p106, %p107
      %p109 = scmp.ne.s32.totalorder %s100, %s101
      %p110 = scmp.eq.s32.totalorder %s22, 0
      %p111 = por %p109, %p110
      %p112 = scmp.ne.s32.totalorder %s100, %s101
      %p113 = scmp.eq.s32.totalorder %s23, 1
      %p114 = por %p112, %p113
      %p116 = scmp.ne.s32.totalorder %s101, %s115
      %p117 = scmp.eq.s32.totalorder %s23, 0
      %p118 = por %p116, %p117
      %s120 = sadd.s32 %s119, 1
      %p123 = scmp.eq.s32.totalorder %s17, 1
      %p124 = scmp.ne.s32.totalorder %s119, %s121
      %p125 = scmp.eq.s32.totalorder %s17, 0
      %p126 = por %p124, %p125
      %p127 = scmp.ne.s32.totalorder %s119, %s121
      %p128 = scmp.eq.s32.totalorder %s22, 1
      %p129 = por %p127, %p128
      %p130 = scmp.ne.s32.totalorder %s121, %s122
      %p131 = scmp.eq.s32.totalorder %s22, 0
      %p132 = por %p130, %p131
      %p133 = scmp.ne.s32.totalorder %s121, %s122
      %p134 = scmp.eq.s32.totalorder %s23, 1
      %p135 = por %p133, %p134
      %p137 = scmp.ne.s32.totalorder %s122, %s136
      %p138 = scmp.eq.s32.totalorder %s23, 0
      %p139 = por %p137, %p138
      %s141 = sadd.s32 %s140, 1
      %p144 = scmp.eq.s32.totalorder %s17, 1
      %p145 = scmp.ne.s32.totalorder %s140, %s142
      %p146 = scmp.eq.s32.totalorder %s17, 0
      %p147 = por %p145, %p146
      %p148 = scmp.ne.s32.totalorder %s140, %s142
      %p149 = scmp.eq.s32.totalorder %s22, 1
      %p150 = por %p148, %p149
      %p151 = scmp.ne.s32.totalorder %s142, %s143
      %p152 = scmp.eq.s32.totalorder %s22, 0
      %p153 = por %p151, %p152
      %p154 = scmp.ne.s32.totalorder %s142, %s143
      %p155 = scmp.eq.s32.totalorder %s23, 1
      %p156 = por %p154, %p155
      %p158 = scmp.ne.s32.totalorder %s143, %s157
      %p159 = scmp.eq.s32.totalorder %s23, 0
      %p160 = por %p158, %p159
      %s161 = ssub.s32 %s17, %s24
      %p162 = scmp.eq.s32.totalorder %s161, 0
      %s164 = sadd.s32 %s163, 1
      %s165 = scalar_select %p162, %s163, %s164
      %p168 = pneg %p162
      %p169 = scmp.eq.s32.totalorder %s17, 1
      %p170 = por %p168, %p169
      %p171 = scmp.ne.s32.totalorder %s163, %s166
      %p172 = scmp.eq.s32.totalorder %s17, 0
      %p173 = por %p171, %p172
      %p174 = scmp.ne.s32.totalorder %s163, %s166
      %p175 = scmp.eq.s32.totalorder %s22, 1
      %p176 = por %p174, %p175
      %p177 = scmp.ne.s32.totalorder %s166, %s167
      %p178 = scmp.eq.s32.totalorder %s22, 0
      %p179 = por %p177, %p178
      %p180 = scmp.ne.s32.totalorder %s166, %s167
      %p181 = scmp.eq.s32.totalorder %s23, 1
      %p182 = por %p180, %p181
      %p184 = scmp.ne.s32.totalorder %s167, %s183
      %p185 = scmp.eq.s32.totalorder %s23, 0
      %p186 = por %p184, %p185
      %s187 = ssub.s32 %s17, %s24
      %p188 = scmp.eq.s32.totalorder %s187, 0
      %s190 = sadd.s32 %s189, 1
      %s191 = scalar_select %p188, %s189, %s190
      %p194 = pneg %p188
      %p195 = scmp.eq.s32.totalorder %s17, 1
      %p196 = por %p194, %p195
      %p197 = scmp.ne.s32.totalorder %s189, %s192
      %p198 = scmp.eq.s32.totalorder %s17, 0
      %p199 = por %p197, %p198
      %p200 = scmp.ne.s32.totalorder %s189, %s192
      %p201 = scmp.eq.s32.totalorder %s22, 1
      %p202 = por %p200, %p201
      %p203 = scmp.ne.s32.totalorder %s192, %s193
      %p204 = scmp.eq.s32.totalorder %s22, 0
      %p205 = por %p203, %p204
      %p206 = scmp.ne.s32.totalorder %s192, %s193
      %p207 = scmp.eq.s32.totalorder %s23, 1
      %p208 = por %p206, %p207
      %p210 = scmp.ne.s32.totalorder %s193, %s209
      %p211 = scmp.eq.s32.totalorder %s23, 0
      %p212 = por %p210, %p211
      %p213 = scmp.le.s32.totalorder 1, %s17
      %p214 = scmp.lt.s32.totalorder %s17, 3
      %p215 = pnand %p213, %p214
      %p216 = pneg %p215
      // Predicated region
      $region9: #{model_forward.9} parent=5 // pred_check
        _
      $region10: #{model_forward.9} parent=5 // pred_check_branch
        %218 = sbr.rel (%p215) target = $region12
      $region11: #{model_forward.9} parent=5 // pred_region
        %s219 = ssub.s32 %s17, 1
        // Predicated region
        $region13: #{model_forward.9} parent=11 // pred_check
          %p220 = pneg %p90
        $region14: #{model_forward.9} parent=11 // pred_check_branch
          %222 = sbr.rel (%p220) target = $region16
        $region15: #{model_forward.9} parent=11 // pred_region
          _
        $region16: #{model_forward.9} parent=11 // pred_fallthru
          _
        // Predicated region
        $region17: #{model_forward.9} parent=11 // pred_check
          %p223 = pneg %p111
        $region18: #{model_forward.9} parent=11 // pred_check_branch
          %225 = sbr.rel (%p223) target = $region20
        $region19: #{model_forward.9} parent=11 // pred_region
          _
        $region20: #{model_forward.9} parent=11 // pred_fallthru
          _
        // Predicated region
        $region21: #{model_forward.9} parent=11 // pred_check
          %p226 = pneg %p132
        $region22: #{model_forward.9} parent=11 // pred_check_branch
          %228 = sbr.rel (%p226) target = $region24
        $region23: #{model_forward.9} parent=11 // pred_region
          _
        $region24: #{model_forward.9} parent=11 // pred_fallthru
          _
        // Predicated region
        $region25: #{model_forward.9} parent=11 // pred_check
          %p229 = pneg %p153
        $region26: #{model_forward.9} parent=11 // pred_check_branch
          %231 = sbr.rel (%p229) target = $region28
        $region27: #{model_forward.9} parent=11 // pred_region
          _
        $region28: #{model_forward.9} parent=11 // pred_fallthru
          _
      $region12: #{model_forward.9} parent=5 // pred_fallthru
        _
      %p232 = scmp.lt.s32.totalorder %s17, 2
      // Predicated region
      $region29: #{model_forward.9} parent=5 // pred_check
        %p233 = pneg %p232
      $region30: #{model_forward.9} parent=5 // pred_check_branch
        %235 = sbr.rel (%p233) target = $region32
      $region31: #{model_forward.9} parent=5 // pred_region
        // Predicated region
        $region33: #{model_forward.9} parent=31 // pred_check
          %p236 = pneg %p37
        $region34: #{model_forward.9} parent=31 // pred_check_branch
          %238 = sbr.rel (%p236) target = $region36
        $region35: #{model_forward.9} parent=31 // pred_region
          %p239 = scmp.lt.s32.totalorder %s17, 1
          %s240 = scalar_select %p239, %s17, 1
          %s241 = smul.addr %s240, 8
          %s242 = scalar_lea.vmem %s0, %s241
        $region36: #{model_forward.9} parent=31 // pred_fallthru
          _
        // Predicated region
        $region37: #{model_forward.9} parent=31 // pred_check
          %p243 = pneg %p63
        $region38: #{model_forward.9} parent=31 // pred_check_branch
          %245 = sbr.rel (%p243) target = $region40
        $region39: #{model_forward.9} parent=31 // pred_region
          %p246 = scmp.lt.s32.totalorder %s17, 1
          %s247 = scalar_select %p246, %s17, 1
          %s248 = smul.addr %s247, 8
          %s249 = scalar_lea.vmem %s1, %s248
        $region40: #{model_forward.9} parent=31 // pred_fallthru
          _
      $region32: #{model_forward.9} parent=5 // pred_fallthru
        _
      %p250 = scmp.le.s32.totalorder 1, %s17
      %p251 = scmp.lt.s32.totalorder %s17, 3
      %p252 = pnand %p250, %p251
      %p253 = pneg %p252
      // Predicated region
      $region41: #{model_forward.9} parent=5 // pred_check
        _
      $region42: #{model_forward.9} parent=5 // pred_check_branch
        %255 = sbr.rel (%p252) target = $region44
      $region43: #{model_forward.9} parent=5 // pred_region
        %s256 = ssub.s32 %s17, 1
        %p257 = scmp.lt.s32.totalorder %s22, 1
        %s258 = scalar_select %p257, %s22, 1
        %s259 = smul.addr %s258, 8
        %s260 = scalar_lea.vmem %s0, %s259
        %p261 = pneg %p43
        %p262 = pneg %p40
        %p263 = scmp.lt.s32.totalorder %s22, 1
        %s264 = scalar_select %p263, %s22, 1
        %s265 = smul.addr %s264, 8
        %s266 = scalar_lea.vmem %s1, %s265
        %p267 = pneg %p69
        %p268 = pneg %p66
        %p269 = pneg %p90
        %p270 = pneg %p87
        %p271 = pneg %p111
        %p272 = pneg %p108
        %p273 = pneg %p132
        %p274 = pneg %p129
        %p275 = pneg %p153
        %p276 = pneg %p150
        %p277 = pneg %p179
        %p278 = pneg %p176
        %s279 = sand.u32 %s166, 1
        %s280 = scalar_lea.sflag [#allocation3], %s279
        %s281 = sand.u32 %s166, 1
        %s282 = smul.addr %s281, 8
        %s283 = scalar_lea.vmem [#allocation2], %s282
        %p284 = pneg %p205
        %p285 = pneg %p202
        %p286 = scmp.lt.s32.totalorder %s22, 1
        %s287 = scalar_select %p286, %s22, 1
        %s288 = smul.addr %s287, 8
        %s289 = scalar_lea.vmem %s7, %s288
        %p290 = scmp.lt.s32.totalorder %s22, 1
        %s291 = scalar_select %p290, %s22, 1
        %s292 = smul.addr %s291, 8
        %s293 = scalar_lea.vmem %s0, %s292
        %p294 = scmp.lt.s32.totalorder %s22, 1
        %s295 = scalar_select %p294, %s22, 1
        %s296 = smul.addr %s295, 8
        %s297 = scalar_lea.vmem %s1, %s296
        %p298 = scmp.lt.s32.totalorder %s22, 1
        %s299 = scalar_select %p298, %s22, 1
        %s300 = smul.addr %s299, 8
        %s301 = scalar_lea.vmem %s7, %s300
        %v303 = vld [vmem:[%s293] sm:$0xff]
        %v304 = vld [vmem:[%s2] sm:$0x1]
        %v305 = vld [vmem:[%s3] sm:$0x1]
        %vm306 = vcmask 261120
        %v307 = vsel %vm306, %v303, 0.0
        %308 = vadd.xlane.f32.xlu0 %v307
        %v309 = vpop.xlane.xlu0 %308
        %v310 = vrcp.pop 32.0
        %v311 = vmul.f32 %v309, %v310
        %v312 = vsub.f32 %v303, %v311
        %v313 = vmul.f32 %v312, %v312
        %v314 = vsel %vm306, %v313, 0.0
        %315 = vadd.xlane.f32.xlu0 %v314
        %v316 = vpop.xlane.xlu0 %315
        %v317 = vmul.f32 %v316, %v310
        %v318 = vadd.f32 %v317, 1e-05
        %v319 = vrsqrt.pop %v318
        %v320 = vmul.f32 %v312, %v319
        %v322 = vlaneseq
        %v323 = vshrl.u32 %v322, 7
        %v324 = vsub.s32 0, %v323
        %v325 = vrot.slane %v304, %v324
        %v327 = vmul.f32 %v320, %v325
        %v329 = vlaneseq
        %v330 = vshrl.u32 %v329, 7
        %v331 = vsub.s32 0, %v330
        %v332 = vrot.slane %v305, %v331
        %v334 = vadd.f32 %v327, %v332
        %v335 = vld [vmem:[%s4] sm:$0xff]
        %v336 = vld [vmem:[%s4 + $0x8] sm:$0xff]
        %v337 = vld [vmem:[%s4 + $0x10] sm:$0xff]
        %v338 = vld [vmem:[%s4 + $0x18] sm:$0xff]
        %v339 = vld [vmem:[%s5] sm:$0x1]
        %v340 = vpack.c.bf16 %v334, %v334
        %v341 = vpack.c.bf16 %v336, %v335
        %v342 = vpack.c.bf16 %v338, %v337
        %v344 = vlaneseq
        %v345 = vshrl.u32 %v344, 7
        %v346 = vsub.s32 0, %v345
        %v347 = vrot.slane %v339, %v346
        %v350 = vsel %vm306, %v340, 0
        %352 = vmatprep.subr.bf16.mxu0 0
        %353 = vmatpush1.bf16.msra.mxu0 %v341
        %354 = vmatprep.subr.bf16.mxu0 0
        %355 = vmatpush1.bf16.msra.mxu0 %v342
        %356 = vmatprep.subr.bf16.mxu0 0
        %357 = vmatpush1.bf16.msra.mxu0 0
        %358 = vmatprep.subr.bf16.mxu0 0
        %359 = vmatpush1.bf16.msra.mxu0 0
        %360 = vmatprep.subr.bf16.mxu0 0
        %361 = vmatpush1.bf16.msra.mxu0 0
        %362 = vmatprep.subr.bf16.mxu0 0
        %363 = vmatpush1.bf16.msra.mxu0 0
        %364 = vmatprep.subr.bf16.mxu0 0
        %365 = vmatpush1.bf16.msra.mxu0 0
        %366 = vmatprep.subr.bf16.mxu0 0
        %367 = vmatpush1.bf16.msra.mxu0 0
        %368 = vmatprep.subr.bf16.mxu0 0
        %369 = vmatpush1.bf16.msra.mxu0 0
        %370 = vmatprep.subr.bf16.mxu0 0
        %371 = vmatpush1.bf16.msra.mxu0 0
        %372 = vmatprep.subr.bf16.mxu0 0
        %373 = vmatpush1.bf16.msra.mxu0 0
        %374 = vmatprep.subr.bf16.mxu0 0
        %375 = vmatpush1.bf16.msra.mxu0 0
        %376 = vmatprep.subr.bf16.mxu0 0
        %377 = vmatpush1.bf16.msra.mxu0 0
        %378 = vmatprep.subr.bf16.mxu0 0
        %379 = vmatpush1.bf16.msra.mxu0 0
        %380 = vmatprep.subr.bf16.mxu0 0
        %381 = vmatpush1.bf16.msra.mxu0 0
        %382 = vmatprep.subr.bf16.mxu0 0
        %383 = vmatpush1.bf16.msra.mxu0 0
        %384 = vmatprep.mubr.bf16.mxu0 0
        %385 = vmatmul.mubr.bf16.gmra.mrb[0].mxu0 %v350
        %v386 = vpop.f32.mrb[0].mxu0
        %v387 = vadd.f32 %v347, %v386
        %v388 = vpop.f32.mrb[0].mxu0
        %v389 = vpop.f32.mrb[0].mxu0
        %v390 = vpop.f32.mrb[0].mxu0
        %391 = vdwg.mxu0
        %vm392 = vcmask 523264
        %v393 = vsel %vm392, %v387, -inf
        %394 = vmax.xlane.f32.xlu0 %v393
        %v395 = vpop.xlane.xlu0 %394
        %v396 = vsub.f32 %v387, %v395
        %v397 = vmul.f32 %v396, 1.442695
        %v398 = vpow.pop %v397
        %v399 = vsel %vm392, %v398, 0.0
        %400 = vadd.xlane.f32.xlu0 %v399
        %v401 = vpop.xlane.xlu0 %400
        %v402 = vrcp.pop %v401
        %v403 = vmul.f32 %v398, %v402
        %404 = vst.msk [vmem:[%s283] sm:$0xff] %vm392, %v403
        %v405 = vlog2.pop %v401
        %v406 = vmul.f32 %v405, 0.6931472
        %v407 = vsub.f32 %v396, %v406
        %v408 = vld [vmem:[%s297] sm:$0xff]
        %v409 = vlaneseq
        %v410 = vand.u32 %v409, 127
        %411 = vset.pattern.permute.xlu0 0
        %412 = vperm.xlu0 %411, %v408
        %v413 = vpop.permute.xlu0 %412
        %vm414 = vcmp.eq.s32.totalorder %v410, %v413
        %v415 = vsel %vm414, %v407, 0.0
        %v416 = vsel %vm392, %v415, 0.0
        %417 = vadd.xlane.f32.xlu0 %v416
        %v418 = vpop.xlane.xlu0 %417
        %v419 = vsub.f32 0.0, %v418
        %vm420 = vcmask 7168
        %421 = vst.msk [vmem:[%s301] sm:$0xff] %vm420, %v419
        %s422 = sand.u32 %s166, 1
        %s423 = scalar_lea.sflag [#allocation3], %s422
        %s424 = sand.u32 %s166, 1
        %s425 = smul.addr %s424, 8
        %s426 = scalar_lea.vmem [#allocation2], %s425
        %p427 = scmp.lt.s32.totalorder %s22, 1
        %s428 = scalar_select %p427, %s22, 1
        %s429 = smul.addr %s428, 8
        %s430 = scalar_lea.vmem %s7, %s429
        // Predicated region
        $region45: #{model_forward.9} parent=43 // pred_check
          %p431 = pneg %p176
        $region46: #{model_forward.9} parent=43 // pred_check_branch
          %433 = sbr.rel (%p431) target = $region48
        $region47: #{model_forward.9} parent=43 // pred_region
          %s435 = ssub.s32 128, 128
          %436 = vsyncadd %s423, %s435
          %s437 = smul.addr %s22, 128
          %s438 = scalar_lea.hbm %s6, %s437
          %s440 = sshll.u32 %s426, 4
          %s441 = int_to_ptr.vmem [resolvable:$true] %s440
          %443 = dma.vmem_to_hbm [thread:$0]  %s441, 128, %s438, %s423
        $region48: #{model_forward.9} parent=43 // pred_fallthru
          _
        // Predicated region
        $region49: #{model_forward.9} parent=43 // pred_check
          %p444 = pneg %p202
        $region50: #{model_forward.9} parent=43 // pred_check_branch
          %446 = sbr.rel (%p444) target = $region52
        $region51: #{model_forward.9} parent=43 // pred_region
          _
        $region52: #{model_forward.9} parent=43 // pred_fallthru
          _
      $region44: #{model_forward.9} parent=5 // pred_fallthru
        _
      %p447 = scmp.le.s32.totalorder 2, %s17
      // Predicated region
      $region53: #{model_forward.9} parent=5 // pred_check
        %p448 = pneg %p447
      $region54: #{model_forward.9} parent=5 // pred_check_branch
        %450 = sbr.rel (%p448) target = $region56
      $region55: #{model_forward.9} parent=5 // pred_region
        %s451 = ssub.s32 %s17, 2
        // Predicated region
        $region57: #{model_forward.9} parent=55 // pred_check
          %p452 = pneg %p182
        $region58: #{model_forward.9} parent=55 // pred_check_branch
          %454 = sbr.rel (%p452) target = $region60
        $region59: #{model_forward.9} parent=55 // pred_region
          %s455 = sand.u32 %s167, 1
          %s456 = scalar_lea.sflag [#allocation3], %s455
          %s457 = sand.u32 %s167, 1
          %s458 = smul.addr %s457, 8
          %s459 = scalar_lea.vmem [#allocation2], %s458
          %460 = dma.done %s456, 128
        $region60: #{model_forward.9} parent=55 // pred_fallthru
          _
        // Predicated region
        $region61: #{model_forward.9} parent=55 // pred_check
          %p461 = pneg %p208
        $region62: #{model_forward.9} parent=55 // pred_check_branch
          %463 = sbr.rel (%p461) target = $region64
        $region63: #{model_forward.9} parent=55 // pred_region
          %p464 = scmp.lt.s32.totalorder %s23, 1
          %s465 = scalar_select %p464, %s23, 1
          %s466 = smul.addr %s465, 8
          %s467 = scalar_lea.vmem %s7, %s466
        $region64: #{model_forward.9} parent=55 // pred_fallthru
          _
      $region56: #{model_forward.9} parent=5 // pred_fallthru
        _
    $region6: #{model_forward.9} parent=1 // loop_footer
      %s21 = sadd.s32 1, %s17
    $region7: #{model_forward.9} parent=1 // loop_footer_branch
      %16 = sbr.rel target = $region3
    $region8: #{model_forward.9} parent=1 // loop_exit
      _
    %468 = vsyncpa [#allocation3], 1
    %s469 = scalar_lea.sflag [#allocation3], 1
    %470 = vsyncpa %s469, 1

// kernel: model_forward.5
$region0: #{model_forward.5}
  #allocation0 [shape = 'u32[]', space=smem, size = 0x4, offset = 0x4, fixed_abs, tag = 'smem constant byte address 0x4 - core index']
  #allocation1 [shape = 'u32[144,128]{1,0:T(1,128)}', space=vmem, size = 0x12000, scoped, tag = 'internal scratch']
  %s0 = inlined_call_operand.vmem [shape: f32[2,16,32], index: 0, kind: input, shape index: {}]
  %s1 = inlined_call_operand.vmem [shape: f32[2,1,16], index: 1, kind: input, shape index: {}]
  %s2 = inlined_call_operand.vmem [shape: f32[1,32], index: 2, kind: input, shape index: {}]
  %s3 = inlined_call_operand.vmem [shape: f32[1,32], index: 3, kind: input, shape index: {}]
  %s4 = inlined_call_operand.vmem [shape: f32[32,96], index: 4, kind: input, shape index: {}]
  %s5 = inlined_call_operand.vmem [shape: f32[1,96], index: 5, kind: input, shape index: {}]
  %s6 = inlined_call_operand.vmem [shape: f32[32,32], index: 6, kind: input, shape index: {}]
  %s7 = inlined_call_operand.vmem [shape: f32[1,32], index: 7, kind: input, shape index: {}]
  %s8 = inlined_call_operand.vmem [shape: f32[1,32], index: 8, kind: input, shape index: {}]
  %s9 = inlined_call_operand.vmem [shape: f32[1,32], index: 9, kind: input, shape index: {}]
  %s10 = inlined_call_operand.vmem [shape: f32[32,64], index: 10, kind: input, shape index: {}]
  %s11 = inlined_call_operand.vmem [shape: f32[1,64], index: 11, kind: input, shape index: {}]
  %s12 = inlined_call_operand.vmem [shape: f32[64,32], index: 12, kind: input, shape index: {}]
  %s13 = inlined_call_operand.vmem [shape: f32[1,32], index: 13, kind: input, shape index: {}]
  %s14 = inlined_call_operand.vmem [shape: f32[1,32], index: 14, kind: input, shape index: {}]
  %s15 = inlined_call_operand.vmem [shape: f32[1,32], index: 15, kind: input, shape index: {}]
  %s16 = inlined_call_operand.vmem [shape: f32[2,16,32], index: 16, kind: output, shape index: {}]
  %s17 = sld [smem:[#allocation0]]
  $region97: #{model_forward.5} parent=0
    _
  %s19 = ssub.s32 1, %s17
  %s20 = scalar_select 0, %s19, %s17
  loop: start=0, step=1, limit=4
  $region2: #{model_forward.5} parent=0 // loop_pre_header
    _
  $region3: #{model_forward.5} parent=0 // loop_header
    %s22 = sphi 0, %s26
    %p23 = scmp.ge.s32.totalorder %s22, 4
    %s32 = sphi 0, %s34
    %s35 = sphi 0, %s32
    %s36 = sphi 0, %s35
    %s52 = sphi 0, %s36
    %s58 = sphi 0, %s60
    %s61 = sphi 0, %s58
    %s62 = sphi 0, %s61
    %s78 = sphi 0, %s62
    %s82 = sphi 0, %s82
    %s84 = sphi 0, %s82
    %s85 = sphi 0, %s84
    %s99 = sphi 0, %s85
    %s103 = sphi 0, %s103
    %s105 = sphi 0, %s103
    %s106 = sphi 0, %s105
    %s120 = sphi 0, %s106
    %s124 = sphi 0, %s124
    %s126 = sphi 0, %s124
    %s127 = sphi 0, %s126
    %s141 = sphi 0, %s127
    %s145 = sphi 0, %s145
    %s147 = sphi 0, %s145
    %s148 = sphi 0, %s147
    %s162 = sphi 0, %s148
    %s166 = sphi 0, %s166
    %s168 = sphi 0, %s166
    %s169 = sphi 0, %s168
    %s183 = sphi 0, %s169
    %s187 = sphi 0, %s187
    %s189 = sphi 0, %s187
    %s190 = sphi 0, %s189
    %s204 = sphi 0, %s190
    %s208 = sphi 0, %s208
    %s210 = sphi 0, %s208
    %s211 = sphi 0, %s210
    %s225 = sphi 0, %s211
    %s229 = sphi 0, %s229
    %s231 = sphi 0, %s229
    %s232 = sphi 0, %s231
    %s246 = sphi 0, %s232
    %s250 = sphi 0, %s250
    %s252 = sphi 0, %s250
    %s253 = sphi 0, %s252
    %s267 = sphi 0, %s253
    %s271 = sphi 0, %s271
    %s273 = sphi 0, %s271
    %s274 = sphi 0, %s273
    %s288 = sphi 0, %s274
    %s292 = sphi 0, %s292
    %s294 = sphi 0, %s292
    %s295 = sphi 0, %s294
    %s309 = sphi 0, %s295
    %s313 = sphi 0, %s313
    %s315 = sphi 0, %s313
    %s316 = sphi 0, %s315
    %s330 = sphi 0, %s316
    %s334 = sphi 0, %s334
    %s336 = sphi 0, %s334
    %s337 = sphi 0, %s336
    %s351 = sphi 0, %s337
    %s355 = sphi 0, %s355
    %s357 = sphi 0, %s355
    %s358 = sphi 0, %s357
    %s372 = sphi 0, %s358
    %s378 = sphi 0, %s380
    %s381 = sphi 0, %s378
    %s382 = sphi 0, %s381
    %s398 = sphi 0, %s382
  $region4: #{model_forward.5} parent=0 // loop_header_branch
    %25 = sbr.rel (%p23) target = $region8
  $region5: #{model_forward.5} parent=0 // loop_body
    %s27 = ssub.s32 %s22, 1
    %s28 = ssub.s32 %s22, 2
    %s29 = sadd.s32 %s22, 1
    %s30 = ssub.s32 %s22, %s29
    %p31 = scmp.eq.s32.totalorder %s30, 0
    %s33 = sadd.s32 %s32, 1
    %s34 = scalar_select %p31, %s32, %s33
    %p37 = pneg %p31
    %p38 = scmp.eq.s32.totalorder %s22, 1
    %p39 = por %p37, %p38
    %p40 = scmp.ne.s32.totalorder %s32, %s35
    %p41 = scmp.eq.s32.totalorder %s22, 0
    %p42 = por %p40, %p41
    %p43 = scmp.ne.s32.totalorder %s32, %s35
    %p44 = scmp.eq.s32.totalorder %s27, 1
    %p45 = por %p43, %p44
    %p46 = scmp.ne.s32.totalorder %s35, %s36
    %p47 = scmp.eq.s32.totalorder %s27, 0
    %p48 = por %p46, %p47
    %p49 = scmp.ne.s32.totalorder %s35, %s36
    %p50 = scmp.eq.s32.totalorder %s28, 1
    %p51 = por %p49, %p50
    %p53 = scmp.ne.s32.totalorder %s36, %s52
    %p54 = scmp.eq.s32.totalorder %s28, 0
    %p55 = por %p53, %p54
    %s56 = ssub.s32 %s22, %s29
    %p57 = scmp.eq.s32.totalorder %s56, 0
    %s59 = sadd.s32 %s58, 1
    %s60 = scalar_select %p57, %s58, %s59
    %p63 = pneg %p57
    %p64 = scmp.eq.s32.totalorder %s22, 1
    %p65 = por %p63, %p64
    %p66 = scmp.ne.s32.totalorder %s58, %s61
    %p67 = scmp.eq.s32.totalorder %s22, 0
    %p68 = por %p66, %p67
    %p69 = scmp.ne.s32.totalorder %s58, %s61
    %p70 = scmp.eq.s32.totalorder %s27, 1
    %p71 = por %p69, %p70
    %p72 = scmp.ne.s32.totalorder %s61, %s62
    %p73 = scmp.eq.s32.totalorder %s27, 0
    %p74 = por %p72, %p73
    %p75 = scmp.ne.s32.totalorder %s61, %s62
    %p76 = scmp.eq.s32.totalorder %s28, 1
    %p77 = por %p75, %p76
    %p79 = scmp.ne.s32.totalorder %s62, %s78
    %p80 = scmp.eq.s32.totalorder %s28, 0
    %p81 = por %p79, %p80
    %s83 = sadd.s32 %s82, 1
    %p86 = scmp.eq.s32.totalorder %s22, 1
    %p87 = scmp.ne.s32.totalorder %s82, %s84
    %p88 = scmp.eq.s32.totalorder %s22, 0
    %p89 = por %p87, %p88
    %p90 = scmp.ne.s32.totalorder %s82, %s84
    %p91 = scmp.eq.s32.totalorder %s27, 1
    %p92 = por %p90, %p91
    %p93 = scmp.ne.s32.totalorder %s84, %s85
    %p94 = scmp.eq.s32.totalorder %s27, 0
    %p95 = por %p93, %p94
    %p96 = scmp.ne.s32.totalorder %s84, %s85
    %p97 = scmp.eq.s32.totalorder %s28, 1
    %p98 = por %p96, %p97
    %p100 = scmp.ne.s32.totalorder %s85, %s99
    %p101 = scmp.eq.s32.totalorder %s28, 0
    %p102 = por %p100, %p101
    %s104 = sadd.s32 %s103, 1
    %p107 = scmp.eq.s32.totalorder %s22, 1
    %p108 = scmp.ne.s32.totalorder %s103, %s105
    %p109 = scmp.eq.s32.totalorder %s22, 0
    %p110 = por %p108, %p109
    %p111 = scmp.ne.s32.totalorder %s103, %s105
    %p112 = scmp.eq.s32.totalorder %s27, 1
    %p113 = por %p111, %p112
    %p114 = scmp.ne.s32.totalorder %s105, %s106
    %p115 = scmp.eq.s32.totalorder %s27, 0
    %p116 = por %p114, %p115
    %p117 = scmp.ne.s32.totalorder %s105, %s106
    %p118 = scmp.eq.s32.totalorder %s28, 1
    %p119 = por %p117, %p118
    %p121 = scmp.ne.s32.totalorder %s106, %s120
    %p122 = scmp.eq.s32.totalorder %s28, 0
    %p123 = por %p121, %p122
    %s125 = sadd.s32 %s124, 1
    %p128 = scmp.eq.s32.totalorder %s22, 1
    %p129 = scmp.ne.s32.totalorder %s124, %s126
    %p130 = scmp.eq.s32.totalorder %s22, 0
    %p131 = por %p129, %p130
    %p132 = scmp.ne.s32.totalorder %s124, %s126
    %p133 = scmp.eq.s32.totalorder %s27, 1
    %p134 = por %p132, %p133
    %p135 = scmp.ne.s32.totalorder %s126, %s127
    %p136 = scmp.eq.s32.totalorder %s27, 0
    %p137 = por %p135, %p136
    %p138 = scmp.ne.s32.totalorder %s126, %s127
    %p139 = scmp.eq.s32.totalorder %s28, 1
    %p140 = por %p138, %p139
    %p142 = scmp.ne.s32.totalorder %s127, %s141
    %p143 = scmp.eq.s32.totalorder %s28, 0
    %p144 = por %p142, %p143
    %s146 = sadd.s32 %s145, 1
    %p149 = scmp.eq.s32.totalorder %s22, 1
    %p150 = scmp.ne.s32.totalorder %s145, %s147
    %p151 = scmp.eq.s32.totalorder %s22, 0
    %p152 = por %p150, %p151
    %p153 = scmp.ne.s32.totalorder %s145, %s147
    %p154 = scmp.eq.s32.totalorder %s27, 1
    %p155 = por %p153, %p154
    %p156 = scmp.ne.s32.totalorder %s147, %s148
    %p157 = scmp.eq.s32.totalorder %s27, 0
    %p158 = por %p156, %p157
    %p159 = scmp.ne.s32.totalorder %s147, %s148
    %p160 = scmp.eq.s32.totalorder %s28, 1
    %p161 = por %p159, %p160
    %p163 = scmp.ne.s32.totalorder %s148, %s162
    %p164 = scmp.eq.s32.totalorder %s28, 0
    %p165 = por %p163, %p164
    %s167 = sadd.s32 %s166, 1
    %p170 = scmp.eq.s32.totalorder %s22, 1
    %p171 = scmp.ne.s32.totalorder %s166, %s168
    %p172 = scmp.eq.s32.totalorder %s22, 0
    %p173 = por %p171, %p172
    %p174 = scmp.ne.s32.totalorder %s166, %s168
    %p175 = scmp.eq.s32.totalorder %s27, 1
    %p176 = por %p174, %p175
    %p177 = scmp.ne.s32.totalorder %s168, %s169
    %p178 = scmp.eq.s32.totalorder %s27, 0
    %p179 = por %p177, %p178
    %p180 = scmp.ne.s32.totalorder %s168, %s169
    %p181 = scmp.eq.s32.totalorder %s28, 1
    %p182 = por %p180, %p181
    %p184 = scmp.ne.s32.totalorder %s169, %s183
    %p185 = scmp.eq.s32.totalorder %s28, 0
    %p186 = por %p184, %p185
    %s188 = sadd.s32 %s187, 1
    %p191 = scmp.eq.s32.totalorder %s22, 1
    %p192 = scmp.ne.s32.totalorder %s187, %s189
    %p193 = scmp.eq.s32.totalorder %s22, 0
    %p194 = por %p192, %p193
    %p195 = scmp.ne.s32.totalorder %s187, %s189
    %p196 = scmp.eq.s32.totalorder %s27, 1
    %p197 = por %p195, %p196
    %p198 = scmp.ne.s32.totalorder %s189, %s190
    %p199 = scmp.eq.s32.totalorder %s27, 0
    %p200 = por %p198, %p199
    %p201 = scmp.ne.s32.totalorder %s189, %s190
    %p202 = scmp.eq.s32.totalorder %s28, 1
    %p203 = por %p201, %p202
    %p205 = scmp.ne.s32.totalorder %s190, %s204
    %p206 = scmp.eq.s32.totalorder %s28, 0
    %p207 = por %p205, %p206
    %s209 = sadd.s32 %s208, 1
    %p212 = scmp.eq.s32.totalorder %s22, 1
    %p213 = scmp.ne.s32.totalorder %s208, %s210
    %p214 = scmp.eq.s32.totalorder %s22, 0
    %p215 = por %p213, %p214
    %p216 = scmp.ne.s32.totalorder %s208, %s210
    %p217 = scmp.eq.s32.totalorder %s27, 1
    %p218 = por %p216, %p217
    %p219 = scmp.ne.s32.totalorder %s210, %s211
    %p220 = scmp.eq.s32.totalorder %s27, 0
    %p221 = por %p219, %p220
    %p222 = scmp.ne.s32.totalorder %s210, %s211
    %p223 = scmp.eq.s32.totalorder %s28, 1
    %p224 = por %p222, %p223
    %p226 = scmp.ne.s32.totalorder %s211, %s225
    %p227 = scmp.eq.s32.totalorder %s28, 0
    %p228 = por %p226, %p227
    %s230 = sadd.s32 %s229, 1
    %p233 = scmp.eq.s32.totalorder %s22, 1
    %p234 = scmp.ne.s32.totalorder %s229, %s231
    %p235 = scmp.eq.s32.totalorder %s22, 0
    %p236 = por %p234, %p235
    %p237 = scmp.ne.s32.totalorder %s229, %s231
    %p238 = scmp.eq.s32.totalorder %s27, 1
    %p239 = por %p237, %p238
    %p240 = scmp.ne.s32.totalorder %s231, %s232
    %p241 = scmp.eq.s32.totalorder %s27, 0
    %p242 = por %p240, %p241
    %p243 = scmp.ne.s32.totalorder %s231, %s232
    %p244 = scmp.eq.s32.totalorder %s28, 1
    %p245 = por %p243, %p244
    %p247 = scmp.ne.s32.totalorder %s232, %s246
    %p248 = scmp.eq.s32.totalorder %s28, 0
    %p249 = por %p247, %p248
    %s251 = sadd.s32 %s250, 1
    %p254 = scmp.eq.s32.totalorder %s22, 1
    %p255 = scmp.ne.s32.totalorder %s250, %s252
    %p256 = scmp.eq.s32.totalorder %s22, 0
    %p257 = por %p255, %p256
    %p258 = scmp.ne.s32.totalorder %s250, %s252
    %p259 = scmp.eq.s32.totalorder %s27, 1
    %p260 = por %p258, %p259
    %p261 = scmp.ne.s32.totalorder %s252, %s253
    %p262 = scmp.eq.s32.totalorder %s27, 0
    %p263 = por %p261, %p262
    %p264 = scmp.ne.s32.totalorder %s252, %s253
    %p265 = scmp.eq.s32.totalorder %s28, 1
    %p266 = por %p264, %p265
    %p268 = scmp.ne.s32.totalorder %s253, %s267
    %p269 = scmp.eq.s32.totalorder %s28, 0
    %p270 = por %p268, %p269
    %s272 = sadd.s32 %s271, 1
    %p275 = scmp.eq.s32.totalorder %s22, 1
    %p276 = scmp.ne.s32.totalorder %s271, %s273
    %p277 = scmp.eq.s32.totalorder %s22, 0
    %p278 = por %p276, %p277
    %p279 = scmp.ne.s32.totalorder %s271, %s273
    %p280 = scmp.eq.s32.totalorder %s27, 1
    %p281 = por %p279, %p280
    %p282 = scmp.ne.s32.totalorder %s273, %s274
    %p283 = scmp.eq.s32.totalorder %s27, 0
    %p284 = por %p282, %p283
    %p285 = scmp.ne.s32.totalorder %s273, %s274
    %p286 = scmp.eq.s32.totalorder %s28, 1
    %p287 = por %p285, %p286
    %p289 = scmp.ne.s32.totalorder %s274, %s288
    %p290 = scmp.eq.s32.totalorder %s28, 0
    %p291 = por %p289, %p290
    %s293 = sadd.s32 %s292, 1
    %p296 = scmp.eq.s32.totalorder %s22, 1
    %p297 = scmp.ne.s32.totalorder %s292, %s294
    %p298 = scmp.eq.s32.totalorder %s22, 0
    %p299 = por %p297, %p298
    %p300 = scmp.ne.s32.totalorder %s292, %s294
    %p301 = scmp.eq.s32.totalorder %s27, 1
    %p302 = por %p300, %p301
    %p303 = scmp.ne.s32.totalorder %s294, %s295
    %p304 = scmp.eq.s32.totalorder %s27, 0
    %p305 = por %p303, %p304
    %p306 = scmp.ne.s32.totalorder %s294, %s295
    %p307 = scmp.eq.s32.totalorder %s28, 1
    %p308 = por %p306, %p307
    %p310 = scmp.ne.s32.totalorder %s295, %s309
    %p311 = scmp.eq.s32.totalorder %s28, 0
    %p312 = por %p310, %p311
    %s314 = sadd.s32 %s313, 1
    %p317 = scmp.eq.s32.totalorder %s22, 1
    %p318 = scmp.ne.s32.totalorder %s313, %s315
    %p319 = scmp.eq.s32.totalorder %s22, 0
    %p320 = por %p318, %p319
    %p321 = scmp.ne.s32.totalorder %s313, %s315
    %p322 = scmp.eq.s32.totalorder %s27, 1
    %p323 = por %p321, %p322
    %p324 = scmp.ne.s32.totalorder %s315, %s316
    %p325 = scmp.eq.s32.totalorder %s27, 0
    %p326 = por %p324, %p325
    %p327 = scmp.ne.s32.totalorder %s315, %s316
    %p328 = scmp.eq.s32.totalorder %s28, 1
    %p329 = por %p327, %p328
    %p331 = scmp.ne.s32.totalorder %s316, %s330
    %p332 = scmp.eq.s32.totalorder %s28, 0
    %p333 = por %p331, %p332
    %s335 = sadd.s32 %s334, 1
    %p338 = scmp.eq.s32.totalorder %s22, 1
    %p339 = scmp.ne.s32.totalorder %s334, %s336
    %p340 = scmp.eq.s32.totalorder %s22, 0
    %p341 = por %p339, %p340
    %p342 = scmp.ne.s32.totalorder %s334, %s336
    %p343 = scmp.eq.s32.totalorder %s27, 1
    %p344 = por %p342, %p343
    %p345 = scmp.ne.s32.totalorder %s336, %s337
    %p346 = scmp.eq.s32.totalorder %s27, 0
    %p347 = por %p345, %p346
    %p348 = scmp.ne.s32.totalorder %s336, %s337
    %p349 = scmp.eq.s32.totalorder %s28, 1
    %p350 = por %p348, %p349
    %p352 = scmp.ne.s32.totalorder %s337, %s351
    %p353 = scmp.eq.s32.totalorder %s28, 0
    %p354 = por %p352, %p353
    %s356 = sadd.s32 %s355, 1
    %p359 = scmp.eq.s32.totalorder %s22, 1
    %p360 = scmp.ne.s32.totalorder %s355, %s357
    %p361 = scmp.eq.s32.totalorder %s22, 0
    %p362 = por %p360, %p361
    %p363 = scmp.ne.s32.totalorder %s355, %s357
    %p364 = scmp.eq.s32.totalorder %s27, 1
    %p365 = por %p363, %p364
    %p366 = scmp.ne.s32.totalorder %s357, %s358
    %p367 = scmp.eq.s32.totalorder %s27, 0
    %p368 = por %p366, %p367
    %p369 = scmp.ne.s32.totalorder %s357, %s358
    %p370 = scmp.eq.s32.totalorder %s28, 1
    %p371 = por %p369, %p370
    %p373 = scmp.ne.s32.totalorder %s358, %s372
    %p374 = scmp.eq.s32.totalorder %s28, 0
    %p375 = por %p373, %p374
    %s376 = ssub.s32 %s22, %s29
    %p377 = scmp.eq.s32.totalorder %s376, 0
    %s379 = sadd.s32 %s378, 1
    %s380 = scalar_select %p377, %s378, %s379
    %p383 = pneg %p377
    %p384 = scmp.eq.s32.totalorder %s22, 1
    %p385 = por %p383, %p384
    %p386 = scmp.ne.s32.totalorder %s378, %s381
    %p387 = scmp.eq.s32.totalorder %s22, 0
    %p388 = por %p386, %p387
    %p389 = scmp.ne.s32.totalorder %s378, %s381
    %p390 = scmp.eq.s32.totalorder %s27, 1
    %p391 = por %p389, %p390
    %p392 = scmp.ne.s32.totalorder %s381, %s382
    %p393 = scmp.eq.s32.totalorder %s27, 0
    %p394 = por %p392, %p393
    %p395 = scmp.ne.s32.totalorder %s381, %s382
    %p396 = scmp.eq.s32.totalorder %s28, 1
    %p397 = por %p395, %p396
    %p399 = scmp.ne.s32.totalorder %s382, %s398
    %p400 = scmp.eq.s32.totalorder %s28, 0
    %p401 = por %p399, %p400
    %p402 = scmp.le.s32.totalorder 1, %s22
    %p403 = scmp.lt.s32.totalorder %s22, 3
    %p404 = pnand %p402, %p403
    %p405 = pneg %p404
    // Predicated region
    $region9: #{model_forward.5} parent=5 // pred_check
      _
    $region10: #{model_forward.5} parent=5 // pred_check_branch
      %407 = sbr.rel (%p404) target = $region12
    $region11: #{model_forward.5} parent=5 // pred_region
      %s408 = ssub.s32 %s22, 1
      // Predicated region
      $region13: #{model_forward.5} parent=11 // pred_check
        %p409 = pneg %p95
      $region14: #{model_forward.5} parent=11 // pred_check_branch
        %411 = sbr.rel (%p409) target = $region16
      $region15: #{model_forward.5} parent=11 // pred_region
        _
      $region16: #{model_forward.5} parent=11 // pred_fallthru
        _
      // Predicated region
      $region17: #{model_forward.5} parent=11 // pred_check
        %p412 = pneg %p116
      $region18: #{model_forward.5} parent=11 // pred_check_branch
        %414 = sbr.rel (%p412) target = $region20
      $region19: #{model_forward.5} parent=11 // pred_region
        _
      $region20: #{model_forward.5} parent=11 // pred_fallthru
        _
      // Predicated region
      $region21: #{model_forward.5} parent=11 // pred_check
        %p415 = pneg %p137
      $region22: #{model_forward.5} parent=11 // pred_check_branch
        %417 = sbr.rel (%p415) target = $region24
      $region23: #{model_forward.5} parent=11 // pred_region
        _
      $region24: #{model_forward.5} parent=11 // pred_fallthru
        _
      // Predicated region
      $region25: #{model_forward.5} parent=11 // pred_check
        %p418 = pneg %p158
      $region26: #{model_forward.5} parent=11 // pred_check_branch
        %420 = sbr.rel (%p418) target = $region28
      $region27: #{model_forward.5} parent=11 // pred_region
        _
      $region28: #{model_forward.5} parent=11 // pred_fallthru
        _
      // Predicated region
      $region29: #{model_forward.5} parent=11 // pred_check
        %p421 = pneg %p179
      $region30: #{model_forward.5} parent=11 // pred_check_branch
        %423 = sbr.rel (%p421) target = $region32
      $region31: #{model_forward.5} parent=11 // pred_region
        _
      $region32: #{model_forward.5} parent=11 // pred_fallthru
        _
      // Predicated region
      $region33: #{model_forward.5} parent=11 // pred_check
        %p424 = pneg %p200
      $region34: #{model_forward.5} parent=11 // pred_check_branch
        %426 = sbr.rel (%p424) target = $region36
      $region35: #{model_forward.5} parent=11 // pred_region
        _
      $region36: #{model_forward.5} parent=11 // pred_fallthru
        _
      // Predicated region
      $region37: #{model_forward.5} parent=11 // pred_check
        %p427 = pneg %p221
      $region38: #{model_forward.5} parent=11 // pred_check_branch
        %429 = sbr.rel (%p427) target = $region40
      $region39: #{model_forward.5} parent=11 // pred_region
        _
      $region40: #{model_forward.5} parent=11 // pred_fallthru
        _
      // Predicated region
      $region41: #{model_forward.5} parent=11 // pred_check
        %p430 = pneg %p242
      $region42: #{model_forward.5} parent=11 // pred_check_branch
        %432 = sbr.rel (%p430) target = $region44
      $region43: #{model_forward.5} parent=11 // pred_region
        _
      $region44: #{model_forward.5} parent=11 // pred_fallthru
        _
      // Predicated region
      $region45: #{model_forward.5} parent=11 // pred_check
        %p433 = pneg %p263
      $region46: #{model_forward.5} parent=11 // pred_check_branch
        %435 = sbr.rel (%p433) target = $region48
      $region47: #{model_forward.5} parent=11 // pred_region
        _
      $region48: #{model_forward.5} parent=11 // pred_fallthru
        _
      // Predicated region
      $region49: #{model_forward.5} parent=11 // pred_check
        %p436 = pneg %p284
      $region50: #{model_forward.5} parent=11 // pred_check_branch
        %438 = sbr.rel (%p436) target = $region52
      $region51: #{model_forward.5} parent=11 // pred_region
        _
      $region52: #{model_forward.5} parent=11 // pred_fallthru
        _
      // Predicated region
      $region53: #{model_forward.5} parent=11 // pred_check
        %p439 = pneg %p305
      $region54: #{model_forward.5} parent=11 // pred_check_branch
        %441 = sbr.rel (%p439) target = $region56
      $region55: #{model_forward.5} parent=11 // pred_region
        _
      $region56: #{model_forward.5} parent=11 // pred_fallthru
        _
      // Predicated region
      $region57: #{model_forward.5} parent=11 // pred_check
        %p442 = pneg %p326
      $region58: #{model_forward.5} parent=11 // pred_check_branch
        %444 = sbr.rel (%p442) target = $region60
      $region59: #{model_forward.5} parent=11 // pred_region
        _
      $region60: #{model_forward.5} parent=11 // pred_fallthru
        _
      // Predicated region
      $region61: #{model_forward.5} parent=11 // pred_check
        %p445 = pneg %p347
      $region62: #{model_forward.5} parent=11 // pred_check_branch
        %447 = sbr.rel (%p445) target = $region64
      $region63: #{model_forward.5} parent=11 // pred_region
        _
      $region64: #{model_forward.5} parent=11 // pred_fallthru
        _
      // Predicated region
      $region65: #{model_forward.5} parent=11 // pred_check
        %p448 = pneg %p368
      $region66: #{model_forward.5} parent=11 // pred_check_branch
        %450 = sbr.rel (%p448) target = $region68
      $region67: #{model_forward.5} parent=11 // pred_region
        _
      $region68: #{model_forward.5} parent=11 // pred_fallthru
        _
    $region12: #{model_forward.5} parent=5 // pred_fallthru
      _
    %p451 = scmp.lt.s32.totalorder %s22, 2
    // Predicated region
    $region69: #{model_forward.5} parent=5 // pred_check
      %p452 = pneg %p451
    $region70: #{model_forward.5} parent=5 // pred_check_branch
      %454 = sbr.rel (%p452) target = $region72
    $region71: #{model_forward.5} parent=5 // pred_region
      // Predicated region
      $region73: #{model_forward.5} parent=71 // pred_check
        %p455 = pneg %p42
      $region74: #{model_forward.5} parent=71 // pred_check_branch
        %457 = sbr.rel (%p455) target = $region76
      $region75: #{model_forward.5} parent=71 // pred_region
        %p458 = scmp.lt.s32.totalorder %s22, 1
        %s459 = scalar_select %p458, %s22, 1
        %s460 = smul.addr %s459, 2
        %s461 = smul.addr %s460, 8
        %s462 = scalar_lea.vmem %s0, %s461
      $region76: #{model_forward.5} parent=71 // pred_fallthru
        _
      // Predicated region
      $region77: #{model_forward.5} parent=71 // pred_check
        %p463 = pneg %p68
      $region78: #{model_forward.5} parent=71 // pred_check_branch
        %465 = sbr.rel (%p463) target = $region80
      $region79: #{model_forward.5} parent=71 // pred_region
        %p466 = scmp.lt.s32.totalorder %s22, 1
        %s467 = scalar_select %p466, %s22, 1
        %s468 = scalar_lea.vmem %s1, %s467
      $region80: #{model_forward.5} parent=71 // pred_fallthru
        _
    $region72: #{model_forward.5} parent=5 // pred_fallthru
      _
    %p469 = scmp.le.s32.totalorder 1, %s22
    %p470 = scmp.lt.s32.totalorder %s22, 3
    %p471 = pnand %p469, %p470
    %p472 = pneg %p471
    // Predicated region
    $region81: #{model_forward.5} parent=5 // pred_check
      _
    $region82: #{model_forward.5} parent=5 // pred_check_branch
      %474 = sbr.rel (%p471) target = $region84
    $region83: #{model_forward.5} parent=5 // pred_region
      %s475 = ssub.s32 %s22, 1
      %p476 = scmp.lt.s32.totalorder %s27, 1
      %s477 = scalar_select %p476, %s27, 1
      %s478 = smul.addr %s477, 2
      %s479 = smul.addr %s478, 8
      %s480 = scalar_lea.vmem %s0, %s479
      %p481 = pneg %p48
      %p482 = pneg %p45
      %p483 = scmp.lt.s32.totalorder %s27, 1
      %s484 = scalar_select %p483, %s27, 1
      %s485 = scalar_lea.vmem %s1, %s484
      %p486 = pneg %p74
      %p487 = pneg %p71
      %p488 = pneg %p95
      %p489 = pneg %p92
      %p490 = pneg %p116
      %p491 = pneg %p113
      %p492 = pneg %p137
      %p493 = pneg %p134
      %p494 = pneg %p158
      %p495 = pneg %p155
      %p496 = pneg %p179
      %p497 = pneg %p176
      %p498 = pneg %p200
      %p499 = pneg %p197
      %p500 = pneg %p221
      %p501 = pneg %p218
      %p502 = pneg %p242
      %p503 = pneg %p239
      %p504 = pneg %p263
      %p505 = pneg %p260
      %p506 = pneg %p284
      %p507 = pneg %p281
      %p508 = pneg %p305
      %p509 = pneg %p302
      %p510 = pneg %p326
      %p511 = pneg %p323
      %p512 = pneg %p347
      %p513 = pneg %p344
      %p514 = pneg %p368
      %p515 = pneg %p365
      %p516 = pneg %p394
      %p517 = pneg %p391
      %p518 = scmp.lt.s32.totalorder %s27, 1
      %s519 = scalar_select %p518, %s27, 1
      %s520 = smul.addr %s519, 2
      %s521 = smul.addr %s520, 8
      %s522 = scalar_lea.vmem %s16, %s521
      %p523 = scmp.lt.s32.totalorder %s27, 1
      %s524 = scalar_select %p523, %s27, 1
      %s525 = smul.addr %s524, 2
      %s526 = smul.addr %s525, 8
      %s527 = scalar_lea.vmem %s0, %s526
      %p528 = scmp.lt.s32.totalorder %s27, 1
      %s529 = scalar_select %p528, %s27, 1
      %s530 = scalar_lea.vmem %s1, %s529
      %p531 = scmp.lt.s32.totalorder %s27, 1
      %s532 = scalar_select %p531, %s27, 1
      %s533 = smul.addr %s532, 2
      %s534 = smul.addr %s533, 8
      %s535 = scalar_lea.vmem %s16, %s534
      %v537 = vld [vmem:[%s527] sm:$0xff]
      %v538 = vld [vmem:[%s527 + $0x8] sm:$0xff]
      %v539 = vld [vmem:[%s530] sm:$0x1]
      %v540 = vld [vmem:[%s2] sm:$0x1]
      %v541 = vld [vmem:[%s3] sm:$0x1]
      %vm542 = vcmask 261120
      %v543 = vsel %vm542, %v537, 0.0
      %544 = vadd.xlane.f32.xlu0 %v543
      %v545 = vpop.xlane.xlu0 %544
      %v546 = vsel %vm542, %v538, 0.0
      %547 = vadd.xlane.f32.xlu0 %v546
      %v548 = vpop.xlane.xlu0 %547
      %v549 = vrcp.pop 32.0
      %v550 = vmul.f32 %v545, %v549
      %v551 = vmul.f32 %v548, %v549
      %v552 = vsub.f32 %v537, %v550
      %v553 = vsub.f32 %v538, %v551
      %v554 = vmul.f32 %v552, %v552
      %v555 = vmul.f32 %v553, %v553
      %v556 = vsel %vm542, %v554, 0.0
      %557 = vadd.xlane.f32.xlu0 %v556
      %v558 = vpop.xlane.xlu0 %557
      %v559 = vsel %vm542, %v555, 0.0
      %560 = vadd.xlane.f32.xlu0 %v559
      %v561 = vpop.xlane.xlu0 %560
      %v562 = vmul.f32 %v558, %v549
      %v563 = vmul.f32 %v561, %v549
      %v564 = vadd.f32 %v562, 1e-05
      %v565 = vadd.f32 %v563, 1e-05
      %v566 = vrsqrt.pop %v564
      %v567 = vrsqrt.pop %v565
      %v568 = vmul.f32 %v552, %v566
      %v569 = vmul.f32 %v553, %v567
      %v571 = vlaneseq
      %v572 = vshrl.u32 %v571, 7
      %v573 = vsub.s32 0, %v572
      %v574 = vrot.slane %v540, %v573
      %v576 = vmul.f32 %v568, %v574
      %v577 = vmul.f32 %v569, %v574
      %v579 = vlaneseq
      %v580 = vshrl.u32 %v579, 7
      %v581 = vsub.s32 0, %v580
      %v582 = vrot.slane %v541, %v581
      %v584 = vadd.f32 %v576, %v582
      %v585 = vadd.f32 %v577, %v582
      %v586 = vld [vmem:[%s4] sm:$0xff]
      %v587 = vld [vmem:[%s4 + $0x8] sm:$0xff]
      %v588 = vld [vmem:[%s4 + $0x10] sm:$0xff]
      %v589 = vld [vmem:[%s4 + $0x18] sm:$0xff]
      %v590 = vld [vmem:[%s5] sm:$0x1]
      %v591 = vpack.c.bf16 %v585, %v584
      %v592 = vpack.c.bf16 %v587, %v586
      %v593 = vpack.c.bf16 %v589, %v588
      %v595 = vlaneseq
      %v596 = vshrl.u32 %v595, 7
      %v597 = vsub.s32 0, %v596
      %v598 = vrot.slane %v590, %v597
      %v601 = vsel %vm542, %v591, 0
      %603 = vmatprep.subr.bf16.mxu0 0
      %604 = vmatpush1.bf16.msra.mxu0 %v592
      %605 = vmatprep.subr.bf16.mxu0 0
      %606 = vmatpush1.bf16.msra.mxu0 %v593
      %607 = vmatprep.subr.bf16.mxu0 0
      %608 = vmatpush1.bf16.msra.mxu0 0
      %609 = vmatprep.subr.bf16.mxu0 0
      %610 = vmatpush1.bf16.msra.mxu0 0
      %611 = vmatprep.subr.bf16.mxu0 0
      %612 = vmatpush1.bf16.msra.mxu0 0
      %613 = vmatprep.subr.bf16.mxu0 0
      %614 = vmatpush1.bf16.msra.mxu0 0
      %615 = vmatprep.subr.bf16.mxu0 0
      %616 = vmatpush1.bf16.msra.mxu0 0
      %617 = vmatprep.subr.bf16.mxu0 0
      %618 = vmatpush1.bf16.msra.mxu0 0
      %619 = vmatprep.subr.bf16.mxu0 0
      %620 = vmatpush1.bf16.msra.mxu0 0
      %621 = vmatprep.subr.bf16.mxu0 0
      %622 = vmatpush1.bf16.msra.mxu0 0
      %623 = vmatprep.subr.bf16.mxu0 0
      %624 = vmatpush1.bf16.msra.mxu0 0
      %625 = vmatprep.subr.bf16.mxu0 0
      %626 = vmatpush1.bf16.msra.mxu0 0
      %627 = vmatprep.subr.bf16.mxu0 0
      %628 = vmatpush1.bf16.msra.mxu0 0
      %629 = vmatprep.subr.bf16.mxu0 0
      %630 = vmatpush1.bf16.msra.mxu0 0
      %631 = vmatprep.subr.bf16.mxu0 0
      %632 = vmatpush1.bf16.msra.mxu0 0
      %633 = vmatprep.subr.bf16.mxu0 0
      %634 = vmatpush1.bf16.msra.mxu0 0
      %635 = vmatprep.mubr.bf16.mxu0 0
      %636 = vmatmul.mubr.bf16.gmra.mrb[0].mxu0 %v601
      %v637 = vpop.f32.mrb[0].mxu0
      %v638 = vadd.f32 %v598, %v637
      %v639 = vpop.f32.mrb[0].mxu0
      %v640 = vpop.f32.mrb[0].mxu0
      %v641 = vadd.f32 %v598, %v640
      %v642 = vpop.f32.mrb[0].mxu0
      %643 = vdwg.mxu0
      %646 = vrot.lane.b32.xlu0 %v638, 120
      %v647 = vpop.permute.xlu0 %646
      %648 = vrot.lane.b32.xlu0 %v641, 120
      %v649 = vpop.permute.xlu0 %648
      %652 = vrot.lane.b32.xlu0 %v638, 112
      %v653 = vpop.permute.xlu0 %652
      %654 = vrot.lane.b32.xlu0 %v641, 112
      %v655 = vpop.permute.xlu0 %654
      %658 = vrot.lane.b32.xlu0 %v638, 104
      %v659 = vpop.permute.xlu0 %658
      %660 = vrot.lane.b32.xlu0 %v641, 104
      %v661 = vpop.permute.xlu0 %660
      %v664 = vcombine.low %v638, %v653
      %v665 = vcombine.high %v638, %v653
      %v667 = vunpack.c.l.s4 1983009808
      %v668 = vunpack.c.0.s8 %v667
      %v669 = vlaneseq
      %v670 = vshrl.u32 %v669, 7
      %v671 = vsub.s32 %v668, %v670
      %v672 = vrot.slane %v664, %v671
      %v674 = vunpack.c.l.s4 1983009808
      %v675 = vunpack.c.0.s8 %v674
      %v676 = vlaneseq
      %v677 = vshrl.u32 %v676, 7
      %v678 = vsub.s32 %v675, %v677
      %v679 = vrot.slane %v665, %v678
      %v680 = vcombine.low %v647, %v659
      %v681 = vcombine.high %v647, %v659
      %v683 = vunpack.c.l.s4 1983009808
      %v684 = vunpack.c.0.s8 %v683
      %v685 = vlaneseq
      %v686 = vshrl.u32 %v685, 7
      %v687 = vsub.s32 %v684, %v686
      %v688 = vrot.slane %v680, %v687
      %v690 = vunpack.c.l.s4 1983009808
      %v691 = vunpack.c.0.s8 %v690
      %v692 = vlaneseq
      %v693 = vshrl.u32 %v692, 7
      %v694 = vsub.s32 %v691, %v693
      %v695 = vrot.slane %v681, %v694
      %v696 = vcombine.low %v672, %v688
      %v697 = vcombine.high %v672, %v688
      %v699 = vunpack.c.l.s4 1934713408
      %v700 = vunpack.c.0.s8 %v699
      %v701 = vlaneseq
      %v702 = vshrl.u32 %v701, 7
      %v703 = vsub.s32 %v700, %v702
      %v704 = vrot.slane %v696, %v703
      %v706 = vunpack.c.l.s4 1934713408
      %v707 = vunpack.c.0.s8 %v706
      %v708 = vlaneseq
      %v709 = vshrl.u32 %v708, 7
      %v710 = vsub.s32 %v707, %v709
      %v711 = vrot.slane %v697, %v710
      %v712 = vcombine.low %v679, %v695
      %v713 = vcombine.high %v679, %v695
      %v715 = vunpack.c.l.s4 1934713408
      %v716 = vunpack.c.0.s8 %v715
      %v717 = vlaneseq
      %v718 = vshrl.u32 %v717, 7
      %v719 = vsub.s32 %v716, %v718
      %v720 = vrot.slane %v712, %v719
      %v722 = vunpack.c.l.s4 1934713408
      %v723 = vunpack.c.0.s8 %v722
      %v724 = vlaneseq
      %v725 = vshrl.u32 %v724, 7
      %v726 = vsub.s32 %v723, %v725
      %v727 = vrot.slane %v713, %v726
      %v728 = vcombine.high %v704, 0.0
      %v729 = vcombine.high %v711, 0.0
      %v730 = vcombine.high %v720, 0.0
      %v731 = vcombine.high %v727, 0.0
      %v732 = vcombine.low %v641, %v655
      %v733 = vcombine.high %v641, %v655
      %v735 = vunpack.c.l.s4 1983009808
      %v736 = vunpack.c.0.s8 %v735
      %v737 = vlaneseq
      %v738 = vshrl.u32 %v737, 7
      %v739 = vsub.s32 %v736, %v738
      %v740 = vrot.slane %v732, %v739
      %v742 = vunpack.c.l.s4 1983009808
      %v743 = vunpack.c.0.s8 %v742
      %v744 = vlaneseq
      %v745 = vshrl.u32 %v744, 7
      %v746 = vsub.s32 %v743, %v745
      %v747 = vrot.slane %v733, %v746
      %v748 = vcombine.low %v649, %v661
      %v749 = vcombine.high %v649, %v661
      %v751 = vunpack.c.l.s4 1983009808
      %v752 = vunpack.c.0.s8 %v751
      %v753 = vlaneseq
      %v754 = vshrl.u32 %v753, 7
      %v755 = vsub.s32 %v752, %v754
      %v756 = vrot.slane %v748, %v755
      %v758 = vunpack.c.l.s4 1983009808
      %v759 = vunpack.c.0.s8 %v758
      %v760 = vlaneseq
      %v761 = vshrl.u32 %v760, 7
      %v762 = vsub.s32 %v759, %v761
      %v763 = vrot.slane %v749, %v762
      %v764 = vcombine.low %v740, %v756
      %v765 = vcombine.high %v740, %v756
      %v767 = vunpack.c.l.s4 1934713408
      %v768 = vunpack.c.0.s8 %v767
      %v769 = vlaneseq
      %v770 = vshrl.u32 %v769, 7
      %v771 = vsub.s32 %v768, %v770
      %v772 = vrot.slane %v764, %v771
      %v774 = vunpack.c.l.s4 1934713408
      %v775 = vunpack.c.0.s8 %v774
      %v776 = vlaneseq
      %v777 = vshrl.u32 %v776, 7
      %v778 = vsub.s32 %v775, %v777
      %v779 = vrot.slane %v765, %v778
      %v780 = vcombine.low %v747, %v763
      %v781 = vcombine.high %v747, %v763
      %v783 = vunpack.c.l.s4 1934713408
      %v784 = vunpack.c.0.s8 %v783
      %v785 = vlaneseq
      %v786 = vshrl.u32 %v785, 7
      %v787 = vsub.s32 %v784, %v786
      %v788 = vrot.slane %v780, %v787
      %v790 = vunpack.c.l.s4 1934713408
      %v791 = vunpack.c.0.s8 %v790
      %v792 = vlaneseq
      %v793 = vshrl.u32 %v792, 7
      %v794 = vsub.s32 %v791, %v793
      %v795 = vrot.slane %v781, %v794
      %v796 = vcombine.high %v772, 0.0
      %v797 = vcombine.high %v779, 0.0
      %v798 = vcombine.high %v788, 0.0
      %v799 = vcombine.high %v795, 0.0
      %v800 = vcombine.low %v704, %v711
      %v802 = vunpack.c.l.s4 1983009808
      %v803 = vunpack.c.0.s8 %v802
      %v804 = vlaneseq
      %v805 = vshrl.u32 %v804, 7
      %v806 = vsub.s32 %v803, %v805
      %v807 = vrot.slane %v800, %v806
      %v808 = vcombine.low %v728, %v729
      %v810 = vunpack.c.l.s4 1983009808
      %v811 = vunpack.c.0.s8 %v810
      %v812 = vlaneseq
      %v813 = vshrl.u32 %v812, 7
      %v814 = vsub.s32 %v811, %v813
      %v815 = vrot.slane %v808, %v814
      %v816 = vcombine.low %v720, %v727
      %v818 = vunpack.c.l.s4 1983009808
      %v819 = vunpack.c.0.s8 %v818
      %v820 = vlaneseq
      %v821 = vshrl.u32 %v820, 7
      %v822 = vsub.s32 %v819, %v821
      %v823 = vrot.slane %v816, %v822
      %v824 = vcombine.low %v730, %v731
      %v826 = vunpack.c.l.s4 1983009808
      %v827 = vunpack.c.0.s8 %v826
      %v828 = vlaneseq
      %v829 = vshrl.u32 %v828, 7
      %v830 = vsub.s32 %v827, %v829
      %v831 = vrot.slane %v824, %v830
      %v832 = vcombine.low %v807, %v815
      %v833 = vcombine.high %v807, %v815
      %v835 = vunpack.c.l.s4 1934713408
      %v836 = vunpack.c.0.s8 %v835
      %v837 = vlaneseq
      %v838 = vshrl.u32 %v837, 7
      %v839 = vsub.s32 %v836, %v838
      %v840 = vrot.slane %v832, %v839
      %v842 = vunpack.c.l.s4 1934713408
      %v843 = vunpack.c.0.s8 %v842
      %v844 = vlaneseq
      %v845 = vshrl.u32 %v844, 7
      %v846 = vsub.s32 %v843, %v845
      %v847 = vrot.slane %v833, %v846
      %v848 = vcombine.low %v823, %v831
      %v849 = vcombine.high %v823, %v831
      %v851 = vunpack.c.l.s4 1934713408
      %v852 = vunpack.c.0.s8 %v851
      %v853 = vlaneseq
      %v854 = vshrl.u32 %v853, 7
      %v855 = vsub.s32 %v852, %v854
      %v856 = vrot.slane %v848, %v855
      %v858 = vunpack.c.l.s4 1934713408
      %v859 = vunpack.c.0.s8 %v858
      %v860 = vlaneseq
      %v861 = vshrl.u32 %v860, 7
      %v862 = vsub.s32 %v859, %v861
      %v863 = vrot.slane %v849, %v862
      %v864 = vcombine.low %v840, %v856
      %v865 = vcombine.high %v840, %v856
      %v866 = vcombine.low %v847, %v863
      %v867 = vcombine.high %v847, %v863
      %v868 = vcombine.low %v772, %v779
      %v870 = vunpack.c.l.s4 1983009808
      %v871 = vunpack.c.0.s8 %v870
      %v872 = vlaneseq
      %v873 = vshrl.u32 %v872, 7
      %v874 = vsub.s32 %v871, %v873
      %v875 = vrot.slane %v868, %v874
      %v876 = vcombine.low %v796, %v797
      %v878 = vunpack.c.l.s4 1983009808
      %v879 = vunpack.c.0.s8 %v878
      %v880 = vlaneseq
      %v881 = vshrl.u32 %v880, 7
      %v882 = vsub.s32 %v879, %v881
      %v883 = vrot.slane %v876, %v882
      %v884 = vcombine.low %v788, %v795
      %v886 = vunpack.c.l.s4 1983009808
      %v887 = vunpack.c.0.s8 %v886
      %v888 = vlaneseq
      %v889 = vshrl.u32 %v888, 7
      %v890 = vsub.s32 %v887, %v889
      %v891 = vrot.slane %v884, %v890
      %v892 = vcombine.low %v798, %v799
      %v894 = vunpack.c.l.s4 1983009808
      %v895 = vunpack.c.0.s8 %v894
      %v896 = vlaneseq
      %v897 = vshrl.u32 %v896, 7
      %v898 = vsub.s32 %v895, %v897
      %v899 = vrot.slane %v892, %v898
      %v900 = vcombine.low %v875, %v883
      %v901 = vcombine.high %v875, %v883
      %v903 = vunpack.c.l.s4 1934713408
      %v904 = vunpack.c.0.s8 %v903
      %v905 = vlaneseq
      %v906 = vshrl.u32 %v905, 7
      %v907 = vsub.s32 %v904, %v906
      %v908 = vrot.slane %v900, %v907
      %v910 = vunpack.c.l.s4 1934713408
      %v911 = vunpack.c.0.s8 %v910
      %v912 = vlaneseq
      %v913 = vshrl.u32 %v912, 7
      %v914 = vsub.s32 %v911, %v913
      %v915 = vrot.slane %v901, %v914
      %v916 = vcombine.low %v891, %v899
      %v917 = vcombine.high %v891, %v899
      %v919 = vunpack.c.l.s4 1934713408
      %v920 = vunpack.c.0.s8 %v919
      %v921 = vlaneseq
      %v922 = vshrl.u32 %v921, 7
      %v923 = vsub.s32 %v920, %v922
      %v924 = vrot.slane %v916, %v923
      %v926 = vunpack.c.l.s4 1934713408
      %v927 = vunpack.c.0.s8 %v926
      %v928 = vlaneseq
      %v929 = vshrl.u32 %v928, 7
      %v930 = vsub.s32 %v927, %v929
      %v931 = vrot.slane %v917, %v930
      %v932 = vcombine.low %v908, %v924
      %v933 = vcombine.high %v908, %v924
      %v934 = vcombine.low %v915, %v931
      %v935 = vcombine.high %v915, %v931
      %936 = vrot.lane.b32.xlu0 %v638, 96
      %v937 = vpop.permute.xlu0 %936
      %938 = vrot.lane.b32.xlu0 %v641, 96
      %v939 = vpop.permute.xlu0 %938
      %940 = vrot.lane.b32.xlu0 %v647, 96
      %v941 = vpop.permute.xlu0 %940
      %942 = vrot.lane.b32.xlu0 %v649, 96
      %v943 = vpop.permute.xlu0 %942
      %944 = vrot.lane.b32.xlu0 %v653, 96
      %v945 = vpop.permute.xlu0 %944
      %946 = vrot.lane.b32.xlu0 %v655, 96
      %v947 = vpop.permute.xlu0 %946
      %948 = vrot.lane.b32.xlu0 %v659, 96
      %v949 = vpop.permute.xlu0 %948
      %950 = vrot.lane.b32.xlu0 %v661, 96
      %v951 = vpop.permute.xlu0 %950
      %v960 = vcombine.low %v937, %v945
      %v961 = vcombine.high %v937, %v945
      %v963 = vunpack.c.l.s4 1983009808
      %v964 = vunpack.c.0.s8 %v963
      %v965 = vlaneseq
      %v966 = vshrl.u32 %v965, 7
      %v967 = vsub.s32 %v964, %v966
      %v968 = vrot.slane %v960, %v967
      %v970 = vunpack.c.l.s4 1983009808
      %v971 = vunpack.c.0.s8 %v970
      %v972 = vlaneseq
      %v973 = vshrl.u32 %v972, 7
      %v974 = vsub.s32 %v971, %v973
      %v975 = vrot.slane %v961, %v974
      %v976 = vcombine.low %v941, %v949
      %v977 = vcombine.high %v941, %v949
      %v979 = vunpack.c.l.s4 1983009808
      %v980 = vunpack.c.0.s8 %v979
      %v981 = vlaneseq
      %v982 = vshrl.u32 %v981, 7
      %v983 = vsub.s32 %v980, %v982
      %v984 = vrot.slane %v976, %v983
      %v986 = vunpack.c.l.s4 1983009808
      %v987 = vunpack.c.0.s8 %v986
      %v988 = vlaneseq
      %v989 = vshrl.u32 %v988, 7
      %v990 = vsub.s32 %v987, %v989
      %v991 = vrot.slane %v977, %v990
      %v992 = vcombine.low %v968, %v984
      %v993 = vcombine.high %v968, %v984
      %v995 = vunpack.c.l.s4 1934713408
      %v996 = vunpack.c.0.s8 %v995
      %v997 = vlaneseq
      %v998 = vshrl.u32 %v997, 7
      %v999 = vsub.s32 %v996, %v998
      %v1000 = vrot.slane %v992, %v999
      %v1002 = vunpack.c.l.s4 1934713408
      %v1003 = vunpack.c.0.s8 %v1002
      %v1004 = vlaneseq
      %v1005 = vshrl.u32 %v1004, 7
      %v1006 = vsub.s32 %v1003, %v1005
      %v1007 = vrot.slane %v993, %v1006
      %v1008 = vcombine.low %v975, %v991
      %v1009 = vcombine.high %v975, %v991
      %v1011 = vunpack.c.l.s4 1934713408
      %v1012 = vunpack.c.0.s8 %v1011
      %v1013 = vlaneseq
      %v1014 = vshrl.u32 %v1013, 7
      %v1015 = vsub.s32 %v1012, %v1014
      %v1016 = vrot.slane %v1008, %v1015
      %v1018 = vunpack.c.l.s4 1934713408
      %v1019 = vunpack.c.0.s8 %v1018
      %v1020 = vlaneseq
      %v1021 = vshrl.u32 %v1020, 7
      %v1022 = vsub.s32 %v1019, %v1021
      %v1023 = vrot.slane %v1009, %v1022
      %v1024 = vcombine.high %v1000, 0.0
      %v1025 = vcombine.high %v1007, 0.0
      %v1026 = vcombine.high %v1016, 0.0
      %v1027 = vcombine.high %v1023, 0.0
      %v1028 = vcombine.low %v939, %v947
      %v1029 = vcombine.high %v939, %v947
      %v1031 = vunpack.c.l.s4 1983009808
      %v1032 = vunpack.c.0.s8 %v1031
      %v1033 = vlaneseq
      %v1034 = vshrl.u32 %v1033, 7
      %v1035 = vsub.s32 %v1032, %v1034
      %v1036 = vrot.slane %v1028, %v1035
      %v1038 = vunpack.c.l.s4 1983009808
      %v1039 = vunpack.c.0.s8 %v1038
      %v1040 = vlaneseq
      %v1041 = vshrl.u32 %v1040, 7
      %v1042 = vsub.s32 %v1039, %v1041
      %v1043 = vrot.slane %v1029, %v1042
      %v1044 = vcombine.low %v943, %v951
      %v1045 = vcombine.high %v943, %v951
      %v1047 = vunpack.c.l.s4 1983009808
      %v1048 = vunpack.c.0.s8 %v1047
      %v1049 = vlaneseq
      %v1050 = vshrl.u32 %v1049, 7
      %v1051 = vsub.s32 %v1048, %v1050
      %v1052 = vrot.slane %v1044, %v1051
      %v1054 = vunpack.c.l.s4 1983009808
      %v1055 = vunpack.c.0.s8 %v1054
      %v1056 = vlaneseq
      %v1057 = vshrl.u32 %v1056, 7
      %v1058 = vsub.s32 %v1055, %v1057
      %v1059 = vrot.slane %v1045, %v1058
      %v1060 = vcombine.low %v1036, %v1052
      %v1061 = vcombine.high %v1036, %v1052
      %v1063 = vunpack.c.l.s4 1934713408
      %v1064 = vunpack.c.0.s8 %v1063
      %v1065 = vlaneseq
      %v1066 = vshrl.u32 %v1065, 7
      %v1067 = vsub.s32 %v1064, %v1066
      %v1068 = vrot.slane %v1060, %v1067
      %v1070 = vunpack.c.l.s4 1934713408
      %v1071 = vunpack.c.0.s8 %v1070
      %v1072 = vlaneseq
      %v1073 = vshrl.u32 %v1072, 7
      %v1074 = vsub.s32 %v1071, %v1073
      %v1075 = vrot.slane %v1061, %v1074
      %v1076 = vcombine.low %v1043, %v1059
      %v1077 = vcombine.high %v1043, %v1059
      %v1079 = vunpack.c.l.s4 1934713408
      %v1080 = vunpack.c.0.s8 %v1079
      %v1081 = vlaneseq
      %v1082 = vshrl.u32 %v1081, 7
      %v1083 = vsub.s32 %v1080, %v1082
      %v1084 = vrot.slane %v1076, %v1083
      %v1086 = vunpack.c.l.s4 1934713408
      %v1087 = vunpack.c.0.s8 %v1086
      %v1088 = vlaneseq
      %v1089 = vshrl.u32 %v1088, 7
      %v1090 = vsub.s32 %v1087, %v1089
      %v1091 = vrot.slane %v1077, %v1090
      %v1092 = vcombine.high %v1068, 0.0
      %v1093 = vcombine.high %v1075, 0.0
      %v1094 = vcombine.high %v1084, 0.0
      %v1095 = vcombine.high %v1091, 0.0
      %v1096 = vcombine.low %v1000, %v1007
      %v1098 = vunpack.c.l.s4 1983009808
      %v1099 = vunpack.c.0.s8 %v1098
      %v1100 = vlaneseq
      %v1101 = vshrl.u32 %v1100, 7
      %v1102 = vsub.s32 %v1099, %v1101
      %v1103 = vrot.slane %v1096, %v1102
      %v1104 = vcombine.low %v1024, %v1025
      %v1106 = vunpack.c.l.s4 1983009808
      %v1107 = vunpack.c.0.s8 %v1106
      %v1108 = vlaneseq
      %v1109 = vshrl.u32 %v1108, 7
      %v1110 = vsub.s32 %v1107, %v1109
      %v1111 = vrot.slane %v1104, %v1110
      %v1112 = vcombine.low %v1016, %v1023
      %v1114 = vunpack.c.l.s4 1983009808
      %v1115 = vunpack.c.0.s8 %v1114
      %v1116 = vlaneseq
      %v1117 = vshrl.u32 %v1116, 7
      %v1118 = vsub.s32 %v1115, %v1117
      %v1119 = vrot.slane %v1112, %v1118
      %v1120 = vcombine.low %v1026, %v1027
      %v1122 = vunpack.c.l.s4 1983009808
      %v1123 = vunpack.c.0.s8 %v1122
      %v1124 = vlaneseq
      %v1125 = vshrl.u32 %v1124, 7
      %v1126 = vsub.s32 %v1123, %v1125
      %v1127 = vrot.slane %v1120, %v1126
      %v1128 = vcombine.low %v1103, %v1111
      %v1129 = vcombine.high %v1103, %v1111
      %v1131 = vunpack.c.l.s4 1934713408
      %v1132 = vunpack.c.0.s8 %v1131
      %v1133 = vlaneseq
      %v1134 = vshrl.u32 %v1133, 7
      %v1135 = vsub.s32 %v1132, %v1134
      %v1136 = vrot.slane %v1128, %v1135
      %v1138 = vunpack.c.l.s4 1934713408
      %v1139 = vunpack.c.0.s8 %v1138
      %v1140 = vlaneseq
      %v1141 = vshrl.u32 %v1140, 7
      %v1142 = vsub.s32 %v1139, %v1141
      %v1143 = vrot.slane %v1129, %v1142
      %v1144 = vcombine.low %v1119, %v1127
      %v1145 = vcombine.high %v1119, %v1127
      %v1147 = vunpack.c.l.s4 1934713408
      %v1148 = vunpack.c.0.s8 %v1147
      %v1149 = vlaneseq
      %v1150 = vshrl.u32 %v1149, 7
      %v1151 = vsub.s32 %v1148, %v1150
      %v1152 = vrot.slane %v1144, %v1151
      %v1154 = vunpack.c.l.s4 1934713408
      %v1155 = vunpack.c.0.s8 %v1154
      %v1156 = vlaneseq
      %v1157 = vshrl.u32 %v1156, 7
      %v1158 = vsub.s32 %v1155, %v1157
      %v1159 = vrot.slane %v1145, %v1158
      %v1160 = vcombine.low %v1136, %v1152
      %v1161 = vcombine.high %v1136, %v1152
      %v1162 = vcombine.low %v1143, %v1159
      %v1163 = vcombine.high %v1143, %v1159
      %v1164 = vcombine.low %v1068, %v1075
      %v1166 = vunpack.c.l.s4 1983009808
      %v1167 = vunpack.c.0.s8 %v1166
      %v1168 = vlaneseq
      %v1169 = vshrl.u32 %v1168, 7
      %v1170 = vsub.s32 %v1167, %v1169
      %v1171 = vrot.slane %v1164, %v1170
      %v1172 = vcombine.low %v1092, %v1093
      %v1174 = vunpack.c.l.s4 1983009808
      %v1175 = vunpack.c.0.s8 %v1174
      %v1176 = vlaneseq
      %v1177 = vshrl.u32 %v1176, 7
      %v1178 = vsub.s32 %v1175, %v1177
      %v1179 = vrot.slane %v1172, %v1178
      %v1180 = vcombine.low %v1084, %v1091
      %v1182 = vunpack.c.l.s4 1983009808
      %v1183 = vunpack.c.0.s8 %v1182
      %v1184 = vlaneseq
      %v1185 = vshrl.u32 %v1184, 7
      %v1186 = vsub.s32 %v1183, %v1185
      %v1187 = vrot.slane %v1180, %v1186
      %v1188 = vcombine.low %v1094, %v1095
      %v1190 = vunpack.c.l.s4 1983009808
      %v1191 = vunpack.c.0.s8 %v1190
      %v1192 = vlaneseq
      %v1193 = vshrl.u32 %v1192, 7
      %v1194 = vsub.s32 %v1191, %v1193
      %v1195 = vrot.slane %v1188, %v1194
      %v1196 = vcombine.low %v1171, %v1179
      %v1197 = vcombine.high %v1171, %v1179
      %v1199 = vunpack.c.l.s4 1934713408
      %v1200 = vunpack.c.0.s8 %v1199
      %v1201 = vlaneseq
      %v1202 = vshrl.u32 %v1201, 7
      %v1203 = vsub.s32 %v1200, %v1202
      %v1204 = vrot.slane %v1196, %v1203
      %v1206 = vunpack.c.l.s4 1934713408
      %v1207 = vunpack.c.0.s8 %v1206
      %v1208 = vlaneseq
      %v1209 = vshrl.u32 %v1208, 7
      %v1210 = vsub.s32 %v1207, %v1209
      %v1211 = vrot.slane %v1197, %v1210
      %v1212 = vcombine.low %v1187, %v1195
      %v1213 = vcombine.high %v1187, %v1195
      %v1215 = vunpack.c.l.s4 1934713408
      %v1216 = vunpack.c.0.s8 %v1215
      %v1217 = vlaneseq
      %v1218 = vshrl.u32 %v1217, 7
      %v1219 = vsub.s32 %v1216, %v1218
      %v1220 = vrot.slane %v1212, %v1219
      %v1222 = vunpack.c.l.s4 1934713408
      %v1223 = vunpack.c.0.s8 %v1222
      %v1224 = vlaneseq
      %v1225 = vshrl.u32 %v1224, 7
      %v1226 = vsub.s32 %v1223, %v1225
      %v1227 = vrot.slane %v1213, %v1226
      %v1228 = vcombine.low %v1204, %v1220
      %v1229 = vcombine.high %v1204, %v1220
      %v1230 = vcombine.low %v1211, %v1227
      %v1231 = vcombine.high %v1211, %v1227
      %1232 = vrot.lane.b32.xlu0 %v638, 64
      %v1233 = vpop.permute.xlu0 %1232
      %1234 = vrot.lane.b32.xlu0 %v641, 64
      %v1235 = vpop.permute.xlu0 %1234
      %1236 = vrot.lane.b32.xlu0 %v647, 64
      %v1237 = vpop.permute.xlu0 %1236
      %1238 = vrot.lane.b32.xlu0 %v649, 64
      %v1239 = vpop.permute.xlu0 %1238
      %1240 = vrot.lane.b32.xlu0 %v653, 64
      %v1241 = vpop.permute.xlu0 %1240
      %1242 = vrot.lane.b32.xlu0 %v655, 64
      %v1243 = vpop.permute.xlu0 %1242
      %1244 = vrot.lane.b32.xlu0 %v659, 64
      %v1245 = vpop.permute.xlu0 %1244
      %1246 = vrot.lane.b32.xlu0 %v661, 64
      %v1247 = vpop.permute.xlu0 %1246
      %v1256 = vcombine.low %v1233, %v1241
      %v1257 = vcombine.high %v1233, %v1241
      %v1259 = vunpack.c.l.s4 1983009808
      %v1260 = vunpack.c.0.s8 %v1259
      %v1261 = vlaneseq
      %v1262 = vshrl.u32 %v1261, 7
      %v1263 = vsub.s32 %v1260, %v1262
      %v1264 = vrot.slane %v1256, %v1263
      %v1266 = vunpack.c.l.s4 1983009808
      %v1267 = vunpack.c.0.s8 %v1266
      %v1268 = vlaneseq
      %v1269 = vshrl.u32 %v1268, 7
      %v1270 = vsub.s32 %v1267, %v1269
      %v1271 = vrot.slane %v1257, %v1270
      %v1272 = vcombine.low %v1237, %v1245
      %v1273 = vcombine.high %v1237, %v1245
      %v1275 = vunpack.c.l.s4 1983009808
      %v1276 = vunpack.c.0.s8 %v1275
      %v1277 = vlaneseq
      %v1278 = vshrl.u32 %v1277, 7
      %v1279 = vsub.s32 %v1276, %v1278
      %v1280 = vrot.slane %v1272, %v1279
      %v1282 = vunpack.c.l.s4 1983009808
      %v1283 = vunpack.c.0.s8 %v1282
      %v1284 = vlaneseq
      %v1285 = vshrl.u32 %v1284, 7
      %v1286 = vsub.s32 %v1283, %v1285
      %v1287 = vrot.slane %v1273, %v1286
      %v1288 = vcombine.low %v1264, %v1280
      %v1289 = vcombine.high %v1264, %v1280
      %v1291 = vunpack.c.l.s4 1934713408
      %v1292 = vunpack.c.0.s8 %v1291
      %v1293 = vlaneseq
      %v1294 = vshrl.u32 %v1293, 7
      %v1295 = vsub.s32 %v1292, %v1294
      %v1296 = vrot.slane %v1288, %v1295
      %v1298 = vunpack.c.l.s4 1934713408
      %v1299 = vunpack.c.0.s8 %v1298
      %v1300 = vlaneseq
      %v1301 = vshrl.u32 %v1300, 7
      %v1302 = vsub.s32 %v1299, %v1301
      %v1303 = vrot.slane %v1289, %v1302
      %v1304 = vcombine.low %v1271, %v1287
      %v1305 = vcombine.high %v1271, %v1287
      %v1307 = vunpack.c.l.s4 1934713408
      %v1308 = vunpack.c.0.s8 %v1307
      %v1309 = vlaneseq
      %v1310 = vshrl.u32 %v1309, 7
      %v1311 = vsub.s32 %v1308, %v1310
      %v1312 = vrot.slane %v1304, %v1311
      %v1314 = vunpack.c.l.s4 1934713408
      %v1315 = vunpack.c.0.s8 %v1314
      %v1316 = vlaneseq
      %v1317 = vshrl.u32 %v1316, 7
      %v1318 = vsub.s32 %v1315, %v1317
      %v1319 = vrot.slane %v1305, %v1318
      %v1320 = vcombine.high %v1296, 0.0
      %v1321 = vcombine.high %v1303, 0.0
      %v1322 = vcombine.high %v1312, 0.0
      %v1323 = vcombine.high %v1319, 0.0
      %v1324 = vcombine.low %v1235, %v1243
      %v1325 = vcombine.high %v1235, %v1243
      %v1327 = vunpack.c.l.s4 1983009808
      %v1328 = vunpack.c.0.s8 %v1327
      %v1329 = vlaneseq
      %v1330 = vshrl.u32 %v1329, 7
      %v1331 = vsub.s32 %v1328, %v1330
      %v1332 = vrot.slane %v1324, %v1331
      %v1334 = vunpack.c.l.s4 1983009808
      %v1335 = vunpack.c.0.s8 %v1334
      %v1336 = vlaneseq
      %v1337 = vshrl.u32 %v1336, 7
      %v1338 = vsub.s32 %v1335, %v1337
      %v1339 = vrot.slane %v1325, %v1338
      %v1340 = vcombine.low %v1239, %v1247
      %v1341 = vcombine.high %v1239, %v1247
      %v1343 = vunpack.c.l.s4 1983009808
      %v1344 = vunpack.c.0.s8 %v1343
      %v1345 = vlaneseq
      %v1346 = vshrl.u32 %v1345, 7
      %v1347 = vsub.s32 %v1344, %v1346
      %v1348 = vrot.slane %v1340, %v1347
      %v1350 = vunpack.c.l.s4 1983009808
      %v1351 = vunpack.c.0.s8 %v1350
      %v1352 = vlaneseq
      %v1353 = vshrl.u32 %v1352, 7
      %v1354 = vsub.s32 %v1351, %v1353
      %v1355 = vrot.slane %v1341, %v1354
      %v1356 = vcombine.low %v1332, %v1348
      %v1357 = vcombine.high %v1332, %v1348
      %v1359 = vunpack.c.l.s4 1934713408
      %v1360 = vunpack.c.0.s8 %v1359
      %v1361 = vlaneseq
      %v1362 = vshrl.u32 %v1361, 7
      %v1363 = vsub.s32 %v1360, %v1362
      %v1364 = vrot.slane %v1356, %v1363
      %v1366 = vunpack.c.l.s4 1934713408
      %v1367 = vunpack.c.0.s8 %v1366
      %v1368 = vlaneseq
      %v1369 = vshrl.u32 %v1368, 7
      %v1370 = vsub.s32 %v1367, %v1369
      %v1371 = vrot.slane %v1357, %v1370
      %v1372 = vcombine.low %v1339, %v1355
      %v1373 = vcombine.high %v1339, %v1355
      %v1375 = vunpack.c.l.s4 1934713408
      %v1376 = vunpack.c.0.s8 %v1375
      %v1377 = vlaneseq
      %v1378 = vshrl.u32 %v1377, 7
      %v1379 = vsub.s32 %v1376, %v1378
      %v1380 = vrot.slane %v1372, %v1379
      %v1382 = vunpack.c.l.s4 1934713408
      %v1383 = vunpack.c.0.s8 %v1382
      %v1384 = vlaneseq
      %v1385 = vshrl.u32 %v1384, 7
      %v1386 = vsub.s32 %v1383, %v1385
      %v1387 = vrot.slane %v1373, %v1386
      %v1388 = vcombine.high %v1364, 0.0
      %v1389 = vcombine.high %v1371, 0.0
      %v1390 = vcombine.high %v1380, 0.0
      %v1391 = vcombine.high %v1387, 0.0
      %v1392 = vcombine.low %v1296, %v1303
      %v1394 = vunpack.c.l.s4 1983009808
      %v1395 = vunpack.c.0.s8 %v1394
      %v1396 = vlaneseq
      %v1397 = vshrl.u32 %v1396, 7
      %v1398 = vsub.s32 %v1395, %v1397
      %v1399 = vrot.slane %v1392, %v1398
      %v1400 = vcombine.low %v1320, %v1321
      %v1402 = vunpack.c.l.s4 1983009808
      %v1403 = vunpack.c.0.s8 %v1402
      %v1404 = vlaneseq
      %v1405 = vshrl.u32 %v1404, 7
      %v1406 = vsub.s32 %v1403, %v1405
      %v1407 = vrot.slane %v1400, %v1406
      %v1408 = vcombine.low %v1312, %v1319
      %v1410 = vunpack.c.l.s4 1983009808
      %v1411 = vunpack.c.0.s8 %v1410
      %v1412 = vlaneseq
      %v1413 = vshrl.u32 %v1412, 7
      %v1414 = vsub.s32 %v1411, %v1413
      %v1415 = vrot.slane %v1408, %v1414
      %v1416 = vcombine.low %v1322, %v1323
      %v1418 = vunpack.c.l.s4 1983009808
      %v1419 = vunpack.c.0.s8 %v1418
      %v1420 = vlaneseq
      %v1421 = vshrl.u32 %v1420, 7
      %v1422 = vsub.s32 %v1419, %v1421
      %v1423 = vrot.slane %v1416, %v1422
      %v1424 = vcombine.low %v1399, %v1407
      %v1425 = vcombine.high %v1399, %v1407
      %v1427 = vunpack.c.l.s4 1934713408
      %v1428 = vunpack.c.0.s8 %v1427
      %v1429 = vlaneseq
      %v1430 = vshrl.u32 %v1429, 7
      %v1431 = vsub.s32 %v1428, %v1430
      %v1432 = vrot.slane %v1424, %v1431
      %v1434 = vunpack.c.l.s4 1934713408
      %v1435 = vunpack.c.0.s8 %v1434
      %v1436 = vlaneseq
      %v1437 = vshrl.u32 %v1436, 7
      %v1438 = vsub.s32 %v1435, %v1437
      %v1439 = vrot.slane %v1425, %v1438
      %v1440 = vcombine.low %v1415, %v1423
      %v1441 = vcombine.high %v1415, %v1423
      %v1443 = vunpack.c.l.s4 1934713408
      %v1444 = vunpack.c.0.s8 %v1443
      %v1445 = vlaneseq
      %v1446 = vshrl.u32 %v1445, 7
      %v1447 = vsub.s32 %v1444, %v1446
      %v1448 = vrot.slane %v1440, %v1447
      %v1450 = vunpack.c.l.s4 1934713408
      %v1451 = vunpack.c.0.s8 %v1450
      %v1452 = vlaneseq
      %v1453 = vshrl.u32 %v1452, 7
      %v1454 = vsub.s32 %v1451, %v1453
      %v1455 = vrot.slane %v1441, %v1454
      %v1456 = vcombine.low %v1432, %v1448
      %v1457 = vcombine.high %v1432, %v1448
      %v1458 = vcombine.low %v1439, %v1455
      %v1459 = vcombine.high %v1439, %v1455
      %v1460 = vcombine.low %v1364, %v1371
      %v1462 = vunpack.c.l.s4 1983009808
      %v1463 = vunpack.c.0.s8 %v1462
      %v1464 = vlaneseq
      %v1465 = vshrl.u32 %v1464, 7
      %v1466 = vsub.s32 %v1463, %v1465
      %v1467 = vrot.slane %v1460, %v1466
      %v1468 = vcombine.low %v1388, %v1389
      %v1470 = vunpack.c.l.s4 1983009808
      %v1471 = vunpack.c.0.s8 %v1470
      %v1472 = vlaneseq
      %v1473 = vshrl.u32 %v1472, 7
      %v1474 = vsub.s32 %v1471, %v1473
      %v1475 = vrot.slane %v1468, %v1474
      %v1476 = vcombine.low %v1380, %v1387
      %v1478 = vunpack.c.l.s4 1983009808
      %v1479 = vunpack.c.0.s8 %v1478
      %v1480 = vlaneseq
      %v1481 = vshrl.u32 %v1480, 7
      %v1482 = vsub.s32 %v1479, %v1481
      %v1483 = vrot.slane %v1476, %v1482
      %v1484 = vcombine.low %v1390, %v1391
      %v1486 = vunpack.c.l.s4 1983009808
      %v1487 = vunpack.c.0.s8 %v1486
      %v1488 = vlaneseq
      %v1489 = vshrl.u32 %v1488, 7
      %v1490 = vsub.s32 %v1487, %v1489
      %v1491 = vrot.slane %v1484, %v1490
      %v1492 = vcombine.low %v1467, %v1475
      %v1493 = vcombine.high %v1467, %v1475
      %v1495 = vunpack.c.l.s4 1934713408
      %v1496 = vunpack.c.0.s8 %v1495
      %v1497 = vlaneseq
      %v1498 = vshrl.u32 %v1497, 7
      %v1499 = vsub.s32 %v1496, %v1498
      %v1500 = vrot.slane %v1492, %v1499
      %v1502 = vunpack.c.l.s4 1934713408
      %v1503 = vunpack.c.0.s8 %v1502
      %v1504 = vlaneseq
      %v1505 = vshrl.u32 %v1504, 7
      %v1506 = vsub.s32 %v1503, %v1505
      %v1507 = vrot.slane %v1493, %v1506
      %v1508 = vcombine.low %v1483, %v1491
      %v1509 = vcombine.high %v1483, %v1491
      %v1511 = vunpack.c.l.s4 1934713408
      %v1512 = vunpack.c.0.s8 %v1511
      %v1513 = vlaneseq
      %v1514 = vshrl.u32 %v1513, 7
      %v1515 = vsub.s32 %v1512, %v1514
      %v1516 = vrot.slane %v1508, %v1515
      %v1518 = vunpack.c.l.s4 1934713408
      %v1519 = vunpack.c.0.s8 %v1518
      %v1520 = vlaneseq
      %v1521 = vshrl.u32 %v1520, 7
      %v1522 = vsub.s32 %v1519, %v1521
      %v1523 = vrot.slane %v1509, %v1522
      %v1524 = vcombine.low %v1500, %v1516
      %v1525 = vcombine.high %v1500, %v1516
      %v1526 = vcombine.low %v1507, %v1523
      %v1527 = vcombine.high %v1507, %v1523
      %v1528 = vpack.c.bf16 %v932, %v864
      %v1529 = vpack.c.bf16 %v933, %v865
      %v1530 = vpack.c.bf16 %v934, %v866
      %v1531 = vpack.c.bf16 %v935, %v867
      %v1532 = vpack.c.bf16 %v1228, %v1160
      %v1533 = vpack.c.bf16 %v1229, %v1161
      %v1534 = vpack.c.bf16 %v1230, %v1162
      %v1535 = vpack.c.bf16 %v1231, %v1163
      %vm1536 = vcmask 64512
      %v1538 = vsel %vm1536, %v1528, 0
      %v1541 = vsel %vm1536, %v1532, 0
      %1543 = vmatprep.subr.bf16.mxu0 0
      %1544 = vmatpush1.bf16.xpose.msra.mxu0 %v1541
      %1545 = vmatprep.subr.bf16.mxu0 0
      %1546 = vmatpush1.bf16.xpose.msra.mxu0 0
      %1547 = vmatprep.subr.bf16.mxu0 0
      %1548 = vmatpush1.bf16.xpose.msra.mxu0 0
      %1549 = vmatprep.subr.bf16.mxu0 0
      %1550 = vmatpush1.bf16.xpose.msra.mxu0 0
      %1551 = vmatprep.subr.bf16.mxu0 0
      %1552 = vmatpush1.bf16.xpose.msra.mxu0 0
      %1553 = vmatprep.subr.bf16.mxu0 0
      %1554 = vmatpush1.bf16.xpose.msra.mxu0 0
      %1555 = vmatprep.subr.bf16.mxu0 0
      %1556 = vmatpush1.bf16.xpose.msra.mxu0 0
      %1557 = vmatprep.subr.bf16.mxu0 0
      %1558 = vmatpush1.bf16.xpose.msra.mxu0 0
      %1559 = vmatprep.subr.bf16.mxu0 0
      %1560 = vmatpush1.bf16.xpose.msra.mxu0 0
      %1561 = vmatprep.subr.bf16.mxu0 0
      %1562 = vmatpush1.bf16.xpose.msra.mxu0 0
      %1563 = vmatprep.subr.bf16.mxu0 0
      %1564 = vmatpush1.bf16.xpose.msra.mxu0 0
      %1565 = vmatprep.subr.bf16.mxu0 0
      %1566 = vmatpush1.bf16.xpose.msra.mxu0 0
      %1567 = vmatprep.subr.bf16.mxu0 0
      %1568 = vmatpush1.bf16.xpose.msra.mxu0 0
      %1569 = vmatprep.subr.bf16.mxu0 0
      %1570 = vmatpush1.bf16.xpose.msra.mxu0 0
      %1571 = vmatprep.subr.bf16.mxu0 0
      %1572 = vmatpush1.bf16.xpose.msra.mxu0 0
      %1573 = vmatprep.subr.bf16.mxu0 0
      %1574 = vmatpush1.bf16.xpose.msra.mxu0 0
      %1575 = vmatprep.mubr.bf16.mxu0 0
      %1576 = vmatmul.mubr.bf16.gmra.mrb[0].mxu0 %v1538
      %v1577 = vpop.f32.mrb[0].mxu0
      %v1578 = vadd.f32 0.0, %v1577
      %v1579 = vpop.f32.mrb[0].mxu0
      %v1580 = vpop.f32.mrb[0].mxu0
      %v1581 = vadd.f32 0.0, %v1580
      %v1582 = vpop.f32.mrb[0].mxu0
      %1583 = vdwg.mxu0
      %v1585 = vsel %vm1536, %v1529, 0
      %v1588 = vsel %vm1536, %v1533, 0
      %1590 = vmatprep.subr.bf16.mxu0 0
      %1591 = vmatpush1.bf16.xpose.msra.mxu0 %v1588
      %1592 = vmatprep.subr.bf16.mxu0 0
      %1593 = vmatpush1.bf16.xpose.msra.mxu0 0
      %1594 = vmatprep.subr.bf16.mxu0 0
      %1595 = vmatpush1.bf16.xpose.msra.mxu0 0
      %1596 = vmatprep.subr.bf16.mxu0 0
      %1597 = vmatpush1.bf16.xpose.msra.mxu0 0
      %1598 = vmatprep.subr.bf16.mxu0 0
      %1599 = vmatpush1.bf16.xpose.msra.mxu0 0
      %1600 = vmatprep.subr.bf16.mxu0 0
      %1601 = vmatpush1.bf16.xpose.msra.mxu0 0
      %1602 = vmatprep.subr.bf16.mxu0 0
      %1603 = vmatpush1.bf16.xpose.msra.mxu0 0
      %1604 = vmatprep.subr.bf16.mxu0 0
      %1605 = vmatpush1.bf16.xpose.msra.mxu0 0
      %1606 = vmatprep.subr.bf16.mxu0 0
      %1607 = vmatpush1.bf16.xpose.msra.mxu0 0
      %1608 = vmatprep.subr.bf16.mxu0 0
      %1609 = vmatpush1.bf16.xpose.msra.mxu0 0
      %1610 = vmatprep.subr.bf16.mxu0 0
      %1611 = vmatpush1.bf16.xpose.msra.mxu0 0
      %1612 = vmatprep.subr.bf16.mxu0 0
      %1613 = vmatpush1.bf16.xpose.msra.mxu0 0
      %1614 = vmatprep.subr.bf16.mxu0 0
      %1615 = vmatpush1.bf16.xpose.msra.mxu0 0
      %1616 = vmatprep.subr.bf16.mxu0 0
      %1617 = vmatpush1.bf16.xpose.msra.mxu0 0
      %1618 = vmatprep.subr.bf16.mxu0 0
      %1619 = vmatpush1.bf16.xpose.msra.mxu0 0
      %1620 = vmatprep.subr.bf16.mxu0 0
      %1621 = vmatpush1.bf16.xpose.msra.mxu0 0
      %1622 = vmatprep.mubr.bf16.mxu0 0
      %1623 = vmatmul.mubr.bf16.gmra.mrb[0].mxu0 %v1585
      %v1624 = vpop.f32.mrb[0].mxu0
      %v1625 = vadd.f32 0.0, %v1624
      %v1626 = vpop.f32.mrb[0].mxu0
      %v1627 = vpop.f32.mrb[0].mxu0
      %v1628 = vadd.f32 0.0, %v1627
      %v1629 = vpop.f32.mrb[0].mxu0
      %1630 = vdwg.mxu0
      %v1632 = vsel %vm1536, %v1530, 0
      %v1635 = vsel %vm1536, %v1534, 0
      %1637 = vmatprep.subr.bf16.mxu0 0
      %1638 = vmatpush1.bf16.xpose.msra.mxu0 %v1635
      %1639 = vmatprep.subr.bf16.mxu0 0
      %1640 = vmatpush1.bf16.xpose.msra.mxu0 0
      %1641 = vmatprep.subr.bf16.mxu0 0
      %1642 = vmatpush1.bf16.xpose.msra.mxu0 0
      %1643 = vmatprep.subr.bf16.mxu0 0
      %1644 = vmatpush1.bf16.xpose.msra.mxu0 0
      %1645 = vmatprep.subr.bf16.mxu0 0
      %1646 = vmatpush1.bf16.xpose.msra.mxu0 0
      %1647 = vmatprep.subr.bf16.mxu0 0
      %1648 = vmatpush1.bf16.xpose.msra.mxu0 0
      %1649 = vmatprep.subr.bf16.mxu0 0
      %1650 = vmatpush1.bf16.xpose.msra.mxu0 0
      %1651 = vmatprep.subr.bf16.mxu0 0
      %1652 = vmatpush1.bf16.xpose.msra.mxu0 0
      %1653 = vmatprep.subr.bf16.mxu0 0
      %1654 = vmatpush1.bf16.xpose.msra.mxu0 0
      %1655 = vmatprep.subr.bf16.mxu0 0
      %1656 = vmatpush1.bf16.xpose.msra.mxu0 0
      %1657 = vmatprep.subr.bf16.mxu0 0
      %1658 = vmatpush1.bf16.xpose.msra.mxu0 0
      %1659 = vmatprep.subr.bf16.mxu0 0
      %1660 = vmatpush1.bf16.xpose.msra.mxu0 0
      %1661 = vmatprep.subr.bf16.mxu0 0
      %1662 = vmatpush1.bf16.xpose.msra.mxu0 0
      %1663 = vmatprep.subr.bf16.mxu0 0
      %1664 = vmatpush1.bf16.xpose.msra.mxu0 0
      %1665 = vmatprep.subr.bf16.mxu0 0
      %1666 = vmatpush1.bf16.xpose.msra.mxu0 0
      %1667 = vmatprep.subr.bf16.mxu0 0
      %1668 = vmatpush1.bf16.xpose.msra.mxu0 0
      %1669 = vmatprep.mubr.bf16.mxu0 0
      %1670 = vmatmul.mubr.bf16.gmra.mrb[0].mxu0 %v1632
      %v1671 = vpop.f32.mrb[0].mxu0
      %v1672 = vadd.f32 0.0, %v1671
      %v1673 = vpop.f32.mrb[0].mxu0
      %v1674 = vpop.f32.mrb[0].mxu0
      %v1675 = vadd.f32 0.0, %v1674
      %v1676 = vpop.f32.mrb[0].mxu0
      %1677 = vdwg.mxu0
      %v1679 = vsel %vm1536, %v1531, 0
      %v1682 = vsel %vm1536, %v1535, 0
      %1684 = vmatprep.subr.bf16.mxu0 0
      %1685 = vmatpush1.bf16.xpose.msra.mxu0 %v1682
      %1686 = vmatprep.subr.bf16.mxu0 0
      %1687 = vmatpush1.bf16.xpose.msra.mxu0 0
      %1688 = vmatprep.subr.bf16.mxu0 0
      %1689 = vmatpush1.bf16.xpose.msra.mxu0 0
      %1690 = vmatprep.subr.bf16.mxu0 0
      %1691 = vmatpush1.bf16.xpose.msra.mxu0 0
      %1692 = vmatprep.subr.bf16.mxu0 0
      %1693 = vmatpush1.bf16.xpose.msra.mxu0 0
      %1694 = vmatprep.subr.bf16.mxu0 0
      %1695 = vmatpush1.bf16.xpose.msra.mxu0 0
      %1696 = vmatprep.subr.bf16.mxu0 0
      %1697 = vmatpush1.bf16.xpose.msra.mxu0 0
      %1698 = vmatprep.subr.bf16.mxu0 0
      %1699 = vmatpush1.bf16.xpose.msra.mxu0 0
      %1700 = vmatprep.subr.bf16.mxu0 0
      %1701 = vmatpush1.bf16.xpose.msra.mxu0 0
      %1702 = vmatprep.subr.bf16.mxu0 0
      %1703 = vmatpush1.bf16.xpose.msra.mxu0 0
      %1704 = vmatprep.subr.bf16.mxu0 0
      %1705 = vmatpush1.bf16.xpose.msra.mxu0 0
      %1706 = vmatprep.subr.bf16.mxu0 0
      %1707 = vmatpush1.bf16.xpose.msra.mxu0 0
      %1708 = vmatprep.subr.bf16.mxu0 0
      %1709 = vmatpush1.bf16.xpose.msra.mxu0 0
      %1710 = vmatprep.subr.bf16.mxu0 0
      %1711 = vmatpush1.bf16.xpose.msra.mxu0 0
      %1712 = vmatprep.subr.bf16.mxu0 0
      %1713 = vmatpush1.bf16.xpose.msra.mxu0 0
      %1714 = vmatprep.subr.bf16.mxu0 0
      %1715 = vmatpush1.bf16.xpose.msra.mxu0 0
      %1716 = vmatprep.mubr.bf16.mxu0 0
      %1717 = vmatmul.mubr.bf16.gmra.mrb[0].mxu0 %v1679
      %v1718 = vpop.f32.mrb[0].mxu0
      %v1719 = vadd.f32 0.0, %v1718
      %v1720 = vpop.f32.mrb[0].mxu0
      %v1721 = vpop.f32.mrb[0].mxu0
      %v1722 = vadd.f32 0.0, %v1721
      %v1723 = vpop.f32.mrb[0].mxu0
      %1724 = vdwg.mxu0
      %v1725 = vmul.f32 %v1578, 0.35355338
      %v1726 = vmul.f32 %v1581, 0.35355338
      %v1727 = vmul.f32 %v1625, 0.35355338
      %v1728 = vmul.f32 %v1628, 0.35355338
      %v1729 = vmul.f32 %v1672, 0.35355338
      %v1730 = vmul.f32 %v1675, 0.35355338
      %v1731 = vmul.f32 %v1719, 0.35355338
      %v1732 = vmul.f32 %v1722, 0.35355338
      %vm1733 = vcmp.gt.f32.partialorder %v539, 0.0
      %v1734 = vsel %vm1733, 1, 0
      %v1735 = vlaneseq
      %v1736 = vshrl.u32 %v1735, 7
      %v1737 = vsub.s32 0, %v1736
      %v1738 = vrot.slane %v1734, %v1737
      %vm1739 = vcmp.eq.s32.totalorder %v1738, 1
      %v1740 = vsel %vm1739, %v1725, -1e+09
      %v1741 = vsel %vm1739, %v1726, -1e+09
      %v1742 = vsel %vm1739, %v1727, -1e+09
      %v1743 = vsel %vm1739, %v1728, -1e+09
      %v1744 = vsel %vm1739, %v1729, -1e+09
      %v1745 = vsel %vm1739, %v1730, -1e+09
      %v1746 = vsel %vm1739, %v1731, -1e+09
      %v1747 = vsel %vm1739, %v1732, -1e+09
      %vm1748 = vcmask 130048
      %v1749 = vsel %vm1748, %v1740, -inf
      %1750 = vmax.xlane.f32.xlu0 %v1749
      %v1751 = vpop.xlane.xlu0 %1750
      %v1752 = vsel %vm1748, %v1741, -inf
      %1753 = vmax.xlane.f32.xlu0 %v1752
      %v1754 = vpop.xlane.xlu0 %1753
      %v1755 = vsel %vm1748, %v1742, -inf
      %1756 = vmax.xlane.f32.xlu0 %v1755
      %v1757 = vpop.xlane.xlu0 %1756
      %v1758 = vsel %vm1748, %v1743, -inf
      %1759 = vmax.xlane.f32.xlu0 %v1758
      %v1760 = vpop.xlane.xlu0 %1759
      %v1761 = vsel %vm1748, %v1744, -inf
      %1762 = vmax.xlane.f32.xlu0 %v1761
      %v1763 = vpop.xlane.xlu0 %1762
      %v1764 = vsel %vm1748, %v1745, -inf
      %1765 = vmax.xlane.f32.xlu0 %v1764
      %v1766 = vpop.xlane.xlu0 %1765
      %v1767 = vsel %vm1748, %v1746, -inf
      %1768 = vmax.xlane.f32.xlu0 %v1767
      %v1769 = vpop.xlane.xlu0 %1768
      %v1770 = vsel %vm1748, %v1747, -inf
      %1771 = vmax.xlane.f32.xlu0 %v1770
      %v1772 = vpop.xlane.xlu0 %1771
      %v1773 = vsub.f32 %v1740, %v1751
      %v1774 = vsub.f32 %v1741, %v1754
      %v1775 = vsub.f32 %v1742, %v1757
      %v1776 = vsub.f32 %v1743, %v1760
      %v1777 = vsub.f32 %v1744, %v1763
      %v1778 = vsub.f32 %v1745, %v1766
      %v1779 = vsub.f32 %v1746, %v1769
      %v1780 = vsub.f32 %v1747, %v1772
      %v1781 = vmul.f32 %v1773, 1.442695
      %v1782 = vpow.pop %v1781
      %v1783 = vmul.f32 %v1774, 1.442695
      %v1784 = vpow.pop %v1783
      %v1785 = vmul.f32 %v1775, 1.442695
      %v1786 = vpow.pop %v1785
      %v1787 = vmul.f32 %v1776, 1.442695
      %v1788 = vpow.pop %v1787
      %v1789 = vmul.f32 %v1777, 1.442695
      %v1790 = vpow.pop %v1789
      %v1791 = vmul.f32 %v1778, 1.442695
      %v1792 = vpow.pop %v1791
      %v1793 = vmul.f32 %v1779, 1.442695
      %v1794 = vpow.pop %v1793
      %v1795 = vmul.f32 %v1780, 1.442695
      %v1796 = vpow.pop %v1795
      %v1797 = vsel %vm1748, %v1782, 0.0
      %1798 = vadd.xlane.f32.xlu0 %v1797
      %v1799 = vpop.xlane.xlu0 %1798
      %v1800 = vsel %vm1748, %v1784, 0.0
      %1801 = vadd.xlane.f32.xlu0 %v1800
      %v1802 = vpop.xlane.xlu0 %1801
      %v1803 = vsel %vm1748, %v1786, 0.0
      %1804 = vadd.xlane.f32.xlu0 %v1803
      %v1805 = vpop.xlane.xlu0 %1804
      %v1806 = vsel %vm1748, %v1788, 0.0
      %1807 = vadd.xlane.f32.xlu0 %v1806
      %v1808 = vpop.xlane.xlu0 %1807
      %v1809 = vsel %vm1748, %v1790, 0.0
      %1810 = vadd.xlane.f32.xlu0 %v1809
      %v1811 = vpop.xlane.xlu0 %1810
      %v1812 = vsel %vm1748, %v1792, 0.0
      %1813 = vadd.xlane.f32.xlu0 %v1812
      %v1814 = vpop.xlane.xlu0 %1813
      %v1815 = vsel %vm1748, %v1794, 0.0
      %1816 = vadd.xlane.f32.xlu0 %v1815
      %v1817 = vpop.xlane.xlu0 %1816
      %v1818 = vsel %vm1748, %v1796, 0.0
      %1819 = vadd.xlane.f32.xlu0 %v1818
      %v1820 = vpop.xlane.xlu0 %1819
      %v1821 = vrcp.pop %v1799
      %v1822 = vrcp.pop %v1802
      %v1823 = vrcp.pop %v1805
      %v1824 = vrcp.pop %v1808
      %v1825 = vrcp.pop %v1811
      %v1826 = vrcp.pop %v1814
      %v1827 = vrcp.pop %v1817
      %v1828 = vrcp.pop %v1820
      %v1829 = vmul.f32 %v1782, %v1821
      %v1830 = vmul.f32 %v1784, %v1822
      %v1831 = vmul.f32 %v1786, %v1823
      %v1832 = vmul.f32 %v1788, %v1824
      %v1833 = vmul.f32 %v1790, %v1825
      %v1834 = vmul.f32 %v1792, %v1826
      %v1835 = vmul.f32 %v1794, %v1827
      %v1836 = vmul.f32 %v1796, %v1828
      %v1837 = vpack.c.bf16 %v1830, %v1829
      %v1838 = vpack.c.bf16 %v1832, %v1831
      %v1839 = vpack.c.bf16 %v1834, %v1833
      %v1840 = vpack.c.bf16 %v1836, %v1835
      %v1841 = vpack.c.bf16 %v1524, %v1456
      %v1842 = vpack.c.bf16 %v1525, %v1457
      %v1843 = vpack.c.bf16 %v1526, %v1458
      %v1844 = vpack.c.bf16 %v1527, %v1459
      %v1846 = vsel %vm1748, %v1837, 0
      %1848 = vmatprep.subr.bf16.mxu0 0
      %1849 = vmatpush1.bf16.msra.mxu0 %v1841
      %1850 = vmatprep.subr.bf16.mxu0 0
      %1851 = vmatpush1.bf16.msra.mxu0 0
      %1852 = vmatprep.subr.bf16.mxu0 0
      %1853 = vmatpush1.bf16.msra.mxu0 0
      %1854 = vmatprep.subr.bf16.mxu0 0
      %1855 = vmatpush1.bf16.msra.mxu0 0
      %1856 = vmatprep.subr.bf16.mxu0 0
      %1857 = vmatpush1.bf16.msra.mxu0 0
      %1858 = vmatprep.subr.bf16.mxu0 0
      %1859 = vmatpush1.bf16.msra.mxu0 0
      %1860 = vmatprep.subr.bf16.mxu0 0
      %1861 = vmatpush1.bf16.msra.mxu0 0
      %1862 = vmatprep.subr.bf16.mxu0 0
      %1863 = vmatpush1.bf16.msra.mxu0 0
      %1864 = vmatprep.subr.bf16.mxu0 0
      %1865 = vmatpush1.bf16.msra.mxu0 0
      %1866 = vmatprep.subr.bf16.mxu0 0
      %1867 = vmatpush1.bf16.msra.mxu0 0
      %1868 = vmatprep.subr.bf16.mxu0 0
      %1869 = vmatpush1.bf16.msra.mxu0 0
      %1870 = vmatprep.subr.bf16.mxu0 0
      %1871 = vmatpush1.bf16.msra.mxu0 0
      %1872 = vmatprep.subr.bf16.mxu0 0
      %1873 = vmatpush1.bf16.msra.mxu0 0
      %1874 = vmatprep.subr.bf16.mxu0 0
      %1875 = vmatpush1.bf16.msra.mxu0 0
      %1876 = vmatprep.subr.bf16.mxu0 0
      %1877 = vmatpush1.bf16.msra.mxu0 0
      %1878 = vmatprep.subr.bf16.mxu0 0
      %1879 = vmatpush1.bf16.msra.mxu0 0
      %1880 = vmatprep.mubr.bf16.mxu0 0
      %1881 = vmatmul.mubr.bf16.gmra.mrb[0].mxu0 %v1846
      %v1882 = vpop.f32.mrb[0].mxu0
      %v1883 = vadd.f32 0.0, %v1882
      %v1884 = vpop.f32.mrb[0].mxu0
      %v1885 = vpop.f32.mrb[0].mxu0
      %v1886 = vadd.f32 0.0, %v1885
      %v1887 = vpop.f32.mrb[0].mxu0
      %1888 = vdwg.mxu0
      %v1890 = vsel %vm1748, %v1838, 0
      %1892 = vmatprep.subr.bf16.mxu0 0
      %1893 = vmatpush1.bf16.msra.mxu0 %v1842
      %1894 = vmatprep.subr.bf16.mxu0 0
      %1895 = vmatpush1.bf16.msra.mxu0 0
      %1896 = vmatprep.subr.bf16.mxu0 0
      %1897 = vmatpush1.bf16.msra.mxu0 0
      %1898 = vmatprep.subr.bf16.mxu0 0
      %1899 = vmatpush1.bf16.msra.mxu0 0
      %1900 = vmatprep.subr.bf16.mxu0 0
      %1901 = vmatpush1.bf16.msra.mxu0 0
      %1902 = vmatprep.subr.bf16.mxu0 0
      %1903 = vmatpush1.bf16.msra.mxu0 0
      %1904 = vmatprep.subr.bf16.mxu0 0
      %1905 = vmatpush1.bf16.msra.mxu0 0
      %1906 = vmatprep.subr.bf16.mxu0 0
      %1907 = vmatpush1.bf16.msra.mxu0 0
      %1908 = vmatprep.subr.bf16.mxu0 0
      %1909 = vmatpush1.bf16.msra.mxu0 0
      %1910 = vmatprep.subr.bf16.mxu0 0
      %1911 = vmatpush1.bf16.msra.mxu0 0
      %1912 = vmatprep.subr.bf16.mxu0 0
      %1913 = vmatpush1.bf16.msra.mxu0 0
      %1914 = vmatprep.subr.bf16.mxu0 0
      %1915 = vmatpush1.bf16.msra.mxu0 0
      %1916 = vmatprep.subr.bf16.mxu0 0
      %1917 = vmatpush1.bf16.msra.mxu0 0
      %1918 = vmatprep.subr.bf16.mxu0 0
      %1919 = vmatpush1.bf16.msra.mxu0 0
      %1920 = vmatprep.subr.bf16.mxu0 0
      %1921 = vmatpush1.bf16.msra.mxu0 0
      %1922 = vmatprep.subr.bf16.mxu0 0
      %1923 = vmatpush1.bf16.msra.mxu0 0
      %1924 = vmatprep.mubr.bf16.mxu0 0
      %1925 = vmatmul.mubr.bf16.gmra.mrb[0].mxu0 %v1890
      %v1926 = vpop.f32.mrb[0].mxu0
      %v1927 = vadd.f32 0.0, %v1926
      %v1928 = vpop.f32.mrb[0].mxu0
      %v1929 = vpop.f32.mrb[0].mxu0
      %v1930 = vadd.f32 0.0, %v1929
      %v1931 = vpop.f32.mrb[0].mxu0
      %1932 = vdwg.mxu0
      %v1934 = vsel %vm1748, %v1839, 0
      %1936 = vmatprep.subr.bf16.mxu0 0
      %1937 = vmatpush1.bf16.msra.mxu0 %v1843
      %1938 = vmatprep.subr.bf16.mxu0 0
      %1939 = vmatpush1.bf16.msra.mxu0 0
      %1940 = vmatprep.subr.bf16.mxu0 0
      %1941 = vmatpush1.bf16.msra.mxu0 0
      %1942 = vmatprep.subr.bf16.mxu0 0
      %1943 = vmatpush1.bf16.msra.mxu0 0
      %1944 = vmatprep.subr.bf16.mxu0 0
      %1945 = vmatpush1.bf16.msra.mxu0 0
      %1946 = vmatprep.subr.bf16.mxu0 0
      %1947 = vmatpush1.bf16.msra.mxu0 0
      %1948 = vmatprep.subr.bf16.mxu0 0
      %1949 = vmatpush1.bf16.msra.mxu0 0
      %1950 = vmatprep.subr.bf16.mxu0 0
      %1951 = vmatpush1.bf16.msra.mxu0 0
      %1952 = vmatprep.subr.bf16.mxu0 0
      %1953 = vmatpush1.bf16.msra.mxu0 0
      %1954 = vmatprep.subr.bf16.mxu0 0
      %1955 = vmatpush1.bf16.msra.mxu0 0
      %1956 = vmatprep.subr.bf16.mxu0 0
      %1957 = vmatpush1.bf16.msra.mxu0 0
      %1958 = vmatprep.subr.bf16.mxu0 0
      %1959 = vmatpush1.bf16.msra.mxu0 0
      %1960 = vmatprep.subr.bf16.mxu0 0
      %1961 = vmatpush1.bf16.msra.mxu0 0
      %1962 = vmatprep.subr.bf16.mxu0 0
      %1963 = vmatpush1.bf16.msra.mxu0 0
      %1964 = vmatprep.subr.bf16.mxu0 0
      %1965 = vmatpush1.bf16.msra.mxu0 0
      %1966 = vmatprep.subr.bf16.mxu0 0
      %1967 = vmatpush1.bf16.msra.mxu0 0
      %1968 = vmatprep.mubr.bf16.mxu0 0
      %1969 = vmatmul.mubr.bf16.gmra.mrb[0].mxu0 %v1934
      %v1970 = vpop.f32.mrb[0].mxu0
      %v1971 = vadd.f32 0.0, %v1970
      %v1972 = vpop.f32.mrb[0].mxu0
      %v1973 = vpop.f32.mrb[0].mxu0
      %v1974 = vadd.f32 0.0, %v1973
      %v1975 = vpop.f32.mrb[0].mxu0
      %1976 = vdwg.mxu0
      %v1978 = vsel %vm1748, %v1840, 0
      %1980 = vmatprep.subr.bf16.mxu0 0
      %1981 = vmatpush1.bf16.msra.mxu0 %v1844
      %1982 = vmatprep.subr.bf16.mxu0 0
      %1983 = vmatpush1.bf16.msra.mxu0 0
      %1984 = vmatprep.subr.bf16.mxu0 0
      %1985 = vmatpush1.bf16.msra.mxu0 0
      %1986 = vmatprep.subr.bf16.mxu0 0
      %1987 = vmatpush1.bf16.msra.mxu0 0
      %1988 = vmatprep.subr.bf16.mxu0 0
      %1989 = vmatpush1.bf16.msra.mxu0 0
      %1990 = vmatprep.subr.bf16.mxu0 0
      %1991 = vmatpush1.bf16.msra.mxu0 0
      %1992 = vmatprep.subr.bf16.mxu0 0
      %1993 = vmatpush1.bf16.msra.mxu0 0
      %1994 = vmatprep.subr.bf16.mxu0 0
      %1995 = vmatpush1.bf16.msra.mxu0 0
      %1996 = vmatprep.subr.bf16.mxu0 0
      %1997 = vmatpush1.bf16.msra.mxu0 0
      %1998 = vmatprep.subr.bf16.mxu0 0
      %1999 = vmatpush1.bf16.msra.mxu0 0
      %2000 = vmatprep.subr.bf16.mxu0 0
      %2001 = vmatpush1.bf16.msra.mxu0 0
      %2002 = vmatprep.subr.bf16.mxu0 0
      %2003 = vmatpush1.bf16.msra.mxu0 0
      %2004 = vmatprep.subr.bf16.mxu0 0
      %2005 = vmatpush1.bf16.msra.mxu0 0
      %2006 = vmatprep.subr.bf16.mxu0 0
      %2007 = vmatpush1.bf16.msra.mxu0 0
      %2008 = vmatprep.subr.bf16.mxu0 0
      %2009 = vmatpush1.bf16.msra.mxu0 0
      %2010 = vmatprep.subr.bf16.mxu0 0
      %2011 = vmatpush1.bf16.msra.mxu0 0
      %2012 = vmatprep.mubr.bf16.mxu0 0
      %2013 = vmatmul.mubr.bf16.gmra.mrb[0].mxu0 %v1978
      %v2014 = vpop.f32.mrb[0].mxu0
      %v2015 = vadd.f32 0.0, %v2014
      %v2016 = vpop.f32.mrb[0].mxu0
      %v2017 = vpop.f32.mrb[0].mxu0
      %v2018 = vadd.f32 0.0, %v2017
      %v2019 = vpop.f32.mrb[0].mxu0
      %2020 = vdwg.mxu0
      %v2021 = vcombine.low %v1883, %v1971
      %v2022 = vcombine.high %v1883, %v1971
      %v2024 = vunpack.c.l.s4 1983009808
      %v2025 = vunpack.c.0.s8 %v2024
      %v2026 = vlaneseq
      %v2027 = vshrl.u32 %v2026, 7
      %v2028 = vsub.s32 %v2025, %v2027
      %v2029 = vrot.slane %v2021, %v2028
      %v2031 = vunpack.c.l.s4 1983009808
      %v2032 = vunpack.c.0.s8 %v2031
      %v2033 = vlaneseq
      %v2034 = vshrl.u32 %v2033, 7
      %v2035 = vsub.s32 %v2032, %v2034
      %v2036 = vrot.slane %v2022, %v2035
      %v2037 = vcombine.low %v1927, %v2015
      %v2038 = vcombine.high %v1927, %v2015
      %v2040 = vunpack.c.l.s4 1983009808
      %v2041 = vunpack.c.0.s8 %v2040
      %v2042 = vlaneseq
      %v2043 = vshrl.u32 %v2042, 7
      %v2044 = vsub.s32 %v2041, %v2043
      %v2045 = vrot.slane %v2037, %v2044
      %v2047 = vunpack.c.l.s4 1983009808
      %v2048 = vunpack.c.0.s8 %v2047
      %v2049 = vlaneseq
      %v2050 = vshrl.u32 %v2049, 7
      %v2051 = vsub.s32 %v2048, %v2050
      %v2052 = vrot.slane %v2038, %v2051
      %v2053 = vcombine.low %v2029, %v2045
      %v2054 = vcombine.high %v2029, %v2045
      %v2056 = vunpack.c.l.s4 1934713408
      %v2057 = vunpack.c.0.s8 %v2056
      %v2058 = vlaneseq
      %v2059 = vshrl.u32 %v2058, 7
      %v2060 = vsub.s32 %v2057, %v2059
      %v2061 = vrot.slane %v2053, %v2060
      %v2063 = vunpack.c.l.s4 1934713408
      %v2064 = vunpack.c.0.s8 %v2063
      %v2065 = vlaneseq
      %v2066 = vshrl.u32 %v2065, 7
      %v2067 = vsub.s32 %v2064, %v2066
      %v2068 = vrot.slane %v2054, %v2067
      %v2069 = vcombine.low %v2036, %v2052
      %v2070 = vcombine.high %v2036, %v2052
      %v2072 = vunpack.c.l.s4 1934713408
      %v2073 = vunpack.c.0.s8 %v2072
      %v2074 = vlaneseq
      %v2075 = vshrl.u32 %v2074, 7
      %v2076 = vsub.s32 %v2073, %v2075
      %v2077 = vrot.slane %v2069, %v2076
      %v2079 = vunpack.c.l.s4 1934713408
      %v2080 = vunpack.c.0.s8 %v2079
      %v2081 = vlaneseq
      %v2082 = vshrl.u32 %v2081, 7
      %v2083 = vsub.s32 %v2080, %v2082
      %v2084 = vrot.slane %v2070, %v2083
      %v2085 = vcombine.high %v2061, 0.0
      %v2086 = vcombine.high %v2068, 0.0
      %v2087 = vcombine.high %v2077, 0.0
      %v2088 = vcombine.high %v2084, 0.0
      %v2089 = vcombine.low %v1886, %v1974
      %v2090 = vcombine.high %v1886, %v1974
      %v2092 = vunpack.c.l.s4 1983009808
      %v2093 = vunpack.c.0.s8 %v2092
      %v2094 = vlaneseq
      %v2095 = vshrl.u32 %v2094, 7
      %v2096 = vsub.s32 %v2093, %v2095
      %v2097 = vrot.slane %v2089, %v2096
      %v2099 = vunpack.c.l.s4 1983009808
      %v2100 = vunpack.c.0.s8 %v2099
      %v2101 = vlaneseq
      %v2102 = vshrl.u32 %v2101, 7
      %v2103 = vsub.s32 %v2100, %v2102
      %v2104 = vrot.slane %v2090, %v2103
      %v2105 = vcombine.low %v1930, %v2018
      %v2106 = vcombine.high %v1930, %v2018
      %v2108 = vunpack.c.l.s4 1983009808
      %v2109 = vunpack.c.0.s8 %v2108
      %v2110 = vlaneseq
      %v2111 = vshrl.u32 %v2110, 7
      %v2112 = vsub.s32 %v2109, %v2111
      %v2113 = vrot.slane %v2105, %v2112
      %v2115 = vunpack.c.l.s4 1983009808
      %v2116 = vunpack.c.0.s8 %v2115
      %v2117 = vlaneseq
      %v2118 = vshrl.u32 %v2117, 7
      %v2119 = vsub.s32 %v2116, %v2118
      %v2120 = vrot.slane %v2106, %v2119
      %v2121 = vcombine.low %v2097, %v2113
      %v2122 = vcombine.high %v2097, %v2113
      %v2124 = vunpack.c.l.s4 1934713408
      %v2125 = vunpack.c.0.s8 %v2124
      %v2126 = vlaneseq
      %v2127 = vshrl.u32 %v2126, 7
      %v2128 = vsub.s32 %v2125, %v2127
      %v2129 = vrot.slane %v2121, %v2128
      %v2131 = vunpack.c.l.s4 1934713408
      %v2132 = vunpack.c.0.s8 %v2131
      %v2133 = vlaneseq
      %v2134 = vshrl.u32 %v2133, 7
      %v2135 = vsub.s32 %v2132, %v2134
      %v2136 = vrot.slane %v2122, %v2135
      %v2137 = vcombine.low %v2104, %v2120
      %v2138 = vcombine.high %v2104, %v2120
      %v2140 = vunpack.c.l.s4 1934713408
      %v2141 = vunpack.c.0.s8 %v2140
      %v2142 = vlaneseq
      %v2143 = vshrl.u32 %v2142, 7
      %v2144 = vsub.s32 %v2141, %v2143
      %v2145 = vrot.slane %v2137, %v2144
      %v2147 = vunpack.c.l.s4 1934713408
      %v2148 = vunpack.c.0.s8 %v2147
      %v2149 = vlaneseq
      %v2150 = vshrl.u32 %v2149, 7
      %v2151 = vsub.s32 %v2148, %v2150
      %v2152 = vrot.slane %v2138, %v2151
      %v2153 = vcombine.high %v2129, 0.0
      %v2154 = vcombine.high %v2136, 0.0
      %v2155 = vcombine.high %v2145, 0.0
      %v2156 = vcombine.high %v2152, 0.0
      %v2157 = vcombine.low %v2061, %v2068
      %v2159 = vunpack.c.l.s4 1983009808
      %v2160 = vunpack.c.0.s8 %v2159
      %v2161 = vlaneseq
      %v2162 = vshrl.u32 %v2161, 7
      %v2163 = vsub.s32 %v2160, %v2162
      %v2164 = vrot.slane %v2157, %v2163
      %v2165 = vcombine.low %v2085, %v2086
      %v2167 = vunpack.c.l.s4 1983009808
      %v2168 = vunpack.c.0.s8 %v2167
      %v2169 = vlaneseq
      %v2170 = vshrl.u32 %v2169, 7
      %v2171 = vsub.s32 %v2168, %v2170
      %v2172 = vrot.slane %v2165, %v2171
      %v2173 = vcombine.low %v2077, %v2084
      %v2175 = vunpack.c.l.s4 1983009808
      %v2176 = vunpack.c.0.s8 %v2175
      %v2177 = vlaneseq
      %v2178 = vshrl.u32 %v2177, 7
      %v2179 = vsub.s32 %v2176, %v2178
      %v2180 = vrot.slane %v2173, %v2179
      %v2181 = vcombine.low %v2087, %v2088
      %v2183 = vunpack.c.l.s4 1983009808
      %v2184 = vunpack.c.0.s8 %v2183
      %v2185 = vlaneseq
      %v2186 = vshrl.u32 %v2185, 7
      %v2187 = vsub.s32 %v2184, %v2186
      %v2188 = vrot.slane %v2181, %v2187
      %v2189 = vcombine.low %v2164, %v2172
      %v2190 = vcombine.high %v2164, %v2172
      %v2192 = vunpack.c.l.s4 1934713408
      %v2193 = vunpack.c.0.s8 %v2192
      %v2194 = vlaneseq
      %v2195 = vshrl.u32 %v2194, 7
      %v2196 = vsub.s32 %v2193, %v2195
      %v2197 = vrot.slane %v2189, %v2196
      %v2199 = vunpack.c.l.s4 1934713408
      %v2200 = vunpack.c.0.s8 %v2199
      %v2201 = vlaneseq
      %v2202 = vshrl.u32 %v2201, 7
      %v2203 = vsub.s32 %v2200, %v2202
      %v2204 = vrot.slane %v2190, %v2203
      %v2205 = vcombine.low %v2180, %v2188
      %v2206 = vcombine.high %v2180, %v2188
      %v2208 = vunpack.c.l.s4 1934713408
      %v2209 = vunpack.c.0.s8 %v2208
      %v2210 = vlaneseq
      %v2211 = vshrl.u32 %v2210, 7
      %v2212 = vsub.s32 %v2209, %v2211
      %v2213 = vrot.slane %v2205, %v2212
      %v2215 = vunpack.c.l.s4 1934713408
      %v2216 = vunpack.c.0.s8 %v2215
      %v2217 = vlaneseq
      %v2218 = vshrl.u32 %v2217, 7
      %v2219 = vsub.s32 %v2216, %v2218
      %v2220 = vrot.slane %v2206, %v2219
      %v2221 = vcombine.low %v2197, %v2213
      %v2222 = vcombine.high %v2197, %v2213
      %v2223 = vcombine.low %v2204, %v2220
      %v2224 = vcombine.high %v2204, %v2220
      %v2225 = vcombine.low %v2129, %v2136
      %v2227 = vunpack.c.l.s4 1983009808
      %v2228 = vunpack.c.0.s8 %v2227
      %v2229 = vlaneseq
      %v2230 = vshrl.u32 %v2229, 7
      %v2231 = vsub.s32 %v2228, %v2230
      %v2232 = vrot.slane %v2225, %v2231
      %v2233 = vcombine.low %v2153, %v2154
      %v2235 = vunpack.c.l.s4 1983009808
      %v2236 = vunpack.c.0.s8 %v2235
      %v2237 = vlaneseq
      %v2238 = vshrl.u32 %v2237, 7
      %v2239 = vsub.s32 %v2236, %v2238
      %v2240 = vrot.slane %v2233, %v2239
      %v2241 = vcombine.low %v2145, %v2152
      %v2243 = vunpack.c.l.s4 1983009808
      %v2244 = vunpack.c.0.s8 %v2243
      %v2245 = vlaneseq
      %v2246 = vshrl.u32 %v2245, 7
      %v2247 = vsub.s32 %v2244, %v2246
      %v2248 = vrot.slane %v2241, %v2247
      %v2249 = vcombine.low %v2155, %v2156
      %v2251 = vunpack.c.l.s4 1983009808
      %v2252 = vunpack.c.0.s8 %v2251
      %v2253 = vlaneseq
      %v2254 = vshrl.u32 %v2253, 7
      %v2255 = vsub.s32 %v2252, %v2254
      %v2256 = vrot.slane %v2249, %v2255
      %v2257 = vcombine.low %v2232, %v2240
      %v2258 = vcombine.high %v2232, %v2240
      %v2260 = vunpack.c.l.s4 1934713408
      %v2261 = vunpack.c.0.s8 %v2260
      %v2262 = vlaneseq
      %v2263 = vshrl.u32 %v2262, 7
      %v2264 = vsub.s32 %v2261, %v2263
      %v2265 = vrot.slane %v2257, %v2264
      %v2267 = vunpack.c.l.s4 1934713408
      %v2268 = vunpack.c.0.s8 %v2267
      %v2269 = vlaneseq
      %v2270 = vshrl.u32 %v2269, 7
      %v2271 = vsub.s32 %v2268, %v2270
      %v2272 = vrot.slane %v2258, %v2271
      %v2273 = vcombine.low %v2248, %v2256
      %v2274 = vcombine.high %v2248, %v2256
      %v2276 = vunpack.c.l.s4 1934713408
      %v2277 = vunpack.c.0.s8 %v2276
      %v2278 = vlaneseq
      %v2279 = vshrl.u32 %v2278, 7
      %v2280 = vsub.s32 %v2277, %v2279
      %v2281 = vrot.slane %v2273, %v2280
      %v2283 = vunpack.c.l.s4 1934713408
      %v2284 = vunpack.c.0.s8 %v2283
      %v2285 = vlaneseq
      %v2286 = vshrl.u32 %v2285, 7
      %v2287 = vsub.s32 %v2284, %v2286
      %v2288 = vrot.slane %v2274, %v2287
      %v2289 = vcombine.low %v2265, %v2281
      %v2290 = vcombine.high %v2265, %v2281
      %v2291 = vcombine.low %v2272, %v2288
      %v2292 = vcombine.high %v2272, %v2288
      %2295 = vrot.lane.b32.xlu0 %v2222, 8
      %v2296 = vpop.permute.xlu0 %2295
      %2297 = vrot.lane.b32.xlu0 %v2290, 8
      %v2298 = vpop.permute.xlu0 %2297
      %2303 = vrot.lane.b32.xlu0 %v2223, 16
      %v2304 = vpop.permute.xlu0 %2303
      %2305 = vrot.lane.b32.xlu0 %v2291, 16
      %v2306 = vpop.permute.xlu0 %2305
      %2311 = vrot.lane.b32.xlu0 %v2224, 24
      %v2312 = vpop.permute.xlu0 %2311
      %2313 = vrot.lane.b32.xlu0 %v2292, 24
      %v2314 = vpop.permute.xlu0 %2313
      %v2317 = vsel %vm1536, %v2221, %v2296
      %v2318 = vsel %vm1536, %v2289, %v2298
      %v2319 = vsel %vm1748, %v2317, %v2304
      %v2320 = vsel %vm1748, %v2318, %v2306
      %vm2321 = vcmask 195584
      %v2322 = vsel %vm2321, %v2319, %v2312
      %v2323 = vsel %vm2321, %v2320, %v2314
      %v2324 = vld [vmem:[%s6] sm:$0xff]
      %v2325 = vld [vmem:[%s6 + $0x8] sm:$0xff]
      %v2326 = vld [vmem:[%s6 + $0x10] sm:$0xff]
      %v2327 = vld [vmem:[%s6 + $0x18] sm:$0xff]
      %v2328 = vld [vmem:[%s7] sm:$0x1]
      %v2329 = vpack.c.bf16 %v2323, %v2322
      %v2330 = vpack.c.bf16 %v2325, %v2324
      %v2331 = vpack.c.bf16 %v2327, %v2326
      %v2333 = vlaneseq
      %v2334 = vshrl.u32 %v2333, 7
      %v2335 = vsub.s32 0, %v2334
      %v2336 = vrot.slane %v2328, %v2335
      %v2339 = vsel %vm542, %v2329, 0
      %2341 = vmatprep.subr.bf16.mxu0 0
      %2342 = vmatpush1.bf16.msra.mxu0 %v2330
      %2343 = vmatprep.subr.bf16.mxu0 0
      %2344 = vmatpush1.bf16.msra.mxu0 %v2331
      %2345 = vmatprep.subr.bf16.mxu0 0
      %2346 = vmatpush1.bf16.msra.mxu0 0
      %2347 = vmatprep.subr.bf16.mxu0 0
      %2348 = vmatpush1.bf16.msra.mxu0 0
      %2349 = vmatprep.subr.bf16.mxu0 0
      %2350 = vmatpush1.bf16.msra.mxu0 0
      %2351 = vmatprep.subr.bf16.mxu0 0
      %2352 = vmatpush1.bf16.msra.mxu0 0
      %2353 = vmatprep.subr.bf16.mxu0 0
      %2354 = vmatpush1.bf16.msra.mxu0 0
      %2355 = vmatprep.subr.bf16.mxu0 0
      %2356 = vmatpush1.bf16.msra.mxu0 0
      %2357 = vmatprep.subr.bf16.mxu0 0
      %2358 = vmatpush1.bf16.msra.mxu0 0
      %2359 = vmatprep.subr.bf16.mxu0 0
      %2360 = vmatpush1.bf16.msra.mxu0 0
      %2361 = vmatprep.subr.bf16.mxu0 0
      %2362 = vmatpush1.bf16.msra.mxu0 0
      %2363 = vmatprep.subr.bf16.mxu0 0
      %2364 = vmatpush1.bf16.msra.mxu0 0
      %2365 = vmatprep.subr.bf16.mxu0 0
      %2366 = vmatpush1.bf16.msra.mxu0 0
      %2367 = vmatprep.subr.bf16.mxu0 0
      %2368 = vmatpush1.bf16.msra.mxu0 0
      %2369 = vmatprep.subr.bf16.mxu0 0
      %2370 = vmatpush1.bf16.msra.mxu0 0
      %2371 = vmatprep.subr.bf16.mxu0 0
      %2372 = vmatpush1.bf16.msra.mxu0 0
      %2373 = vmatprep.mubr.bf16.mxu0 0
      %2374 = vmatmul.mubr.bf16.gmra.mrb[0].mxu0 %v2339
      %v2375 = vpop.f32.mrb[0].mxu0
      %v2376 = vadd.f32 %v2336, %v2375
      %v2377 = vpop.f32.mrb[0].mxu0
      %v2378 = vpop.f32.mrb[0].mxu0
      %v2379 = vadd.f32 %v2336, %v2378
      %v2380 = vpop.f32.mrb[0].mxu0
      %2381 = vdwg.mxu0
      %v2382 = vadd.f32 %v537, %v2376
      %v2383 = vadd.f32 %v538, %v2379
      %v2384 = vld [vmem:[%s8] sm:$0x1]
      %v2385 = vld [vmem:[%s9] sm:$0x1]
      %v2386 = vsel %vm542, %v2382, 0.0
      %2387 = vadd.xlane.f32.xlu0 %v2386
      %v2388 = vpop.xlane.xlu0 %2387
      %v2389 = vsel %vm542, %v2383, 0.0
      %2390 = vadd.xlane.f32.xlu0 %v2389
      %v2391 = vpop.xlane.xlu0 %2390
      %v2392 = vmul.f32 %v2388, %v549
      %v2393 = vmul.f32 %v2391, %v549
      %v2394 = vsub.f32 %v2382, %v2392
      %v2395 = vsub.f32 %v2383, %v2393
      %v2396 = vmul.f32 %v2394, %v2394
      %v2397 = vmul.f32 %v2395, %v2395
      %v2398 = vsel %vm542, %v2396, 0.0
      %2399 = vadd.xlane.f32.xlu0 %v2398
      %v2400 = vpop.xlane.xlu0 %2399
      %v2401 = vsel %vm542, %v2397, 0.0
      %2402 = vadd.xlane.f32.xlu0 %v2401
      %v2403 = vpop.xlane.xlu0 %2402
      %v2404 = vmul.f32 %v2400, %v549
      %v2405 = vmul.f32 %v2403, %v549
      %v2406 = vadd.f32 %v2404, 1e-05
      %v2407 = vadd.f32 %v2405, 1e-05
      %v2408 = vrsqrt.pop %v2406
      %v2409 = vrsqrt.pop %v2407
      %v2410 = vmul.f32 %v2394, %v2408
      %v2411 = vmul.f32 %v2395, %v2409
      %v2413 = vlaneseq
      %v2414 = vshrl.u32 %v2413, 7
      %v2415 = vsub.s32 0, %v2414
      %v2416 = vrot.slane %v2384, %v2415
      %v2418 = vmul.f32 %v2410, %v2416
      %v2419 = vmul.f32 %v2411, %v2416
      %v2421 = vlaneseq
      %v2422 = vshrl.u32 %v2421, 7
      %v2423 = vsub.s32 0, %v2422
      %v2424 = vrot.slane %v2385, %v2423
      %v2426 = vadd.f32 %v2418, %v2424
      %v2427 = vadd.f32 %v2419, %v2424
      %v2428 = vld [vmem:[%s10] sm:$0xff]
      %v2429 = vld [vmem:[%s10 + $0x8] sm:$0xff]
      %v2430 = vld [vmem:[%s10 + $0x10] sm:$0xff]
      %v2431 = vld [vmem:[%s10 + $0x18] sm:$0xff]
      %v2432 = vld [vmem:[%s11] sm:$0x1]
      %v2433 = vpack.c.bf16 %v2427, %v2426
      %v2434 = vpack.c.bf16 %v2429, %v2428
      %v2435 = vpack.c.bf16 %v2431, %v2430
      %v2437 = vlaneseq
      %v2438 = vshrl.u32 %v2437, 7
      %v2439 = vsub.s32 0, %v2438
      %v2440 = vrot.slane %v2432, %v2439
      %v2443 = vsel %vm542, %v2433, 0
      %2445 = vmatprep.subr.bf16.mxu0 0
      %2446 = vmatpush1.bf16.msra.mxu0 %v2434
      %2447 = vmatprep.subr.bf16.mxu0 0
      %2448 = vmatpush1.bf16.msra.mxu0 %v2435
      %2449 = vmatprep.subr.bf16.mxu0 0
      %2450 = vmatpush1.bf16.msra.mxu0 0
      %2451 = vmatprep.subr.bf16.mxu0 0
      %2452 = vmatpush1.bf16.msra.mxu0 0
      %2453 = vmatprep.subr.bf16.mxu0 0
      %2454 = vmatpush1.bf16.msra.mxu0 0
      %2455 = vmatprep.subr.bf16.mxu0 0
      %2456 = vmatpush1.bf16.msra.mxu0 0
      %2457 = vmatprep.subr.bf16.mxu0 0
      %2458 = vmatpush1.bf16.msra.mxu0 0
      %2459 = vmatprep.subr.bf16.mxu0 0
      %2460 = vmatpush1.bf16.msra.mxu0 0
      %2461 = vmatprep.subr.bf16.mxu0 0
      %2462 = vmatpush1.bf16.msra.mxu0 0
      %2463 = vmatprep.subr.bf16.mxu0 0
      %2464 = vmatpush1.bf16.msra.mxu0 0
      %2465 = vmatprep.subr.bf16.mxu0 0
      %2466 = vmatpush1.bf16.msra.mxu0 0
      %2467 = vmatprep.subr.bf16.mxu0 0
      %2468 = vmatpush1.bf16.msra.mxu0 0
      %2469 = vmatprep.subr.bf16.mxu0 0
      %2470 = vmatpush1.bf16.msra.mxu0 0
      %2471 = vmatprep.subr.bf16.mxu0 0
      %2472 = vmatpush1.bf16.msra.mxu0 0
      %2473 = vmatprep.subr.bf16.mxu0 0
      %2474 = vmatpush1.bf16.msra.mxu0 0
      %2475 = vmatprep.subr.bf16.mxu0 0
      %2476 = vmatpush1.bf16.msra.mxu0 0
      %2477 = vmatprep.mubr.bf16.mxu0 0
      %2478 = vmatmul.mubr.bf16.gmra.mrb[0].mxu0 %v2443
      %v2479 = vpop.f32.mrb[0].mxu0
      %v2480 = vadd.f32 %v2440, %v2479
      %v2481 = vpop.f32.mrb[0].mxu0
      %v2482 = vpop.f32.mrb[0].mxu0
      %v2483 = vadd.f32 %v2440, %v2482
      %v2484 = vpop.f32.mrb[0].mxu0
      %2485 = vdwg.mxu0
      %v2486 = vmax.f32 %v2480, 0.0
      %v2487 = vmax.f32 %v2483, 0.0
      %v2488 = vld [vmem:[%s12] sm:$0xff]
      %v2489 = vld [vmem:[%s12 + $0x8] sm:$0xff]
      %v2490 = vld [vmem:[%s12 + $0x10] sm:$0xff]
      %v2491 = vld [vmem:[%s12 + $0x18] sm:$0xff]
      %v2492 = vld [vmem:[%s12 + $0x20] sm:$0xff]
      %v2493 = vld [vmem:[%s12 + $0x28] sm:$0xff]
      %v2494 = vld [vmem:[%s12 + $0x30] sm:$0xff]
      %v2495 = vld [vmem:[%s12 + $0x38] sm:$0xff]
      %v2496 = vld [vmem:[%s13] sm:$0x1]
      %v2497 = vpack.c.bf16 %v2487, %v2486
      %v2498 = vpack.c.bf16 %v2489, %v2488
      %v2499 = vpack.c.bf16 %v2491, %v2490
      %v2500 = vpack.c.bf16 %v2493, %v2492
      %v2501 = vpack.c.bf16 %v2495, %v2494
      %v2503 = vlaneseq
      %v2504 = vshrl.u32 %v2503, 7
      %v2505 = vsub.s32 0, %v2504
      %v2506 = vrot.slane %v2496, %v2505
      %vm2508 = vcmask 523264
      %v2510 = vsel %vm2508, %v2497, 0
      %2512 = vmatprep.subr.bf16.mxu0 0
      %2513 = vmatpush1.bf16.msra.mxu0 %v2498
      %2514 = vmatprep.subr.bf16.mxu0 0
      %2515 = vmatpush1.bf16.msra.mxu0 %v2499
      %2516 = vmatprep.subr.bf16.mxu0 0
      %2517 = vmatpush1.bf16.msra.mxu0 %v2500
      %2518 = vmatprep.subr.bf16.mxu0 0
      %2519 = vmatpush1.bf16.msra.mxu0 %v2501
      %2520 = vmatprep.subr.bf16.mxu0 0
      %2521 = vmatpush1.bf16.msra.mxu0 0
      %2522 = vmatprep.subr.bf16.mxu0 0
      %2523 = vmatpush1.bf16.msra.mxu0 0
      %2524 = vmatprep.subr.bf16.mxu0 0
      %2525 = vmatpush1.bf16.msra.mxu0 0
      %2526 = vmatprep.subr.bf16.mxu0 0
      %2527 = vmatpush1.bf16.msra.mxu0 0
      %2528 = vmatprep.subr.bf16.mxu0 0
      %2529 = vmatpush1.bf16.msra.mxu0 0
      %2530 = vmatprep.subr.bf16.mxu0 0
      %2531 = vmatpush1.bf16.msra.mxu0 0
      %2532 = vmatprep.subr.bf16.mxu0 0
      %2533 = vmatpush1.bf16.msra.mxu0 0
      %2534 = vmatprep.subr.bf16.mxu0 0
      %2535 = vmatpush1.bf16.msra.mxu0 0
      %2536 = vmatprep.subr.bf16.mxu0 0
      %2537 = vmatpush1.bf16.msra.mxu0 0
      %2538 = vmatprep.subr.bf16.mxu0 0
      %2539 = vmatpush1.bf16.msra.mxu0 0
      %2540 = vmatprep.subr.bf16.mxu0 0
      %2541 = vmatpush1.bf16.msra.mxu0 0
      %2542 = vmatprep.subr.bf16.mxu0 0
      %2543 = vmatpush1.bf16.msra.mxu0 0
      %2544 = vmatprep.mubr.bf16.mxu0 0
      %2545 = vmatmul.mubr.bf16.gmra.mrb[0].mxu0 %v2510
      %v2546 = vpop.f32.mrb[0].mxu0
      %v2547 = vadd.f32 %v2506, %v2546
      %v2548 = vpop.f32.mrb[0].mxu0
      %v2549 = vpop.f32.mrb[0].mxu0
      %v2550 = vadd.f32 %v2506, %v2549
      %v2551 = vpop.f32.mrb[0].mxu0
      %2552 = vdwg.mxu0
      %v2553 = vadd.f32 %v2382, %v2547
      %v2554 = vadd.f32 %v2383, %v2550
      %2555 = vst.msk [vmem:[%s535] sm:$0xff] %vm542, %v2553
      %2556 = vst.msk [vmem:[%s535 + $0x8] sm:$0xff] %vm542, %v2554
      %p2557 = scmp.lt.s32.totalorder %s27, 1
      %s2558 = scalar_select %p2557, %s27, 1
      %s2559 = smul.addr %s2558, 2
      %s2560 = smul.addr %s2559, 8
      %s2561 = scalar_lea.vmem %s16, %s2560
      // Predicated region
      $region85: #{model_forward.5} parent=83 // pred_check
        %p2562 = pneg %p391
      $region86: #{model_forward.5} parent=83 // pred_check_branch
        %2564 = sbr.rel (%p2562) target = $region88
      $region87: #{model_forward.5} parent=83 // pred_region
        _
      $region88: #{model_forward.5} parent=83 // pred_fallthru
        _
    $region84: #{model_forward.5} parent=5 // pred_fallthru
      _
    %p2565 = scmp.le.s32.totalorder 2, %s22
    // Predicated region
    $region89: #{model_forward.5} parent=5 // pred_check
      %p2566 = pneg %p2565
    $region90: #{model_forward.5} parent=5 // pred_check_branch
      %2568 = sbr.rel (%p2566) target = $region92
    $region91: #{model_forward.5} parent=5 // pred_region
      %s2569 = ssub.s32 %s22, 2
      // Predicated region
      $region93: #{model_forward.5} parent=91 // pred_check
        %p2570 = pneg %p397
      $region94: #{model_forward.5} parent=91 // pred_check_branch
        %2572 = sbr.rel (%p2570) target = $region96
      $region95: #{model_forward.5} parent=91 // pred_region
        %p2573 = scmp.lt.s32.totalorder %s28, 1
        %s2574 = scalar_select %p2573, %s28, 1
        %s2575 = smul.addr %s2574, 2
        %s2576 = smul.addr %s2575, 8
        %s2577 = scalar_lea.vmem %s16, %s2576
      $region96: #{model_forward.5} parent=91 // pred_fallthru
        _
    $region92: #{model_forward.5} parent=5 // pred_fallthru
      _
  $region6: #{model_forward.5} parent=0 // loop_footer
    %s26 = sadd.s32 1, %s22
  $region7: #{model_forward.5} parent=0 // loop_footer_branch
    %21 = sbr.rel target = $region3
  $region8: #{model_forward.5} parent=0 // loop_exit
    _

// kernel: model_forward.6
$region0: #{model_forward.6}
  #allocation0 [shape = 'u32[]', space=smem, size = 0x4, offset = 0x4, fixed_abs, tag = 'smem constant byte address 0x4 - core index']
  #allocation1 [shape = 'u32[144,128]{1,0:T(1,128)}', space=vmem, size = 0x12000, scoped, tag = 'internal scratch']
  %s0 = inlined_call_operand.vmem [shape: f32[2,16,32], index: 0, kind: input, shape index: {}]
  %s1 = inlined_call_operand.vmem [shape: f32[2,1,16], index: 1, kind: input, shape index: {}]
  %s2 = inlined_call_operand.vmem [shape: f32[1,32], index: 2, kind: input, shape index: {}]
  %s3 = inlined_call_operand.vmem [shape: f32[1,32], index: 3, kind: input, shape index: {}]
  %s4 = inlined_call_operand.vmem [shape: f32[32,96], index: 4, kind: input, shape index: {}]
  %s5 = inlined_call_operand.vmem [shape: f32[1,96], index: 5, kind: input, shape index: {}]
  %s6 = inlined_call_operand.vmem [shape: f32[32,32], index: 6, kind: input, shape index: {}]
  %s7 = inlined_call_operand.vmem [shape: f32[1,32], index: 7, kind: input, shape index: {}]
  %s8 = inlined_call_operand.vmem [shape: f32[1,32], index: 8, kind: input, shape index: {}]
  %s9 = inlined_call_operand.vmem [shape: f32[1,32], index: 9, kind: input, shape index: {}]
  %s10 = inlined_call_operand.vmem [shape: f32[32,64], index: 10, kind: input, shape index: {}]
  %s11 = inlined_call_operand.vmem [shape: f32[1,64], index: 11, kind: input, shape index: {}]
  %s12 = inlined_call_operand.vmem [shape: f32[64,32], index: 12, kind: input, shape index: {}]
  %s13 = inlined_call_operand.vmem [shape: f32[1,32], index: 13, kind: input, shape index: {}]
  %s14 = inlined_call_operand.vmem [shape: f32[1,32], index: 14, kind: input, shape index: {}]
  %s15 = inlined_call_operand.vmem [shape: f32[1,32], index: 15, kind: input, shape index: {}]
  %s16 = inlined_call_operand.vmem [shape: f32[2,16,32], index: 16, kind: output, shape index: {}]
  %s17 = sld [smem:[#allocation0]]
  $region97: #{model_forward.6} parent=0
    _
  %s19 = ssub.s32 1, %s17
  %s20 = scalar_select 0, %s19, %s17
  loop: start=0, step=1, limit=4
  $region2: #{model_forward.6} parent=0 // loop_pre_header
    _
  $region3: #{model_forward.6} parent=0 // loop_header
    %s22 = sphi 0, %s26
    %p23 = scmp.ge.s32.totalorder %s22, 4
    %s32 = sphi 0, %s34
    %s35 = sphi 0, %s32
    %s36 = sphi 0, %s35
    %s52 = sphi 0, %s36
    %s58 = sphi 0, %s60
    %s61 = sphi 0, %s58
    %s62 = sphi 0, %s61
    %s78 = sphi 0, %s62
    %s82 = sphi 0, %s82
    %s84 = sphi 0, %s82
    %s85 = sphi 0, %s84
    %s99 = sphi 0, %s85
    %s103 = sphi 0, %s103
    %s105 = sphi 0, %s103
    %s106 = sphi 0, %s105
    %s120 = sphi 0, %s106
    %s124 = sphi 0, %s124
    %s126 = sphi 0, %s124
    %s127 = sphi 0, %s126
    %s141 = sphi 0, %s127
    %s145 = sphi 0, %s145
    %s147 = sphi 0, %s145
    %s148 = sphi 0, %s147
    %s162 = sphi 0, %s148
    %s166 = sphi 0, %s166
    %s168 = sphi 0, %s166
    %s169 = sphi 0, %s168
    %s183 = sphi 0, %s169
    %s187 = sphi 0, %s187
    %s189 = sphi 0, %s187
    %s190 = sphi 0, %s189
    %s204 = sphi 0, %s190
    %s208 = sphi 0, %s208
    %s210 = sphi 0, %s208
    %s211 = sphi 0, %s210
    %s225 = sphi 0, %s211
    %s229 = sphi 0, %s229
    %s231 = sphi 0, %s229
    %s232 = sphi 0, %s231
    %s246 = sphi 0, %s232
    %s250 = sphi 0, %s250
    %s252 = sphi 0, %s250
    %s253 = sphi 0, %s252
    %s267 = sphi 0, %s253
    %s271 = sphi 0, %s271
    %s273 = sphi 0, %s271
    %s274 = sphi 0, %s273
    %s288 = sphi 0, %s274
    %s292 = sphi 0, %s292
    %s294 = sphi 0, %s292
    %s295 = sphi 0, %s294
    %s309 = sphi 0, %s295
    %s313 = sphi 0, %s313
    %s315 = sphi 0, %s313
    %s316 = sphi 0, %s315
    %s330 = sphi 0, %s316
    %s334 = sphi 0, %s334
    %s336 = sphi 0, %s334
    %s337 = sphi 0, %s336
    %s351 = sphi 0, %s337
    %s355 = sphi 0, %s355
    %s357 = sphi 0, %s355
    %s358 = sphi 0, %s357
    %s372 = sphi 0, %s358
    %s378 = sphi 0, %s380
    %s381 = sphi 0, %s378
    %s382 = sphi 0, %s381
    %s398 = sphi 0, %s382
  $region4: #{model_forward.6} parent=0 // loop_header_branch
    %25 = sbr.rel (%p23) target = $region8
  $region5: #{model_forward.6} parent=0 // loop_body
    %s27 = ssub.s32 %s22, 1
    %s28 = ssub.s32 %s22, 2
    %s29 = sadd.s32 %s22, 1
    %s30 = ssub.s32 %s22, %s29
    %p31 = scmp.eq.s32.totalorder %s30, 0
    %s33 = sadd.s32 %s32, 1
    %s34 = scalar_select %p31, %s32, %s33
    %p37 = pneg %p31
    %p38 = scmp.eq.s32.totalorder %s22, 1
    %p39 = por %p37, %p38
    %p40 = scmp.ne.s32.totalorder %s32, %s35
    %p41 = scmp.eq.s32.totalorder %s22, 0
    %p42 = por %p40, %p41
    %p43 = scmp.ne.s32.totalorder %s32, %s35
    %p44 = scmp.eq.s32.totalorder %s27, 1
    %p45 = por %p43, %p44
    %p46 = scmp.ne.s32.totalorder %s35, %s36
    %p47 = scmp.eq.s32.totalorder %s27, 0
    %p48 = por %p46, %p47
    %p49 = scmp.ne.s32.totalorder %s35, %s36
    %p50 = scmp.eq.s32.totalorder %s28, 1
    %p51 = por %p49, %p50
    %p53 = scmp.ne.s32.totalorder %s36, %s52
    %p54 = scmp.eq.s32.totalorder %s28, 0
    %p55 = por %p53, %p54
    %s56 = ssub.s32 %s22, %s29
    %p57 = scmp.eq.s32.totalorder %s56, 0
    %s59 = sadd.s32 %s58, 1
    %s60 = scalar_select %p57, %s58, %s59
    %p63 = pneg %p57
    %p64 = scmp.eq.s32.totalorder %s22, 1
    %p65 = por %p63, %p64
    %p66 = scmp.ne.s32.totalorder %s58, %s61
    %p67 = scmp.eq.s32.totalorder %s22, 0
    %p68 = por %p66, %p67
    %p69 = scmp.ne.s32.totalorder %s58, %s61
    %p70 = scmp.eq.s32.totalorder %s27, 1
    %p71 = por %p69, %p70
    %p72 = scmp.ne.s32.totalorder %s61, %s62
    %p73 = scmp.eq.s32.totalorder %s27, 0
    %p74 = por %p72, %p73
    %p75 = scmp.ne.s32.totalorder %s61, %s62
    %p76 = scmp.eq.s32.totalorder %s28, 1
    %p77 = por %p75, %p76
    %p79 = scmp.ne.s32.totalorder %s62, %s78
    %p80 = scmp.eq.s32.totalorder %s28, 0
    %p81 = por %p79, %p80
    %s83 = sadd.s32 %s82, 1
    %p86 = scmp.eq.s32.totalorder %s22, 1
    %p87 = scmp.ne.s32.totalorder %s82, %s84
    %p88 = scmp.eq.s32.totalorder %s22, 0
    %p89 = por %p87, %p88
    %p90 = scmp.ne.s32.totalorder %s82, %s84
    %p91 = scmp.eq.s32.totalorder %s27, 1
    %p92 = por %p90, %p91
    %p93 = scmp.ne.s32.totalorder %s84, %s85
    %p94 = scmp.eq.s32.totalorder %s27, 0
    %p95 = por %p93, %p94
    %p96 = scmp.ne.s32.totalorder %s84, %s85
    %p97 = scmp.eq.s32.totalorder %s28, 1
    %p98 = por %p96, %p97
    %p100 = scmp.ne.s32.totalorder %s85, %s99
    %p101 = scmp.eq.s32.totalorder %s28, 0
    %p102 = por %p100, %p101
    %s104 = sadd.s32 %s103, 1
    %p107 = scmp.eq.s32.totalorder %s22, 1
    %p108 = scmp.ne.s32.totalorder %s103, %s105
    %p109 = scmp.eq.s32.totalorder %s22, 0
    %p110 = por %p108, %p109
    %p111 = scmp.ne.s32.totalorder %s103, %s105
    %p112 = scmp.eq.s32.totalorder %s27, 1
    %p113 = por %p111, %p112
    %p114 = scmp.ne.s32.totalorder %s105, %s106
    %p115 = scmp.eq.s32.totalorder %s27, 0
    %p116 = por %p114, %p115
    %p117 = scmp.ne.s32.totalorder %s105, %s106
    %p118 = scmp.eq.s32.totalorder %s28, 1
    %p119 = por %p117, %p118
    %p121 = scmp.ne.s32.totalorder %s106, %s120
    %p122 = scmp.eq.s32.totalorder %s28, 0
    %p123 = por %p121, %p122
    %s125 = sadd.s32 %s124, 1
    %p128 = scmp.eq.s32.totalorder %s22, 1
    %p129 = scmp.ne.s32.totalorder %s124, %s126
    %p130 = scmp.eq.s32.totalorder %s22, 0
    %p131 = por %p129, %p130
    %p132 = scmp.ne.s32.totalorder %s124, %s126
    %p133 = scmp.eq.s32.totalorder %s27, 1
    %p134 = por %p132, %p133
    %p135 = scmp.ne.s32.totalorder %s126, %s127
    %p136 = scmp.eq.s32.totalorder %s27, 0
    %p137 = por %p135, %p136
    %p138 = scmp.ne.s32.totalorder %s126, %s127
    %p139 = scmp.eq.s32.totalorder %s28, 1
    %p140 = por %p138, %p139
    %p142 = scmp.ne.s32.totalorder %s127, %s141
    %p143 = scmp.eq.s32.totalorder %s28, 0
    %p144 = por %p142, %p143
    %s146 = sadd.s32 %s145, 1
    %p149 = scmp.eq.s32.totalorder %s22, 1
    %p150 = scmp.ne.s32.totalorder %s145, %s147
    %p151 = scmp.eq.s32.totalorder %s22, 0
    %p152 = por %p150, %p151
    %p153 = scmp.ne.s32.totalorder %s145, %s147
    %p154 = scmp.eq.s32.totalorder %s27, 1
    %p155 = por %p153, %p154
    %p156 = scmp.ne.s32.totalorder %s147, %s148
    %p157 = scmp.eq.s32.totalorder %s27, 0
    %p158 = por %p156, %p157
    %p159 = scmp.ne.s32.totalorder %s147, %s148
    %p160 = scmp.eq.s32.totalorder %s28, 1
    %p161 = por %p159, %p160
    %p163 = scmp.ne.s32.totalorder %s148, %s162
    %p164 = scmp.eq.s32.totalorder %s28, 0
    %p165 = por %p163, %p164
    %s167 = sadd.s32 %s166, 1
    %p170 = scmp.eq.s32.totalorder %s22, 1
    %p171 = scmp.ne.s32.totalorder %s166, %s168
    %p172 = scmp.eq.s32.totalorder %s22, 0
    %p173 = por %p171, %p172
    %p174 = scmp.ne.s32.totalorder %s166, %s168
    %p175 = scmp.eq.s32.totalorder %s27, 1
    %p176 = por %p174, %p175
    %p177 = scmp.ne.s32.totalorder %s168, %s169
    %p178 = scmp.eq.s32.totalorder %s27, 0
    %p179 = por %p177, %p178
    %p180 = scmp.ne.s32.totalorder %s168, %s169
    %p181 = scmp.eq.s32.totalorder %s28, 1
    %p182 = por %p180, %p181
    %p184 = scmp.ne.s32.totalorder %s169, %s183
    %p185 = scmp.eq.s32.totalorder %s28, 0
    %p186 = por %p184, %p185
    %s188 = sadd.s32 %s187, 1
    %p191 = scmp.eq.s32.totalorder %s22, 1
    %p192 = scmp.ne.s32.totalorder %s187, %s189
    %p193 = scmp.eq.s32.totalorder %s22, 0
    %p194 = por %p192, %p193
    %p195 = scmp.ne.s32.totalorder %s187, %s189
    %p196 = scmp.eq.s32.totalorder %s27, 1
    %p197 = por %p195, %p196
    %p198 = scmp.ne.s32.totalorder %s189, %s190
    %p199 = scmp.eq.s32.totalorder %s27, 0
    %p200 = por %p198, %p199
    %p201 = scmp.ne.s32.totalorder %s189, %s190
    %p202 = scmp.eq.s32.totalorder %s28, 1
    %p203 = por %p201, %p202
    %p205 = scmp.ne.s32.totalorder %s190, %s204
    %p206 = scmp.eq.s32.totalorder %s28, 0
    %p207 = por %p205, %p206
    %s209 = sadd.s32 %s208, 1
    %p212 = scmp.eq.s32.totalorder %s22, 1
    %p213 = scmp.ne.s32.totalorder %s208, %s210
    %p214 = scmp.eq.s32.totalorder %s22, 0
    %p215 = por %p213, %p214
    %p216 = scmp.ne.s32.totalorder %s208, %s210
    %p217 = scmp.eq.s32.totalorder %s27, 1
    %p218 = por %p216, %p217
    %p219 = scmp.ne.s32.totalorder %s210, %s211
    %p220 = scmp.eq.s32.totalorder %s27, 0
    %p221 = por %p219, %p220
    %p222 = scmp.ne.s32.totalorder %s210, %s211
    %p223 = scmp.eq.s32.totalorder %s28, 1
    %p224 = por %p222, %p223
    %p226 = scmp.ne.s32.totalorder %s211, %s225
    %p227 = scmp.eq.s32.totalorder %s28, 0
    %p228 = por %p226, %p227
    %s230 = sadd.s32 %s229, 1
    %p233 = scmp.eq.s32.totalorder %s22, 1
    %p234 = scmp.ne.s32.totalorder %s229, %s231
    %p235 = scmp.eq.s32.totalorder %s22, 0
    %p236 = por %p234, %p235
    %p237 = scmp.ne.s32.totalorder %s229, %s231
    %p238 = scmp.eq.s32.totalorder %s27, 1
    %p239 = por %p237, %p238
    %p240 = scmp.ne.s32.totalorder %s231, %s232
    %p241 = scmp.eq.s32.totalorder %s27, 0
    %p242 = por %p240, %p241
    %p243 = scmp.ne.s32.totalorder %s231, %s232
    %p244 = scmp.eq.s32.totalorder %s28, 1
    %p245 = por %p243, %p244
    %p247 = scmp.ne.s32.totalorder %s232, %s246
    %p248 = scmp.eq.s32.totalorder %s28, 0
    %p249 = por %p247, %p248
    %s251 = sadd.s32 %s250, 1
    %p254 = scmp.eq.s32.totalorder %s22, 1
    %p255 = scmp.ne.s32.totalorder %s250, %s252
    %p256 = scmp.eq.s32.totalorder %s22, 0
    %p257 = por %p255, %p256
    %p258 = scmp.ne.s32.totalorder %s250, %s252
    %p259 = scmp.eq.s32.totalorder %s27, 1
    %p260 = por %p258, %p259
    %p261 = scmp.ne.s32.totalorder %s252, %s253
    %p262 = scmp.eq.s32.totalorder %s27, 0
    %p263 = por %p261, %p262
    %p264 = scmp.ne.s32.totalorder %s252, %s253
    %p265 = scmp.eq.s32.totalorder %s28, 1
    %p266 = por %p264, %p265
    %p268 = scmp.ne.s32.totalorder %s253, %s267
    %p269 = scmp.eq.s32.totalorder %s28, 0
    %p270 = por %p268, %p269
    %s272 = sadd.s32 %s271, 1
    %p275 = scmp.eq.s32.totalorder %s22, 1
    %p276 = scmp.ne.s32.totalorder %s271, %s273
    %p277 = scmp.eq.s32.totalorder %s22, 0
    %p278 = por %p276, %p277
    %p279 = scmp.ne.s32.totalorder %s271, %s273
    %p280 = scmp.eq.s32.totalorder %s27, 1
    %p281 = por %p279, %p280
    %p282 = scmp.ne.s32.totalorder %s273, %s274
    %p283 = scmp.eq.s32.totalorder %s27, 0
    %p284 = por %p282, %p283
    %p285 = scmp.ne.s32.totalorder %s273, %s274
    %p286 = scmp.eq.s32.totalorder %s28, 1
    %p287 = por %p285, %p286
    %p289 = scmp.ne.s32.totalorder %s274, %s288
    %p290 = scmp.eq.s32.totalorder %s28, 0
    %p291 = por %p289, %p290
    %s293 = sadd.s32 %s292, 1
    %p296 = scmp.eq.s32.totalorder %s22, 1
    %p297 = scmp.ne.s32.totalorder %s292, %s294
    %p298 = scmp.eq.s32.totalorder %s22, 0
    %p299 = por %p297, %p298
    %p300 = scmp.ne.s32.totalorder %s292, %s294
    %p301 = scmp.eq.s32.totalorder %s27, 1
    %p302 = por %p300, %p301
    %p303 = scmp.ne.s32.totalorder %s294, %s295
    %p304 = scmp.eq.s32.totalorder %s27, 0
    %p305 = por %p303, %p304
    %p306 = scmp.ne.s32.totalorder %s294, %s295
    %p307 = scmp.eq.s32.totalorder %s28, 1
    %p308 = por %p306, %p307
    %p310 = scmp.ne.s32.totalorder %s295, %s309
    %p311 = scmp.eq.s32.totalorder %s28, 0
    %p312 = por %p310, %p311
    %s314 = sadd.s32 %s313, 1
    %p317 = scmp.eq.s32.totalorder %s22, 1
    %p318 = scmp.ne.s32.totalorder %s313, %s315
    %p319 = scmp.eq.s32.totalorder %s22, 0
    %p320 = por %p318, %p319
    %p321 = scmp.ne.s32.totalorder %s313, %s315
    %p322 = scmp.eq.s32.totalorder %s27, 1
    %p323 = por %p321, %p322
    %p324 = scmp.ne.s32.totalorder %s315, %s316
    %p325 = scmp.eq.s32.totalorder %s27, 0
    %p326 = por %p324, %p325
    %p327 = scmp.ne.s32.totalorder %s315, %s316
    %p328 = scmp.eq.s32.totalorder %s28, 1
    %p329 = por %p327, %p328
    %p331 = scmp.ne.s32.totalorder %s316, %s330
    %p332 = scmp.eq.s32.totalorder %s28, 0
    %p333 = por %p331, %p332
    %s335 = sadd.s32 %s334, 1
    %p338 = scmp.eq.s32.totalorder %s22, 1
    %p339 = scmp.ne.s32.totalorder %s334, %s336
    %p340 = scmp.eq.s32.totalorder %s22, 0
    %p341 = por %p339, %p340
    %p342 = scmp.ne.s32.totalorder %s334, %s336
    %p343 = scmp.eq.s32.totalorder %s27, 1
    %p344 = por %p342, %p343
    %p345 = scmp.ne.s32.totalorder %s336, %s337
    %p346 = scmp.eq.s32.totalorder %s27, 0
    %p347 = por %p345, %p346
    %p348 = scmp.ne.s32.totalorder %s336, %s337
    %p349 = scmp.eq.s32.totalorder %s28, 1
    %p350 = por %p348, %p349
    %p352 = scmp.ne.s32.totalorder %s337, %s351
    %p353 = scmp.eq.s32.totalorder %s28, 0
    %p354 = por %p352, %p353
    %s356 = sadd.s32 %s355, 1
    %p359 = scmp.eq.s32.totalorder %s22, 1
    %p360 = scmp.ne.s32.totalorder %s355, %s357
    %p361 = scmp.eq.s32.totalorder %s22, 0
    %p362 = por %p360, %p361
    %p363 = scmp.ne.s32.totalorder %s355, %s357
    %p364 = scmp.eq.s32.totalorder %s27, 1
    %p365 = por %p363, %p364
    %p366 = scmp.ne.s32.totalorder %s357, %s358
    %p367 = scmp.eq.s32.totalorder %s27, 0
    %p368 = por %p366, %p367
    %p369 = scmp.ne.s32.totalorder %s357, %s358
    %p370 = scmp.eq.s32.totalorder %s28, 1
    %p371 = por %p369, %p370
    %p373 = scmp.ne.s32.totalorder %s358, %s372
    %p374 = scmp.eq.s32.totalorder %s28, 0
    %p375 = por %p373, %p374
    %s376 = ssub.s32 %s22, %s29
    %p377 = scmp.eq.s32.totalorder %s376, 0
    %s379 = sadd.s32 %s378, 1
    %s380 = scalar_select %p377, %s378, %s379
    %p383 = pneg %p377
    %p384 = scmp.eq.s32.totalorder %s22, 1
    %p385 = por %p383, %p384
    %p386 = scmp.ne.s32.totalorder %s378, %s381
    %p387 = scmp.eq.s32.totalorder %s22, 0
    %p388 = por %p386, %p387
    %p389 = scmp.ne.s32.totalorder %s378, %s381
    %p390 = scmp.eq.s32.totalorder %s27, 1
    %p391 = por %p389, %p390
    %p392 = scmp.ne.s32.totalorder %s381, %s382
    %p393 = scmp.eq.s32.totalorder %s27, 0
    %p394 = por %p392, %p393
    %p395 = scmp.ne.s32.totalorder %s381, %s382
    %p396 = scmp.eq.s32.totalorder %s28, 1
    %p397 = por %p395, %p396
    %p399 = scmp.ne.s32.totalorder %s382, %s398
    %p400 = scmp.eq.s32.totalorder %s28, 0
    %p401 = por %p399, %p400
    %p402 = scmp.le.s32.totalorder 1, %s22
    %p403 = scmp.lt.s32.totalorder %s22, 3
    %p404 = pnand %p402, %p403
    %p405 = pneg %p404
    // Predicated region
    $region9: #{model_forward.6} parent=5 // pred_check
      _
    $region10: #{model_forward.6} parent=5 // pred_check_branch
      %407 = sbr.rel (%p404) target = $region12
    $region11: #{model_forward.6} parent=5 // pred_region
      %s408 = ssub.s32 %s22, 1
      // Predicated region
      $region13: #{model_forward.6} parent=11 // pred_check
        %p409 = pneg %p95
      $region14: #{model_forward.6} parent=11 // pred_check_branch
        %411 = sbr.rel (%p409) target = $region16
      $region15: #{model_forward.6} parent=11 // pred_region
        _
      $region16: #{model_forward.6} parent=11 // pred_fallthru
        _
      // Predicated region
      $region17: #{model_forward.6} parent=11 // pred_check
        %p412 = pneg %p116
      $region18: #{model_forward.6} parent=11 // pred_check_branch
        %414 = sbr.rel (%p412) target = $region20
      $region19: #{model_forward.6} parent=11 // pred_region
        _
      $region20: #{model_forward.6} parent=11 // pred_fallthru
        _
      // Predicated region
      $region21: #{model_forward.6} parent=11 // pred_check
        %p415 = pneg %p137
      $region22: #{model_forward.6} parent=11 // pred_check_branch
        %417 = sbr.rel (%p415) target = $region24
      $region23: #{model_forward.6} parent=11 // pred_region
        _
      $region24: #{model_forward.6} parent=11 // pred_fallthru
        _
      // Predicated region
      $region25: #{model_forward.6} parent=11 // pred_check
        %p418 = pneg %p158
      $region26: #{model_forward.6} parent=11 // pred_check_branch
        %420 = sbr.rel (%p418) target = $region28
      $region27: #{model_forward.6} parent=11 // pred_region
        _
      $region28: #{model_forward.6} parent=11 // pred_fallthru
        _
      // Predicated region
      $region29: #{model_forward.6} parent=11 // pred_check
        %p421 = pneg %p179
      $region30: #{model_forward.6} parent=11 // pred_check_branch
        %423 = sbr.rel (%p421) target = $region32
      $region31: #{model_forward.6} parent=11 // pred_region
        _
      $region32: #{model_forward.6} parent=11 // pred_fallthru
        _
      // Predicated region
      $region33: #{model_forward.6} parent=11 // pred_check
        %p424 = pneg %p200
      $region34: #{model_forward.6} parent=11 // pred_check_branch
        %426 = sbr.rel (%p424) target = $region36
      $region35: #{model_forward.6} parent=11 // pred_region
        _
      $region36: #{model_forward.6} parent=11 // pred_fallthru
        _
      // Predicated region
      $region37: #{model_forward.6} parent=11 // pred_check
        %p427 = pneg %p221
      $region38: #{model_forward.6} parent=11 // pred_check_branch
        %429 = sbr.rel (%p427) target = $region40
      $region39: #{model_forward.6} parent=11 // pred_region
        _
      $region40: #{model_forward.6} parent=11 // pred_fallthru
        _
      // Predicated region
      $region41: #{model_forward.6} parent=11 // pred_check
        %p430 = pneg %p242
      $region42: #{model_forward.6} parent=11 // pred_check_branch
        %432 = sbr.rel (%p430) target = $region44
      $region43: #{model_forward.6} parent=11 // pred_region
        _
      $region44: #{model_forward.6} parent=11 // pred_fallthru
        _
      // Predicated region
      $region45: #{model_forward.6} parent=11 // pred_check
        %p433 = pneg %p263
      $region46: #{model_forward.6} parent=11 // pred_check_branch
        %435 = sbr.rel (%p433) target = $region48
      $region47: #{model_forward.6} parent=11 // pred_region
        _
      $region48: #{model_forward.6} parent=11 // pred_fallthru
        _
      // Predicated region
      $region49: #{model_forward.6} parent=11 // pred_check
        %p436 = pneg %p284
      $region50: #{model_forward.6} parent=11 // pred_check_branch
        %438 = sbr.rel (%p436) target = $region52
      $region51: #{model_forward.6} parent=11 // pred_region
        _
      $region52: #{model_forward.6} parent=11 // pred_fallthru
        _
      // Predicated region
      $region53: #{model_forward.6} parent=11 // pred_check
        %p439 = pneg %p305
      $region54: #{model_forward.6} parent=11 // pred_check_branch
        %441 = sbr.rel (%p439) target = $region56
      $region55: #{model_forward.6} parent=11 // pred_region
        _
      $region56: #{model_forward.6} parent=11 // pred_fallthru
        _
      // Predicated region
      $region57: #{model_forward.6} parent=11 // pred_check
        %p442 = pneg %p326
      $region58: #{model_forward.6} parent=11 // pred_check_branch
        %444 = sbr.rel (%p442) target = $region60
      $region59: #{model_forward.6} parent=11 // pred_region
        _
      $region60: #{model_forward.6} parent=11 // pred_fallthru
        _
      // Predicated region
      $region61: #{model_forward.6} parent=11 // pred_check
        %p445 = pneg %p347
      $region62: #{model_forward.6} parent=11 // pred_check_branch
        %447 = sbr.rel (%p445) target = $region64
      $region63: #{model_forward.6} parent=11 // pred_region
        _
      $region64: #{model_forward.6} parent=11 // pred_fallthru
        _
      // Predicated region
      $region65: #{model_forward.6} parent=11 // pred_check
        %p448 = pneg %p368
      $region66: #{model_forward.6} parent=11 // pred_check_branch
        %450 = sbr.rel (%p448) target = $region68
      $region67: #{model_forward.6} parent=11 // pred_region
        _
      $region68: #{model_forward.6} parent=11 // pred_fallthru
        _
    $region12: #{model_forward.6} parent=5 // pred_fallthru
      _
    %p451 = scmp.lt.s32.totalorder %s22, 2
    // Predicated region
    $region69: #{model_forward.6} parent=5 // pred_check
      %p452 = pneg %p451
    $region70: #{model_forward.6} parent=5 // pred_check_branch
      %454 = sbr.rel (%p452) target = $region72
    $region71: #{model_forward.6} parent=5 // pred_region
      // Predicated region
      $region73: #{model_forward.6} parent=71 // pred_check
        %p455 = pneg %p42
      $region74: #{model_forward.6} parent=71 // pred_check_branch
        %457 = sbr.rel (%p455) target = $region76
      $region75: #{model_forward.6} parent=71 // pred_region
        %p458 = scmp.lt.s32.totalorder %s22, 1
        %s459 = scalar_select %p458, %s22, 1
        %s460 = smul.addr %s459, 2
        %s461 = smul.addr %s460, 8
        %s462 = scalar_lea.vmem %s0, %s461
      $region76: #{model_forward.6} parent=71 // pred_fallthru
        _
      // Predicated region
      $region77: #{model_forward.6} parent=71 // pred_check
        %p463 = pneg %p68
      $region78: #{model_forward.6} parent=71 // pred_check_branch
        %465 = sbr.rel (%p463) target = $region80
      $region79: #{model_forward.6} parent=71 // pred_region
        %p466 = scmp.lt.s32.totalorder %s22, 1
        %s467 = scalar_select %p466, %s22, 1
        %s468 = scalar_lea.vmem %s1, %s467
      $region80: #{model_forward.6} parent=71 // pred_fallthru
        _
    $region72: #{model_forward.6} parent=5 // pred_fallthru
      _
    %p469 = scmp.le.s32.totalorder 1, %s22
    %p470 = scmp.lt.s32.totalorder %s22, 3
    %p471 = pnand %p469, %p470
    %p472 = pneg %p471
    // Predicated region
    $region81: #{model_forward.6} parent=5 // pred_check
      _
    $region82: #{model_forward.6} parent=5 // pred_check_branch
      %474 = sbr.rel (%p471) target = $region84
    $region83: #{model_forward.6} parent=5 // pred_region
      %s475 = ssub.s32 %s22, 1
      %p476 = scmp.lt.s32.totalorder %s27, 1
      %s477 = scalar_select %p476, %s27, 1
      %s478 = smul.addr %s477, 2
      %s479 = smul.addr %s478, 8
      %s480 = scalar_lea.vmem %s0, %s479
      %p481 = pneg %p48
      %p482 = pneg %p45
      %p483 = scmp.lt.s32.totalorder %s27, 1
      %s484 = scalar_select %p483, %s27, 1
      %s485 = scalar_lea.vmem %s1, %s484
      %p486 = pneg %p74
      %p487 = pneg %p71
      %p488 = pneg %p95
      %p489 = pneg %p92
      %p490 = pneg %p116
      %p491 = pneg %p113
      %p492 = pneg %p137
      %p493 = pneg %p134
      %p494 = pneg %p158
      %p495 = pneg %p155
      %p496 = pneg %p179
      %p497 = pneg %p176
      %p498 = pneg %p200
      %p499 = pneg %p197
      %p500 = pneg %p221
      %p501 = pneg %p218
      %p502 = pneg %p242
      %p503 = pneg %p239
      %p504 = pneg %p263
      %p505 = pneg %p260
      %p506 = pneg %p284
      %p507 = pneg %p281
      %p508 = pneg %p305
      %p509 = pneg %p302
      %p510 = pneg %p326
      %p511 = pneg %p323
      %p512 = pneg %p347
      %p513 = pneg %p344
      %p514 = pneg %p368
      %p515 = pneg %p365
      %p516 = pneg %p394
      %p517 = pneg %p391
      %p518 = scmp.lt.s32.totalorder %s27, 1
      %s519 = scalar_select %p518, %s27, 1
      %s520 = smul.addr %s519, 2
      %s521 = smul.addr %s520, 8
      %s522 = scalar_lea.vmem %s16, %s521
      %p523 = scmp.lt.s32.totalorder %s27, 1
      %s524 = scalar_select %p523, %s27, 1
      %s525 = smul.addr %s524, 2
      %s526 = smul.addr %s525, 8
      %s527 = scalar_lea.vmem %s0, %s526
      %p528 = scmp.lt.s32.totalorder %s27, 1
      %s529 = scalar_select %p528, %s27, 1
      %s530 = scalar_lea.vmem %s1, %s529
      %p531 = scmp.lt.s32.totalorder %s27, 1
      %s532 = scalar_select %p531, %s27, 1
      %s533 = smul.addr %s532, 2
      %s534 = smul.addr %s533, 8
      %s535 = scalar_lea.vmem %s16, %s534
      %v537 = vld [vmem:[%s527] sm:$0xff]
      %v538 = vld [vmem:[%s527 + $0x8] sm:$0xff]
      %v539 = vld [vmem:[%s530] sm:$0x1]
      %v540 = vld [vmem:[%s2] sm:$0x1]
      %v541 = vld [vmem:[%s3] sm:$0x1]
      %vm542 = vcmask 261120
      %v543 = vsel %vm542, %v537, 0.0
      %544 = vadd.xlane.f32.xlu0 %v543
      %v545 = vpop.xlane.xlu0 %544
      %v546 = vsel %vm542, %v538, 0.0
      %547 = vadd.xlane.f32.xlu0 %v546
      %v548 = vpop.xlane.xlu0 %547
      %v549 = vrcp.pop 32.0
      %v550 = vmul.f32 %v545, %v549
      %v551 = vmul.f32 %v548, %v549
      %v552 = vsub.f32 %v537, %v550
      %v553 = vsub.f32 %v538, %v551
      %v554 = vmul.f32 %v552, %v552
      %v555 = vmul.f32 %v553, %v553
      %v556 = vsel %vm542, %v554, 0.0
      %557 = vadd.xlane.f32.xlu0 %v556
      %v558 = vpop.xlane.xlu0 %557
      %v559 = vsel %vm542, %v555, 0.0
      %560 = vadd.xlane.f32.xlu0 %v559
      %v561 = vpop.xlane.xlu0 %560
      %v562 = vmul.f32 %v558, %v549
      %v563 = vmul.f32 %v561, %v549
      %v564 = vadd.f32 %v562, 1e-05
      %v565 = vadd.f32 %v563, 1e-05
      %v566 = vrsqrt.pop %v564
      %v567 = vrsqrt.pop %v565
      %v568 = vmul.f32 %v552, %v566
      %v569 = vmul.f32 %v553, %v567
      %v571 = vlaneseq
      %v572 = vshrl.u32 %v571, 7
      %v573 = vsub.s32 0, %v572
      %v574 = vrot.slane %v540, %v573
      %v576 = vmul.f32 %v568, %v574
      %v577 = vmul.f32 %v569, %v574
      %v579 = vlaneseq
      %v580 = vshrl.u32 %v579, 7
      %v581 = vsub.s32 0, %v580
      %v582 = vrot.slane %v541, %v581
      %v584 = vadd.f32 %v576, %v582
      %v585 = vadd.f32 %v577, %v582
      %v586 = vld [vmem:[%s4] sm:$0xff]
      %v587 = vld [vmem:[%s4 + $0x8] sm:$0xff]
      %v588 = vld [vmem:[%s4 + $0x10] sm:$0xff]
      %v589 = vld [vmem:[%s4 + $0x18] sm:$0xff]
      %v590 = vld [vmem:[%s5] sm:$0x1]
      %v591 = vpack.c.bf16 %v585, %v584
      %v592 = vpack.c.bf16 %v587, %v586
      %v593 = vpack.c.bf16 %v589, %v588
      %v595 = vlaneseq
      %v596 = vshrl.u32 %v595, 7
      %v597 = vsub.s32 0, %v596
      %v598 = vrot.slane %v590, %v597
      %v601 = vsel %vm542, %v591, 0
      %603 = vmatprep.subr.bf16.mxu0 0
      %604 = vmatpush1.bf16.msra.mxu0 %v592
      %605 = vmatprep.subr.bf16.mxu0 0
      %606 = vmatpush1.bf16.msra.mxu0 %v593
      %607 = vmatprep.subr.bf16.mxu0 0
      %608 = vmatpush1.bf16.msra.mxu0 0
      %609 = vmatprep.subr.bf16.mxu0 0
      %610 = vmatpush1.bf16.msra.mxu0 0
      %611 = vmatprep.subr.bf16.mxu0 0
      %612 = vmatpush1.bf16.msra.mxu0 0
      %613 = vmatprep.subr.bf16.mxu0 0
      %614 = vmatpush1.bf16.msra.mxu0 0
      %615 = vmatprep.subr.bf16.mxu0 0
      %616 = vmatpush1.bf16.msra.mxu0 0
      %617 = vmatprep.subr.bf16.mxu0 0
      %618 = vmatpush1.bf16.msra.mxu0 0
      %619 = vmatprep.subr.bf16.mxu0 0
      %620 = vmatpush1.bf16.msra.mxu0 0
      %621 = vmatprep.subr.bf16.mxu0 0
      %622 = vmatpush1.bf16.msra.mxu0 0
      %623 = vmatprep.subr.bf16.mxu0 0
      %624 = vmatpush1.bf16.msra.mxu0 0
      %625 = vmatprep.subr.bf16.mxu0 0
      %626 = vmatpush1.bf16.msra.mxu0 0
      %627 = vmatprep.subr.bf16.mxu0 0
      %628 = vmatpush1.bf16.msra.mxu0 0
      %629 = vmatprep.subr.bf16.mxu0 0
      %630 = vmatpush1.bf16.msra.mxu0 0
      %631 = vmatprep.subr.bf16.mxu0 0
      %632 = vmatpush1.bf16.msra.mxu0 0
      %633 = vmatprep.subr.bf16.mxu0 0
      %634 = vmatpush1.bf16.msra.mxu0 0
      %635 = vmatprep.mubr.bf16.mxu0 0
      %636 = vmatmul.mubr.bf16.gmra.mrb[0].mxu0 %v601
      %v637 = vpop.f32.mrb[0].mxu0
      %v638 = vadd.f32 %v598, %v637
      %v639 = vpop.f32.mrb[0].mxu0
      %v640 = vpop.f32.mrb[0].mxu0
      %v641 = vadd.f32 %v598, %v640
      %v642 = vpop.f32.mrb[0].mxu0
      %643 = vdwg.mxu0
      %646 = vrot.lane.b32.xlu0 %v638, 120
      %v647 = vpop.permute.xlu0 %646
      %648 = vrot.lane.b32.xlu0 %v641, 120
      %v649 = vpop.permute.xlu0 %648
      %652 = vrot.lane.b32.xlu0 %v638, 112
      %v653 = vpop.permute.xlu0 %652
      %654 = vrot.lane.b32.xlu0 %v641, 112
      %v655 = vpop.permute.xlu0 %654
      %658 = vrot.lane.b32.xlu0 %v638, 104
      %v659 = vpop.permute.xlu0 %658
      %660 = vrot.lane.b32.xlu0 %v641, 104
      %v661 = vpop.permute.xlu0 %660
      %v664 = vcombine.low %v638, %v653
      %v665 = vcombine.high %v638, %v653
      %v667 = vunpack.c.l.s4 1983009808
      %v668 = vunpack.c.0.s8 %v667
      %v669 = vlaneseq
      %v670 = vshrl.u32 %v669, 7
      %v671 = vsub.s32 %v668, %v670
      %v672 = vrot.slane %v664, %v671
      %v674 = vunpack.c.l.s4 1983009808
      %v675 = vunpack.c.0.s8 %v674
      %v676 = vlaneseq
      %v677 = vshrl.u32 %v676, 7
      %v678 = vsub.s32 %v675, %v677
      %v679 = vrot.slane %v665, %v678
      %v680 = vcombine.low %v647, %v659
      %v681 = vcombine.high %v647, %v659
      %v683 = vunpack.c.l.s4 1983009808
      %v684 = vunpack.c.0.s8 %v683
      %v685 = vlaneseq
      %v686 = vshrl.u32 %v685, 7
      %v687 = vsub.s32 %v684, %v686
      %v688 = vrot.slane %v680, %v687
      %v690 = vunpack.c.l.s4 1983009808
      %v691 = vunpack.c.0.s8 %v690
      %v692 = vlaneseq
      %v693 = vshrl.u32 %v692, 7
      %v694 = vsub.s32 %v691, %v693
      %v695 = vrot.slane %v681, %v694
      %v696 = vcombine.low %v672, %v688
      %v697 = vcombine.high %v672, %v688
      %v699 = vunpack.c.l.s4 1934713408
      %v700 = vunpack.c.0.s8 %v699
      %v701 = vlaneseq
      %v702 = vshrl.u32 %v701, 7
      %v703 = vsub.s32 %v700, %v702
      %v704 = vrot.slane %v696, %v703
      %v706 = vunpack.c.l.s4 1934713408
      %v707 = vunpack.c.0.s8 %v706
      %v708 = vlaneseq
      %v709 = vshrl.u32 %v708, 7
      %v710 = vsub.s32 %v707, %v709
      %v711 = vrot.slane %v697, %v710
      %v712 = vcombine.low %v679, %v695
      %v713 = vcombine.high %v679, %v695
      %v715 = vunpack.c.l.s4 1934713408
      %v716 = vunpack.c.0.s8 %v715
      %v717 = vlaneseq
      %v718 = vshrl.u32 %v717, 7
      %v719 = vsub.s32 %v716, %v718
      %v720 = vrot.slane %v712, %v719
      %v722 = vunpack.c.l.s4 1934713408
      %v723 = vunpack.c.0.s8 %v722
      %v724 = vlaneseq
      %v725 = vshrl.u32 %v724, 7
      %v726 = vsub.s32 %v723, %v725
      %v727 = vrot.slane %v713, %v726
      %v728 = vcombine.high %v704, 0.0
      %v729 = vcombine.high %v711, 0.0
      %v730 = vcombine.high %v720, 0.0
      %v731 = vcombine.high %v727, 0.0
      %v732 = vcombine.low %v641, %v655
      %v733 = vcombine.high %v641, %v655
      %v735 = vunpack.c.l.s4 1983009808
      %v736 = vunpack.c.0.s8 %v735
      %v737 = vlaneseq
      %v738 = vshrl.u32 %v737, 7
      %v739 = vsub.s32 %v736, %v738
      %v740 = vrot.slane %v732, %v739
      %v742 = vunpack.c.l.s4 1983009808
      %v743 = vunpack.c.0.s8 %v742
      %v744 = vlaneseq
      %v745 = vshrl.u32 %v744, 7
      %v746 = vsub.s32 %v743, %v745
      %v747 = vrot.slane %v733, %v746
      %v748 = vcombine.low %v649, %v661
      %v749 = vcombine.high %v649, %v661
      %v751 = vunpack.c.l.s4 1983009808
      %v752 = vunpack.c.0.s8 %v751
      %v753 = vlaneseq
      %v754 = vshrl.u32 %v753, 7
      %v755 = vsub.s32 %v752, %v754
      %v756 = vrot.slane %v748, %v755
      %v758 = vunpack.c.l.s4 1983009808
      %v759 = vunpack.c.0.s8 %v758
      %v760 = vlaneseq
      %v761 = vshrl.u32 %v760, 7
      %v762 = vsub.s32 %v759, %v761
      %v763 = vrot.slane %v749, %v762
      %v764 = vcombine.low %v740, %v756
      %v765 = vcombine.high %v740, %v756
      %v767 = vunpack.c.l.s4 1934713408
      %v768 = vunpack.c.0.s8 %v767
      %v769 = vlaneseq
      %v770 = vshrl.u32 %v769, 7
      %v771 = vsub.s32 %v768, %v770
      %v772 = vrot.slane %v764, %v771
      %v774 = vunpack.c.l.s4 1934713408
      %v775 = vunpack.c.0.s8 %v774
      %v776 = vlaneseq
      %v777 = vshrl.u32 %v776, 7
      %v778 = vsub.s32 %v775, %v777
      %v779 = vrot.slane %v765, %v778
      %v780 = vcombine.low %v747, %v763
      %v781 = vcombine.high %v747, %v763
      %v783 = vunpack.c.l.s4 1934713408
      %v784 = vunpack.c.0.s8 %v783
      %v785 = vlaneseq
      %v786 = vshrl.u32 %v785, 7
      %v787 = vsub.s32 %v784, %v786
      %v788 = vrot.slane %v780, %v787
      %v790 = vunpack.c.l.s4 1934713408
      %v791 = vunpack.c.0.s8 %v790
      %v792 = vlaneseq
      %v793 = vshrl.u32 %v792, 7
      %v794 = vsub.s32 %v791, %v793
      %v795 = vrot.slane %v781, %v794
      %v796 = vcombine.high %v772, 0.0
      %v797 = vcombine.high %v779, 0.0
      %v798 = vcombine.high %v788, 0.0
      %v799 = vcombine.high %v795, 0.0
      %v800 = vcombine.low %v704, %v711
      %v802 = vunpack.c.l.s4 1983009808
      %v803 = vunpack.c.0.s8 %v802
      %v804 = vlaneseq
      %v805 = vshrl.u32 %v804, 7
      %v806 = vsub.s32 %v803, %v805
      %v807 = vrot.slane %v800, %v806
      %v808 = vcombine.low %v728, %v729
      %v810 = vunpack.c.l.s4 1983009808
      %v811 = vunpack.c.0.s8 %v810
      %v812 = vlaneseq
      %v813 = vshrl.u32 %v812, 7
      %v814 = vsub.s32 %v811, %v813
      %v815 = vrot.slane %v808, %v814
      %v816 = vcombine.low %v720, %v727
      %v818 = vunpack.c.l.s4 1983009808
      %v819 = vunpack.c.0.s8 %v818
      %v820 = vlaneseq
      %v821 = vshrl.u32 %v820, 7
      %v822 = vsub.s32 %v819, %v821
      %v823 = vrot.slane %v816, %v822
      %v824 = vcombine.low %v730, %v731
      %v826 = vunpack.c.l.s4 1983009808
      %v827 = vunpack.c.0.s8 %v826
      %v828 = vlaneseq
      %v829 = vshrl.u32 %v828, 7
      %v830 = vsub.s32 %v827, %v829
      %v831 = vrot.slane %v824, %v830
      %v832 = vcombine.low %v807, %v815
      %v833 = vcombine.high %v807, %v815
      %v835 = vunpack.c.l.s4 1934713408
      %v836 = vunpack.c.0.s8 %v835
      %v837 = vlaneseq
      %v838 = vshrl.u32 %v837, 7
      %v839 = vsub.s32 %v836, %v838
      %v840 = vrot.slane %v832, %v839
      %v842 = vunpack.c.l.s4 1934713408
      %v843 = vunpack.c.0.s8 %v842
      %v844 = vlaneseq
      %v845 = vshrl.u32 %v844, 7
      %v846 = vsub.s32 %v843, %v845
      %v847 = vrot.slane %v833, %v846
      %v848 = vcombine.low %v823, %v831
      %v849 = vcombine.high %v823, %v831
      %v851 = vunpack.c.l.s4 1934713408
      %v852 = vunpack.c.0.s8 %v851
      %v853 = vlaneseq
      %v854 = vshrl.u32 %v853, 7
      %v855 = vsub.s32 %v852, %v854
      %v856 = vrot.slane %v848, %v855
      %v858 = vunpack.c.l.s4 1934713408
      %v859 = vunpack.c.0.s8 %v858
      %v860 = vlaneseq
      %v861 = vshrl.u32 %v860, 7
      %v862 = vsub.s32 %v859, %v861
      %v863 = vrot.slane %v849, %v862
      %v864 = vcombine.low %v840, %v856
      %v865 = vcombine.high %v840, %v856
      %v866 = vcombine.low %v847, %v863
      %v867 = vcombine.high %v847, %v863
      %v868 = vcombine.low %v772, %v779
      %v870 = vunpack.c.l.s4 1983009808
      %v871 = vunpack.c.0.s8 %v870
      %v872 = vlaneseq
      %v873 = vshrl.u32 %v872, 7
      %v874 = vsub.s32 %v871, %v873
      %v875 = vrot.slane %v868, %v874
      %v876 = vcombine.low %v796, %v797
      %v878 = vunpack.c.l.s4 1983009808
      %v879 = vunpack.c.0.s8 %v878
      %v880 = vlaneseq
      %v881 = vshrl.u32 %v880, 7
      %v882 = vsub.s32 %v879, %v881
      %v883 = vrot.slane %v876, %v882
      %v884 = vcombine.low %v788, %v795
      %v886 = vunpack.c.l.s4 1983009808
      %v887 = vunpack.c.0.s8 %v886
      %v888 = vlaneseq
      %v889 = vshrl.u32 %v888, 7
      %v890 = vsub.s32 %v887, %v889
      %v891 = vrot.slane %v884, %v890
      %v892 = vcombine.low %v798, %v799
      %v894 = vunpack.c.l.s4 1983009808
      %v895 = vunpack.c.0.s8 %v894
      %v896 = vlaneseq
      %v897 = vshrl.u32 %v896, 7
      %v898 = vsub.s32 %v895, %v897
      %v899 = vrot.slane %v892, %v898
      %v900 = vcombine.low %v875, %v883
      %v901 = vcombine.high %v875, %v883
      %v903 = vunpack.c.l.s4 1934713408
      %v904 = vunpack.c.0.s8 %v903
      %v905 = vlaneseq
      %v906 = vshrl.u32 %v905, 7
      %v907 = vsub.s32 %v904, %v906
      %v908 = vrot.slane %v900, %v907
      %v910 = vunpack.c.l.s4 1934713408
      %v911 = vunpack.c.0.s8 %v910
      %v912 = vlaneseq
      %v913 = vshrl.u32 %v912, 7
      %v914 = vsub.s32 %v911, %v913
      %v915 = vrot.slane %v901, %v914
      %v916 = vcombine.low %v891, %v899
      %v917 = vcombine.high %v891, %v899
      %v919 = vunpack.c.l.s4 1934713408
      %v920 = vunpack.c.0.s8 %v919
      %v921 = vlaneseq
      %v922 = vshrl.u32 %v921, 7
      %v923 = vsub.s32 %v920, %v922
      %v924 = vrot.slane %v916, %v923
      %v926 = vunpack.c.l.s4 1934713408
      %v927 = vunpack.c.0.s8 %v926
      %v928 = vlaneseq
      %v929 = vshrl.u32 %v928, 7
      %v930 = vsub.s32 %v927, %v929
      %v931 = vrot.slane %v917, %v930
      %v932 = vcombine.low %v908, %v924
      %v933 = vcombine.high %v908, %v924
      %v934 = vcombine.low %v915, %v931
      %v935 = vcombine.high %v915, %v931
      %936 = vrot.lane.b32.xlu0 %v638, 96
      %v937 = vpop.permute.xlu0 %936
      %938 = vrot.lane.b32.xlu0 %v641, 96
      %v939 = vpop.permute.xlu0 %938
      %940 = vrot.lane.b32.xlu0 %v647, 96
      %v941 = vpop.permute.xlu0 %940
      %942 = vrot.lane.b32.xlu0 %v649, 96
      %v943 = vpop.permute.xlu0 %942
      %944 = vrot.lane.b32.xlu0 %v653, 96
      %v945 = vpop.permute.xlu0 %944
      %946 = vrot.lane.b32.xlu0 %v655, 96
      %v947 = vpop.permute.xlu0 %946
      %948 = vrot.lane.b32.xlu0 %v659, 96
      %v949 = vpop.permute.xlu0 %948
      %950 = vrot.lane.b32.xlu0 %v661, 96
      %v951 = vpop.permute.xlu0 %950
      %v960 = vcombine.low %v937, %v945
      %v961 = vcombine.high %v937, %v945
      %v963 = vunpack.c.l.s4 1983009808
      %v964 = vunpack.c.0.s8 %v963
      %v965 = vlaneseq
      %v966 = vshrl.u32 %v965, 7
      %v967 = vsub.s32 %v964, %v966
      %v968 = vrot.slane %v960, %v967
      %v970 = vunpack.c.l.s4 1983009808
      %v971 = vunpack.c.0.s8 %v970
      %v972 = vlaneseq
      %v973 = vshrl.u32 %v972, 7
      %v974 = vsub.s32 %v971, %v973
      %v975 = vrot.slane %v961, %v974
      %v976 = vcombine.low %v941, %v949
      %v977 = vcombine.high %v941, %v949
      %v979 = vunpack.c.l.s4 1983009808
      %v980 = vunpack.c.0.s8 %v979
      %v981 = vlaneseq
      %v982 = vshrl.u32 %v981, 7
      %v983 = vsub.s32 %v980, %v982
      %v984 = vrot.slane %v976, %v983
      %v986 = vunpack.c.l.s4 1983009808
      %v987 = vunpack.c.0.s8 %v986
      %v988 = vlaneseq
      %v989 = vshrl.u32 %v988, 7
      %v990 = vsub.s32 %v987, %v989
      %v991 = vrot.slane %v977, %v990
      %v992 = vcombine.low %v968, %v984
      %v993 = vcombine.high %v968, %v984
      %v995 = vunpack.c.l.s4 1934713408
      %v996 = vunpack.c.0.s8 %v995
      %v997 = vlaneseq
      %v998 = vshrl.u32 %v997, 7
      %v999 = vsub.s32 %v996, %v998
      %v1000 = vrot.slane %v992, %v999
      %v1002 = vunpack.c.l.s4 1934713408
      %v1003 = vunpack.c.0.s8 %v1002
      %v1004 = vlaneseq
      %v1005 = vshrl.u32 %v1004, 7
      %v1006 = vsub.s32 %v1003, %v1005
      %v1007 = vrot.slane %v993, %v1006
      %v1008 = vcombine.low %v975, %v991
      %v1009 = vcombine.high %v975, %v991
      %v1011 = vunpack.c.l.s4 1934713408
      %v1012 = vunpack.c.0.s8 %v1011
      %v1013 = vlaneseq
      %v1014 = vshrl.u32 %v1013, 7
      %v1015 = vsub.s32 %v1012, %v1014
      %v1016 = vrot.slane %v1008, %v1015
      %v1018 = vunpack.c.l.s4 1934713408
      %v1019 = vunpack.c.0.s8 %v1018
      %v1020 = vlaneseq
      %v1021 = vshrl.u32 %v1020, 7
      %v1022 = vsub.s32 %v1019, %v1021
      %v1023 = vrot.slane %v1009, %v1022
      %v1024 = vcombine.high %v1000, 0.0
      %v1025 = vcombine.high %v1007, 0.0
      %v1026 = vcombine.high %v1016, 0.0
      %v1027 = vcombine.high %v1023, 0.0
      %v1028 = vcombine.low %v939, %v947
      %v1029 = vcombine.high %v939, %v947
      %v1031 = vunpack.c.l.s4 1983009808
      %v1032 = vunpack.c.0.s8 %v1031
      %v1033 = vlaneseq
      %v1034 = vshrl.u32 %v1033, 7
      %v1035 = vsub.s32 %v1032, %v1034
      %v1036 = vrot.slane %v1028, %v1035
      %v1038 = vunpack.c.l.s4 1983009808
      %v1039 = vunpack.c.0.s8 %v1038
      %v1040 = vlaneseq
      %v1041 = vshrl.u32 %v1040, 7
      %v1042 = vsub.s32 %v1039, %v1041
      %v1043 = vrot.slane %v1029, %v1042
      %v1044 = vcombine.low %v943, %v951
      %v1045 = vcombine.high %v943, %v951
      %v1047 = vunpack.c.l.s4 1983009808
      %v1048 = vunpack.c.0.s8 %v1047
      %v1049 = vlaneseq
      %v1050 = vshrl.u32 %v1049, 7
      %v1051 = vsub.s32 %v1048, %v1050
      %v1052 = vrot.slane %v1044, %v1051
      %v1054 = vunpack.c.l.s4 1983009808
      %v1055 = vunpack.c.0.s8 %v1054
      %v1056 = vlaneseq
      %v1057 = vshrl.u32 %v1056, 7
      %v1058 = vsub.s32 %v1055, %v1057
      %v1059 = vrot.slane %v1045, %v1058
      %v1060 = vcombine.low %v1036, %v1052
      %v1061 = vcombine.high %v1036, %v1052
      %v1063 = vunpack.c.l.s4 1934713408
      %v1064 = vunpack.c.0.s8 %v1063
      %v1065 = vlaneseq
      %v1066 = vshrl.u32 %v1065, 7
      %v1067 = vsub.s32 %v1064, %v1066
      %v1068 = vrot.slane %v1060, %v1067
      %v1070 = vunpack.c.l.s4 1934713408
      %v1071 = vunpack.c.0.s8 %v1070
      %v1072 = vlaneseq
      %v1073 = vshrl.u32 %v1072, 7
      %v1074 = vsub.s32 %v1071, %v1073
      %v1075 = vrot.slane %v1061, %v1074
      %v1076 = vcombine.low %v1043, %v1059
      %v1077 = vcombine.high %v1043, %v1059
      %v1079 = vunpack.c.l.s4 1934713408
      %v1080 = vunpack.c.0.s8 %v1079
      %v1081 = vlaneseq
      %v1082 = vshrl.u32 %v1081, 7
      %v1083 = vsub.s32 %v1080, %v1082
      %v1084 = vrot.slane %v1076, %v1083
      %v1086 = vunpack.c.l.s4 1934713408
      %v1087 = vunpack.c.0.s8 %v1086
      %v1088 = vlaneseq
      %v1089 = vshrl.u32 %v1088, 7
      %v1090 = vsub.s32 %v1087, %v1089
      %v1091 = vrot.slane %v1077, %v1090
      %v1092 = vcombine.high %v1068, 0.0
      %v1093 = vcombine.high %v1075, 0.0
      %v1094 = vcombine.high %v1084, 0.0
      %v1095 = vcombine.high %v1091, 0.0
      %v1096 = vcombine.low %v1000, %v1007
      %v1098 = vunpack.c.l.s4 1983009808
      %v1099 = vunpack.c.0.s8 %v1098
      %v1100 = vlaneseq
      %v1101 = vshrl.u32 %v1100, 7
      %v1102 = vsub.s32 %v1099, %v1101
      %v1103 = vrot.slane %v1096, %v1102
      %v1104 = vcombine.low %v1024, %v1025
      %v1106 = vunpack.c.l.s4 1983009808
      %v1107 = vunpack.c.0.s8 %v1106
      %v1108 = vlaneseq
      %v1109 = vshrl.u32 %v1108, 7
      %v1110 = vsub.s32 %v1107, %v1109
      %v1111 = vrot.slane %v1104, %v1110
      %v1112 = vcombine.low %v1016, %v1023
      %v1114 = vunpack.c.l.s4 1983009808
      %v1115 = vunpack.c.0.s8 %v1114
      %v1116 = vlaneseq
      %v1117 = vshrl.u32 %v1116, 7
      %v1118 = vsub.s32 %v1115, %v1117
      %v1119 = vrot.slane %v1112, %v1118
      %v1120 = vcombine.low %v1026, %v1027
      %v1122 = vunpack.c.l.s4 1983009808
      %v1123 = vunpack.c.0.s8 %v1122
      %v1124 = vlaneseq
      %v1125 = vshrl.u32 %v1124, 7
      %v1126 = vsub.s32 %v1123, %v1125
      %v1127 = vrot.slane %v1120, %v1126
      %v1128 = vcombine.low %v1103, %v1111
      %v1129 = vcombine.high %v1103, %v1111
      %v1131 = vunpack.c.l.s4 1934713408
      %v1132 = vunpack.c.0.s8 %v1131
      %v1133 = vlaneseq
      %v1134 = vshrl.u32 %v1133, 7
      %v1135 = vsub.s32 %v1132, %v1134
      %v1136 = vrot.slane %v1128, %v1135
      %v1138 = vunpack.c.l.s4 1934713408
      %v1139 = vunpack.c.0.s8 %v1138
      %v1140 = vlaneseq
      %v1141 = vshrl.u32 %v1140, 7
      %v1142 = vsub.s32 %v1139, %v1141
      %v1143 = vrot.slane %v1129, %v1142
      %v1144 = vcombine.low %v1119, %v1127
      %v1145 = vcombine.high %v1119, %v1127
      %v1147 = vunpack.c.l.s4 1934713408
      %v1148 = vunpack.c.0.s8 %v1147
      %v1149 = vlaneseq
      %v1150 = vshrl.u32 %v1149, 7
      %v1151 = vsub.s32 %v1148, %v1150
      %v1152 = vrot.slane %v1144, %v1151
      %v1154 = vunpack.c.l.s4 1934713408
      %v1155 = vunpack.c.0.s8 %v1154
      %v1156 = vlaneseq
      %v1157 = vshrl.u32 %v1156, 7
      %v1158 = vsub.s32 %v1155, %v1157
      %v1159 = vrot.slane %v1145, %v1158
      %v1160 = vcombine.low %v1136, %v1152
      %v1161 = vcombine.high %v1136, %v1152
      %v1162 = vcombine.low %v1143, %v1159
      %v1163 = vcombine.high %v1143, %v1159
      %v1164 = vcombine.low %v1068, %v1075
      %v1166 = vunpack.c.l.s4 1983009808
      %v1167 = vunpack.c.0.s8 %v1166
      %v1168 = vlaneseq
      %v1169 = vshrl.u32 %v1168, 7
      %v1170 = vsub.s32 %v1167, %v1169
      %v1171 = vrot.slane %v1164, %v1170
      %v1172 = vcombine.low %v1092, %v1093
      %v1174 = vunpack.c.l.s4 1983009808
      %v1175 = vunpack.c.0.s8 %v1174
      %v1176 = vlaneseq
      %v1177 = vshrl.u32 %v1176, 7
      %v1178 = vsub.s32 %v1175, %v1177
      %v1179 = vrot.slane %v1172, %v1178
      %v1180 = vcombine.low %v1084, %v1091
      %v1182 = vunpack.c.l.s4 1983009808
      %v1183 = vunpack.c.0.s8 %v1182
      %v1184 = vlaneseq
      %v1185 = vshrl.u32 %v1184, 7
      %v1186 = vsub.s32 %v1183, %v1185
      %v1187 = vrot.slane %v1180, %v1186
      %v1188 = vcombine.low %v1094, %v1095
      %v1190 = vunpack.c.l.s4 1983009808
      %v1191 = vunpack.c.0.s8 %v1190
      %v1192 = vlaneseq
      %v1193 = vshrl.u32 %v1192, 7
      %v1194 = vsub.s32 %v1191, %v1193
      %v1195 = vrot.slane %v1188, %v1194
      %v1196 = vcombine.low %v1171, %v1179
      %v1197 = vcombine.high %v1171, %v1179
      %v1199 = vunpack.c.l.s4 1934713408
      %v1200 = vunpack.c.0.s8 %v1199
      %v1201 = vlaneseq
      %v1202 = vshrl.u32 %v1201, 7
      %v1203 = vsub.s32 %v1200, %v1202
      %v1204 = vrot.slane %v1196, %v1203
      %v1206 = vunpack.c.l.s4 1934713408
      %v1207 = vunpack.c.0.s8 %v1206
      %v1208 = vlaneseq
      %v1209 = vshrl.u32 %v1208, 7
      %v1210 = vsub.s32 %v1207, %v1209
      %v1211 = vrot.slane %v1197, %v1210
      %v1212 = vcombine.low %v1187, %v1195
      %v1213 = vcombine.high %v1187, %v1195
      %v1215 = vunpack.c.l.s4 1934713408
      %v1216 = vunpack.c.0.s8 %v1215
      %v1217 = vlaneseq
      %v1218 = vshrl.u32 %v1217, 7
      %v1219 = vsub.s32 %v1216, %v1218
      %v1220 = vrot.slane %v1212, %v1219
      %v1222 = vunpack.c.l.s4 1934713408
      %v1223 = vunpack.c.0.s8 %v1222
      %v1224 = vlaneseq
      %v1225 = vshrl.u32 %v1224, 7
      %v1226 = vsub.s32 %v1223, %v1225
      %v1227 = vrot.slane %v1213, %v1226
      %v1228 = vcombine.low %v1204, %v1220
      %v1229 = vcombine.high %v1204, %v1220
      %v1230 = vcombine.low %v1211, %v1227
      %v1231 = vcombine.high %v1211, %v1227
      %1232 = vrot.lane.b32.xlu0 %v638, 64
      %v1233 = vpop.permute.xlu0 %1232
      %1234 = vrot.lane.b32.xlu0 %v641, 64
      %v1235 = vpop.permute.xlu0 %1234
      %1236 = vrot.lane.b32.xlu0 %v647, 64
      %v1237 = vpop.permute.xlu0 %1236
      %1238 = vrot.lane.b32.xlu0 %v649, 64
      %v1239 = vpop.permute.xlu0 %1238
      %1240 = vrot.lane.b32.xlu0 %v653, 64
      %v1241 = vpop.permute.xlu0 %1240
      %1242 = vrot.lane.b32.xlu0 %v655, 64
      %v1243 = vpop.permute.xlu0 %1242
      %1244 = vrot.lane.b32.xlu0 %v659, 64
      %v1245 = vpop.permute.xlu0 %1244
      %1246 = vrot.lane.b32.xlu0 %v661, 64
      %v1247 = vpop.permute.xlu0 %1246
      %v1256 = vcombine.low %v1233, %v1241
      %v1257 = vcombine.high %v1233, %v1241
      %v1259 = vunpack.c.l.s4 1983009808
      %v1260 = vunpack.c.0.s8 %v1259
      %v1261 = vlaneseq
      %v1262 = vshrl.u32 %v1261, 7
      %v1263 = vsub.s32 %v1260, %v1262
      %v1264 = vrot.slane %v1256, %v1263
      %v1266 = vunpack.c.l.s4 1983009808
      %v1267 = vunpack.c.0.s8 %v1266
      %v1268 = vlaneseq
      %v1269 = vshrl.u32 %v1268, 7
      %v1270 = vsub.s32 %v1267, %v1269
      %v1271 = vrot.slane %v1257, %v1270
      %v1272 = vcombine.low %v1237, %v1245
      %v1273 = vcombine.high %v1237, %v1245
      %v1275 = vunpack.c.l.s4 1983009808
      %v1276 = vunpack.c.0.s8 %v1275
      %v1277 = vlaneseq
      %v1278 = vshrl.u32 %v1277, 7
      %v1279 = vsub.s32 %v1276, %v1278
      %v1280 = vrot.slane %v1272, %v1279
      %v1282 = vunpack.c.l.s4 1983009808
      %v1283 = vunpack.c.0.s8 %v1282
      %v1284 = vlaneseq
      %v1285 = vshrl.u32 %v1284, 7
      %v1286 = vsub.s32 %v1283, %v1285
      %v1287 = vrot.slane %v1273, %v1286
      %v1288 = vcombine.low %v1264, %v1280
      %v1289 = vcombine.high %v1264, %v1280
      %v1291 = vunpack.c.l.s4 1934713408
      %v1292 = vunpack.c.0.s8 %v1291
      %v1293 = vlaneseq
      %v1294 = vshrl.u32 %v1293, 7
      %v1295 = vsub.s32 %v1292, %v1294
      %v1296 = vrot.slane %v1288, %v1295
      %v1298 = vunpack.c.l.s4 1934713408
      %v1299 = vunpack.c.0.s8 %v1298
      %v1300 = vlaneseq
      %v1301 = vshrl.u32 %v1300, 7
      %v1302 = vsub.s32 %v1299, %v1301
      %v1303 = vrot.slane %v1289, %v1302
      %v1304 = vcombine.low %v1271, %v1287
      %v1305 = vcombine.high %v1271, %v1287
      %v1307 = vunpack.c.l.s4 1934713408
      %v1308 = vunpack.c.0.s8 %v1307
      %v1309 = vlaneseq
      %v1310 = vshrl.u32 %v1309, 7
      %v1311 = vsub.s32 %v1308, %v1310
      %v1312 = vrot.slane %v1304, %v1311
      %v1314 = vunpack.c.l.s4 1934713408
      %v1315 = vunpack.c.0.s8 %v1314
      %v1316 = vlaneseq
      %v1317 = vshrl.u32 %v1316, 7
      %v1318 = vsub.s32 %v1315, %v1317
      %v1319 = vrot.slane %v1305, %v1318
      %v1320 = vcombine.high %v1296, 0.0
      %v1321 = vcombine.high %v1303, 0.0
      %v1322 = vcombine.high %v1312, 0.0
      %v1323 = vcombine.high %v1319, 0.0
      %v1324 = vcombine.low %v1235, %v1243
      %v1325 = vcombine.high %v1235, %v1243
      %v1327 = vunpack.c.l.s4 1983009808
      %v1328 = vunpack.c.0.s8 %v1327
      %v1329 = vlaneseq
      %v1330 = vshrl.u32 %v1329, 7
      %v1331 = vsub.s32 %v1328, %v1330
      %v1332 = vrot.slane %v1324, %v1331
      %v1334 = vunpack.c.l.s4 1983009808
      %v1335 = vunpack.c.0.s8 %v1334
      %v1336 = vlaneseq
      %v1337 = vshrl.u32 %v1336, 7
      %v1338 = vsub.s32 %v1335, %v1337
      %v1339 = vrot.slane %v1325, %v1338
      %v1340 = vcombine.low %v1239, %v1247
      %v1341 = vcombine.high %v1239, %v1247
      %v1343 = vunpack.c.l.s4 1983009808
      %v1344 = vunpack.c.0.s8 %v1343
      %v1345 = vlaneseq
      %v1346 = vshrl.u32 %v1345, 7
      %v1347 = vsub.s32 %v1344, %v1346
      %v1348 = vrot.slane %v1340, %v1347
      %v1350 = vunpack.c.l.s4 1983009808
      %v1351 = vunpack.c.0.s8 %v1350
      %v1352 = vlaneseq
      %v1353 = vshrl.u32 %v1352, 7
      %v1354 = vsub.s32 %v1351, %v1353
      %v1355 = vrot.slane %v1341, %v1354
      %v1356 = vcombine.low %v1332, %v1348
      %v1357 = vcombine.high %v1332, %v1348
      %v1359 = vunpack.c.l.s4 1934713408
      %v1360 = vunpack.c.0.s8 %v1359
      %v1361 = vlaneseq
      %v1362 = vshrl.u32 %v1361, 7
      %v1363 = vsub.s32 %v1360, %v1362
      %v1364 = vrot.slane %v1356, %v1363
      %v1366 = vunpack.c.l.s4 1934713408
      %v1367 = vunpack.c.0.s8 %v1366
      %v1368 = vlaneseq
      %v1369 = vshrl.u32 %v1368, 7
      %v1370 = vsub.s32 %v1367, %v1369
      %v1371 = vrot.slane %v1357, %v1370
      %v1372 = vcombine.low %v1339, %v1355
      %v1373 = vcombine.high %v1339, %v1355
      %v1375 = vunpack.c.l.s4 1934713408
      %v1376 = vunpack.c.0.s8 %v1375
      %v1377 = vlaneseq
      %v1378 = vshrl.u32 %v1377, 7
      %v1379 = vsub.s32 %v1376, %v1378
      %v1380 = vrot.slane %v1372, %v1379
      %v1382 = vunpack.c.l.s4 1934713408
      %v1383 = vunpack.c.0.s8 %v1382
      %v1384 = vlaneseq
      %v1385 = vshrl.u32 %v1384, 7
      %v1386 = vsub.s32 %v1383, %v1385
      %v1387 = vrot.slane %v1373, %v1386
      %v1388 = vcombine.high %v1364, 0.0
      %v1389 = vcombine.high %v1371, 0.0
      %v1390 = vcombine.high %v1380, 0.0
      %v1391 = vcombine.high %v1387, 0.0
      %v1392 = vcombine.low %v1296, %v1303
      %v1394 = vunpack.c.l.s4 1983009808
      %v1395 = vunpack.c.0.s8 %v1394
      %v1396 = vlaneseq
      %v1397 = vshrl.u32 %v1396, 7
      %v1398 = vsub.s32 %v1395, %v1397
      %v1399 = vrot.slane %v1392, %v1398
      %v1400 = vcombine.low %v1320, %v1321
      %v1402 = vunpack.c.l.s4 1983009808
      %v1403 = vunpack.c.0.s8 %v1402
      %v1404 = vlaneseq
      %v1405 = vshrl.u32 %v1404, 7
      %v1406 = vsub.s32 %v1403, %v1405
      %v1407 = vrot.slane %v1400, %v1406
      %v1408 = vcombine.low %v1312, %v1319
      %v1410 = vunpack.c.l.s4 1983009808
      %v1411 = vunpack.c.0.s8 %v1410
      %v1412 = vlaneseq
      %v1413 = vshrl.u32 %v1412, 7
      %v1414 = vsub.s32 %v1411, %v1413
      %v1415 = vrot.slane %v1408, %v1414
      %v1416 = vcombine.low %v1322, %v1323
      %v1418 = vunpack.c.l.s4 1983009808
      %v1419 = vunpack.c.0.s8 %v1418
      %v1420 = vlaneseq
      %v1421 = vshrl.u32 %v1420, 7
      %v1422 = vsub.s32 %v1419, %v1421
      %v1423 = vrot.slane %v1416, %v1422
      %v1424 = vcombine.low %v1399, %v1407
      %v1425 = vcombine.high %v1399, %v1407
      %v1427 = vunpack.c.l.s4 1934713408
      %v1428 = vunpack.c.0.s8 %v1427
      %v1429 = vlaneseq
      %v1430 = vshrl.u32 %v1429, 7
      %v1431 = vsub.s32 %v1428, %v1430
      %v1432 = vrot.slane %v1424, %v1431
      %v1434 = vunpack.c.l.s4 1934713408
      %v1435 = vunpack.c.0.s8 %v1434
      %v1436 = vlaneseq
      %v1437 = vshrl.u32 %v1436, 7
      %v1438 = vsub.s32 %v1435, %v1437
      %v1439 = vrot.slane %v1425, %v1438
      %v1440 = vcombine.low %v1415, %v1423
      %v1441 = vcombine.high %v1415, %v1423
      %v1443 = vunpack.c.l.s4 1934713408
      %v1444 = vunpack.c.0.s8 %v1443
      %v1445 = vlaneseq
      %v1446 = vshrl.u32 %v1445, 7
      %v1447 = vsub.s32 %v1444, %v1446
      %v1448 = vrot.slane %v1440, %v1447
      %v1450 = vunpack.c.l.s4 1934713408
      %v1451 = vunpack.c.0.s8 %v1450
      %v1452 = vlaneseq
      %v1453 = vshrl.u32 %v1452, 7
      %v1454 = vsub.s32 %v1451, %v1453
      %v1455 = vrot.slane %v1441, %v1454
      %v1456 = vcombine.low %v1432, %v1448
      %v1457 = vcombine.high %v1432, %v1448
      %v1458 = vcombine.low %v1439, %v1455
      %v1459 = vcombine.high %v1439, %v1455
      %v1460 = vcombine.low %v1364, %v1371
      %v1462 = vunpack.c.l.s4 1983009808
      %v1463 = vunpack.c.0.s8 %v1462
      %v1464 = vlaneseq
      %v1465 = vshrl.u32 %v1464, 7
      %v1466 = vsub.s32 %v1463, %v1465
      %v1467 = vrot.slane %v1460, %v1466
      %v1468 = vcombine.low %v1388, %v1389
      %v1470 = vunpack.c.l.s4 1983009808
      %v1471 = vunpack.c.0.s8 %v1470
      %v1472 = vlaneseq
      %v1473 = vshrl.u32 %v1472, 7
      %v1474 = vsub.s32 %v1471, %v1473
      %v1475 = vrot.slane %v1468, %v1474
      %v1476 = vcombine.low %v1380, %v1387
      %v1478 = vunpack.c.l.s4 1983009808
      %v1479 = vunpack.c.0.s8 %v1478
      %v1480 = vlaneseq
      %v1481 = vshrl.u32 %v1480, 7
      %v1482 = vsub.s32 %v1479, %v1481
      %v1483 = vrot.slane %v1476, %v1482
      %v1484 = vcombine.low %v1390, %v1391
      %v1486 = vunpack.c.l.s4 1983009808
      %v1487 = vunpack.c.0.s8 %v1486
      %v1488 = vlaneseq
      %v1489 = vshrl.u32 %v1488, 7
      %v1490 = vsub.s32 %v1487, %v1489
      %v1491 = vrot.slane %v1484, %v1490
      %v1492 = vcombine.low %v1467, %v1475
      %v1493 = vcombine.high %v1467, %v1475
      %v1495 = vunpack.c.l.s4 1934713408
      %v1496 = vunpack.c.0.s8 %v1495
      %v1497 = vlaneseq
      %v1498 = vshrl.u32 %v1497, 7
      %v1499 = vsub.s32 %v1496, %v1498
      %v1500 = vrot.slane %v1492, %v1499
      %v1502 = vunpack.c.l.s4 1934713408
      %v1503 = vunpack.c.0.s8 %v1502
      %v1504 = vlaneseq
      %v1505 = vshrl.u32 %v1504, 7
      %v1506 = vsub.s32 %v1503, %v1505
      %v1507 = vrot.slane %v1493, %v1506
      %v1508 = vcombine.low %v1483, %v1491
      %v1509 = vcombine.high %v1483, %v1491
      %v1511 = vunpack.c.l.s4 1934713408
      %v1512 = vunpack.c.0.s8 %v1511
      %v1513 = vlaneseq
      %v1514 = vshrl.u32 %v1513, 7
      %v1515 = vsub.s32 %v1512, %v1514
      %v1516 = vrot.slane %v1508, %v1515
      %v1518 = vunpack.c.l.s4 1934713408
      %v1519 = vunpack.c.0.s8 %v1518
      %v1520 = vlaneseq
      %v1521 = vshrl.u32 %v1520, 7
      %v1522 = vsub.s32 %v1519, %v1521
      %v1523 = vrot.slane %v1509, %v1522
      %v1524 = vcombine.low %v1500, %v1516
      %v1525 = vcombine.high %v1500, %v1516
      %v1526 = vcombine.low %v1507, %v1523
      %v1527 = vcombine.high %v1507, %v1523
      %v1528 = vpack.c.bf16 %v932, %v864
      %v1529 = vpack.c.bf16 %v933, %v865
      %v1530 = vpack.c.bf16 %v934, %v866
      %v1531 = vpack.c.bf16 %v935, %v867
      %v1532 = vpack.c.bf16 %v1228, %v1160
      %v1533 = vpack.c.bf16 %v1229, %v1161
      %v1534 = vpack.c.bf16 %v1230, %v1162
      %v1535 = vpack.c.bf16 %v1231, %v1163
      %vm1536 = vcmask 64512
      %v1538 = vsel %vm1536, %v1528, 0
      %v1541 = vsel %vm1536, %v1532, 0
      %1543 = vmatprep.subr.bf16.mxu0 0
      %1544 = vmatpush1.bf16.xpose.msra.mxu0 %v1541
      %1545 = vmatprep.subr.bf16.mxu0 0
      %1546 = vmatpush1.bf16.xpose.msra.mxu0 0
      %1547 = vmatprep.subr.bf16.mxu0 0
      %1548 = vmatpush1.bf16.xpose.msra.mxu0 0
      %1549 = vmatprep.subr.bf16.mxu0 0
      %1550 = vmatpush1.bf16.xpose.msra.mxu0 0
      %1551 = vmatprep.subr.bf16.mxu0 0
      %1552 = vmatpush1.bf16.xpose.msra.mxu0 0
      %1553 = vmatprep.subr.bf16.mxu0 0
      %1554 = vmatpush1.bf16.xpose.msra.mxu0 0
      %1555 = vmatprep.subr.bf16.mxu0 0
      %1556 = vmatpush1.bf16.xpose.msra.mxu0 0
      %1557 = vmatprep.subr.bf16.mxu0 0
      %1558 = vmatpush1.bf16.xpose.msra.mxu0 0
      %1559 = vmatprep.subr.bf16.mxu0 0
      %1560 = vmatpush1.bf16.xpose.msra.mxu0 0
      %1561 = vmatprep.subr.bf16.mxu0 0
      %1562 = vmatpush1.bf16.xpose.msra.mxu0 0
      %1563 = vmatprep.subr.bf16.mxu0 0
      %1564 = vmatpush1.bf16.xpose.msra.mxu0 0
      %1565 = vmatprep.subr.bf16.mxu0 0
      %1566 = vmatpush1.bf16.xpose.msra.mxu0 0
      %1567 = vmatprep.subr.bf16.mxu0 0
      %1568 = vmatpush1.bf16.xpose.msra.mxu0 0
      %1569 = vmatprep.subr.bf16.mxu0 0
      %1570 = vmatpush1.bf16.xpose.msra.mxu0 0
      %1571 = vmatprep.subr.bf16.mxu0 0
      %1572 = vmatpush1.bf16.xpose.msra.mxu0 0
      %1573 = vmatprep.subr.bf16.mxu0 0
      %1574 = vmatpush1.bf16.xpose.msra.mxu0 0
      %1575 = vmatprep.mubr.bf16.mxu0 0
      %1576 = vmatmul.mubr.bf16.gmra.mrb[0].mxu0 %v1538
      %v1577 = vpop.f32.mrb[0].mxu0
      %v1578 = vadd.f32 0.0, %v1577
      %v1579 = vpop.f32.mrb[0].mxu0
      %v1580 = vpop.f32.mrb[0].mxu0
      %v1581 = vadd.f32 0.0, %v1580
      %v1582 = vpop.f32.mrb[0].mxu0
      %1583 = vdwg.mxu0
      %v1585 = vsel %vm1536, %v1529, 0
      %v1588 = vsel %vm1536, %v1533, 0
      %1590 = vmatprep.subr.bf16.mxu0 0
      %1591 = vmatpush1.bf16.xpose.msra.mxu0 %v1588
      %1592 = vmatprep.subr.bf16.mxu0 0
      %1593 = vmatpush1.bf16.xpose.msra.mxu0 0
      %1594 = vmatprep.subr.bf16.mxu0 0
      %1595 = vmatpush1.bf16.xpose.msra.mxu0 0
      %1596 = vmatprep.subr.bf16.mxu0 0
      %1597 = vmatpush1.bf16.xpose.msra.mxu0 0
      %1598 = vmatprep.subr.bf16.mxu0 0
      %1599 = vmatpush1.bf16.xpose.msra.mxu0 0
      %1600 = vmatprep.subr.bf16.mxu0 0
      %1601 = vmatpush1.bf16.xpose.msra.mxu0 0
      %1602 = vmatprep.subr.bf16.mxu0 0
      %1603 = vmatpush1.bf16.xpose.msra.mxu0 0
      %1604 = vmatprep.subr.bf16.mxu0 0
      %1605 = vmatpush1.bf16.xpose.msra.mxu0 0
      %1606 = vmatprep.subr.bf16.mxu0 0
      %1607 = vmatpush1.bf16.xpose.msra.mxu0 0
      %1608 = vmatprep.subr.bf16.mxu0 0
      %1609 = vmatpush1.bf16.xpose.msra.mxu0 0
      %1610 = vmatprep.subr.bf16.mxu0 0
      %1611 = vmatpush1.bf16.xpose.msra.mxu0 0
      %1612 = vmatprep.subr.bf16.mxu0 0
      %1613 = vmatpush1.bf16.xpose.msra.mxu0 0
      %1614 = vmatprep.subr.bf16.mxu0 0
      %1615 = vmatpush1.bf16.xpose.msra.mxu0 0
      %1616 = vmatprep.subr.bf16.mxu0 0
      %1617 = vmatpush1.bf16.xpose.msra.mxu0 0
      %1618 = vmatprep.subr.bf16.mxu0 0
      %1619 = vmatpush1.bf16.xpose.msra.mxu0 0
      %1620 = vmatprep.subr.bf16.mxu0 0
      %1621 = vmatpush1.bf16.xpose.msra.mxu0 0
      %1622 = vmatprep.mubr.bf16.mxu0 0
      %1623 = vmatmul.mubr.bf16.gmra.mrb[0].mxu0 %v1585
      %v1624 = vpop.f32.mrb[0].mxu0
      %v1625 = vadd.f32 0.0, %v1624
      %v1626 = vpop.f32.mrb[0].mxu0
      %v1627 = vpop.f32.mrb[0].mxu0
      %v1628 = vadd.f32 0.0, %v1627
      %v1629 = vpop.f32.mrb[0].mxu0
      %1630 = vdwg.mxu0
      %v1632 = vsel %vm1536, %v1530, 0
      %v1635 = vsel %vm1536, %v1534, 0
      %1637 = vmatprep.subr.bf16.mxu0 0
      %1638 = vmatpush1.bf16.xpose.msra.mxu0 %v1635
      %1639 = vmatprep.subr.bf16.mxu0 0
      %1640 = vmatpush1.bf16.xpose.msra.mxu0 0
      %1641 = vmatprep.subr.bf16.mxu0 0
      %1642 = vmatpush1.bf16.xpose.msra.mxu0 0
      %1643 = vmatprep.subr.bf16.mxu0 0
      %1644 = vmatpush1.bf16.xpose.msra.mxu0 0
      %1645 = vmatprep.subr.bf16.mxu0 0
      %1646 = vmatpush1.bf16.xpose.msra.mxu0 0
      %1647 = vmatprep.subr.bf16.mxu0 0
      %1648 = vmatpush1.bf16.xpose.msra.mxu0 0
      %1649 = vmatprep.subr.bf16.mxu0 0
      %1650 = vmatpush1.bf16.xpose.msra.mxu0 0
      %1651 = vmatprep.subr.bf16.mxu0 0
      %1652 = vmatpush1.bf16.xpose.msra.mxu0 0
      %1653 = vmatprep.subr.bf16.mxu0 0
      %1654 = vmatpush1.bf16.xpose.msra.mxu0 0
      %1655 = vmatprep.subr.bf16.mxu0 0
      %1656 = vmatpush1.bf16.xpose.msra.mxu0 0
      %1657 = vmatprep.subr.bf16.mxu0 0
      %1658 = vmatpush1.bf16.xpose.msra.mxu0 0
      %1659 = vmatprep.subr.bf16.mxu0 0
      %1660 = vmatpush1.bf16.xpose.msra.mxu0 0
      %1661 = vmatprep.subr.bf16.mxu0 0
      %1662 = vmatpush1.bf16.xpose.msra.mxu0 0
      %1663 = vmatprep.subr.bf16.mxu0 0
      %1664 = vmatpush1.bf16.xpose.msra.mxu0 0
      %1665 = vmatprep.subr.bf16.mxu0 0
      %1666 = vmatpush1.bf16.xpose.msra.mxu0 0
      %1667 = vmatprep.subr.bf16.mxu0 0
      %1668 = vmatpush1.bf16.xpose.msra.mxu0 0
      %1669 = vmatprep.mubr.bf16.mxu0 0
      %1670 = vmatmul.mubr.bf16.gmra.mrb[0].mxu0 %v1632
      %v1671 = vpop.f32.mrb[0].mxu0
      %v1672 = vadd.f32 0.0, %v1671
      %v1673 = vpop.f32.mrb[0].mxu0
      %v1674 = vpop.f32.mrb[0].mxu0
      %v1675 = vadd.f32 0.0, %v1674
      %v1676 = vpop.f32.mrb[0].mxu0
      %1677 = vdwg.mxu0
      %v1679 = vsel %vm1536, %v1531, 0
      %v1682 = vsel %vm1536, %v1535, 0
      %1684 = vmatprep.subr.bf16.mxu0 0
      %1685 = vmatpush1.bf16.xpose.msra.mxu0 %v1682
      %1686 = vmatprep.subr.bf16.mxu0 0
      %1687 = vmatpush1.bf16.xpose.msra.mxu0 0
      %1688 = vmatprep.subr.bf16.mxu0 0
      %1689 = vmatpush1.bf16.xpose.msra.mxu0 0
      %1690 = vmatprep.subr.bf16.mxu0 0
      %1691 = vmatpush1.bf16.xpose.msra.mxu0 0
      %1692 = vmatprep.subr.bf16.mxu0 0
      %1693 = vmatpush1.bf16.xpose.msra.mxu0 0
      %1694 = vmatprep.subr.bf16.mxu0 0
      %1695 = vmatpush1.bf16.xpose.msra.mxu0 0
      %1696 = vmatprep.subr.bf16.mxu0 0
      %1697 = vmatpush1.bf16.xpose.msra.mxu0 0
      %1698 = vmatprep.subr.bf16.mxu0 0
      %1699 = vmatpush1.bf16.xpose.msra.mxu0 0
      %1700 = vmatprep.subr.bf16.mxu0 0
      %1701 = vmatpush1.bf16.xpose.msra.mxu0 0
      %1702 = vmatprep.subr.bf16.mxu0 0
      %1703 = vmatpush1.bf16.xpose.msra.mxu0 0
      %1704 = vmatprep.subr.bf16.mxu0 0
      %1705 = vmatpush1.bf16.xpose.msra.mxu0 0
      %1706 = vmatprep.subr.bf16.mxu0 0
      %1707 = vmatpush1.bf16.xpose.msra.mxu0 0
      %1708 = vmatprep.subr.bf16.mxu0 0
      %1709 = vmatpush1.bf16.xpose.msra.mxu0 0
      %1710 = vmatprep.subr.bf16.mxu0 0
      %1711 = vmatpush1.bf16.xpose.msra.mxu0 0
      %1712 = vmatprep.subr.bf16.mxu0 0
      %1713 = vmatpush1.bf16.xpose.msra.mxu0 0
      %1714 = vmatprep.subr.bf16.mxu0 0
      %1715 = vmatpush1.bf16.xpose.msra.mxu0 0
      %1716 = vmatprep.mubr.bf16.mxu0 0
      %1717 = vmatmul.mubr.bf16.gmra.mrb[0].mxu0 %v1679
      %v1718 = vpop.f32.mrb[0].mxu0
      %v1719 = vadd.f32 0.0, %v1718
      %v1720 = vpop.f32.mrb[0].mxu0
      %v1721 = vpop.f32.mrb[0].mxu0
      %v1722 = vadd.f32 0.0, %v1721
      %v1723 = vpop.f32.mrb[0].mxu0
      %1724 = vdwg.mxu0
      %v1725 = vmul.f32 %v1578, 0.35355338
      %v1726 = vmul.f32 %v1581, 0.35355338
      %v1727 = vmul.f32 %v1625, 0.35355338
      %v1728 = vmul.f32 %v1628, 0.35355338
      %v1729 = vmul.f32 %v1672, 0.35355338
      %v1730 = vmul.f32 %v1675, 0.35355338
      %v1731 = vmul.f32 %v1719, 0.35355338
      %v1732 = vmul.f32 %v1722, 0.35355338
      %vm1733 = vcmp.gt.f32.partialorder %v539, 0.0
      %v1734 = vsel %vm1733, 1, 0
      %v1735 = vlaneseq
      %v1736 = vshrl.u32 %v1735, 7
      %v1737 = vsub.s32 0, %v1736
      %v1738 = vrot.slane %v1734, %v1737
      %vm1739 = vcmp.eq.s32.totalorder %v1738, 1
      %v1740 = vsel %vm1739, %v1725, -1e+09
      %v1741 = vsel %vm1739, %v1726, -1e+09
      %v1742 = vsel %vm1739, %v1727, -1e+09
      %v1743 = vsel %vm1739, %v1728, -1e+09
      %v1744 = vsel %vm1739, %v1729, -1e+09
      %v1745 = vsel %vm1739, %v1730, -1e+09
      %v1746 = vsel %vm1739, %v1731, -1e+09
      %v1747 = vsel %vm1739, %v1732, -1e+09
      %vm1748 = vcmask 130048
      %v1749 = vsel %vm1748, %v1740, -inf
      %1750 = vmax.xlane.f32.xlu0 %v1749
      %v1751 = vpop.xlane.xlu0 %1750
      %v1752 = vsel %vm1748, %v1741, -inf
      %1753 = vmax.xlane.f32.xlu0 %v1752
      %v1754 = vpop.xlane.xlu0 %1753
      %v1755 = vsel %vm1748, %v1742, -inf
      %1756 = vmax.xlane.f32.xlu0 %v1755
      %v1757 = vpop.xlane.xlu0 %1756
      %v1758 = vsel %vm1748, %v1743, -inf
      %1759 = vmax.xlane.f32.xlu0 %v1758
      %v1760 = vpop.xlane.xlu0 %1759
      %v1761 = vsel %vm1748, %v1744, -inf
      %1762 = vmax.xlane.f32.xlu0 %v1761
      %v1763 = vpop.xlane.xlu0 %1762
      %v1764 = vsel %vm1748, %v1745, -inf
      %1765 = vmax.xlane.f32.xlu0 %v1764
      %v1766 = vpop.xlane.xlu0 %1765
      %v1767 = vsel %vm1748, %v1746, -inf
      %1768 = vmax.xlane.f32.xlu0 %v1767
      %v1769 = vpop.xlane.xlu0 %1768
      %v1770 = vsel %vm1748, %v1747, -inf
      %1771 = vmax.xlane.f32.xlu0 %v1770
      %v1772 = vpop.xlane.xlu0 %1771
      %v1773 = vsub.f32 %v1740, %v1751
      %v1774 = vsub.f32 %v1741, %v1754
      %v1775 = vsub.f32 %v1742, %v1757
      %v1776 = vsub.f32 %v1743, %v1760
      %v1777 = vsub.f32 %v1744, %v1763
      %v1778 = vsub.f32 %v1745, %v1766
      %v1779 = vsub.f32 %v1746, %v1769
      %v1780 = vsub.f32 %v1747, %v1772
      %v1781 = vmul.f32 %v1773, 1.442695
      %v1782 = vpow.pop %v1781
      %v1783 = vmul.f32 %v1774, 1.442695
      %v1784 = vpow.pop %v1783
      %v1785 = vmul.f32 %v1775, 1.442695
      %v1786 = vpow.pop %v1785
      %v1787 = vmul.f32 %v1776, 1.442695
      %v1788 = vpow.pop %v1787
      %v1789 = vmul.f32 %v1777, 1.442695
      %v1790 = vpow.pop %v1789
      %v1791 = vmul.f32 %v1778, 1.442695
      %v1792 = vpow.pop %v1791
      %v1793 = vmul.f32 %v1779, 1.442695
      %v1794 = vpow.pop %v1793
      %v1795 = vmul.f32 %v1780, 1.442695
      %v1796 = vpow.pop %v1795
      %v1797 = vsel %vm1748, %v1782, 0.0
      %1798 = vadd.xlane.f32.xlu0 %v1797
      %v1799 = vpop.xlane.xlu0 %1798
      %v1800 = vsel %vm1748, %v1784, 0.0
      %1801 = vadd.xlane.f32.xlu0 %v1800
      %v1802 = vpop.xlane.xlu0 %1801
      %v1803 = vsel %vm1748, %v1786, 0.0
      %1804 = vadd.xlane.f32.xlu0 %v1803
      %v1805 = vpop.xlane.xlu0 %1804
      %v1806 = vsel %vm1748, %v1788, 0.0
      %1807 = vadd.xlane.f32.xlu0 %v1806
      %v1808 = vpop.xlane.xlu0 %1807
      %v1809 = vsel %vm1748, %v1790, 0.0
      %1810 = vadd.xlane.f32.xlu0 %v1809
      %v1811 = vpop.xlane.xlu0 %1810
      %v1812 = vsel %vm1748, %v1792, 0.0
      %1813 = vadd.xlane.f32.xlu0 %v1812
      %v1814 = vpop.xlane.xlu0 %1813
      %v1815 = vsel %vm1748, %v1794, 0.0
      %1816 = vadd.xlane.f32.xlu0 %v1815
      %v1817 = vpop.xlane.xlu0 %1816
      %v1818 = vsel %vm1748, %v1796, 0.0
      %1819 = vadd.xlane.f32.xlu0 %v1818
      %v1820 = vpop.xlane.xlu0 %1819
      %v1821 = vrcp.pop %v1799
      %v1822 = vrcp.pop %v1802
      %v1823 = vrcp.pop %v1805
      %v1824 = vrcp.pop %v1808
      %v1825 = vrcp.pop %v1811
      %v1826 = vrcp.pop %v1814
      %v1827 = vrcp.pop %v1817
      %v1828 = vrcp.pop %v1820
      %v1829 = vmul.f32 %v1782, %v1821
      %v1830 = vmul.f32 %v1784, %v1822
      %v1831 = vmul.f32 %v1786, %v1823
      %v1832 = vmul.f32 %v1788, %v1824
      %v1833 = vmul.f32 %v1790, %v1825
      %v1834 = vmul.f32 %v1792, %v1826
      %v1835 = vmul.f32 %v1794, %v1827
      %v1836 = vmul.f32 %v1796, %v1828
      %v1837 = vpack.c.bf16 %v1830, %v1829
      %v1838 = vpack.c.bf16 %v1832, %v1831
      %v1839 = vpack.c.bf16 %v1834, %v1833
      %v1840 = vpack.c.bf16 %v1836, %v1835
      %v1841 = vpack.c.bf16 %v1524, %v1456
      %v1842 = vpack.c.bf16 %v1525, %v1457
      %v1843 = vpack.c.bf16 %v1526, %v1458
      %v1844 = vpack.c.bf16 %v1527, %v1459
      %v1846 = vsel %vm1748, %v1837, 0
      %1848 = vmatprep.subr.bf16.mxu0 0
      %1849 = vmatpush1.bf16.msra.mxu0 %v1841
      %1850 = vmatprep.subr.bf16.mxu0 0
      %1851 = vmatpush1.bf16.msra.mxu0 0
      %1852 = vmatprep.subr.bf16.mxu0 0
      %1853 = vmatpush1.bf16.msra.mxu0 0
      %1854 = vmatprep.subr.bf16.mxu0 0
      %1855 = vmatpush1.bf16.msra.mxu0 0
      %1856 = vmatprep.subr.bf16.mxu0 0
      %1857 = vmatpush1.bf16.msra.mxu0 0
      %1858 = vmatprep.subr.bf16.mxu0 0
      %1859 = vmatpush1.bf16.msra.mxu0 0
      %1860 = vmatprep.subr.bf16.mxu0 0
      %1861 = vmatpush1.bf16.msra.mxu0 0
      %1862 = vmatprep.subr.bf16.mxu0 0
      %1863 = vmatpush1.bf16.msra.mxu0 0
      %1864 = vmatprep.subr.bf16.mxu0 0
      %1865 = vmatpush1.bf16.msra.mxu0 0
      %1866 = vmatprep.subr.bf16.mxu0 0
      %1867 = vmatpush1.bf16.msra.mxu0 0
      %1868 = vmatprep.subr.bf16.mxu0 0
      %1869 = vmatpush1.bf16.msra.mxu0 0
      %1870 = vmatprep.subr.bf16.mxu0 0
      %1871 = vmatpush1.bf16.msra.mxu0 0
      %1872 = vmatprep.subr.bf16.mxu0 0
      %1873 = vmatpush1.bf16.msra.mxu0 0
      %1874 = vmatprep.subr.bf16.mxu0 0
      %1875 = vmatpush1.bf16.msra.mxu0 0
      %1876 = vmatprep.subr.bf16.mxu0 0
      %1877 = vmatpush1.bf16.msra.mxu0 0
      %1878 = vmatprep.subr.bf16.mxu0 0
      %1879 = vmatpush1.bf16.msra.mxu0 0
      %1880 = vmatprep.mubr.bf16.mxu0 0
      %1881 = vmatmul.mubr.bf16.gmra.mrb[0].mxu0 %v1846
      %v1882 = vpop.f32.mrb[0].mxu0
      %v1883 = vadd.f32 0.0, %v1882
      %v1884 = vpop.f32.mrb[0].mxu0
      %v1885 = vpop.f32.mrb[0].mxu0
      %v1886 = vadd.f32 0.0, %v1885
      %v1887 = vpop.f32.mrb[0].mxu0
      %1888 = vdwg.mxu0
      %v1890 = vsel %vm1748, %v1838, 0
      %1892 = vmatprep.subr.bf16.mxu0 0
      %1893 = vmatpush1.bf16.msra.mxu0 %v1842
      %1894 = vmatprep.subr.bf16.mxu0 0
      %1895 = vmatpush1.bf16.msra.mxu0 0
      %1896 = vmatprep.subr.bf16.mxu0 0
      %1897 = vmatpush1.bf16.msra.mxu0 0
      %1898 = vmatprep.subr.bf16.mxu0 0
      %1899 = vmatpush1.bf16.msra.mxu0 0
      %1900 = vmatprep.subr.bf16.mxu0 0
      %1901 = vmatpush1.bf16.msra.mxu0 0
      %1902 = vmatprep.subr.bf16.mxu0 0
      %1903 = vmatpush1.bf16.msra.mxu0 0
      %1904 = vmatprep.subr.bf16.mxu0 0
      %1905 = vmatpush1.bf16.msra.mxu0 0
      %1906 = vmatprep.subr.bf16.mxu0 0
      %1907 = vmatpush1.bf16.msra.mxu0 0
      %1908 = vmatprep.subr.bf16.mxu0 0
      %1909 = vmatpush1.bf16.msra.mxu0 0
      %1910 = vmatprep.subr.bf16.mxu0 0
      %1911 = vmatpush1.bf16.msra.mxu0 0
      %1912 = vmatprep.subr.bf16.mxu0 0
      %1913 = vmatpush1.bf16.msra.mxu0 0
      %1914 = vmatprep.subr.bf16.mxu0 0
      %1915 = vmatpush1.bf16.msra.mxu0 0
      %1916 = vmatprep.subr.bf16.mxu0 0
      %1917 = vmatpush1.bf16.msra.mxu0 0
      %1918 = vmatprep.subr.bf16.mxu0 0
      %1919 = vmatpush1.bf16.msra.mxu0 0
      %1920 = vmatprep.subr.bf16.mxu0 0
      %1921 = vmatpush1.bf16.msra.mxu0 0
      %1922 = vmatprep.subr.bf16.mxu0 0
      %1923 = vmatpush1.bf16.msra.mxu0 0
      %1924 = vmatprep.mubr.bf16.mxu0 0
      %1925 = vmatmul.mubr.bf16.gmra.mrb[0].mxu0 %v1890
      %v1926 = vpop.f32.mrb[0].mxu0
      %v1927 = vadd.f32 0.0, %v1926
      %v1928 = vpop.f32.mrb[0].mxu0
      %v1929 = vpop.f32.mrb[0].mxu0
      %v1930 = vadd.f32 0.0, %v1929
      %v1931 = vpop.f32.mrb[0].mxu0
      %1932 = vdwg.mxu0
      %v1934 = vsel %vm1748, %v1839, 0
      %1936 = vmatprep.subr.bf16.mxu0 0
      %1937 = vmatpush1.bf16.msra.mxu0 %v1843
      %1938 = vmatprep.subr.bf16.mxu0 0
      %1939 = vmatpush1.bf16.msra.mxu0 0
      %1940 = vmatprep.subr.bf16.mxu0 0
      %1941 = vmatpush1.bf16.msra.mxu0 0
      %1942 = vmatprep.subr.bf16.mxu0 0
      %1943 = vmatpush1.bf16.msra.mxu0 0
      %1944 = vmatprep.subr.bf16.mxu0 0
      %1945 = vmatpush1.bf16.msra.mxu0 0
      %1946 = vmatprep.subr.bf16.mxu0 0
      %1947 = vmatpush1.bf16.msra.mxu0 0
      %1948 = vmatprep.subr.bf16.mxu0 0
      %1949 = vmatpush1.bf16.msra.mxu0 0
      %1950 = vmatprep.subr.bf16.mxu0 0
      %1951 = vmatpush1.bf16.msra.mxu0 0
      %1952 = vmatprep.subr.bf16.mxu0 0
      %1953 = vmatpush1.bf16.msra.mxu0 0
      %1954 = vmatprep.subr.bf16.mxu0 0
      %1955 = vmatpush1.bf16.msra.mxu0 0
      %1956 = vmatprep.subr.bf16.mxu0 0
      %1957 = vmatpush1.bf16.msra.mxu0 0
      %1958 = vmatprep.subr.bf16.mxu0 0
      %1959 = vmatpush1.bf16.msra.mxu0 0
      %1960 = vmatprep.subr.bf16.mxu0 0
      %1961 = vmatpush1.bf16.msra.mxu0 0
      %1962 = vmatprep.subr.bf16.mxu0 0
      %1963 = vmatpush1.bf16.msra.mxu0 0
      %1964 = vmatprep.subr.bf16.mxu0 0
      %1965 = vmatpush1.bf16.msra.mxu0 0
      %1966 = vmatprep.subr.bf16.mxu0 0
      %1967 = vmatpush1.bf16.msra.mxu0 0
      %1968 = vmatprep.mubr.bf16.mxu0 0
      %1969 = vmatmul.mubr.bf16.gmra.mrb[0].mxu0 %v1934
      %v1970 = vpop.f32.mrb[0].mxu0
      %v1971 = vadd.f32 0.0, %v1970
      %v1972 = vpop.f32.mrb[0].mxu0
      %v1973 = vpop.f32.mrb[0].mxu0
      %v1974 = vadd.f32 0.0, %v1973
      %v1975 = vpop.f32.mrb[0].mxu0
      %1976 = vdwg.mxu0
      %v1978 = vsel %vm1748, %v1840, 0
      %1980 = vmatprep.subr.bf16.mxu0 0
      %1981 = vmatpush1.bf16.msra.mxu0 %v1844
      %1982 = vmatprep.subr.bf16.mxu0 0
      %1983 = vmatpush1.bf16.msra.mxu0 0
      %1984 = vmatprep.subr.bf16.mxu0 0
      %1985 = vmatpush1.bf16.msra.mxu0 0
      %1986 = vmatprep.subr.bf16.mxu0 0
      %1987 = vmatpush1.bf16.msra.mxu0 0
      %1988 = vmatprep.subr.bf16.mxu0 0
      %1989 = vmatpush1.bf16.msra.mxu0 0
      %1990 = vmatprep.subr.bf16.mxu0 0
      %1991 = vmatpush1.bf16.msra.mxu0 0
      %1992 = vmatprep.subr.bf16.mxu0 0
      %1993 = vmatpush1.bf16.msra.mxu0 0
      %1994 = vmatprep.subr.bf16.mxu0 0
      %1995 = vmatpush1.bf16.msra.mxu0 0
      %1996 = vmatprep.subr.bf16.mxu0 0
      %1997 = vmatpush1.bf16.msra.mxu0 0
      %1998 = vmatprep.subr.bf16.mxu0 0
      %1999 = vmatpush1.bf16.msra.mxu0 0
      %2000 = vmatprep.subr.bf16.mxu0 0
      %2001 = vmatpush1.bf16.msra.mxu0 0
      %2002 = vmatprep.subr.bf16.mxu0 0
      %2003 = vmatpush1.bf16.msra.mxu0 0
      %2004 = vmatprep.subr.bf16.mxu0 0
      %2005 = vmatpush1.bf16.msra.mxu0 0
      %2006 = vmatprep.subr.bf16.mxu0 0
      %2007 = vmatpush1.bf16.msra.mxu0 0
      %2008 = vmatprep.subr.bf16.mxu0 0
      %2009 = vmatpush1.bf16.msra.mxu0 0
      %2010 = vmatprep.subr.bf16.mxu0 0
      %2011 = vmatpush1.bf16.msra.mxu0 0
      %2012 = vmatprep.mubr.bf16.mxu0 0
      %2013 = vmatmul.mubr.bf16.gmra.mrb[0].mxu0 %v1978
      %v2014 = vpop.f32.mrb[0].mxu0
      %v2015 = vadd.f32 0.0, %v2014
      %v2016 = vpop.f32.mrb[0].mxu0
      %v2017 = vpop.f32.mrb[0].mxu0
      %v2018 = vadd.f32 0.0, %v2017
      %v2019 = vpop.f32.mrb[0].mxu0
      %2020 = vdwg.mxu0
      %v2021 = vcombine.low %v1883, %v1971
      %v2022 = vcombine.high %v1883, %v1971
      %v2024 = vunpack.c.l.s4 1983009808
      %v2025 = vunpack.c.0.s8 %v2024
      %v2026 = vlaneseq
      %v2027 = vshrl.u32 %v2026, 7
      %v2028 = vsub.s32 %v2025, %v2027
      %v2029 = vrot.slane %v2021, %v2028
      %v2031 = vunpack.c.l.s4 1983009808
      %v2032 = vunpack.c.0.s8 %v2031
      %v2033 = vlaneseq
      %v2034 = vshrl.u32 %v2033, 7
      %v2035 = vsub.s32 %v2032, %v2034
      %v2036 = vrot.slane %v2022, %v2035
      %v2037 = vcombine.low %v1927, %v2015
      %v2038 = vcombine.high %v1927, %v2015
      %v2040 = vunpack.c.l.s4 1983009808
      %v2041 = vunpack.c.0.s8 %v2040
      %v2042 = vlaneseq
      %v2043 = vshrl.u32 %v2042, 7
      %v2044 = vsub.s32 %v2041, %v2043
      %v2045 = vrot.slane %v2037, %v2044
      %v2047 = vunpack.c.l.s4 1983009808
      %v2048 = vunpack.c.0.s8 %v2047
      %v2049 = vlaneseq
      %v2050 = vshrl.u32 %v2049, 7
      %v2051 = vsub.s32 %v2048, %v2050
      %v2052 = vrot.slane %v2038, %v2051
      %v2053 = vcombine.low %v2029, %v2045
      %v2054 = vcombine.high %v2029, %v2045
      %v2056 = vunpack.c.l.s4 1934713408
      %v2057 = vunpack.c.0.s8 %v2056
      %v2058 = vlaneseq
      %v2059 = vshrl.u32 %v2058, 7
      %v2060 = vsub.s32 %v2057, %v2059
      %v2061 = vrot.slane %v2053, %v2060
      %v2063 = vunpack.c.l.s4 1934713408
      %v2064 = vunpack.c.0.s8 %v2063
      %v2065 = vlaneseq
      %v2066 = vshrl.u32 %v2065, 7
      %v2067 = vsub.s32 %v2064, %v2066
      %v2068 = vrot.slane %v2054, %v2067
      %v2069 = vcombine.low %v2036, %v2052
      %v2070 = vcombine.high %v2036, %v2052
      %v2072 = vunpack.c.l.s4 1934713408
      %v2073 = vunpack.c.0.s8 %v2072
      %v2074 = vlaneseq
      %v2075 = vshrl.u32 %v2074, 7
      %v2076 = vsub.s32 %v2073, %v2075
      %v2077 = vrot.slane %v2069, %v2076
      %v2079 = vunpack.c.l.s4 1934713408
      %v2080 = vunpack.c.0.s8 %v2079
      %v2081 = vlaneseq
      %v2082 = vshrl.u32 %v2081, 7
      %v2083 = vsub.s32 %v2080, %v2082
      %v2084 = vrot.slane %v2070, %v2083
      %v2085 = vcombine.high %v2061, 0.0
      %v2086 = vcombine.high %v2068, 0.0
      %v2087 = vcombine.high %v2077, 0.0
      %v2088 = vcombine.high %v2084, 0.0
      %v2089 = vcombine.low %v1886, %v1974
      %v2090 = vcombine.high %v1886, %v1974
      %v2092 = vunpack.c.l.s4 1983009808
      %v2093 = vunpack.c.0.s8 %v2092
      %v2094 = vlaneseq
      %v2095 = vshrl.u32 %v2094, 7
      %v2096 = vsub.s32 %v2093, %v2095
      %v2097 = vrot.slane %v2089, %v2096
      %v2099 = vunpack.c.l.s4 1983009808
      %v2100 = vunpack.c.0.s8 %v2099
      %v2101 = vlaneseq
      %v2102 = vshrl.u32 %v2101, 7
      %v2103 = vsub.s32 %v2100, %v2102
      %v2104 = vrot.slane %v2090, %v2103
      %v2105 = vcombine.low %v1930, %v2018
      %v2106 = vcombine.high %v1930, %v2018
      %v2108 = vunpack.c.l.s4 1983009808
      %v2109 = vunpack.c.0.s8 %v2108
      %v2110 = vlaneseq
      %v2111 = vshrl.u32 %v2110, 7
      %v2112 = vsub.s32 %v2109, %v2111
      %v2113 = vrot.slane %v2105, %v2112
      %v2115 = vunpack.c.l.s4 1983009808
      %v2116 = vunpack.c.0.s8 %v2115
      %v2117 = vlaneseq
      %v2118 = vshrl.u32 %v2117, 7
      %v2119 = vsub.s32 %v2116, %v2118
      %v2120 = vrot.slane %v2106, %v2119
      %v2121 = vcombine.low %v2097, %v2113
      %v2122 = vcombine.high %v2097, %v2113
      %v2124 = vunpack.c.l.s4 1934713408
      %v2125 = vunpack.c.0.s8 %v2124
      %v2126 = vlaneseq
      %v2127 = vshrl.u32 %v2126, 7
      %v2128 = vsub.s32 %v2125, %v2127
      %v2129 = vrot.slane %v2121, %v2128
      %v2131 = vunpack.c.l.s4 1934713408
      %v2132 = vunpack.c.0.s8 %v2131
      %v2133 = vlaneseq
      %v2134 = vshrl.u32 %v2133, 7
      %v2135 = vsub.s32 %v2132, %v2134
      %v2136 = vrot.slane %v2122, %v2135
      %v2137 = vcombine.low %v2104, %v2120
      %v2138 = vcombine.high %v2104, %v2120
      %v2140 = vunpack.c.l.s4 1934713408
      %v2141 = vunpack.c.0.s8 %v2140
      %v2142 = vlaneseq
      %v2143 = vshrl.u32 %v2142, 7
      %v2144 = vsub.s32 %v2141, %v2143
      %v2145 = vrot.slane %v2137, %v2144
      %v2147 = vunpack.c.l.s4 1934713408
      %v2148 = vunpack.c.0.s8 %v2147
      %v2149 = vlaneseq
      %v2150 = vshrl.u32 %v2149, 7
      %v2151 = vsub.s32 %v2148, %v2150
      %v2152 = vrot.slane %v2138, %v2151
      %v2153 = vcombine.high %v2129, 0.0
      %v2154 = vcombine.high %v2136, 0.0
      %v2155 = vcombine.high %v2145, 0.0
      %v2156 = vcombine.high %v2152, 0.0
      %v2157 = vcombine.low %v2061, %v2068
      %v2159 = vunpack.c.l.s4 1983009808
      %v2160 = vunpack.c.0.s8 %v2159
      %v2161 = vlaneseq
      %v2162 = vshrl.u32 %v2161, 7
      %v2163 = vsub.s32 %v2160, %v2162
      %v2164 = vrot.slane %v2157, %v2163
      %v2165 = vcombine.low %v2085, %v2086
      %v2167 = vunpack.c.l.s4 1983009808
      %v2168 = vunpack.c.0.s8 %v2167
      %v2169 = vlaneseq
      %v2170 = vshrl.u32 %v2169, 7
      %v2171 = vsub.s32 %v2168, %v2170
      %v2172 = vrot.slane %v2165, %v2171
      %v2173 = vcombine.low %v2077, %v2084
      %v2175 = vunpack.c.l.s4 1983009808
      %v2176 = vunpack.c.0.s8 %v2175
      %v2177 = vlaneseq
      %v2178 = vshrl.u32 %v2177, 7
      %v2179 = vsub.s32 %v2176, %v2178
      %v2180 = vrot.slane %v2173, %v2179
      %v2181 = vcombine.low %v2087, %v2088
      %v2183 = vunpack.c.l.s4 1983009808
      %v2184 = vunpack.c.0.s8 %v2183
      %v2185 = vlaneseq
      %v2186 = vshrl.u32 %v2185, 7
      %v2187 = vsub.s32 %v2184, %v2186
      %v2188 = vrot.slane %v2181, %v2187
      %v2189 = vcombine.low %v2164, %v2172
      %v2190 = vcombine.high %v2164, %v2172
      %v2192 = vunpack.c.l.s4 1934713408
      %v2193 = vunpack.c.0.s8 %v2192
      %v2194 = vlaneseq
      %v2195 = vshrl.u32 %v2194, 7
      %v2196 = vsub.s32 %v2193, %v2195
      %v2197 = vrot.slane %v2189, %v2196
      %v2199 = vunpack.c.l.s4 1934713408
      %v2200 = vunpack.c.0.s8 %v2199
      %v2201 = vlaneseq
      %v2202 = vshrl.u32 %v2201, 7
      %v2203 = vsub.s32 %v2200, %v2202
      %v2204 = vrot.slane %v2190, %v2203
      %v2205 = vcombine.low %v2180, %v2188
      %v2206 = vcombine.high %v2180, %v2188
      %v2208 = vunpack.c.l.s4 1934713408
      %v2209 = vunpack.c.0.s8 %v2208
      %v2210 = vlaneseq
      %v2211 = vshrl.u32 %v2210, 7
      %v2212 = vsub.s32 %v2209, %v2211
      %v2213 = vrot.slane %v2205, %v2212
      %v2215 = vunpack.c.l.s4 1934713408
      %v2216 = vunpack.c.0.s8 %v2215
      %v2217 = vlaneseq
      %v2218 = vshrl.u32 %v2217, 7
      %v2219 = vsub.s32 %v2216, %v2218
      %v2220 = vrot.slane %v2206, %v2219
      %v2221 = vcombine.low %v2197, %v2213
      %v2222 = vcombine.high %v2197, %v2213
      %v2223 = vcombine.low %v2204, %v2220
      %v2224 = vcombine.high %v2204, %v2220
      %v2225 = vcombine.low %v2129, %v2136
      %v2227 = vunpack.c.l.s4 1983009808
      %v2228 = vunpack.c.0.s8 %v2227
      %v2229 = vlaneseq
      %v2230 = vshrl.u32 %v2229, 7
      %v2231 = vsub.s32 %v2228, %v2230
      %v2232 = vrot.slane %v2225, %v2231
      %v2233 = vcombine.low %v2153, %v2154
      %v2235 = vunpack.c.l.s4 1983009808
      %v2236 = vunpack.c.0.s8 %v2235
      %v2237 = vlaneseq
      %v2238 = vshrl.u32 %v2237, 7
      %v2239 = vsub.s32 %v2236, %v2238
      %v2240 = vrot.slane %v2233, %v2239
      %v2241 = vcombine.low %v2145, %v2152
      %v2243 = vunpack.c.l.s4 1983009808
      %v2244 = vunpack.c.0.s8 %v2243
      %v2245 = vlaneseq
      %v2246 = vshrl.u32 %v2245, 7
      %v2247 = vsub.s32 %v2244, %v2246
      %v2248 = vrot.slane %v2241, %v2247
      %v2249 = vcombine.low %v2155, %v2156
      %v2251 = vunpack.c.l.s4 1983009808
      %v2252 = vunpack.c.0.s8 %v2251
      %v2253 = vlaneseq
      %v2254 = vshrl.u32 %v2253, 7
      %v2255 = vsub.s32 %v2252, %v2254
      %v2256 = vrot.slane %v2249, %v2255
      %v2257 = vcombine.low %v2232, %v2240
      %v2258 = vcombine.high %v2232, %v2240
      %v2260 = vunpack.c.l.s4 1934713408
      %v2261 = vunpack.c.0.s8 %v2260
      %v2262 = vlaneseq
      %v2263 = vshrl.u32 %v2262, 7
      %v2264 = vsub.s32 %v2261, %v2263
      %v2265 = vrot.slane %v2257, %v2264
      %v2267 = vunpack.c.l.s4 1934713408
      %v2268 = vunpack.c.0.s8 %v2267
      %v2269 = vlaneseq
      %v2270 = vshrl.u32 %v2269, 7
      %v2271 = vsub.s32 %v2268, %v2270
      %v2272 = vrot.slane %v2258, %v2271
      %v2273 = vcombine.low %v2248, %v2256
      %v2274 = vcombine.high %v2248, %v2256
      %v2276 = vunpack.c.l.s4 1934713408
      %v2277 = vunpack.c.0.s8 %v2276
      %v2278 = vlaneseq
      %v2279 = vshrl.u32 %v2278, 7
      %v2280 = vsub.s32 %v2277, %v2279
      %v2281 = vrot.slane %v2273, %v2280
      %v2283 = vunpack.c.l.s4 1934713408
      %v2284 = vunpack.c.0.s8 %v2283
      %v2285 = vlaneseq
      %v2286 = vshrl.u32 %v2285, 7
      %v2287 = vsub.s32 %v2284, %v2286
      %v2288 = vrot.slane %v2274, %v2287
      %v2289 = vcombine.low %v2265, %v2281
      %v2290 = vcombine.high %v2265, %v2281
      %v2291 = vcombine.low %v2272, %v2288
      %v2292 = vcombine.high %v2272, %v2288
      %2295 = vrot.lane.b32.xlu0 %v2222, 8
      %v2296 = vpop.permute.xlu0 %2295
      %2297 = vrot.lane.b32.xlu0 %v2290, 8
      %v2298 = vpop.permute.xlu0 %2297
      %2303 = vrot.lane.b32.xlu0 %v2223, 16
      %v2304 = vpop.permute.xlu0 %2303
      %2305 = vrot.lane.b32.xlu0 %v2291, 16
      %v2306 = vpop.permute.xlu0 %2305
      %2311 = vrot.lane.b32.xlu0 %v2224, 24
      %v2312 = vpop.permute.xlu0 %2311
      %2313 = vrot.lane.b32.xlu0 %v2292, 24
      %v2314 = vpop.permute.xlu0 %2313
      %v2317 = vsel %vm1536, %v2221, %v2296
      %v2318 = vsel %vm1536, %v2289, %v2298
      %v2319 = vsel %vm1748, %v2317, %v2304
      %v2320 = vsel %vm1748, %v2318, %v2306
      %vm2321 = vcmask 195584
      %v2322 = vsel %vm2321, %v2319, %v2312
      %v2323 = vsel %vm2321, %v2320, %v2314
      %v2324 = vld [vmem:[%s6] sm:$0xff]
      %v2325 = vld [vmem:[%s6 + $0x8] sm:$0xff]
      %v2326 = vld [vmem:[%s6 + $0x10] sm:$0xff]
      %v2327 = vld [vmem:[%s6 + $0x18] sm:$0xff]
      %v2328 = vld [vmem:[%s7] sm:$0x1]
      %v2329 = vpack.c.bf16 %v2323, %v2322
      %v2330 = vpack.c.bf16 %v2325, %v2324
      %v2331 = vpack.c.bf16 %v2327, %v2326
      %v2333 = vlaneseq
      %v2334 = vshrl.u32 %v2333, 7
      %v2335 = vsub.s32 0, %v2334
      %v2336 = vrot.slane %v2328, %v2335
      %v2339 = vsel %vm542, %v2329, 0
      %2341 = vmatprep.subr.bf16.mxu0 0
      %2342 = vmatpush1.bf16.msra.mxu0 %v2330
      %2343 = vmatprep.subr.bf16.mxu0 0
      %2344 = vmatpush1.bf16.msra.mxu0 %v2331
      %2345 = vmatprep.subr.bf16.mxu0 0
      %2346 = vmatpush1.bf16.msra.mxu0 0
      %2347 = vmatprep.subr.bf16.mxu0 0
      %2348 = vmatpush1.bf16.msra.mxu0 0
      %2349 = vmatprep.subr.bf16.mxu0 0
      %2350 = vmatpush1.bf16.msra.mxu0 0
      %2351 = vmatprep.subr.bf16.mxu0 0
      %2352 = vmatpush1.bf16.msra.mxu0 0
      %2353 = vmatprep.subr.bf16.mxu0 0
      %2354 = vmatpush1.bf16.msra.mxu0 0
      %2355 = vmatprep.subr.bf16.mxu0 0
      %2356 = vmatpush1.bf16.msra.mxu0 0
      %2357 = vmatprep.subr.bf16.mxu0 0
      %2358 = vmatpush1.bf16.msra.mxu0 0
      %2359 = vmatprep.subr.bf16.mxu0 0
      %2360 = vmatpush1.bf16.msra.mxu0 0
      %2361 = vmatprep.subr.bf16.mxu0 0
      %2362 = vmatpush1.bf16.msra.mxu0 0
      %2363 = vmatprep.subr.bf16.mxu0 0
      %2364 = vmatpush1.bf16.msra.mxu0 0
      %2365 = vmatprep.subr.bf16.mxu0 0
      %2366 = vmatpush1.bf16.msra.mxu0 0
      %2367 = vmatprep.subr.bf16.mxu0 0
      %2368 = vmatpush1.bf16.msra.mxu0 0
      %2369 = vmatprep.subr.bf16.mxu0 0
      %2370 = vmatpush1.bf16.msra.mxu0 0
      %2371 = vmatprep.subr.bf16.mxu0 0
      %2372 = vmatpush1.bf16.msra.mxu0 0
      %2373 = vmatprep.mubr.bf16.mxu0 0
      %2374 = vmatmul.mubr.bf16.gmra.mrb[0].mxu0 %v2339
      %v2375 = vpop.f32.mrb[0].mxu0
      %v2376 = vadd.f32 %v2336, %v2375
      %v2377 = vpop.f32.mrb[0].mxu0
      %v2378 = vpop.f32.mrb[0].mxu0
      %v2379 = vadd.f32 %v2336, %v2378
      %v2380 = vpop.f32.mrb[0].mxu0
      %2381 = vdwg.mxu0
      %v2382 = vadd.f32 %v537, %v2376
      %v2383 = vadd.f32 %v538, %v2379
      %v2384 = vld [vmem:[%s8] sm:$0x1]
      %v2385 = vld [vmem:[%s9] sm:$0x1]
      %v2386 = vsel %vm542, %v2382, 0.0
      %2387 = vadd.xlane.f32.xlu0 %v2386
      %v2388 = vpop.xlane.xlu0 %2387
      %v2389 = vsel %vm542, %v2383, 0.0
      %2390 = vadd.xlane.f32.xlu0 %v2389
      %v2391 = vpop.xlane.xlu0 %2390
      %v2392 = vmul.f32 %v2388, %v549
      %v2393 = vmul.f32 %v2391, %v549
      %v2394 = vsub.f32 %v2382, %v2392
      %v2395 = vsub.f32 %v2383, %v2393
      %v2396 = vmul.f32 %v2394, %v2394
      %v2397 = vmul.f32 %v2395, %v2395
      %v2398 = vsel %vm542, %v2396, 0.0
      %2399 = vadd.xlane.f32.xlu0 %v2398
      %v2400 = vpop.xlane.xlu0 %2399
      %v2401 = vsel %vm542, %v2397, 0.0
      %2402 = vadd.xlane.f32.xlu0 %v2401
      %v2403 = vpop.xlane.xlu0 %2402
      %v2404 = vmul.f32 %v2400, %v549
      %v2405 = vmul.f32 %v2403, %v549
      %v2406 = vadd.f32 %v2404, 1e-05
      %v2407 = vadd.f32 %v2405, 1e-05
      %v2408 = vrsqrt.pop %v2406
      %v2409 = vrsqrt.pop %v2407
      %v2410 = vmul.f32 %v2394, %v2408
      %v2411 = vmul.f32 %v2395, %v2409
      %v2413 = vlaneseq
      %v2414 = vshrl.u32 %v2413, 7
      %v2415 = vsub.s32 0, %v2414
      %v2416 = vrot.slane %v2384, %v2415
      %v2418 = vmul.f32 %v2410, %v2416
      %v2419 = vmul.f32 %v2411, %v2416
      %v2421 = vlaneseq
      %v2422 = vshrl.u32 %v2421, 7
      %v2423 = vsub.s32 0, %v2422
      %v2424 = vrot.slane %v2385, %v2423
      %v2426 = vadd.f32 %v2418, %v2424
      %v2427 = vadd.f32 %v2419, %v2424
      %v2428 = vld [vmem:[%s10] sm:$0xff]
      %v2429 = vld [vmem:[%s10 + $0x8] sm:$0xff]
      %v2430 = vld [vmem:[%s10 + $0x10] sm:$0xff]
      %v2431 = vld [vmem:[%s10 + $0x18] sm:$0xff]
      %v2432 = vld [vmem:[%s11] sm:$0x1]
      %v2433 = vpack.c.bf16 %v2427, %v2426
      %v2434 = vpack.c.bf16 %v2429, %v2428
      %v2435 = vpack.c.bf16 %v2431, %v2430
      %v2437 = vlaneseq
      %v2438 = vshrl.u32 %v2437, 7
      %v2439 = vsub.s32 0, %v2438
      %v2440 = vrot.slane %v2432, %v2439
      %v2443 = vsel %vm542, %v2433, 0
      %2445 = vmatprep.subr.bf16.mxu0 0
      %2446 = vmatpush1.bf16.msra.mxu0 %v2434
      %2447 = vmatprep.subr.bf16.mxu0 0
      %2448 = vmatpush1.bf16.msra.mxu0 %v2435
      %2449 = vmatprep.subr.bf16.mxu0 0
      %2450 = vmatpush1.bf16.msra.mxu0 0
      %2451 = vmatprep.subr.bf16.mxu0 0
      %2452 = vmatpush1.bf16.msra.mxu0 0
      %2453 = vmatprep.subr.bf16.mxu0 0
      %2454 = vmatpush1.bf16.msra.mxu0 0
      %2455 = vmatprep.subr.bf16.mxu0 0
      %2456 = vmatpush1.bf16.msra.mxu0 0
      %2457 = vmatprep.subr.bf16.mxu0 0
      %2458 = vmatpush1.bf16.msra.mxu0 0
      %2459 = vmatprep.subr.bf16.mxu0 0
      %2460 = vmatpush1.bf16.msra.mxu0 0
      %2461 = vmatprep.subr.bf16.mxu0 0
      %2462 = vmatpush1.bf16.msra.mxu0 0
      %2463 = vmatprep.subr.bf16.mxu0 0
      %2464 = vmatpush1.bf16.msra.mxu0 0
      %2465 = vmatprep.subr.bf16.mxu0 0
      %2466 = vmatpush1.bf16.msra.mxu0 0
      %2467 = vmatprep.subr.bf16.mxu0 0
      %2468 = vmatpush1.bf16.msra.mxu0 0
      %2469 = vmatprep.subr.bf16.mxu0 0
      %2470 = vmatpush1.bf16.msra.mxu0 0
      %2471 = vmatprep.subr.bf16.mxu0 0
      %2472 = vmatpush1.bf16.msra.mxu0 0
      %2473 = vmatprep.subr.bf16.mxu0 0
      %2474 = vmatpush1.bf16.msra.mxu0 0
      %2475 = vmatprep.subr.bf16.mxu0 0
      %2476 = vmatpush1.bf16.msra.mxu0 0
      %2477 = vmatprep.mubr.bf16.mxu0 0
      %2478 = vmatmul.mubr.bf16.gmra.mrb[0].mxu0 %v2443
      %v2479 = vpop.f32.mrb[0].mxu0
      %v2480 = vadd.f32 %v2440, %v2479
      %v2481 = vpop.f32.mrb[0].mxu0
      %v2482 = vpop.f32.mrb[0].mxu0
      %v2483 = vadd.f32 %v2440, %v2482
      %v2484 = vpop.f32.mrb[0].mxu0
      %2485 = vdwg.mxu0
      %v2486 = vmax.f32 %v2480, 0.0
      %v2487 = vmax.f32 %v2483, 0.0
      %v2488 = vld [vmem:[%s12] sm:$0xff]
      %v2489 = vld [vmem:[%s12 + $0x8] sm:$0xff]
      %v2490 = vld [vmem:[%s12 + $0x10] sm:$0xff]
      %v2491 = vld [vmem:[%s12 + $0x18] sm:$0xff]
      %v2492 = vld [vmem:[%s12 + $0x20] sm:$0xff]
      %v2493 = vld [vmem:[%s12 + $0x28] sm:$0xff]
      %v2494 = vld [vmem:[%s12 + $0x30] sm:$0xff]
      %v2495 = vld [vmem:[%s12 + $0x38] sm:$0xff]
      %v2496 = vld [vmem:[%s13] sm:$0x1]
      %v2497 = vpack.c.bf16 %v2487, %v2486
      %v2498 = vpack.c.bf16 %v2489, %v2488
      %v2499 = vpack.c.bf16 %v2491, %v2490
      %v2500 = vpack.c.bf16 %v2493, %v2492
      %v2501 = vpack.c.bf16 %v2495, %v2494
      %v2503 = vlaneseq
      %v2504 = vshrl.u32 %v2503, 7
      %v2505 = vsub.s32 0, %v2504
      %v2506 = vrot.slane %v2496, %v2505
      %vm2508 = vcmask 523264
      %v2510 = vsel %vm2508, %v2497, 0
      %2512 = vmatprep.subr.bf16.mxu0 0
      %2513 = vmatpush1.bf16.msra.mxu0 %v2498
      %2514 = vmatprep.subr.bf16.mxu0 0
      %2515 = vmatpush1.bf16.msra.mxu0 %v2499
      %2516 = vmatprep.subr.bf16.mxu0 0
      %2517 = vmatpush1.bf16.msra.mxu0 %v2500
      %2518 = vmatprep.subr.bf16.mxu0 0
      %2519 = vmatpush1.bf16.msra.mxu0 %v2501
      %2520 = vmatprep.subr.bf16.mxu0 0
      %2521 = vmatpush1.bf16.msra.mxu0 0
      %2522 = vmatprep.subr.bf16.mxu0 0
      %2523 = vmatpush1.bf16.msra.mxu0 0
      %2524 = vmatprep.subr.bf16.mxu0 0
      %2525 = vmatpush1.bf16.msra.mxu0 0
      %2526 = vmatprep.subr.bf16.mxu0 0
      %2527 = vmatpush1.bf16.msra.mxu0 0
      %2528 = vmatprep.subr.bf16.mxu0 0
      %2529 = vmatpush1.bf16.msra.mxu0 0
      %2530 = vmatprep.subr.bf16.mxu0 0
      %2531 = vmatpush1.bf16.msra.mxu0 0
      %2532 = vmatprep.subr.bf16.mxu0 0
      %2533 = vmatpush1.bf16.msra.mxu0 0
      %2534 = vmatprep.subr.bf16.mxu0 0
      %2535 = vmatpush1.bf16.msra.mxu0 0
      %2536 = vmatprep.subr.bf16.mxu0 0
      %2537 = vmatpush1.bf16.msra.mxu0 0
      %2538 = vmatprep.subr.bf16.mxu0 0
      %2539 = vmatpush1.bf16.msra.mxu0 0
      %2540 = vmatprep.subr.bf16.mxu0 0
      %2541 = vmatpush1.bf16.msra.mxu0 0
      %2542 = vmatprep.subr.bf16.mxu0 0
      %2543 = vmatpush1.bf16.msra.mxu0 0
      %2544 = vmatprep.mubr.bf16.mxu0 0
      %2545 = vmatmul.mubr.bf16.gmra.mrb[0].mxu0 %v2510
      %v2546 = vpop.f32.mrb[0].mxu0
      %v2547 = vadd.f32 %v2506, %v2546
      %v2548 = vpop.f32.mrb[0].mxu0
      %v2549 = vpop.f32.mrb[0].mxu0
      %v2550 = vadd.f32 %v2506, %v2549
      %v2551 = vpop.f32.mrb[0].mxu0
      %2552 = vdwg.mxu0
      %v2553 = vadd.f32 %v2382, %v2547
      %v2554 = vadd.f32 %v2383, %v2550
      %v2555 = vld [vmem:[%s14] sm:$0x1]
      %v2556 = vld [vmem:[%s15] sm:$0x1]
      %v2557 = vsel %vm542, %v2553, 0.0
      %2558 = vadd.xlane.f32.xlu0 %v2557
      %v2559 = vpop.xlane.xlu0 %2558
      %v2560 = vsel %vm542, %v2554, 0.0
      %2561 = vadd.xlane.f32.xlu0 %v2560
      %v2562 = vpop.xlane.xlu0 %2561
      %v2563 = vmul.f32 %v2559, %v549
      %v2564 = vmul.f32 %v2562, %v549
      %v2565 = vsub.f32 %v2553, %v2563
      %v2566 = vsub.f32 %v2554, %v2564
      %v2567 = vmul.f32 %v2565, %v2565
      %v2568 = vmul.f32 %v2566, %v2566
      %v2569 = vsel %vm542, %v2567, 0.0
      %2570 = vadd.xlane.f32.xlu0 %v2569
      %v2571 = vpop.xlane.xlu0 %2570
      %v2572 = vsel %vm542, %v2568, 0.0
      %2573 = vadd.xlane.f32.xlu0 %v2572
      %v2574 = vpop.xlane.xlu0 %2573
      %v2575 = vmul.f32 %v2571, %v549
      %v2576 = vmul.f32 %v2574, %v549
      %v2577 = vadd.f32 %v2575, 1e-05
      %v2578 = vadd.f32 %v2576, 1e-05
      %v2579 = vrsqrt.pop %v2577
      %v2580 = vrsqrt.pop %v2578
      %v2581 = vmul.f32 %v2565, %v2579
      %v2582 = vmul.f32 %v2566, %v2580
      %v2584 = vlaneseq
      %v2585 = vshrl.u32 %v2584, 7
      %v2586 = vsub.s32 0, %v2585
      %v2587 = vrot.slane %v2555, %v2586
      %v2589 = vmul.f32 %v2581, %v2587
      %v2590 = vmul.f32 %v2582, %v2587
      %v2592 = vlaneseq
      %v2593 = vshrl.u32 %v2592, 7
      %v2594 = vsub.s32 0, %v2593
      %v2595 = vrot.slane %v2556, %v2594
      %v2597 = vadd.f32 %v2589, %v2595
      %v2598 = vadd.f32 %v2590, %v2595
      %2599 = vst.msk [vmem:[%s535] sm:$0xff] %vm542, %v2597
      %2600 = vst.msk [vmem:[%s535 + $0x8] sm:$0xff] %vm542, %v2598
      %p2601 = scmp.lt.s32.totalorder %s27, 1
      %s2602 = scalar_select %p2601, %s27, 1
      %s2603 = smul.addr %s2602, 2
      %s2604 = smul.addr %s2603, 8
      %s2605 = scalar_lea.vmem %s16, %s2604
      // Predicated region
      $region85: #{model_forward.6} parent=83 // pred_check
        %p2606 = pneg %p391
      $region86: #{model_forward.6} parent=83 // pred_check_branch
        %2608 = sbr.rel (%p2606) target = $region88
      $region87: #{model_forward.6} parent=83 // pred_region
        _
      $region88: #{model_forward.6} parent=83 // pred_fallthru
        _
    $region84: #{model_forward.6} parent=5 // pred_fallthru
      _
    %p2609 = scmp.le.s32.totalorder 2, %s22
    // Predicated region
    $region89: #{model_forward.6} parent=5 // pred_check
      %p2610 = pneg %p2609
    $region90: #{model_forward.6} parent=5 // pred_check_branch
      %2612 = sbr.rel (%p2610) target = $region92
    $region91: #{model_forward.6} parent=5 // pred_region
      %s2613 = ssub.s32 %s22, 2
      // Predicated region
      $region93: #{model_forward.6} parent=91 // pred_check
        %p2614 = pneg %p397
      $region94: #{model_forward.6} parent=91 // pred_check_branch
        %2616 = sbr.rel (%p2614) target = $region96
      $region95: #{model_forward.6} parent=91 // pred_region
        %p2617 = scmp.lt.s32.totalorder %s28, 1
        %s2618 = scalar_select %p2617, %s28, 1
        %s2619 = smul.addr %s2618, 2
        %s2620 = smul.addr %s2619, 8
        %s2621 = scalar_lea.vmem %s16, %s2620
      $region96: #{model_forward.6} parent=91 // pred_fallthru
        _
    $region92: #{model_forward.6} parent=5 // pred_fallthru
      _
  $region6: #{model_forward.6} parent=0 // loop_footer
    %s26 = sadd.s32 1, %s22
  $region7: #{model_forward.6} parent=0 // loop_footer_branch
    %21 = sbr.rel target = $region3
  $region8: #{model_forward.6} parent=0 // loop_exit
    _

// kernel: model_forward.7
$region0: #{model_forward.7}
  #allocation0 [shape = 'u32[]', space=smem, size = 0x4, offset = 0x4, fixed_abs, tag = 'smem constant byte address 0x4 - core index']
  #allocation1 [shape = 'u32[144,128]{1,0:T(1,128)}', space=vmem, size = 0x12000, scoped, tag = 'internal scratch']
  %s0 = inlined_call_operand.vmem [shape: f32[2,8,32], index: 0, kind: input, shape index: {}]
  %s1 = inlined_call_operand.vmem [shape: f32[2,16,32], index: 1, kind: input, shape index: {}]
  %s2 = inlined_call_operand.vmem [shape: f32[2,8,8], index: 2, kind: input, shape index: {}]
  %s3 = inlined_call_operand.vmem [shape: f32[2,1,16], index: 3, kind: input, shape index: {}]
  %s4 = inlined_call_operand.vmem [shape: f32[1,32], index: 4, kind: input, shape index: {}]
  %s5 = inlined_call_operand.vmem [shape: f32[1,32], index: 5, kind: input, shape index: {}]
  %s6 = inlined_call_operand.vmem [shape: f32[32,96], index: 6, kind: input, shape index: {}]
  %s7 = inlined_call_operand.vmem [shape: f32[1,96], index: 7, kind: input, shape index: {}]
  %s8 = inlined_call_operand.vmem [shape: f32[32,32], index: 8, kind: input, shape index: {}]
  %s9 = inlined_call_operand.vmem [shape: f32[1,32], index: 9, kind: input, shape index: {}]
  %s10 = inlined_call_operand.vmem [shape: f32[1,32], index: 10, kind: input, shape index: {}]
  %s11 = inlined_call_operand.vmem [shape: f32[1,32], index: 11, kind: input, shape index: {}]
  %s12 = inlined_call_operand.vmem [shape: f32[32,32], index: 12, kind: input, shape index: {}]
  %s13 = inlined_call_operand.vmem [shape: f32[1,32], index: 13, kind: input, shape index: {}]
  %s14 = inlined_call_operand.vmem [shape: f32[32,64], index: 14, kind: input, shape index: {}]
  %s15 = inlined_call_operand.vmem [shape: f32[1,64], index: 15, kind: input, shape index: {}]
  %s16 = inlined_call_operand.vmem [shape: f32[32,32], index: 16, kind: input, shape index: {}]
  %s17 = inlined_call_operand.vmem [shape: f32[1,32], index: 17, kind: input, shape index: {}]
  %s18 = inlined_call_operand.vmem [shape: f32[1,32], index: 18, kind: input, shape index: {}]
  %s19 = inlined_call_operand.vmem [shape: f32[1,32], index: 19, kind: input, shape index: {}]
  %s20 = inlined_call_operand.vmem [shape: f32[32,64], index: 20, kind: input, shape index: {}]
  %s21 = inlined_call_operand.vmem [shape: f32[1,64], index: 21, kind: input, shape index: {}]
  %s22 = inlined_call_operand.vmem [shape: f32[64,32], index: 22, kind: input, shape index: {}]
  %s23 = inlined_call_operand.vmem [shape: f32[1,32], index: 23, kind: input, shape index: {}]
  %s24 = inlined_call_operand.vmem [shape: f32[2,8,32], index: 24, kind: output, shape index: {}]
  %s25 = sld [smem:[#allocation0]]
  $region129: #{model_forward.7} parent=0
    _
  %s27 = ssub.s32 1, %s25
  %s28 = scalar_select 0, %s27, %s25
  loop: start=0, step=1, limit=4
  $region2: #{model_forward.7} parent=0 // loop_pre_header
    _
  $region3: #{model_forward.7} parent=0 // loop_header
    %s30 = sphi 0, %s34
    %p31 = scmp.ge.s32.totalorder %s30, 4
    %s40 = sphi 0, %s42
    %s43 = sphi 0, %s40
    %s44 = sphi 0, %s43
    %s60 = sphi 0, %s44
    %s66 = sphi 0, %s68
    %s69 = sphi 0, %s66
    %s70 = sphi 0, %s69
    %s86 = sphi 0, %s70
    %s92 = sphi 0, %s94
    %s95 = sphi 0, %s92
    %s96 = sphi 0, %s95
    %s112 = sphi 0, %s96
    %s118 = sphi 0, %s120
    %s121 = sphi 0, %s118
    %s122 = sphi 0, %s121
    %s138 = sphi 0, %s122
    %s142 = sphi 0, %s142
    %s144 = sphi 0, %s142
    %s145 = sphi 0, %s144
    %s159 = sphi 0, %s145
    %s163 = sphi 0, %s163
    %s165 = sphi 0, %s163
    %s166 = sphi 0, %s165
    %s180 = sphi 0, %s166
    %s184 = sphi 0, %s184
    %s186 = sphi 0, %s184
    %s187 = sphi 0, %s186
    %s201 = sphi 0, %s187
    %s205 = sphi 0, %s205
    %s207 = sphi 0, %s205
    %s208 = sphi 0, %s207
    %s222 = sphi 0, %s208
    %s226 = sphi 0, %s226
    %s228 = sphi 0, %s226
    %s229 = sphi 0, %s228
    %s243 = sphi 0, %s229
    %s247 = sphi 0, %s247
    %s249 = sphi 0, %s247
    %s250 = sphi 0, %s249
    %s264 = sphi 0, %s250
    %s268 = sphi 0, %s268
    %s270 = sphi 0, %s268
    %s271 = sphi 0, %s270
    %s285 = sphi 0, %s271
    %s289 = sphi 0, %s289
    %s291 = sphi 0, %s289
    %s292 = sphi 0, %s291
    %s306 = sphi 0, %s292
    %s310 = sphi 0, %s310
    %s312 = sphi 0, %s310
    %s313 = sphi 0, %s312
    %s327 = sphi 0, %s313
    %s331 = sphi 0, %s331
    %s333 = sphi 0, %s331
    %s334 = sphi 0, %s333
    %s348 = sphi 0, %s334
    %s352 = sphi 0, %s352
    %s354 = sphi 0, %s352
    %s355 = sphi 0, %s354
    %s369 = sphi 0, %s355
    %s373 = sphi 0, %s373
    %s375 = sphi 0, %s373
    %s376 = sphi 0, %s375
    %s390 = sphi 0, %s376
    %s394 = sphi 0, %s394
    %s396 = sphi 0, %s394
    %s397 = sphi 0, %s396
    %s411 = sphi 0, %s397
    %s415 = sphi 0, %s415
    %s417 = sphi 0, %s415
    %s418 = sphi 0, %s417
    %s432 = sphi 0, %s418
    %s436 = sphi 0, %s436
    %s438 = sphi 0, %s436
    %s439 = sphi 0, %s438
    %s453 = sphi 0, %s439
    %s457 = sphi 0, %s457
    %s459 = sphi 0, %s457
    %s460 = sphi 0, %s459
    %s474 = sphi 0, %s460
    %s478 = sphi 0, %s478
    %s480 = sphi 0, %s478
    %s481 = sphi 0, %s480
    %s495 = sphi 0, %s481
    %s499 = sphi 0, %s499
    %s501 = sphi 0, %s499
    %s502 = sphi 0, %s501
    %s516 = sphi 0, %s502
    %s520 = sphi 0, %s520
    %s522 = sphi 0, %s520
    %s523 = sphi 0, %s522
    %s537 = sphi 0, %s523
    %s541 = sphi 0, %s541
    %s543 = sphi 0, %s541
    %s544 = sphi 0, %s543
    %s558 = sphi 0, %s544
    %s564 = sphi 0, %s566
    %s567 = sphi 0, %s564
    %s568 = sphi 0, %s567
    %s584 = sphi 0, %s568
  $region4: #{model_forward.7} parent=0 // loop_header_branch
    %33 = sbr.rel (%p31) target = $region8
  $region5: #{model_forward.7} parent=0 // loop_body
    %s35 = ssub.s32 %s30, 1
    %s36 = ssub.s32 %s30, 2
    %s37 = sadd.s32 %s30, 1
    %s38 = ssub.s32 %s30, %s37
    %p39 = scmp.eq.s32.totalorder %s38, 0
    %s41 = sadd.s32 %s40, 1
    %s42 = scalar_select %p39, %s40, %s41
    %p45 = pneg %p39
    %p46 = scmp.eq.s32.totalorder %s30, 1
    %p47 = por %p45, %p46
    %p48 = scmp.ne.s32.totalorder %s40, %s43
    %p49 = scmp.eq.s32.totalorder %s30, 0
    %p50 = por %p48, %p49
    %p51 = scmp.ne.s32.totalorder %s40, %s43
    %p52 = scmp.eq.s32.totalorder %s35, 1
    %p53 = por %p51, %p52
    %p54 = scmp.ne.s32.totalorder %s43, %s44
    %p55 = scmp.eq.s32.totalorder %s35, 0
    %p56 = por %p54, %p55
    %p57 = scmp.ne.s32.totalorder %s43, %s44
    %p58 = scmp.eq.s32.totalorder %s36, 1
    %p59 = por %p57, %p58
    %p61 = scmp.ne.s32.totalorder %s44, %s60
    %p62 = scmp.eq.s32.totalorder %s36, 0
    %p63 = por %p61, %p62
    %s64 = ssub.s32 %s30, %s37
    %p65 = scmp.eq.s32.totalorder %s64, 0
    %s67 = sadd.s32 %s66, 1
    %s68 = scalar_select %p65, %s66, %s67
    %p71 = pneg %p65
    %p72 = scmp.eq.s32.totalorder %s30, 1
    %p73 = por %p71, %p72
    %p74 = scmp.ne.s32.totalorder %s66, %s69
    %p75 = scmp.eq.s32.totalorder %s30, 0
    %p76 = por %p74, %p75
    %p77 = scmp.ne.s32.totalorder %s66, %s69
    %p78 = scmp.eq.s32.totalorder %s35, 1
    %p79 = por %p77, %p78
    %p80 = scmp.ne.s32.totalorder %s69, %s70
    %p81 = scmp.eq.s32.totalorder %s35, 0
    %p82 = por %p80, %p81
    %p83 = scmp.ne.s32.totalorder %s69, %s70
    %p84 = scmp.eq.s32.totalorder %s36, 1
    %p85 = por %p83, %p84
    %p87 = scmp.ne.s32.totalorder %s70, %s86
    %p88 = scmp.eq.s32.totalorder %s36, 0
    %p89 = por %p87, %p88
    %s90 = ssub.s32 %s30, %s37
    %p91 = scmp.eq.s32.totalorder %s90, 0
    %s93 = sadd.s32 %s92, 1
    %s94 = scalar_select %p91, %s92, %s93
    %p97 = pneg %p91
    %p98 = scmp.eq.s32.totalorder %s30, 1
    %p99 = por %p97, %p98
    %p100 = scmp.ne.s32.totalorder %s92, %s95
    %p101 = scmp.eq.s32.totalorder %s30, 0
    %p102 = por %p100, %p101
    %p103 = scmp.ne.s32.totalorder %s92, %s95
    %p104 = scmp.eq.s32.totalorder %s35, 1
    %p105 = por %p103, %p104
    %p106 = scmp.ne.s32.totalorder %s95, %s96
    %p107 = scmp.eq.s32.totalorder %s35, 0
    %p108 = por %p106, %p107
    %p109 = scmp.ne.s32.totalorder %s95, %s96
    %p110 = scmp.eq.s32.totalorder %s36, 1
    %p111 = por %p109, %p110
    %p113 = scmp.ne.s32.totalorder %s96, %s112
    %p114 = scmp.eq.s32.totalorder %s36, 0
    %p115 = por %p113, %p114
    %s116 = ssub.s32 %s30, %s37
    %p117 = scmp.eq.s32.totalorder %s116, 0
    %s119 = sadd.s32 %s118, 1
    %s120 = scalar_select %p117, %s118, %s119
    %p123 = pneg %p117
    %p124 = scmp.eq.s32.totalorder %s30, 1
    %p125 = por %p123, %p124
    %p126 = scmp.ne.s32.totalorder %s118, %s121
    %p127 = scmp.eq.s32.totalorder %s30, 0
    %p128 = por %p126, %p127
    %p129 = scmp.ne.s32.totalorder %s118, %s121
    %p130 = scmp.eq.s32.totalorder %s35, 1
    %p131 = por %p129, %p130
    %p132 = scmp.ne.s32.totalorder %s121, %s122
    %p133 = scmp.eq.s32.totalorder %s35, 0
    %p134 = por %p132, %p133
    %p135 = scmp.ne.s32.totalorder %s121, %s122
    %p136 = scmp.eq.s32.totalorder %s36, 1
    %p137 = por %p135, %p136
    %p139 = scmp.ne.s32.totalorder %s122, %s138
    %p140 = scmp.eq.s32.totalorder %s36, 0
    %p141 = por %p139, %p140
    %s143 = sadd.s32 %s142, 1
    %p146 = scmp.eq.s32.totalorder %s30, 1
    %p147 = scmp.ne.s32.totalorder %s142, %s144
    %p148 = scmp.eq.s32.totalorder %s30, 0
    %p149 = por %p147, %p148
    %p150 = scmp.ne.s32.totalorder %s142, %s144
    %p151 = scmp.eq.s32.totalorder %s35, 1
    %p152 = por %p150, %p151
    %p153 = scmp.ne.s32.totalorder %s144, %s145
    %p154 = scmp.eq.s32.totalorder %s35, 0
    %p155 = por %p153, %p154
    %p156 = scmp.ne.s32.totalorder %s144, %s145
    %p157 = scmp.eq.s32.totalorder %s36, 1
    %p158 = por %p156, %p157
    %p160 = scmp.ne.s32.totalorder %s145, %s159
    %p161 = scmp.eq.s32.totalorder %s36, 0
    %p162 = por %p160, %p161
    %s164 = sadd.s32 %s163, 1
    %p167 = scmp.eq.s32.totalorder %s30, 1
    %p168 = scmp.ne.s32.totalorder %s163, %s165
    %p169 = scmp.eq.s32.totalorder %s30, 0
    %p170 = por %p168, %p169
    %p171 = scmp.ne.s32.totalorder %s163, %s165
    %p172 = scmp.eq.s32.totalorder %s35, 1
    %p173 = por %p171, %p172
    %p174 = scmp.ne.s32.totalorder %s165, %s166
    %p175 = scmp.eq.s32.totalorder %s35, 0
    %p176 = por %p174, %p175
    %p177 = scmp.ne.s32.totalorder %s165, %s166
    %p178 = scmp.eq.s32.totalorder %s36, 1
    %p179 = por %p177, %p178
    %p181 = scmp.ne.s32.totalorder %s166, %s180
    %p182 = scmp.eq.s32.totalorder %s36, 0
    %p183 = por %p181, %p182
    %s185 = sadd.s32 %s184, 1
    %p188 = scmp.eq.s32.totalorder %s30, 1
    %p189 = scmp.ne.s32.totalorder %s184, %s186
    %p190 = scmp.eq.s32.totalorder %s30, 0
    %p191 = por %p189, %p190
    %p192 = scmp.ne.s32.totalorder %s184, %s186
    %p193 = scmp.eq.s32.totalorder %s35, 1
    %p194 = por %p192, %p193
    %p195 = scmp.ne.s32.totalorder %s186, %s187
    %p196 = scmp.eq.s32.totalorder %s35, 0
    %p197 = por %p195, %p196
    %p198 = scmp.ne.s32.totalorder %s186, %s187
    %p199 = scmp.eq.s32.totalorder %s36, 1
    %p200 = por %p198, %p199
    %p202 = scmp.ne.s32.totalorder %s187, %s201
    %p203 = scmp.eq.s32.totalorder %s36, 0
    %p204 = por %p202, %p203
    %s206 = sadd.s32 %s205, 1
    %p209 = scmp.eq.s32.totalorder %s30, 1
    %p210 = scmp.ne.s32.totalorder %s205, %s207
    %p211 = scmp.eq.s32.totalorder %s30, 0
    %p212 = por %p210, %p211
    %p213 = scmp.ne.s32.totalorder %s205, %s207
    %p214 = scmp.eq.s32.totalorder %s35, 1
    %p215 = por %p213, %p214
    %p216 = scmp.ne.s32.totalorder %s207, %s208
    %p217 = scmp.eq.s32.totalorder %s35, 0
    %p218 = por %p216, %p217
    %p219 = scmp.ne.s32.totalorder %s207, %s208
    %p220 = scmp.eq.s32.totalorder %s36, 1
    %p221 = por %p219, %p220
    %p223 = scmp.ne.s32.totalorder %s208, %s222
    %p224 = scmp.eq.s32.totalorder %s36, 0
    %p225 = por %p223, %p224
    %s227 = sadd.s32 %s226, 1
    %p230 = scmp.eq.s32.totalorder %s30, 1
    %p231 = scmp.ne.s32.totalorder %s226, %s228
    %p232 = scmp.eq.s32.totalorder %s30, 0
    %p233 = por %p231, %p232
    %p234 = scmp.ne.s32.totalorder %s226, %s228
    %p235 = scmp.eq.s32.totalorder %s35, 1
    %p236 = por %p234, %p235
    %p237 = scmp.ne.s32.totalorder %s228, %s229
    %p238 = scmp.eq.s32.totalorder %s35, 0
    %p239 = por %p237, %p238
    %p240 = scmp.ne.s32.totalorder %s228, %s229
    %p241 = scmp.eq.s32.totalorder %s36, 1
    %p242 = por %p240, %p241
    %p244 = scmp.ne.s32.totalorder %s229, %s243
    %p245 = scmp.eq.s32.totalorder %s36, 0
    %p246 = por %p244, %p245
    %s248 = sadd.s32 %s247, 1
    %p251 = scmp.eq.s32.totalorder %s30, 1
    %p252 = scmp.ne.s32.totalorder %s247, %s249
    %p253 = scmp.eq.s32.totalorder %s30, 0
    %p254 = por %p252, %p253
    %p255 = scmp.ne.s32.totalorder %s247, %s249
    %p256 = scmp.eq.s32.totalorder %s35, 1
    %p257 = por %p255, %p256
    %p258 = scmp.ne.s32.totalorder %s249, %s250
    %p259 = scmp.eq.s32.totalorder %s35, 0
    %p260 = por %p258, %p259
    %p261 = scmp.ne.s32.totalorder %s249, %s250
    %p262 = scmp.eq.s32.totalorder %s36, 1
    %p263 = por %p261, %p262
    %p265 = scmp.ne.s32.totalorder %s250, %s264
    %p266 = scmp.eq.s32.totalorder %s36, 0
    %p267 = por %p265, %p266
    %s269 = sadd.s32 %s268, 1
    %p272 = scmp.eq.s32.totalorder %s30, 1
    %p273 = scmp.ne.s32.totalorder %s268, %s270
    %p274 = scmp.eq.s32.totalorder %s30, 0
    %p275 = por %p273, %p274
    %p276 = scmp.ne.s32.totalorder %s268, %s270
    %p277 = scmp.eq.s32.totalorder %s35, 1
    %p278 = por %p276, %p277
    %p279 = scmp.ne.s32.totalorder %s270, %s271
    %p280 = scmp.eq.s32.totalorder %s35, 0
    %p281 = por %p279, %p280
    %p282 = scmp.ne.s32.totalorder %s270, %s271
    %p283 = scmp.eq.s32.totalorder %s36, 1
    %p284 = por %p282, %p283
    %p286 = scmp.ne.s32.totalorder %s271, %s285
    %p287 = scmp.eq.s32.totalorder %s36, 0
    %p288 = por %p286, %p287
    %s290 = sadd.s32 %s289, 1
    %p293 = scmp.eq.s32.totalorder %s30, 1
    %p294 = scmp.ne.s32.totalorder %s289, %s291
    %p295 = scmp.eq.s32.totalorder %s30, 0
    %p296 = por %p294, %p295
    %p297 = scmp.ne.s32.totalorder %s289, %s291
    %p298 = scmp.eq.s32.totalorder %s35, 1
    %p299 = por %p297, %p298
    %p300 = scmp.ne.s32.totalorder %s291, %s292
    %p301 = scmp.eq.s32.totalorder %s35, 0
    %p302 = por %p300, %p301
    %p303 = scmp.ne.s32.totalorder %s291, %s292
    %p304 = scmp.eq.s32.totalorder %s36, 1
    %p305 = por %p303, %p304
    %p307 = scmp.ne.s32.totalorder %s292, %s306
    %p308 = scmp.eq.s32.totalorder %s36, 0
    %p309 = por %p307, %p308
    %s311 = sadd.s32 %s310, 1
    %p314 = scmp.eq.s32.totalorder %s30, 1
    %p315 = scmp.ne.s32.totalorder %s310, %s312
    %p316 = scmp.eq.s32.totalorder %s30, 0
    %p317 = por %p315, %p316
    %p318 = scmp.ne.s32.totalorder %s310, %s312
    %p319 = scmp.eq.s32.totalorder %s35, 1
    %p320 = por %p318, %p319
    %p321 = scmp.ne.s32.totalorder %s312, %s313
    %p322 = scmp.eq.s32.totalorder %s35, 0
    %p323 = por %p321, %p322
    %p324 = scmp.ne.s32.totalorder %s312, %s313
    %p325 = scmp.eq.s32.totalorder %s36, 1
    %p326 = por %p324, %p325
    %p328 = scmp.ne.s32.totalorder %s313, %s327
    %p329 = scmp.eq.s32.totalorder %s36, 0
    %p330 = por %p328, %p329
    %s332 = sadd.s32 %s331, 1
    %p335 = scmp.eq.s32.totalorder %s30, 1
    %p336 = scmp.ne.s32.totalorder %s331, %s333
    %p337 = scmp.eq.s32.totalorder %s30, 0
    %p338 = por %p336, %p337
    %p339 = scmp.ne.s32.totalorder %s331, %s333
    %p340 = scmp.eq.s32.totalorder %s35, 1
    %p341 = por %p339, %p340
    %p342 = scmp.ne.s32.totalorder %s333, %s334
    %p343 = scmp.eq.s32.totalorder %s35, 0
    %p344 = por %p342, %p343
    %p345 = scmp.ne.s32.totalorder %s333, %s334
    %p346 = scmp.eq.s32.totalorder %s36, 1
    %p347 = por %p345, %p346
    %p349 = scmp.ne.s32.totalorder %s334, %s348
    %p350 = scmp.eq.s32.totalorder %s36, 0
    %p351 = por %p349, %p350
    %s353 = sadd.s32 %s352, 1
    %p356 = scmp.eq.s32.totalorder %s30, 1
    %p357 = scmp.ne.s32.totalorder %s352, %s354
    %p358 = scmp.eq.s32.totalorder %s30, 0
    %p359 = por %p357, %p358
    %p360 = scmp.ne.s32.totalorder %s352, %s354
    %p361 = scmp.eq.s32.totalorder %s35, 1
    %p362 = por %p360, %p361
    %p363 = scmp.ne.s32.totalorder %s354, %s355
    %p364 = scmp.eq.s32.totalorder %s35, 0
    %p365 = por %p363, %p364
    %p366 = scmp.ne.s32.totalorder %s354, %s355
    %p367 = scmp.eq.s32.totalorder %s36, 1
    %p368 = por %p366, %p367
    %p370 = scmp.ne.s32.totalorder %s355, %s369
    %p371 = scmp.eq.s32.totalorder %s36, 0
    %p372 = por %p370, %p371
    %s374 = sadd.s32 %s373, 1
    %p377 = scmp.eq.s32.totalorder %s30, 1
    %p378 = scmp.ne.s32.totalorder %s373, %s375
    %p379 = scmp.eq.s32.totalorder %s30, 0
    %p380 = por %p378, %p379
    %p381 = scmp.ne.s32.totalorder %s373, %s375
    %p382 = scmp.eq.s32.totalorder %s35, 1
    %p383 = por %p381, %p382
    %p384 = scmp.ne.s32.totalorder %s375, %s376
    %p385 = scmp.eq.s32.totalorder %s35, 0
    %p386 = por %p384, %p385
    %p387 = scmp.ne.s32.totalorder %s375, %s376
    %p388 = scmp.eq.s32.totalorder %s36, 1
    %p389 = por %p387, %p388
    %p391 = scmp.ne.s32.totalorder %s376, %s390
    %p392 = scmp.eq.s32.totalorder %s36, 0
    %p393 = por %p391, %p392
    %s395 = sadd.s32 %s394, 1
    %p398 = scmp.eq.s32.totalorder %s30, 1
    %p399 = scmp.ne.s32.totalorder %s394, %s396
    %p400 = scmp.eq.s32.totalorder %s30, 0
    %p401 = por %p399, %p400
    %p402 = scmp.ne.s32.totalorder %s394, %s396
    %p403 = scmp.eq.s32.totalorder %s35, 1
    %p404 = por %p402, %p403
    %p405 = scmp.ne.s32.totalorder %s396, %s397
    %p406 = scmp.eq.s32.totalorder %s35, 0
    %p407 = por %p405, %p406
    %p408 = scmp.ne.s32.totalorder %s396, %s397
    %p409 = scmp.eq.s32.totalorder %s36, 1
    %p410 = por %p408, %p409
    %p412 = scmp.ne.s32.totalorder %s397, %s411
    %p413 = scmp.eq.s32.totalorder %s36, 0
    %p414 = por %p412, %p413
    %s416 = sadd.s32 %s415, 1
    %p419 = scmp.eq.s32.totalorder %s30, 1
    %p420 = scmp.ne.s32.totalorder %s415, %s417
    %p421 = scmp.eq.s32.totalorder %s30, 0
    %p422 = por %p420, %p421
    %p423 = scmp.ne.s32.totalorder %s415, %s417
    %p424 = scmp.eq.s32.totalorder %s35, 1
    %p425 = por %p423, %p424
    %p426 = scmp.ne.s32.totalorder %s417, %s418
    %p427 = scmp.eq.s32.totalorder %s35, 0
    %p428 = por %p426, %p427
    %p429 = scmp.ne.s32.totalorder %s417, %s418
    %p430 = scmp.eq.s32.totalorder %s36, 1
    %p431 = por %p429, %p430
    %p433 = scmp.ne.s32.totalorder %s418, %s432
    %p434 = scmp.eq.s32.totalorder %s36, 0
    %p435 = por %p433, %p434
    %s437 = sadd.s32 %s436, 1
    %p440 = scmp.eq.s32.totalorder %s30, 1
    %p441 = scmp.ne.s32.totalorder %s436, %s438
    %p442 = scmp.eq.s32.totalorder %s30, 0
    %p443 = por %p441, %p442
    %p444 = scmp.ne.s32.totalorder %s436, %s438
    %p445 = scmp.eq.s32.totalorder %s35, 1
    %p446 = por %p444, %p445
    %p447 = scmp.ne.s32.totalorder %s438, %s439
    %p448 = scmp.eq.s32.totalorder %s35, 0
    %p449 = por %p447, %p448
    %p450 = scmp.ne.s32.totalorder %s438, %s439
    %p451 = scmp.eq.s32.totalorder %s36, 1
    %p452 = por %p450, %p451
    %p454 = scmp.ne.s32.totalorder %s439, %s453
    %p455 = scmp.eq.s32.totalorder %s36, 0
    %p456 = por %p454, %p455
    %s458 = sadd.s32 %s457, 1
    %p461 = scmp.eq.s32.totalorder %s30, 1
    %p462 = scmp.ne.s32.totalorder %s457, %s459
    %p463 = scmp.eq.s32.totalorder %s30, 0
    %p464 = por %p462, %p463
    %p465 = scmp.ne.s32.totalorder %s457, %s459
    %p466 = scmp.eq.s32.totalorder %s35, 1
    %p467 = por %p465, %p466
    %p468 = scmp.ne.s32.totalorder %s459, %s460
    %p469 = scmp.eq.s32.totalorder %s35, 0
    %p470 = por %p468, %p469
    %p471 = scmp.ne.s32.totalorder %s459, %s460
    %p472 = scmp.eq.s32.totalorder %s36, 1
    %p473 = por %p471, %p472
    %p475 = scmp.ne.s32.totalorder %s460, %s474
    %p476 = scmp.eq.s32.totalorder %s36, 0
    %p477 = por %p475, %p476
    %s479 = sadd.s32 %s478, 1
    %p482 = scmp.eq.s32.totalorder %s30, 1
    %p483 = scmp.ne.s32.totalorder %s478, %s480
    %p484 = scmp.eq.s32.totalorder %s30, 0
    %p485 = por %p483, %p484
    %p486 = scmp.ne.s32.totalorder %s478, %s480
    %p487 = scmp.eq.s32.totalorder %s35, 1
    %p488 = por %p486, %p487
    %p489 = scmp.ne.s32.totalorder %s480, %s481
    %p490 = scmp.eq.s32.totalorder %s35, 0
    %p491 = por %p489, %p490
    %p492 = scmp.ne.s32.totalorder %s480, %s481
    %p493 = scmp.eq.s32.totalorder %s36, 1
    %p494 = por %p492, %p493
    %p496 = scmp.ne.s32.totalorder %s481, %s495
    %p497 = scmp.eq.s32.totalorder %s36, 0
    %p498 = por %p496, %p497
    %s500 = sadd.s32 %s499, 1
    %p503 = scmp.eq.s32.totalorder %s30, 1
    %p504 = scmp.ne.s32.totalorder %s499, %s501
    %p505 = scmp.eq.s32.totalorder %s30, 0
    %p506 = por %p504, %p505
    %p507 = scmp.ne.s32.totalorder %s499, %s501
    %p508 = scmp.eq.s32.totalorder %s35, 1
    %p509 = por %p507, %p508
    %p510 = scmp.ne.s32.totalorder %s501, %s502
    %p511 = scmp.eq.s32.totalorder %s35, 0
    %p512 = por %p510, %p511
    %p513 = scmp.ne.s32.totalorder %s501, %s502
    %p514 = scmp.eq.s32.totalorder %s36, 1
    %p515 = por %p513, %p514
    %p517 = scmp.ne.s32.totalorder %s502, %s516
    %p518 = scmp.eq.s32.totalorder %s36, 0
    %p519 = por %p517, %p518
    %s521 = sadd.s32 %s520, 1
    %p524 = scmp.eq.s32.totalorder %s30, 1
    %p525 = scmp.ne.s32.totalorder %s520, %s522
    %p526 = scmp.eq.s32.totalorder %s30, 0
    %p527 = por %p525, %p526
    %p528 = scmp.ne.s32.totalorder %s520, %s522
    %p529 = scmp.eq.s32.totalorder %s35, 1
    %p530 = por %p528, %p529
    %p531 = scmp.ne.s32.totalorder %s522, %s523
    %p532 = scmp.eq.s32.totalorder %s35, 0
    %p533 = por %p531, %p532
    %p534 = scmp.ne.s32.totalorder %s522, %s523
    %p535 = scmp.eq.s32.totalorder %s36, 1
    %p536 = por %p534, %p535
    %p538 = scmp.ne.s32.totalorder %s523, %s537
    %p539 = scmp.eq.s32.totalorder %s36, 0
    %p540 = por %p538, %p539
    %s542 = sadd.s32 %s541, 1
    %p545 = scmp.eq.s32.totalorder %s30, 1
    %p546 = scmp.ne.s32.totalorder %s541, %s543
    %p547 = scmp.eq.s32.totalorder %s30, 0
    %p548 = por %p546, %p547
    %p549 = scmp.ne.s32.totalorder %s541, %s543
    %p550 = scmp.eq.s32.totalorder %s35, 1
    %p551 = por %p549, %p550
    %p552 = scmp.ne.s32.totalorder %s543, %s544
    %p553 = scmp.eq.s32.totalorder %s35, 0
    %p554 = por %p552, %p553
    %p555 = scmp.ne.s32.totalorder %s543, %s544
    %p556 = scmp.eq.s32.totalorder %s36, 1
    %p557 = por %p555, %p556
    %p559 = scmp.ne.s32.totalorder %s544, %s558
    %p560 = scmp.eq.s32.totalorder %s36, 0
    %p561 = por %p559, %p560
    %s562 = ssub.s32 %s30, %s37
    %p563 = scmp.eq.s32.totalorder %s562, 0
    %s565 = sadd.s32 %s564, 1
    %s566 = scalar_select %p563, %s564, %s565
    %p569 = pneg %p563
    %p570 = scmp.eq.s32.totalorder %s30, 1
    %p571 = por %p569, %p570
    %p572 = scmp.ne.s32.totalorder %s564, %s567
    %p573 = scmp.eq.s32.totalorder %s30, 0
    %p574 = por %p572, %p573
    %p575 = scmp.ne.s32.totalorder %s564, %s567
    %p576 = scmp.eq.s32.totalorder %s35, 1
    %p577 = por %p575, %p576
    %p578 = scmp.ne.s32.totalorder %s567, %s568
    %p579 = scmp.eq.s32.totalorder %s35, 0
    %p580 = por %p578, %p579
    %p581 = scmp.ne.s32.totalorder %s567, %s568
    %p582 = scmp.eq.s32.totalorder %s36, 1
    %p583 = por %p581, %p582
    %p585 = scmp.ne.s32.totalorder %s568, %s584
    %p586 = scmp.eq.s32.totalorder %s36, 0
    %p587 = por %p585, %p586
    %p588 = scmp.le.s32.totalorder 1, %s30
    %p589 = scmp.lt.s32.totalorder %s30, 3
    %p590 = pnand %p588, %p589
    %p591 = pneg %p590
    // Predicated region
    $region9: #{model_forward.7} parent=5 // pred_check
      _
    $region10: #{model_forward.7} parent=5 // pred_check_branch
      %593 = sbr.rel (%p590) target = $region12
    $region11: #{model_forward.7} parent=5 // pred_region
      %s594 = ssub.s32 %s30, 1
      // Predicated region
      $region13: #{model_forward.7} parent=11 // pred_check
        %p595 = pneg %p155
      $region14: #{model_forward.7} parent=11 // pred_check_branch
        %597 = sbr.rel (%p595) target = $region16
      $region15: #{model_forward.7} parent=11 // pred_region
        _
      $region16: #{model_forward.7} parent=11 // pred_fallthru
        _
      // Predicated region
      $region17: #{model_forward.7} parent=11 // pred_check
        %p598 = pneg %p176
      $region18: #{model_forward.7} parent=11 // pred_check_branch
        %600 = sbr.rel (%p598) target = $region20
      $region19: #{model_forward.7} parent=11 // pred_region
        _
      $region20: #{model_forward.7} parent=11 // pred_fallthru
        _
      // Predicated region
      $region21: #{model_forward.7} parent=11 // pred_check
        %p601 = pneg %p197
      $region22: #{model_forward.7} parent=11 // pred_check_branch
        %603 = sbr.rel (%p601) target = $region24
      $region23: #{model_forward.7} parent=11 // pred_region
        _
      $region24: #{model_forward.7} parent=11 // pred_fallthru
        _
      // Predicated region
      $region25: #{model_forward.7} parent=11 // pred_check
        %p604 = pneg %p218
      $region26: #{model_forward.7} parent=11 // pred_check_branch
        %606 = sbr.rel (%p604) target = $region28
      $region27: #{model_forward.7} parent=11 // pred_region
        _
      $region28: #{model_forward.7} parent=11 // pred_fallthru
        _
      // Predicated region
      $region29: #{model_forward.7} parent=11 // pred_check
        %p607 = pneg %p239
      $region30: #{model_forward.7} parent=11 // pred_check_branch
        %609 = sbr.rel (%p607) target = $region32
      $region31: #{model_forward.7} parent=11 // pred_region
        _
      $region32: #{model_forward.7} parent=11 // pred_fallthru
        _
      // Predicated region
      $region33: #{model_forward.7} parent=11 // pred_check
        %p610 = pneg %p260
      $region34: #{model_forward.7} parent=11 // pred_check_branch
        %612 = sbr.rel (%p610) target = $region36
      $region35: #{model_forward.7} parent=11 // pred_region
        _
      $region36: #{model_forward.7} parent=11 // pred_fallthru
        _
      // Predicated region
      $region37: #{model_forward.7} parent=11 // pred_check
        %p613 = pneg %p281
      $region38: #{model_forward.7} parent=11 // pred_check_branch
        %615 = sbr.rel (%p613) target = $region40
      $region39: #{model_forward.7} parent=11 // pred_region
        _
      $region40: #{model_forward.7} parent=11 // pred_fallthru
        _
      // Predicated region
      $region41: #{model_forward.7} parent=11 // pred_check
        %p616 = pneg %p302
      $region42: #{model_forward.7} parent=11 // pred_check_branch
        %618 = sbr.rel (%p616) target = $region44
      $region43: #{model_forward.7} parent=11 // pred_region
        _
      $region44: #{model_forward.7} parent=11 // pred_fallthru
        _
      // Predicated region
      $region45: #{model_forward.7} parent=11 // pred_check
        %p619 = pneg %p323
      $region46: #{model_forward.7} parent=11 // pred_check_branch
        %621 = sbr.rel (%p619) target = $region48
      $region47: #{model_forward.7} parent=11 // pred_region
        _
      $region48: #{model_forward.7} parent=11 // pred_fallthru
        _
      // Predicated region
      $region49: #{model_forward.7} parent=11 // pred_check
        %p622 = pneg %p344
      $region50: #{model_forward.7} parent=11 // pred_check_branch
        %624 = sbr.rel (%p622) target = $region52
      $region51: #{model_forward.7} parent=11 // pred_region
        _
      $region52: #{model_forward.7} parent=11 // pred_fallthru
        _
      // Predicated region
      $region53: #{model_forward.7} parent=11 // pred_check
        %p625 = pneg %p365
      $region54: #{model_forward.7} parent=11 // pred_check_branch
        %627 = sbr.rel (%p625) target = $region56
      $region55: #{model_forward.7} parent=11 // pred_region
        _
      $region56: #{model_forward.7} parent=11 // pred_fallthru
        _
      // Predicated region
      $region57: #{model_forward.7} parent=11 // pred_check
        %p628 = pneg %p386
      $region58: #{model_forward.7} parent=11 // pred_check_branch
        %630 = sbr.rel (%p628) target = $region60
      $region59: #{model_forward.7} parent=11 // pred_region
        _
      $region60: #{model_forward.7} parent=11 // pred_fallthru
        _
      // Predicated region
      $region61: #{model_forward.7} parent=11 // pred_check
        %p631 = pneg %p407
      $region62: #{model_forward.7} parent=11 // pred_check_branch
        %633 = sbr.rel (%p631) target = $region64
      $region63: #{model_forward.7} parent=11 // pred_region
        _
      $region64: #{model_forward.7} parent=11 // pred_fallthru
        _
      // Predicated region
      $region65: #{model_forward.7} parent=11 // pred_check
        %p634 = pneg %p428
      $region66: #{model_forward.7} parent=11 // pred_check_branch
        %636 = sbr.rel (%p634) target = $region68
      $region67: #{model_forward.7} parent=11 // pred_region
        _
      $region68: #{model_forward.7} parent=11 // pred_fallthru
        _
      // Predicated region
      $region69: #{model_forward.7} parent=11 // pred_check
        %p637 = pneg %p449
      $region70: #{model_forward.7} parent=11 // pred_check_branch
        %639 = sbr.rel (%p637) target = $region72
      $region71: #{model_forward.7} parent=11 // pred_region
        _
      $region72: #{model_forward.7} parent=11 // pred_fallthru
        _
      // Predicated region
      $region73: #{model_forward.7} parent=11 // pred_check
        %p640 = pneg %p470
      $region74: #{model_forward.7} parent=11 // pred_check_branch
        %642 = sbr.rel (%p640) target = $region76
      $region75: #{model_forward.7} parent=11 // pred_region
        _
      $region76: #{model_forward.7} parent=11 // pred_fallthru
        _
      // Predicated region
      $region77: #{model_forward.7} parent=11 // pred_check
        %p643 = pneg %p491
      $region78: #{model_forward.7} parent=11 // pred_check_branch
        %645 = sbr.rel (%p643) target = $region80
      $region79: #{model_forward.7} parent=11 // pred_region
        _
      $region80: #{model_forward.7} parent=11 // pred_fallthru
        _
      // Predicated region
      $region81: #{model_forward.7} parent=11 // pred_check
        %p646 = pneg %p512
      $region82: #{model_forward.7} parent=11 // pred_check_branch
        %648 = sbr.rel (%p646) target = $region84
      $region83: #{model_forward.7} parent=11 // pred_region
        _
      $region84: #{model_forward.7} parent=11 // pred_fallthru
        _
      // Predicated region
      $region85: #{model_forward.7} parent=11 // pred_check
        %p649 = pneg %p533
      $region86: #{model_forward.7} parent=11 // pred_check_branch
        %651 = sbr.rel (%p649) target = $region88
      $region87: #{model_forward.7} parent=11 // pred_region
        _
      $region88: #{model_forward.7} parent=11 // pred_fallthru
        _
      // Predicated region
      $region89: #{model_forward.7} parent=11 // pred_check
        %p652 = pneg %p554
      $region90: #{model_forward.7} parent=11 // pred_check_branch
        %654 = sbr.rel (%p652) target = $region92
      $region91: #{model_forward.7} parent=11 // pred_region
        _
      $region92: #{model_forward.7} parent=11 // pred_fallthru
        _
    $region12: #{model_forward.7} parent=5 // pred_fallthru
      _
    %p655 = scmp.lt.s32.totalorder %s30, 2
    // Predicated region
    $region93: #{model_forward.7} parent=5 // pred_check
      %p656 = pneg %p655
    $region94: #{model_forward.7} parent=5 // pred_check_branch
      %658 = sbr.rel (%p656) target = $region96
    $region95: #{model_forward.7} parent=5 // pred_region
      // Predicated region
      $region97: #{model_forward.7} parent=95 // pred_check
        %p659 = pneg %p50
      $region98: #{model_forward.7} parent=95 // pred_check_branch
        %661 = sbr.rel (%p659) target = $region100
      $region99: #{model_forward.7} parent=95 // pred_region
        %p662 = scmp.lt.s32.totalorder %s30, 1
        %s663 = scalar_select %p662, %s30, 1
        %s664 = smul.addr %s663, 8
        %s665 = scalar_lea.vmem %s0, %s664
      $region100: #{model_forward.7} parent=95 // pred_fallthru
        _
      // Predicated region
      $region101: #{model_forward.7} parent=95 // pred_check
        %p666 = pneg %p76
      $region102: #{model_forward.7} parent=95 // pred_check_branch
        %668 = sbr.rel (%p666) target = $region104
      $region103: #{model_forward.7} parent=95 // pred_region
        %p669 = scmp.lt.s32.totalorder %s30, 1
        %s670 = scalar_select %p669, %s30, 1
        %s671 = smul.addr %s670, 2
        %s672 = smul.addr %s671, 8
        %s673 = scalar_lea.vmem %s1, %s672
      $region104: #{model_forward.7} parent=95 // pred_fallthru
        _
      // Predicated region
      $region105: #{model_forward.7} parent=95 // pred_check
        %p674 = pneg %p102
      $region106: #{model_forward.7} parent=95 // pred_check_branch
        %676 = sbr.rel (%p674) target = $region108
      $region107: #{model_forward.7} parent=95 // pred_region
        %p677 = scmp.lt.s32.totalorder %s30, 1
        %s678 = scalar_select %p677, %s30, 1
        %s679 = smul.addr %s678, 8
        %s680 = scalar_lea.vmem %s2, %s679
      $region108: #{model_forward.7} parent=95 // pred_fallthru
        _
      // Predicated region
      $region109: #{model_forward.7} parent=95 // pred_check
        %p681 = pneg %p128
      $region110: #{model_forward.7} parent=95 // pred_check_branch
        %683 = sbr.rel (%p681) target = $region112
      $region111: #{model_forward.7} parent=95 // pred_region
        %p684 = scmp.lt.s32.totalorder %s30, 1
        %s685 = scalar_select %p684, %s30, 1
        %s686 = scalar_lea.vmem %s3, %s685
      $region112: #{model_forward.7} parent=95 // pred_fallthru
        _
    $region96: #{model_forward.7} parent=5 // pred_fallthru
      _
    %p687 = scmp.le.s32.totalorder 1, %s30
    %p688 = scmp.lt.s32.totalorder %s30, 3
    %p689 = pnand %p687, %p688
    %p690 = pneg %p689
    // Predicated region
    $region113: #{model_forward.7} parent=5 // pred_check
      _
    $region114: #{model_forward.7} parent=5 // pred_check_branch
      %692 = sbr.rel (%p689) target = $region116
    $region115: #{model_forward.7} parent=5 // pred_region
      %s693 = ssub.s32 %s30, 1
      %p694 = scmp.lt.s32.totalorder %s35, 1
      %s695 = scalar_select %p694, %s35, 1
      %s696 = smul.addr %s695, 8
      %s697 = scalar_lea.vmem %s0, %s696
      %p698 = pneg %p56
      %p699 = pneg %p53
      %p700 = scmp.lt.s32.totalorder %s35, 1
      %s701 = scalar_select %p700, %s35, 1
      %s702 = smul.addr %s701, 2
      %s703 = smul.addr %s702, 8
      %s704 = scalar_lea.vmem %s1, %s703
      %p705 = pneg %p82
      %p706 = pneg %p79
      %p707 = scmp.lt.s32.totalorder %s35, 1
      %s708 = scalar_select %p707, %s35, 1
      %s709 = smul.addr %s708, 8
      %s710 = scalar_lea.vmem %s2, %s709
      %p711 = pneg %p108
      %p712 = pneg %p105
      %p713 = scmp.lt.s32.totalorder %s35, 1
      %s714 = scalar_select %p713, %s35, 1
      %s715 = scalar_lea.vmem %s3, %s714
      %p716 = pneg %p134
      %p717 = pneg %p131
      %p718 = pneg %p155
      %p719 = pneg %p152
      %p720 = pneg %p176
      %p721 = pneg %p173
      %p722 = pneg %p197
      %p723 = pneg %p194
      %p724 = pneg %p218
      %p725 = pneg %p215
      %p726 = pneg %p239
      %p727 = pneg %p236
      %p728 = pneg %p260
      %p729 = pneg %p257
      %p730 = pneg %p281
      %p731 = pneg %p278
      %p732 = pneg %p302
      %p733 = pneg %p299
      %p734 = pneg %p323
      %p735 = pneg %p320
      %p736 = pneg %p344
      %p737 = pneg %p341
      %p738 = pneg %p365
      %p739 = pneg %p362
      %p740 = pneg %p386
      %p741 = pneg %p383
      %p742 = pneg %p407
      %p743 = pneg %p404
      %p744 = pneg %p428
      %p745 = pneg %p425
      %p746 = pneg %p449
      %p747 = pneg %p446
      %p748 = pneg %p470
      %p749 = pneg %p467
      %p750 = pneg %p491
      %p751 = pneg %p488
      %p752 = pneg %p512
      %p753 = pneg %p509
      %p754 = pneg %p533
      %p755 = pneg %p530
      %p756 = pneg %p554
      %p757 = pneg %p551
      %p758 = pneg %p580
      %p759 = pneg %p577
      %p760 = scmp.lt.s32.totalorder %s35, 1
      %s761 = scalar_select %p760, %s35, 1
      %s762 = smul.addr %s761, 8
      %s763 = scalar_lea.vmem %s24, %s762
      %p764 = scmp.lt.s32.totalorder %s35, 1
      %s765 = scalar_select %p764, %s35, 1
      %s766 = smul.addr %s765, 8
      %s767 = scalar_lea.vmem %s0, %s766
      %p768 = scmp.lt.s32.totalorder %s35, 1
      %s769 = scalar_select %p768, %s35, 1
      %s770 = smul.addr %s769, 2
      %s771 = smul.addr %s770, 8
      %s772 = scalar_lea.vmem %s1, %s771
      %p773 = scmp.lt.s32.totalorder %s35, 1
      %s774 = scalar_select %p773, %s35, 1
      %s775 = smul.addr %s774, 8
      %s776 = scalar_lea.vmem %s2, %s775
      %p777 = scmp.lt.s32.totalorder %s35, 1
      %s778 = scalar_select %p777, %s35, 1
      %s779 = scalar_lea.vmem %s3, %s778
      %p780 = scmp.lt.s32.totalorder %s35, 1
      %s781 = scalar_select %p780, %s35, 1
      %s782 = smul.addr %s781, 8
      %s783 = scalar_lea.vmem %s24, %s782
      %v785 = vld [vmem:[%s767] sm:$0xff]
      %v786 = vld [vmem:[%s772] sm:$0xff]
      %v787 = vld [vmem:[%s772 + $0x8] sm:$0xff]
      %v788 = vld [vmem:[%s776] sm:$0xff]
      %v789 = vld [vmem:[%s779] sm:$0x1]
      %v790 = vld [vmem:[%s4] sm:$0x1]
      %v791 = vld [vmem:[%s5] sm:$0x1]
      %vm792 = vcmask 261120
      %v793 = vsel %vm792, %v785, 0.0
      %794 = vadd.xlane.f32.xlu0 %v793
      %v795 = vpop.xlane.xlu0 %794
      %v796 = vrcp.pop 32.0
      %v797 = vmul.f32 %v795, %v796
      %v798 = vsub.f32 %v785, %v797
      %v799 = vmul.f32 %v798, %v798
      %v800 = vsel %vm792, %v799, 0.0
      %801 = vadd.xlane.f32.xlu0 %v800
      %v802 = vpop.xlane.xlu0 %801
      %v803 = vmul.f32 %v802, %v796
      %v804 = vadd.f32 %v803, 1e-05
      %v805 = vrsqrt.pop %v804
      %v806 = vmul.f32 %v798, %v805
      %v808 = vlaneseq
      %v809 = vshrl.u32 %v808, 7
      %v810 = vsub.s32 0, %v809
      %v811 = vrot.slane %v790, %v810
      %v813 = vmul.f32 %v806, %v811
      %v815 = vlaneseq
      %v816 = vshrl.u32 %v815, 7
      %v817 = vsub.s32 0, %v816
      %v818 = vrot.slane %v791, %v817
      %v820 = vadd.f32 %v813, %v818
      %v821 = vld [vmem:[%s6] sm:$0xff]
      %v822 = vld [vmem:[%s6 + $0x8] sm:$0xff]
      %v823 = vld [vmem:[%s6 + $0x10] sm:$0xff]
      %v824 = vld [vmem:[%s6 + $0x18] sm:$0xff]
      %v825 = vld [vmem:[%s7] sm:$0x1]
      %v826 = vpack.c.bf16 %v820, %v820
      %v827 = vpack.c.bf16 %v822, %v821
      %v828 = vpack.c.bf16 %v824, %v823
      %v830 = vlaneseq
      %v831 = vshrl.u32 %v830, 7
      %v832 = vsub.s32 0, %v831
      %v833 = vrot.slane %v825, %v832
      %v836 = vsel %vm792, %v826, 0
      %838 = vmatprep.subr.bf16.mxu0 0
      %839 = vmatpush1.bf16.msra.mxu0 %v827
      %840 = vmatprep.subr.bf16.mxu0 0
      %841 = vmatpush1.bf16.msra.mxu0 %v828
      %842 = vmatprep.subr.bf16.mxu0 0
      %843 = vmatpush1.bf16.msra.mxu0 0
      %844 = vmatprep.subr.bf16.mxu0 0
      %845 = vmatpush1.bf16.msra.mxu0 0
      %846 = vmatprep.subr.bf16.mxu0 0
      %847 = vmatpush1.bf16.msra.mxu0 0
      %848 = vmatprep.subr.bf16.mxu0 0
      %849 = vmatpush1.bf16.msra.mxu0 0
      %850 = vmatprep.subr.bf16.mxu0 0
      %851 = vmatpush1.bf16.msra.mxu0 0
      %852 = vmatprep.subr.bf16.mxu0 0
      %853 = vmatpush1.bf16.msra.mxu0 0
      %854 = vmatprep.subr.bf16.mxu0 0
      %855 = vmatpush1.bf16.msra.mxu0 0
      %856 = vmatprep.subr.bf16.mxu0 0
      %857 = vmatpush1.bf16.msra.mxu0 0
      %858 = vmatprep.subr.bf16.mxu0 0
      %859 = vmatpush1.bf16.msra.mxu0 0
      %860 = vmatprep.subr.bf16.mxu0 0
      %861 = vmatpush1.bf16.msra.mxu0 0
      %862 = vmatprep.subr.bf16.mxu0 0
      %863 = vmatpush1.bf16.msra.mxu0 0
      %864 = vmatprep.subr.bf16.mxu0 0
      %865 = vmatpush1.bf16.msra.mxu0 0
      %866 = vmatprep.subr.bf16.mxu0 0
      %867 = vmatpush1.bf16.msra.mxu0 0
      %868 = vmatprep.subr.bf16.mxu0 0
      %869 = vmatpush1.bf16.msra.mxu0 0
      %870 = vmatprep.mubr.bf16.mxu0 0
      %871 = vmatmul.mubr.bf16.gmra.mrb[0].mxu0 %v836
      %v872 = vpop.f32.mrb[0].mxu0
      %v873 = vadd.f32 %v833, %v872
      %v874 = vpop.f32.mrb[0].mxu0
      %v875 = vpop.f32.mrb[0].mxu0
      %v876 = vpop.f32.mrb[0].mxu0
      %877 = vdwg.mxu0
      %879 = vrot.lane.b32.xlu0 %v873, 120
      %v880 = vpop.permute.xlu0 %879
      %882 = vrot.lane.b32.xlu0 %v873, 112
      %v883 = vpop.permute.xlu0 %882
      %885 = vrot.lane.b32.xlu0 %v873, 104
      %v886 = vpop.permute.xlu0 %885
      %v888 = vcombine.low %v873, %v883
      %v889 = vcombine.high %v873, %v883
      %v891 = vunpack.c.l.s4 1983009808
      %v892 = vunpack.c.0.s8 %v891
      %v893 = vlaneseq
      %v894 = vshrl.u32 %v893, 7
      %v895 = vsub.s32 %v892, %v894
      %v896 = vrot.slane %v888, %v895
      %v898 = vunpack.c.l.s4 1983009808
      %v899 = vunpack.c.0.s8 %v898
      %v900 = vlaneseq
      %v901 = vshrl.u32 %v900, 7
      %v902 = vsub.s32 %v899, %v901
      %v903 = vrot.slane %v889, %v902
      %v904 = vcombine.low %v880, %v886
      %v905 = vcombine.high %v880, %v886
      %v907 = vunpack.c.l.s4 1983009808
      %v908 = vunpack.c.0.s8 %v907
      %v909 = vlaneseq
      %v910 = vshrl.u32 %v909, 7
      %v911 = vsub.s32 %v908, %v910
      %v912 = vrot.slane %v904, %v911
      %v914 = vunpack.c.l.s4 1983009808
      %v915 = vunpack.c.0.s8 %v914
      %v916 = vlaneseq
      %v917 = vshrl.u32 %v916, 7
      %v918 = vsub.s32 %v915, %v917
      %v919 = vrot.slane %v905, %v918
      %v920 = vcombine.low %v896, %v912
      %v921 = vcombine.high %v896, %v912
      %v923 = vunpack.c.l.s4 1934713408
      %v924 = vunpack.c.0.s8 %v923
      %v925 = vlaneseq
      %v926 = vshrl.u32 %v925, 7
      %v927 = vsub.s32 %v924, %v926
      %v928 = vrot.slane %v920, %v927
      %v930 = vunpack.c.l.s4 1934713408
      %v931 = vunpack.c.0.s8 %v930
      %v932 = vlaneseq
      %v933 = vshrl.u32 %v932, 7
      %v934 = vsub.s32 %v931, %v933
      %v935 = vrot.slane %v921, %v934
      %v936 = vcombine.low %v903, %v919
      %v937 = vcombine.high %v903, %v919
      %v939 = vunpack.c.l.s4 1934713408
      %v940 = vunpack.c.0.s8 %v939
      %v941 = vlaneseq
      %v942 = vshrl.u32 %v941, 7
      %v943 = vsub.s32 %v940, %v942
      %v944 = vrot.slane %v936, %v943
      %v946 = vunpack.c.l.s4 1934713408
      %v947 = vunpack.c.0.s8 %v946
      %v948 = vlaneseq
      %v949 = vshrl.u32 %v948, 7
      %v950 = vsub.s32 %v947, %v949
      %v951 = vrot.slane %v937, %v950
      %v952 = vcombine.high %v928, 0.0
      %v953 = vcombine.high %v935, 0.0
      %v954 = vcombine.high %v944, 0.0
      %v955 = vcombine.high %v951, 0.0
      %v956 = vcombine.low %v928, %v935
      %v958 = vunpack.c.l.s4 1983009808
      %v959 = vunpack.c.0.s8 %v958
      %v960 = vlaneseq
      %v961 = vshrl.u32 %v960, 7
      %v962 = vsub.s32 %v959, %v961
      %v963 = vrot.slane %v956, %v962
      %v964 = vcombine.low %v952, %v953
      %v966 = vunpack.c.l.s4 1983009808
      %v967 = vunpack.c.0.s8 %v966
      %v968 = vlaneseq
      %v969 = vshrl.u32 %v968, 7
      %v970 = vsub.s32 %v967, %v969
      %v971 = vrot.slane %v964, %v970
      %v972 = vcombine.low %v944, %v951
      %v974 = vunpack.c.l.s4 1983009808
      %v975 = vunpack.c.0.s8 %v974
      %v976 = vlaneseq
      %v977 = vshrl.u32 %v976, 7
      %v978 = vsub.s32 %v975, %v977
      %v979 = vrot.slane %v972, %v978
      %v980 = vcombine.low %v954, %v955
      %v982 = vunpack.c.l.s4 1983009808
      %v983 = vunpack.c.0.s8 %v982
      %v984 = vlaneseq
      %v985 = vshrl.u32 %v984, 7
      %v986 = vsub.s32 %v983, %v985
      %v987 = vrot.slane %v980, %v986
      %v988 = vcombine.low %v963, %v971
      %v989 = vcombine.high %v963, %v971
      %v991 = vunpack.c.l.s4 1934713408
      %v992 = vunpack.c.0.s8 %v991
      %v993 = vlaneseq
      %v994 = vshrl.u32 %v993, 7
      %v995 = vsub.s32 %v992, %v994
      %v996 = vrot.slane %v988, %v995
      %v998 = vunpack.c.l.s4 1934713408
      %v999 = vunpack.c.0.s8 %v998
      %v1000 = vlaneseq
      %v1001 = vshrl.u32 %v1000, 7
      %v1002 = vsub.s32 %v999, %v1001
      %v1003 = vrot.slane %v989, %v1002
      %v1004 = vcombine.low %v979, %v987
      %v1005 = vcombine.high %v979, %v987
      %v1007 = vunpack.c.l.s4 1934713408
      %v1008 = vunpack.c.0.s8 %v1007
      %v1009 = vlaneseq
      %v1010 = vshrl.u32 %v1009, 7
      %v1011 = vsub.s32 %v1008, %v1010
      %v1012 = vrot.slane %v1004, %v1011
      %v1014 = vunpack.c.l.s4 1934713408
      %v1015 = vunpack.c.0.s8 %v1014
      %v1016 = vlaneseq
      %v1017 = vshrl.u32 %v1016, 7
      %v1018 = vsub.s32 %v1015, %v1017
      %v1019 = vrot.slane %v1005, %v1018
      %v1020 = vcombine.low %v996, %v1012
      %v1021 = vcombine.high %v996, %v1012
      %v1022 = vcombine.low %v1003, %v1019
      %v1023 = vcombine.high %v1003, %v1019
      %1024 = vrot.lane.b32.xlu0 %v873, 96
      %v1025 = vpop.permute.xlu0 %1024
      %1026 = vrot.lane.b32.xlu0 %v880, 96
      %v1027 = vpop.permute.xlu0 %1026
      %1028 = vrot.lane.b32.xlu0 %v883, 96
      %v1029 = vpop.permute.xlu0 %1028
      %1030 = vrot.lane.b32.xlu0 %v886, 96
      %v1031 = vpop.permute.xlu0 %1030
      %v1036 = vcombine.low %v1025, %v1029
      %v1037 = vcombine.high %v1025, %v1029
      %v1039 = vunpack.c.l.s4 1983009808
      %v1040 = vunpack.c.0.s8 %v1039
      %v1041 = vlaneseq
      %v1042 = vshrl.u32 %v1041, 7
      %v1043 = vsub.s32 %v1040, %v1042
      %v1044 = vrot.slane %v1036, %v1043
      %v1046 = vunpack.c.l.s4 1983009808
      %v1047 = vunpack.c.0.s8 %v1046
      %v1048 = vlaneseq
      %v1049 = vshrl.u32 %v1048, 7
      %v1050 = vsub.s32 %v1047, %v1049
      %v1051 = vrot.slane %v1037, %v1050
      %v1052 = vcombine.low %v1027, %v1031
      %v1053 = vcombine.high %v1027, %v1031
      %v1055 = vunpack.c.l.s4 1983009808
      %v1056 = vunpack.c.0.s8 %v1055
      %v1057 = vlaneseq
      %v1058 = vshrl.u32 %v1057, 7
      %v1059 = vsub.s32 %v1056, %v1058
      %v1060 = vrot.slane %v1052, %v1059
      %v1062 = vunpack.c.l.s4 1983009808
      %v1063 = vunpack.c.0.s8 %v1062
      %v1064 = vlaneseq
      %v1065 = vshrl.u32 %v1064, 7
      %v1066 = vsub.s32 %v1063, %v1065
      %v1067 = vrot.slane %v1053, %v1066
      %v1068 = vcombine.low %v1044, %v1060
      %v1069 = vcombine.high %v1044, %v1060
      %v1071 = vunpack.c.l.s4 1934713408
      %v1072 = vunpack.c.0.s8 %v1071
      %v1073 = vlaneseq
      %v1074 = vshrl.u32 %v1073, 7
      %v1075 = vsub.s32 %v1072, %v1074
      %v1076 = vrot.slane %v1068, %v1075
      %v1078 = vunpack.c.l.s4 1934713408
      %v1079 = vunpack.c.0.s8 %v1078
      %v1080 = vlaneseq
      %v1081 = vshrl.u32 %v1080, 7
      %v1082 = vsub.s32 %v1079, %v1081
      %v1083 = vrot.slane %v1069, %v1082
      %v1084 = vcombine.low %v1051, %v1067
      %v1085 = vcombine.high %v1051, %v1067
      %v1087 = vunpack.c.l.s4 1934713408
      %v1088 = vunpack.c.0.s8 %v1087
      %v1089 = vlaneseq
      %v1090 = vshrl.u32 %v1089, 7
      %v1091 = vsub.s32 %v1088, %v1090
      %v1092 = vrot.slane %v1084, %v1091
      %v1094 = vunpack.c.l.s4 1934713408
      %v1095 = vunpack.c.0.s8 %v1094
      %v1096 = vlaneseq
      %v1097 = vshrl.u32 %v1096, 7
      %v1098 = vsub.s32 %v1095, %v1097
      %v1099 = vrot.slane %v1085, %v1098
      %v1100 = vcombine.high %v1076, 0.0
      %v1101 = vcombine.high %v1083, 0.0
      %v1102 = vcombine.high %v1092, 0.0
      %v1103 = vcombine.high %v1099, 0.0
      %v1104 = vcombine.low %v1076, %v1083
      %v1106 = vunpack.c.l.s4 1983009808
      %v1107 = vunpack.c.0.s8 %v1106
      %v1108 = vlaneseq
      %v1109 = vshrl.u32 %v1108, 7
      %v1110 = vsub.s32 %v1107, %v1109
      %v1111 = vrot.slane %v1104, %v1110
      %v1112 = vcombine.low %v1100, %v1101
      %v1114 = vunpack.c.l.s4 1983009808
      %v1115 = vunpack.c.0.s8 %v1114
      %v1116 = vlaneseq
      %v1117 = vshrl.u32 %v1116, 7
      %v1118 = vsub.s32 %v1115, %v1117
      %v1119 = vrot.slane %v1112, %v1118
      %v1120 = vcombine.low %v1092, %v1099
      %v1122 = vunpack.c.l.s4 1983009808
      %v1123 = vunpack.c.0.s8 %v1122
      %v1124 = vlaneseq
      %v1125 = vshrl.u32 %v1124, 7
      %v1126 = vsub.s32 %v1123, %v1125
      %v1127 = vrot.slane %v1120, %v1126
      %v1128 = vcombine.low %v1102, %v1103
      %v1130 = vunpack.c.l.s4 1983009808
      %v1131 = vunpack.c.0.s8 %v1130
      %v1132 = vlaneseq
      %v1133 = vshrl.u32 %v1132, 7
      %v1134 = vsub.s32 %v1131, %v1133
      %v1135 = vrot.slane %v1128, %v1134
      %v1136 = vcombine.low %v1111, %v1119
      %v1137 = vcombine.high %v1111, %v1119
      %v1139 = vunpack.c.l.s4 1934713408
      %v1140 = vunpack.c.0.s8 %v1139
      %v1141 = vlaneseq
      %v1142 = vshrl.u32 %v1141, 7
      %v1143 = vsub.s32 %v1140, %v1142
      %v1144 = vrot.slane %v1136, %v1143
      %v1146 = vunpack.c.l.s4 1934713408
      %v1147 = vunpack.c.0.s8 %v1146
      %v1148 = vlaneseq
      %v1149 = vshrl.u32 %v1148, 7
      %v1150 = vsub.s32 %v1147, %v1149
      %v1151 = vrot.slane %v1137, %v1150
      %v1152 = vcombine.low %v1127, %v1135
      %v1153 = vcombine.high %v1127, %v1135
      %v1155 = vunpack.c.l.s4 1934713408
      %v1156 = vunpack.c.0.s8 %v1155
      %v1157 = vlaneseq
      %v1158 = vshrl.u32 %v1157, 7
      %v1159 = vsub.s32 %v1156, %v1158
      %v1160 = vrot.slane %v1152, %v1159
      %v1162 = vunpack.c.l.s4 1934713408
      %v1163 = vunpack.c.0.s8 %v1162
      %v1164 = vlaneseq
      %v1165 = vshrl.u32 %v1164, 7
      %v1166 = vsub.s32 %v1163, %v1165
      %v1167 = vrot.slane %v1153, %v1166
      %v1168 = vcombine.low %v1144, %v1160
      %v1169 = vcombine.high %v1144, %v1160
      %v1170 = vcombine.low %v1151, %v1167
      %v1171 = vcombine.high %v1151, %v1167
      %1172 = vrot.lane.b32.xlu0 %v873, 64
      %v1173 = vpop.permute.xlu0 %1172
      %1174 = vrot.lane.b32.xlu0 %v880, 64
      %v1175 = vpop.permute.xlu0 %1174
      %1176 = vrot.lane.b32.xlu0 %v883, 64
      %v1177 = vpop.permute.xlu0 %1176
      %1178 = vrot.lane.b32.xlu0 %v886, 64
      %v1179 = vpop.permute.xlu0 %1178
      %v1184 = vcombine.low %v1173, %v1177
      %v1185 = vcombine.high %v1173, %v1177
      %v1187 = vunpack.c.l.s4 1983009808
      %v1188 = vunpack.c.0.s8 %v1187
      %v1189 = vlaneseq
      %v1190 = vshrl.u32 %v1189, 7
      %v1191 = vsub.s32 %v1188, %v1190
      %v1192 = vrot.slane %v1184, %v1191
      %v1194 = vunpack.c.l.s4 1983009808
      %v1195 = vunpack.c.0.s8 %v1194
      %v1196 = vlaneseq
      %v1197 = vshrl.u32 %v1196, 7
      %v1198 = vsub.s32 %v1195, %v1197
      %v1199 = vrot.slane %v1185, %v1198
      %v1200 = vcombine.low %v1175, %v1179
      %v1201 = vcombine.high %v1175, %v1179
      %v1203 = vunpack.c.l.s4 1983009808
      %v1204 = vunpack.c.0.s8 %v1203
      %v1205 = vlaneseq
      %v1206 = vshrl.u32 %v1205, 7
      %v1207 = vsub.s32 %v1204, %v1206
      %v1208 = vrot.slane %v1200, %v1207
      %v1210 = vunpack.c.l.s4 1983009808
      %v1211 = vunpack.c.0.s8 %v1210
      %v1212 = vlaneseq
      %v1213 = vshrl.u32 %v1212, 7
      %v1214 = vsub.s32 %v1211, %v1213
      %v1215 = vrot.slane %v1201, %v1214
      %v1216 = vcombine.low %v1192, %v1208
      %v1217 = vcombine.high %v1192, %v1208
      %v1219 = vunpack.c.l.s4 1934713408
      %v1220 = vunpack.c.0.s8 %v1219
      %v1221 = vlaneseq
      %v1222 = vshrl.u32 %v1221, 7
      %v1223 = vsub.s32 %v1220, %v1222
      %v1224 = vrot.slane %v1216, %v1223
      %v1226 = vunpack.c.l.s4 1934713408
      %v1227 = vunpack.c.0.s8 %v1226
      %v1228 = vlaneseq
      %v1229 = vshrl.u32 %v1228, 7
      %v1230 = vsub.s32 %v1227, %v1229
      %v1231 = vrot.slane %v1217, %v1230
      %v1232 = vcombine.low %v1199, %v1215
      %v1233 = vcombine.high %v1199, %v1215
      %v1235 = vunpack.c.l.s4 1934713408
      %v1236 = vunpack.c.0.s8 %v1235
      %v1237 = vlaneseq
      %v1238 = vshrl.u32 %v1237, 7
      %v1239 = vsub.s32 %v1236, %v1238
      %v1240 = vrot.slane %v1232, %v1239
      %v1242 = vunpack.c.l.s4 1934713408
      %v1243 = vunpack.c.0.s8 %v1242
      %v1244 = vlaneseq
      %v1245 = vshrl.u32 %v1244, 7
      %v1246 = vsub.s32 %v1243, %v1245
      %v1247 = vrot.slane %v1233, %v1246
      %v1248 = vcombine.high %v1224, 0.0
      %v1249 = vcombine.high %v1231, 0.0
      %v1250 = vcombine.high %v1240, 0.0
      %v1251 = vcombine.high %v1247, 0.0
      %v1252 = vcombine.low %v1224, %v1231
      %v1254 = vunpack.c.l.s4 1983009808
      %v1255 = vunpack.c.0.s8 %v1254
      %v1256 = vlaneseq
      %v1257 = vshrl.u32 %v1256, 7
      %v1258 = vsub.s32 %v1255, %v1257
      %v1259 = vrot.slane %v1252, %v1258
      %v1260 = vcombine.low %v1248, %v1249
      %v1262 = vunpack.c.l.s4 1983009808
      %v1263 = vunpack.c.0.s8 %v1262
      %v1264 = vlaneseq
      %v1265 = vshrl.u32 %v1264, 7
      %v1266 = vsub.s32 %v1263, %v1265
      %v1267 = vrot.slane %v1260, %v1266
      %v1268 = vcombine.low %v1240, %v1247
      %v1270 = vunpack.c.l.s4 1983009808
      %v1271 = vunpack.c.0.s8 %v1270
      %v1272 = vlaneseq
      %v1273 = vshrl.u32 %v1272, 7
      %v1274 = vsub.s32 %v1271, %v1273
      %v1275 = vrot.slane %v1268, %v1274
      %v1276 = vcombine.low %v1250, %v1251
      %v1278 = vunpack.c.l.s4 1983009808
      %v1279 = vunpack.c.0.s8 %v1278
      %v1280 = vlaneseq
      %v1281 = vshrl.u32 %v1280, 7
      %v1282 = vsub.s32 %v1279, %v1281
      %v1283 = vrot.slane %v1276, %v1282
      %v1284 = vcombine.low %v1259, %v1267
      %v1285 = vcombine.high %v1259, %v1267
      %v1287 = vunpack.c.l.s4 1934713408
      %v1288 = vunpack.c.0.s8 %v1287
      %v1289 = vlaneseq
      %v1290 = vshrl.u32 %v1289, 7
      %v1291 = vsub.s32 %v1288, %v1290
      %v1292 = vrot.slane %v1284, %v1291
      %v1294 = vunpack.c.l.s4 1934713408
      %v1295 = vunpack.c.0.s8 %v1294
      %v1296 = vlaneseq
      %v1297 = vshrl.u32 %v1296, 7
      %v1298 = vsub.s32 %v1295, %v1297
      %v1299 = vrot.slane %v1285, %v1298
      %v1300 = vcombine.low %v1275, %v1283
      %v1301 = vcombine.high %v1275, %v1283
      %v1303 = vunpack.c.l.s4 1934713408
      %v1304 = vunpack.c.0.s8 %v1303
      %v1305 = vlaneseq
      %v1306 = vshrl.u32 %v1305, 7
      %v1307 = vsub.s32 %v1304, %v1306
      %v1308 = vrot.slane %v1300, %v1307
      %v1310 = vunpack.c.l.s4 1934713408
      %v1311 = vunpack.c.0.s8 %v1310
      %v1312 = vlaneseq
      %v1313 = vshrl.u32 %v1312, 7
      %v1314 = vsub.s32 %v1311, %v1313
      %v1315 = vrot.slane %v1301, %v1314
      %v1316 = vcombine.low %v1292, %v1308
      %v1317 = vcombine.high %v1292, %v1308
      %v1318 = vcombine.low %v1299, %v1315
      %v1319 = vcombine.high %v1299, %v1315
      %v1320 = vpack.c.bf16 %v1020, %v1020
      %v1321 = vpack.c.bf16 %v1021, %v1021
      %v1322 = vpack.c.bf16 %v1022, %v1022
      %v1323 = vpack.c.bf16 %v1023, %v1023
      %v1324 = vpack.c.bf16 %v1168, %v1168
      %v1325 = vpack.c.bf16 %v1169, %v1169
      %v1326 = vpack.c.bf16 %v1170, %v1170
      %v1327 = vpack.c.bf16 %v1171, %v1171
      %vm1328 = vcmask 64512
      %v1330 = vsel %vm1328, %v1320, 0
      %v1333 = vsel %vm1328, %v1324, 0
      %1335 = vmatprep.subr.bf16.mxu0 0
      %1336 = vmatpush1.bf16.xpose.msra.mxu0 %v1333
      %1337 = vmatprep.subr.bf16.mxu0 0
      %1338 = vmatpush1.bf16.xpose.msra.mxu0 0
      %1339 = vmatprep.subr.bf16.mxu0 0
      %1340 = vmatpush1.bf16.xpose.msra.mxu0 0
      %1341 = vmatprep.subr.bf16.mxu0 0
      %1342 = vmatpush1.bf16.xpose.msra.mxu0 0
      %1343 = vmatprep.subr.bf16.mxu0 0
      %1344 = vmatpush1.bf16.xpose.msra.mxu0 0
      %1345 = vmatprep.subr.bf16.mxu0 0
      %1346 = vmatpush1.bf16.xpose.msra.mxu0 0
      %1347 = vmatprep.subr.bf16.mxu0 0
      %1348 = vmatpush1.bf16.xpose.msra.mxu0 0
      %1349 = vmatprep.subr.bf16.mxu0 0
      %1350 = vmatpush1.bf16.xpose.msra.mxu0 0
      %1351 = vmatprep.subr.bf16.mxu0 0
      %1352 = vmatpush1.bf16.xpose.msra.mxu0 0
      %1353 = vmatprep.subr.bf16.mxu0 0
      %1354 = vmatpush1.bf16.xpose.msra.mxu0 0
      %1355 = vmatprep.subr.bf16.mxu0 0
      %1356 = vmatpush1.bf16.xpose.msra.mxu0 0
      %1357 = vmatprep.subr.bf16.mxu0 0
      %1358 = vmatpush1.bf16.xpose.msra.mxu0 0
      %1359 = vmatprep.subr.bf16.mxu0 0
      %1360 = vmatpush1.bf16.xpose.msra.mxu0 0
      %1361 = vmatprep.subr.bf16.mxu0 0
      %1362 = vmatpush1.bf16.xpose.msra.mxu0 0
      %1363 = vmatprep.subr.bf16.mxu0 0
      %1364 = vmatpush1.bf16.xpose.msra.mxu0 0
      %1365 = vmatprep.subr.bf16.mxu0 0
      %1366 = vmatpush1.bf16.xpose.msra.mxu0 0
      %1367 = vmatprep.mubr.bf16.mxu0 0
      %1368 = vmatmul.mubr.bf16.gmra.mrb[0].mxu0 %v1330
      %v1369 = vpop.f32.mrb[0].mxu0
      %v1370 = vadd.f32 0.0, %v1369
      %v1371 = vpop.f32.mrb[0].mxu0
      %v1372 = vpop.f32.mrb[0].mxu0
      %v1373 = vpop.f32.mrb[0].mxu0
      %1374 = vdwg.mxu0
      %v1376 = vsel %vm1328, %v1321, 0
      %v1379 = vsel %vm1328, %v1325, 0
      %1381 = vmatprep.subr.bf16.mxu0 0
      %1382 = vmatpush1.bf16.xpose.msra.mxu0 %v1379
      %1383 = vmatprep.subr.bf16.mxu0 0
      %1384 = vmatpush1.bf16.xpose.msra.mxu0 0
      %1385 = vmatprep.subr.bf16.mxu0 0
      %1386 = vmatpush1.bf16.xpose.msra.mxu0 0
      %1387 = vmatprep.subr.bf16.mxu0 0
      %1388 = vmatpush1.bf16.xpose.msra.mxu0 0
      %1389 = vmatprep.subr.bf16.mxu0 0
      %1390 = vmatpush1.bf16.xpose.msra.mxu0 0
      %1391 = vmatprep.subr.bf16.mxu0 0
      %1392 = vmatpush1.bf16.xpose.msra.mxu0 0
      %1393 = vmatprep.subr.bf16.mxu0 0
      %1394 = vmatpush1.bf16.xpose.msra.mxu0 0
      %1395 = vmatprep.subr.bf16.mxu0 0
      %1396 = vmatpush1.bf16.xpose.msra.mxu0 0
      %1397 = vmatprep.subr.bf16.mxu0 0
      %1398 = vmatpush1.bf16.xpose.msra.mxu0 0
      %1399 = vmatprep.subr.bf16.mxu0 0
      %1400 = vmatpush1.bf16.xpose.msra.mxu0 0
      %1401 = vmatprep.subr.bf16.mxu0 0
      %1402 = vmatpush1.bf16.xpose.msra.mxu0 0
      %1403 = vmatprep.subr.bf16.mxu0 0
      %1404 = vmatpush1.bf16.xpose.msra.mxu0 0
      %1405 = vmatprep.subr.bf16.mxu0 0
      %1406 = vmatpush1.bf16.xpose.msra.mxu0 0
      %1407 = vmatprep.subr.bf16.mxu0 0
      %1408 = vmatpush1.bf16.xpose.msra.mxu0 0
      %1409 = vmatprep.subr.bf16.mxu0 0
      %1410 = vmatpush1.bf16.xpose.msra.mxu0 0
      %1411 = vmatprep.subr.bf16.mxu0 0
      %1412 = vmatpush1.bf16.xpose.msra.mxu0 0
      %1413 = vmatprep.mubr.bf16.mxu0 0
      %1414 = vmatmul.mubr.bf16.gmra.mrb[0].mxu0 %v1376
      %v1415 = vpop.f32.mrb[0].mxu0
      %v1416 = vadd.f32 0.0, %v1415
      %v1417 = vpop.f32.mrb[0].mxu0
      %v1418 = vpop.f32.mrb[0].mxu0
      %v1419 = vpop.f32.mrb[0].mxu0
      %1420 = vdwg.mxu0
      %v1422 = vsel %vm1328, %v1322, 0
      %v1425 = vsel %vm1328, %v1326, 0
      %1427 = vmatprep.subr.bf16.mxu0 0
      %1428 = vmatpush1.bf16.xpose.msra.mxu0 %v1425
      %1429 = vmatprep.subr.bf16.mxu0 0
      %1430 = vmatpush1.bf16.xpose.msra.mxu0 0
      %1431 = vmatprep.subr.bf16.mxu0 0
      %1432 = vmatpush1.bf16.xpose.msra.mxu0 0
      %1433 = vmatprep.subr.bf16.mxu0 0
      %1434 = vmatpush1.bf16.xpose.msra.mxu0 0
      %1435 = vmatprep.subr.bf16.mxu0 0
      %1436 = vmatpush1.bf16.xpose.msra.mxu0 0
      %1437 = vmatprep.subr.bf16.mxu0 0
      %1438 = vmatpush1.bf16.xpose.msra.mxu0 0
      %1439 = vmatprep.subr.bf16.mxu0 0
      %1440 = vmatpush1.bf16.xpose.msra.mxu0 0
      %1441 = vmatprep.subr.bf16.mxu0 0
      %1442 = vmatpush1.bf16.xpose.msra.mxu0 0
      %1443 = vmatprep.subr.bf16.mxu0 0
      %1444 = vmatpush1.bf16.xpose.msra.mxu0 0
      %1445 = vmatprep.subr.bf16.mxu0 0
      %1446 = vmatpush1.bf16.xpose.msra.mxu0 0
      %1447 = vmatprep.subr.bf16.mxu0 0
      %1448 = vmatpush1.bf16.xpose.msra.mxu0 0
      %1449 = vmatprep.subr.bf16.mxu0 0
      %1450 = vmatpush1.bf16.xpose.msra.mxu0 0
      %1451 = vmatprep.subr.bf16.mxu0 0
      %1452 = vmatpush1.bf16.xpose.msra.mxu0 0
      %1453 = vmatprep.subr.bf16.mxu0 0
      %1454 = vmatpush1.bf16.xpose.msra.mxu0 0
      %1455 = vmatprep.subr.bf16.mxu0 0
      %1456 = vmatpush1.bf16.xpose.msra.mxu0 0
      %1457 = vmatprep.subr.bf16.mxu0 0
      %1458 = vmatpush1.bf16.xpose.msra.mxu0 0
      %1459 = vmatprep.mubr.bf16.mxu0 0
      %1460 = vmatmul.mubr.bf16.gmra.mrb[0].mxu0 %v1422
      %v1461 = vpop.f32.mrb[0].mxu0
      %v1462 = vadd.f32 0.0, %v1461
      %v1463 = vpop.f32.mrb[0].mxu0
      %v1464 = vpop.f32.mrb[0].mxu0
      %v1465 = vpop.f32.mrb[0].mxu0
      %1466 = vdwg.mxu0
      %v1468 = vsel %vm1328, %v1323, 0
      %v1471 = vsel %vm1328, %v1327, 0
      %1473 = vmatprep.subr.bf16.mxu0 0
      %1474 = vmatpush1.bf16.xpose.msra.mxu0 %v1471
      %1475 = vmatprep.subr.bf16.mxu0 0
      %1476 = vmatpush1.bf16.xpose.msra.mxu0 0
      %1477 = vmatprep.subr.bf16.mxu0 0
      %1478 = vmatpush1.bf16.xpose.msra.mxu0 0
      %1479 = vmatprep.subr.bf16.mxu0 0
      %1480 = vmatpush1.bf16.xpose.msra.mxu0 0
      %1481 = vmatprep.subr.bf16.mxu0 0
      %1482 = vmatpush1.bf16.xpose.msra.mxu0 0
      %1483 = vmatprep.subr.bf16.mxu0 0
      %1484 = vmatpush1.bf16.xpose.msra.mxu0 0
      %1485 = vmatprep.subr.bf16.mxu0 0
      %1486 = vmatpush1.bf16.xpose.msra.mxu0 0
      %1487 = vmatprep.subr.bf16.mxu0 0
      %1488 = vmatpush1.bf16.xpose.msra.mxu0 0
      %1489 = vmatprep.subr.bf16.mxu0 0
      %1490 = vmatpush1.bf16.xpose.msra.mxu0 0
      %1491 = vmatprep.subr.bf16.mxu0 0
      %1492 = vmatpush1.bf16.xpose.msra.mxu0 0
      %1493 = vmatprep.subr.bf16.mxu0 0
      %1494 = vmatpush1.bf16.xpose.msra.mxu0 0
      %1495 = vmatprep.subr.bf16.mxu0 0
      %1496 = vmatpush1.bf16.xpose.msra.mxu0 0
      %1497 = vmatprep.subr.bf16.mxu0 0
      %1498 = vmatpush1.bf16.xpose.msra.mxu0 0
      %1499 = vmatprep.subr.bf16.mxu0 0
      %1500 = vmatpush1.bf16.xpose.msra.mxu0 0
      %1501 = vmatprep.subr.bf16.mxu0 0
      %1502 = vmatpush1.bf16.xpose.msra.mxu0 0
      %1503 = vmatprep.subr.bf16.mxu0 0
      %1504 = vmatpush1.bf16.xpose.msra.mxu0 0
      %1505 = vmatprep.mubr.bf16.mxu0 0
      %1506 = vmatmul.mubr.bf16.gmra.mrb[0].mxu0 %v1468
      %v1507 = vpop.f32.mrb[0].mxu0
      %v1508 = vadd.f32 0.0, %v1507
      %v1509 = vpop.f32.mrb[0].mxu0
      %v1510 = vpop.f32.mrb[0].mxu0
      %v1511 = vpop.f32.mrb[0].mxu0
      %1512 = vdwg.mxu0
      %v1513 = vmul.f32 %v1370, 0.35355338
      %v1514 = vmul.f32 %v1416, 0.35355338
      %v1515 = vmul.f32 %v1462, 0.35355338
      %v1516 = vmul.f32 %v1508, 0.35355338
      %vm1517 = vcmp.gt.f32.partialorder %v788, 0.0
      %v1518 = vsel %vm1517, 1, 0
      %vm1519 = vcmp.eq.s32.totalorder %v1518, 1
      %v1520 = vsel %vm1519, %v1513, -1e+09
      %v1521 = vsel %vm1519, %v1514, -1e+09
      %v1522 = vsel %vm1519, %v1515, -1e+09
      %v1523 = vsel %vm1519, %v1516, -1e+09
      %v1524 = vsel %vm1328, %v1520, -inf
      %1525 = vmax.xlane.f32.xlu0 %v1524
      %v1526 = vpop.xlane.xlu0 %1525
      %v1527 = vsel %vm1328, %v1521, -inf
      %1528 = vmax.xlane.f32.xlu0 %v1527
      %v1529 = vpop.xlane.xlu0 %1528
      %v1530 = vsel %vm1328, %v1522, -inf
      %1531 = vmax.xlane.f32.xlu0 %v1530
      %v1532 = vpop.xlane.xlu0 %1531
      %v1533 = vsel %vm1328, %v1523, -inf
      %1534 = vmax.xlane.f32.xlu0 %v1533
      %v1535 = vpop.xlane.xlu0 %1534
      %v1536 = vsub.f32 %v1520, %v1526
      %v1537 = vsub.f32 %v1521, %v1529
      %v1538 = vsub.f32 %v1522, %v1532
      %v1539 = vsub.f32 %v1523, %v1535
      %v1540 = vmul.f32 %v1536, 1.442695
      %v1541 = vpow.pop %v1540
      %v1542 = vmul.f32 %v1537, 1.442695
      %v1543 = vpow.pop %v1542
      %v1544 = vmul.f32 %v1538, 1.442695
      %v1545 = vpow.pop %v1544
      %v1546 = vmul.f32 %v1539, 1.442695
      %v1547 = vpow.pop %v1546
      %v1548 = vsel %vm1328, %v1541, 0.0
      %1549 = vadd.xlane.f32.xlu0 %v1548
      %v1550 = vpop.xlane.xlu0 %1549
      %v1551 = vsel %vm1328, %v1543, 0.0
      %1552 = vadd.xlane.f32.xlu0 %v1551
      %v1553 = vpop.xlane.xlu0 %1552
      %v1554 = vsel %vm1328, %v1545, 0.0
      %1555 = vadd.xlane.f32.xlu0 %v1554
      %v1556 = vpop.xlane.xlu0 %1555
      %v1557 = vsel %vm1328, %v1547, 0.0
      %1558 = vadd.xlane.f32.xlu0 %v1557
      %v1559 = vpop.xlane.xlu0 %1558
      %v1560 = vrcp.pop %v1550
      %v1561 = vrcp.pop %v1553
      %v1562 = vrcp.pop %v1556
      %v1563 = vrcp.pop %v1559
      %v1564 = vmul.f32 %v1541, %v1560
      %v1565 = vmul.f32 %v1543, %v1561
      %v1566 = vmul.f32 %v1545, %v1562
      %v1567 = vmul.f32 %v1547, %v1563
      %v1568 = vpack.c.bf16 %v1564, %v1564
      %v1569 = vpack.c.bf16 %v1565, %v1565
      %v1570 = vpack.c.bf16 %v1566, %v1566
      %v1571 = vpack.c.bf16 %v1567, %v1567
      %v1572 = vpack.c.bf16 %v1316, %v1316
      %v1573 = vpack.c.bf16 %v1317, %v1317
      %v1574 = vpack.c.bf16 %v1318, %v1318
      %v1575 = vpack.c.bf16 %v1319, %v1319
      %v1577 = vsel %vm1328, %v1568, 0
      %vm1579 = vcmask 1043456
      %v1581 = vsel %vm1579, %v1572, 0
      %1583 = vmatprep.subr.bf16.mxu0 0
      %1584 = vmatpush1.bf16.msra.mxu0 %v1581
      %1585 = vmatprep.subr.bf16.mxu0 0
      %1586 = vmatpush1.bf16.msra.mxu0 0
      %1587 = vmatprep.subr.bf16.mxu0 0
      %1588 = vmatpush1.bf16.msra.mxu0 0
      %1589 = vmatprep.subr.bf16.mxu0 0
      %1590 = vmatpush1.bf16.msra.mxu0 0
      %1591 = vmatprep.subr.bf16.mxu0 0
      %1592 = vmatpush1.bf16.msra.mxu0 0
      %1593 = vmatprep.subr.bf16.mxu0 0
      %1594 = vmatpush1.bf16.msra.mxu0 0
      %1595 = vmatprep.subr.bf16.mxu0 0
      %1596 = vmatpush1.bf16.msra.mxu0 0
      %1597 = vmatprep.subr.bf16.mxu0 0
      %1598 = vmatpush1.bf16.msra.mxu0 0
      %1599 = vmatprep.subr.bf16.mxu0 0
      %1600 = vmatpush1.bf16.msra.mxu0 0
      %1601 = vmatprep.subr.bf16.mxu0 0
      %1602 = vmatpush1.bf16.msra.mxu0 0
      %1603 = vmatprep.subr.bf16.mxu0 0
      %1604 = vmatpush1.bf16.msra.mxu0 0
      %1605 = vmatprep.subr.bf16.mxu0 0
      %1606 = vmatpush1.bf16.msra.mxu0 0
      %1607 = vmatprep.subr.bf16.mxu0 0
      %1608 = vmatpush1.bf16.msra.mxu0 0
      %1609 = vmatprep.subr.bf16.mxu0 0
      %1610 = vmatpush1.bf16.msra.mxu0 0
      %1611 = vmatprep.subr.bf16.mxu0 0
      %1612 = vmatpush1.bf16.msra.mxu0 0
      %1613 = vmatprep.subr.bf16.mxu0 0
      %1614 = vmatpush1.bf16.msra.mxu0 0
      %1615 = vmatprep.mubr.bf16.mxu0 0
      %1616 = vmatmul.mubr.bf16.gmra.mrb[0].mxu0 %v1577
      %v1617 = vpop.f32.mrb[0].mxu0
      %v1618 = vadd.f32 0.0, %v1617
      %v1619 = vpop.f32.mrb[0].mxu0
      %v1620 = vpop.f32.mrb[0].mxu0
      %v1621 = vpop.f32.mrb[0].mxu0
      %1622 = vdwg.mxu0
      %v1624 = vsel %vm1328, %v1569, 0
      %v1627 = vsel %vm1579, %v1573, 0
      %1629 = vmatprep.subr.bf16.mxu0 0
      %1630 = vmatpush1.bf16.msra.mxu0 %v1627
      %1631 = vmatprep.subr.bf16.mxu0 0
      %1632 = vmatpush1.bf16.msra.mxu0 0
      %1633 = vmatprep.subr.bf16.mxu0 0
      %1634 = vmatpush1.bf16.msra.mxu0 0
      %1635 = vmatprep.subr.bf16.mxu0 0
      %1636 = vmatpush1.bf16.msra.mxu0 0
      %1637 = vmatprep.subr.bf16.mxu0 0
      %1638 = vmatpush1.bf16.msra.mxu0 0
      %1639 = vmatprep.subr.bf16.mxu0 0
      %1640 = vmatpush1.bf16.msra.mxu0 0
      %1641 = vmatprep.subr.bf16.mxu0 0
      %1642 = vmatpush1.bf16.msra.mxu0 0
      %1643 = vmatprep.subr.bf16.mxu0 0
      %1644 = vmatpush1.bf16.msra.mxu0 0
      %1645 = vmatprep.subr.bf16.mxu0 0
      %1646 = vmatpush1.bf16.msra.mxu0 0
      %1647 = vmatprep.subr.bf16.mxu0 0
      %1648 = vmatpush1.bf16.msra.mxu0 0
      %1649 = vmatprep.subr.bf16.mxu0 0
      %1650 = vmatpush1.bf16.msra.mxu0 0
      %1651 = vmatprep.subr.bf16.mxu0 0
      %1652 = vmatpush1.bf16.msra.mxu0 0
      %1653 = vmatprep.subr.bf16.mxu0 0
      %1654 = vmatpush1.bf16.msra.mxu0 0
      %1655 = vmatprep.subr.bf16.mxu0 0
      %1656 = vmatpush1.bf16.msra.mxu0 0
      %1657 = vmatprep.subr.bf16.mxu0 0
      %1658 = vmatpush1.bf16.msra.mxu0 0
      %1659 = vmatprep.subr.bf16.mxu0 0
      %1660 = vmatpush1.bf16.msra.mxu0 0
      %1661 = vmatprep.mubr.bf16.mxu0 0
      %1662 = vmatmul.mubr.bf16.gmra.mrb[0].mxu0 %v1624
      %v1663 = vpop.f32.mrb[0].mxu0
      %v1664 = vadd.f32 0.0, %v1663
      %v1665 = vpop.f32.mrb[0].mxu0
      %v1666 = vpop.f32.mrb[0].mxu0
      %v1667 = vpop.f32.mrb[0].mxu0
      %1668 = vdwg.mxu0
      %v1670 = vsel %vm1328, %v1570, 0
      %v1673 = vsel %vm1579, %v1574, 0
      %1675 = vmatprep.subr.bf16.mxu0 0
      %1676 = vmatpush1.bf16.msra.mxu0 %v1673
      %1677 = vmatprep.subr.bf16.mxu0 0
      %1678 = vmatpush1.bf16.msra.mxu0 0
      %1679 = vmatprep.subr.bf16.mxu0 0
      %1680 = vmatpush1.bf16.msra.mxu0 0
      %1681 = vmatprep.subr.bf16.mxu0 0
      %1682 = vmatpush1.bf16.msra.mxu0 0
      %1683 = vmatprep.subr.bf16.mxu0 0
      %1684 = vmatpush1.bf16.msra.mxu0 0
      %1685 = vmatprep.subr.bf16.mxu0 0
      %1686 = vmatpush1.bf16.msra.mxu0 0
      %1687 = vmatprep.subr.bf16.mxu0 0
      %1688 = vmatpush1.bf16.msra.mxu0 0
      %1689 = vmatprep.subr.bf16.mxu0 0
      %1690 = vmatpush1.bf16.msra.mxu0 0
      %1691 = vmatprep.subr.bf16.mxu0 0
      %1692 = vmatpush1.bf16.msra.mxu0 0
      %1693 = vmatprep.subr.bf16.mxu0 0
      %1694 = vmatpush1.bf16.msra.mxu0 0
      %1695 = vmatprep.subr.bf16.mxu0 0
      %1696 = vmatpush1.bf16.msra.mxu0 0
      %1697 = vmatprep.subr.bf16.mxu0 0
      %1698 = vmatpush1.bf16.msra.mxu0 0
      %1699 = vmatprep.subr.bf16.mxu0 0
      %1700 = vmatpush1.bf16.msra.mxu0 0
      %1701 = vmatprep.subr.bf16.mxu0 0
      %1702 = vmatpush1.bf16.msra.mxu0 0
      %1703 = vmatprep.subr.bf16.mxu0 0
      %1704 = vmatpush1.bf16.msra.mxu0 0
      %1705 = vmatprep.subr.bf16.mxu0 0
      %1706 = vmatpush1.bf16.msra.mxu0 0
      %1707 = vmatprep.mubr.bf16.mxu0 0
      %1708 = vmatmul.mubr.bf16.gmra.mrb[0].mxu0 %v1670
      %v1709 = vpop.f32.mrb[0].mxu0
      %v1710 = vadd.f32 0.0, %v1709
      %v1711 = vpop.f32.mrb[0].mxu0
      %v1712 = vpop.f32.mrb[0].mxu0
      %v1713 = vpop.f32.mrb[0].mxu0
      %1714 = vdwg.mxu0
      %v1716 = vsel %vm1328, %v1571, 0
      %v1719 = vsel %vm1579, %v1575, 0
      %1721 = vmatprep.subr.bf16.mxu0 0
      %1722 = vmatpush1.bf16.msra.mxu0 %v1719
      %1723 = vmatprep.subr.bf16.mxu0 0
      %1724 = vmatpush1.bf16.msra.mxu0 0
      %1725 = vmatprep.subr.bf16.mxu0 0
      %1726 = vmatpush1.bf16.msra.mxu0 0
      %1727 = vmatprep.subr.bf16.mxu0 0
      %1728 = vmatpush1.bf16.msra.mxu0 0
      %1729 = vmatprep.subr.bf16.mxu0 0
      %1730 = vmatpush1.bf16.msra.mxu0 0
      %1731 = vmatprep.subr.bf16.mxu0 0
      %1732 = vmatpush1.bf16.msra.mxu0 0
      %1733 = vmatprep.subr.bf16.mxu0 0
      %1734 = vmatpush1.bf16.msra.mxu0 0
      %1735 = vmatprep.subr.bf16.mxu0 0
      %1736 = vmatpush1.bf16.msra.mxu0 0
      %1737 = vmatprep.subr.bf16.mxu0 0
      %1738 = vmatpush1.bf16.msra.mxu0 0
      %1739 = vmatprep.subr.bf16.mxu0 0
      %1740 = vmatpush1.bf16.msra.mxu0 0
      %1741 = vmatprep.subr.bf16.mxu0 0
      %1742 = vmatpush1.bf16.msra.mxu0 0
      %1743 = vmatprep.subr.bf16.mxu0 0
      %1744 = vmatpush1.bf16.msra.mxu0 0
      %1745 = vmatprep.subr.bf16.mxu0 0
      %1746 = vmatpush1.bf16.msra.mxu0 0
      %1747 = vmatprep.subr.bf16.mxu0 0
      %1748 = vmatpush1.bf16.msra.mxu0 0
      %1749 = vmatprep.subr.bf16.mxu0 0
      %1750 = vmatpush1.bf16.msra.mxu0 0
      %1751 = vmatprep.subr.bf16.mxu0 0
      %1752 = vmatpush1.bf16.msra.mxu0 0
      %1753 = vmatprep.mubr.bf16.mxu0 0
      %1754 = vmatmul.mubr.bf16.gmra.mrb[0].mxu0 %v1716
      %v1755 = vpop.f32.mrb[0].mxu0
      %v1756 = vadd.f32 0.0, %v1755
      %v1757 = vpop.f32.mrb[0].mxu0
      %v1758 = vpop.f32.mrb[0].mxu0
      %v1759 = vpop.f32.mrb[0].mxu0
      %1760 = vdwg.mxu0
      %v1761 = vcombine.low %v1618, %v1710
      %v1762 = vcombine.high %v1618, %v1710
      %v1764 = vunpack.c.l.s4 1983009808
      %v1765 = vunpack.c.0.s8 %v1764
      %v1766 = vlaneseq
      %v1767 = vshrl.u32 %v1766, 7
      %v1768 = vsub.s32 %v1765, %v1767
      %v1769 = vrot.slane %v1761, %v1768
      %v1771 = vunpack.c.l.s4 1983009808
      %v1772 = vunpack.c.0.s8 %v1771
      %v1773 = vlaneseq
      %v1774 = vshrl.u32 %v1773, 7
      %v1775 = vsub.s32 %v1772, %v1774
      %v1776 = vrot.slane %v1762, %v1775
      %v1777 = vcombine.low %v1664, %v1756
      %v1778 = vcombine.high %v1664, %v1756
      %v1780 = vunpack.c.l.s4 1983009808
      %v1781 = vunpack.c.0.s8 %v1780
      %v1782 = vlaneseq
      %v1783 = vshrl.u32 %v1782, 7
      %v1784 = vsub.s32 %v1781, %v1783
      %v1785 = vrot.slane %v1777, %v1784
      %v1787 = vunpack.c.l.s4 1983009808
      %v1788 = vunpack.c.0.s8 %v1787
      %v1789 = vlaneseq
      %v1790 = vshrl.u32 %v1789, 7
      %v1791 = vsub.s32 %v1788, %v1790
      %v1792 = vrot.slane %v1778, %v1791
      %v1793 = vcombine.low %v1769, %v1785
      %v1794 = vcombine.high %v1769, %v1785
      %v1796 = vunpack.c.l.s4 1934713408
      %v1797 = vunpack.c.0.s8 %v1796
      %v1798 = vlaneseq
      %v1799 = vshrl.u32 %v1798, 7
      %v1800 = vsub.s32 %v1797, %v1799
      %v1801 = vrot.slane %v1793, %v1800
      %v1803 = vunpack.c.l.s4 1934713408
      %v1804 = vunpack.c.0.s8 %v1803
      %v1805 = vlaneseq
      %v1806 = vshrl.u32 %v1805, 7
      %v1807 = vsub.s32 %v1804, %v1806
      %v1808 = vrot.slane %v1794, %v1807
      %v1809 = vcombine.low %v1776, %v1792
      %v1810 = vcombine.high %v1776, %v1792
      %v1812 = vunpack.c.l.s4 1934713408
      %v1813 = vunpack.c.0.s8 %v1812
      %v1814 = vlaneseq
      %v1815 = vshrl.u32 %v1814, 7
      %v1816 = vsub.s32 %v1813, %v1815
      %v1817 = vrot.slane %v1809, %v1816
      %v1819 = vunpack.c.l.s4 1934713408
      %v1820 = vunpack.c.0.s8 %v1819
      %v1821 = vlaneseq
      %v1822 = vshrl.u32 %v1821, 7
      %v1823 = vsub.s32 %v1820, %v1822
      %v1824 = vrot.slane %v1810, %v1823
      %v1825 = vcombine.high %v1801, 0.0
      %v1826 = vcombine.high %v1808, 0.0
      %v1827 = vcombine.high %v1817, 0.0
      %v1828 = vcombine.high %v1824, 0.0
      %v1829 = vcombine.low %v1801, %v1808
      %v1831 = vunpack.c.l.s4 1983009808
      %v1832 = vunpack.c.0.s8 %v1831
      %v1833 = vlaneseq
      %v1834 = vshrl.u32 %v1833, 7
      %v1835 = vsub.s32 %v1832, %v1834
      %v1836 = vrot.slane %v1829, %v1835
      %v1837 = vcombine.low %v1825, %v1826
      %v1839 = vunpack.c.l.s4 1983009808
      %v1840 = vunpack.c.0.s8 %v1839
      %v1841 = vlaneseq
      %v1842 = vshrl.u32 %v1841, 7
      %v1843 = vsub.s32 %v1840, %v1842
      %v1844 = vrot.slane %v1837, %v1843
      %v1845 = vcombine.low %v1817, %v1824
      %v1847 = vunpack.c.l.s4 1983009808
      %v1848 = vunpack.c.0.s8 %v1847
      %v1849 = vlaneseq
      %v1850 = vshrl.u32 %v1849, 7
      %v1851 = vsub.s32 %v1848, %v1850
      %v1852 = vrot.slane %v1845, %v1851
      %v1853 = vcombine.low %v1827, %v1828
      %v1855 = vunpack.c.l.s4 1983009808
      %v1856 = vunpack.c.0.s8 %v1855
      %v1857 = vlaneseq
      %v1858 = vshrl.u32 %v1857, 7
      %v1859 = vsub.s32 %v1856, %v1858
      %v1860 = vrot.slane %v1853, %v1859
      %v1861 = vcombine.low %v1836, %v1844
      %v1862 = vcombine.high %v1836, %v1844
      %v1864 = vunpack.c.l.s4 1934713408
      %v1865 = vunpack.c.0.s8 %v1864
      %v1866 = vlaneseq
      %v1867 = vshrl.u32 %v1866, 7
      %v1868 = vsub.s32 %v1865, %v1867
      %v1869 = vrot.slane %v1861, %v1868
      %v1871 = vunpack.c.l.s4 1934713408
      %v1872 = vunpack.c.0.s8 %v1871
      %v1873 = vlaneseq
      %v1874 = vshrl.u32 %v1873, 7
      %v1875 = vsub.s32 %v1872, %v1874
      %v1876 = vrot.slane %v1862, %v1875
      %v1877 = vcombine.low %v1852, %v1860
      %v1878 = vcombine.high %v1852, %v1860
      %v1880 = vunpack.c.l.s4 1934713408
      %v1881 = vunpack.c.0.s8 %v1880
      %v1882 = vlaneseq
      %v1883 = vshrl.u32 %v1882, 7
      %v1884 = vsub.s32 %v1881, %v1883
      %v1885 = vrot.slane %v1877, %v1884
      %v1887 = vunpack.c.l.s4 1934713408
      %v1888 = vunpack.c.0.s8 %v1887
      %v1889 = vlaneseq
      %v1890 = vshrl.u32 %v1889, 7
      %v1891 = vsub.s32 %v1888, %v1890
      %v1892 = vrot.slane %v1878, %v1891
      %v1893 = vcombine.low %v1869, %v1885
      %v1894 = vcombine.high %v1869, %v1885
      %v1895 = vcombine.low %v1876, %v1892
      %v1896 = vcombine.high %v1876, %v1892
      %1898 = vrot.lane.b32.xlu0 %v1894, 8
      %v1899 = vpop.permute.xlu0 %1898
      %1902 = vrot.lane.b32.xlu0 %v1895, 16
      %v1903 = vpop.permute.xlu0 %1902
      %1906 = vrot.lane.b32.xlu0 %v1896, 24
      %v1907 = vpop.permute.xlu0 %1906
      %v1909 = vsel %vm1328, %v1893, %v1899
      %vm1910 = vcmask 130048
      %v1911 = vsel %vm1910, %v1909, %v1903
      %vm1912 = vcmask 195584
      %v1913 = vsel %vm1912, %v1911, %v1907
      %v1914 = vld [vmem:[%s8] sm:$0xff]
      %v1915 = vld [vmem:[%s8 + $0x8] sm:$0xff]
      %v1916 = vld [vmem:[%s8 + $0x10] sm:$0xff]
      %v1917 = vld [vmem:[%s8 + $0x18] sm:$0xff]
      %v1918 = vld [vmem:[%s9] sm:$0x1]
      %v1919 = vpack.c.bf16 %v1913, %v1913
      %v1920 = vpack.c.bf16 %v1915, %v1914
      %v1921 = vpack.c.bf16 %v1917, %v1916
      %v1923 = vlaneseq
      %v1924 = vshrl.u32 %v1923, 7
      %v1925 = vsub.s32 0, %v1924
      %v1926 = vrot.slane %v1918, %v1925
      %v1929 = vsel %vm792, %v1919, 0
      %1931 = vmatprep.subr.bf16.mxu0 0
      %1932 = vmatpush1.bf16.msra.mxu0 %v1920
      %1933 = vmatprep.subr.bf16.mxu0 0
      %1934 = vmatpush1.bf16.msra.mxu0 %v1921
      %1935 = vmatprep.subr.bf16.mxu0 0
      %1936 = vmatpush1.bf16.msra.mxu0 0
      %1937 = vmatprep.subr.bf16.mxu0 0
      %1938 = vmatpush1.bf16.msra.mxu0 0
      %1939 = vmatprep.subr.bf16.mxu0 0
      %1940 = vmatpush1.bf16.msra.mxu0 0
      %1941 = vmatprep.subr.bf16.mxu0 0
      %1942 = vmatpush1.bf16.msra.mxu0 0
      %1943 = vmatprep.subr.bf16.mxu0 0
      %1944 = vmatpush1.bf16.msra.mxu0 0
      %1945 = vmatprep.subr.bf16.mxu0 0
      %1946 = vmatpush1.bf16.msra.mxu0 0
      %1947 = vmatprep.subr.bf16.mxu0 0
      %1948 = vmatpush1.bf16.msra.mxu0 0
      %1949 = vmatprep.subr.bf16.mxu0 0
      %1950 = vmatpush1.bf16.msra.mxu0 0
      %1951 = vmatprep.subr.bf16.mxu0 0
      %1952 = vmatpush1.bf16.msra.mxu0 0
      %1953 = vmatprep.subr.bf16.mxu0 0
      %1954 = vmatpush1.bf16.msra.mxu0 0
      %1955 = vmatprep.subr.bf16.mxu0 0
      %1956 = vmatpush1.bf16.msra.mxu0 0
      %1957 = vmatprep.subr.bf16.mxu0 0
      %1958 = vmatpush1.bf16.msra.mxu0 0
      %1959 = vmatprep.subr.bf16.mxu0 0
      %1960 = vmatpush1.bf16.msra.mxu0 0
      %1961 = vmatprep.subr.bf16.mxu0 0
      %1962 = vmatpush1.bf16.msra.mxu0 0
      %1963 = vmatprep.mubr.bf16.mxu0 0
      %1964 = vmatmul.mubr.bf16.gmra.mrb[0].mxu0 %v1929
      %v1965 = vpop.f32.mrb[0].mxu0
      %v1966 = vadd.f32 %v1926, %v1965
      %v1967 = vpop.f32.mrb[0].mxu0
      %v1968 = vpop.f32.mrb[0].mxu0
      %v1969 = vpop.f32.mrb[0].mxu0
      %1970 = vdwg.mxu0
      %v1971 = vadd.f32 %v785, %v1966
      %v1972 = vld [vmem:[%s10] sm:$0x1]
      %v1973 = vld [vmem:[%s11] sm:$0x1]
      %v1974 = vsel %vm792, %v1971, 0.0
      %1975 = vadd.xlane.f32.xlu0 %v1974
      %v1976 = vpop.xlane.xlu0 %1975
      %v1977 = vmul.f32 %v1976, %v796
      %v1978 = vsub.f32 %v1971, %v1977
      %v1979 = vmul.f32 %v1978, %v1978
      %v1980 = vsel %vm792, %v1979, 0.0
      %1981 = vadd.xlane.f32.xlu0 %v1980
      %v1982 = vpop.xlane.xlu0 %1981
      %v1983 = vmul.f32 %v1982, %v796
      %v1984 = vadd.f32 %v1983, 1e-05
      %v1985 = vrsqrt.pop %v1984
      %v1986 = vmul.f32 %v1978, %v1985
      %v1988 = vlaneseq
      %v1989 = vshrl.u32 %v1988, 7
      %v1990 = vsub.s32 0, %v1989
      %v1991 = vrot.slane %v1972, %v1990
      %v1993 = vmul.f32 %v1986, %v1991
      %v1995 = vlaneseq
      %v1996 = vshrl.u32 %v1995, 7
      %v1997 = vsub.s32 0, %v1996
      %v1998 = vrot.slane %v1973, %v1997
      %v2000 = vadd.f32 %v1993, %v1998
      %v2001 = vld [vmem:[%s12] sm:$0xff]
      %v2002 = vld [vmem:[%s12 + $0x8] sm:$0xff]
      %v2003 = vld [vmem:[%s12 + $0x10] sm:$0xff]
      %v2004 = vld [vmem:[%s12 + $0x18] sm:$0xff]
      %v2005 = vld [vmem:[%s13] sm:$0x1]
      %v2006 = vpack.c.bf16 %v2000, %v2000
      %v2007 = vpack.c.bf16 %v2002, %v2001
      %v2008 = vpack.c.bf16 %v2004, %v2003
      %v2010 = vlaneseq
      %v2011 = vshrl.u32 %v2010, 7
      %v2012 = vsub.s32 0, %v2011
      %v2013 = vrot.slane %v2005, %v2012
      %v2016 = vsel %vm792, %v2006, 0
      %2018 = vmatprep.subr.bf16.mxu0 0
      %2019 = vmatpush1.bf16.msra.mxu0 %v2007
      %2020 = vmatprep.subr.bf16.mxu0 0
      %2021 = vmatpush1.bf16.msra.mxu0 %v2008
      %2022 = vmatprep.subr.bf16.mxu0 0
      %2023 = vmatpush1.bf16.msra.mxu0 0
      %2024 = vmatprep.subr.bf16.mxu0 0
      %2025 = vmatpush1.bf16.msra.mxu0 0
      %2026 = vmatprep.subr.bf16.mxu0 0
      %2027 = vmatpush1.bf16.msra.mxu0 0
      %2028 = vmatprep.subr.bf16.mxu0 0
      %2029 = vmatpush1.bf16.msra.mxu0 0
      %2030 = vmatprep.subr.bf16.mxu0 0
      %2031 = vmatpush1.bf16.msra.mxu0 0
      %2032 = vmatprep.subr.bf16.mxu0 0
      %2033 = vmatpush1.bf16.msra.mxu0 0
      %2034 = vmatprep.subr.bf16.mxu0 0
      %2035 = vmatpush1.bf16.msra.mxu0 0
      %2036 = vmatprep.subr.bf16.mxu0 0
      %2037 = vmatpush1.bf16.msra.mxu0 0
      %2038 = vmatprep.subr.bf16.mxu0 0
      %2039 = vmatpush1.bf16.msra.mxu0 0
      %2040 = vmatprep.subr.bf16.mxu0 0
      %2041 = vmatpush1.bf16.msra.mxu0 0
      %2042 = vmatprep.subr.bf16.mxu0 0
      %2043 = vmatpush1.bf16.msra.mxu0 0
      %2044 = vmatprep.subr.bf16.mxu0 0
      %2045 = vmatpush1.bf16.msra.mxu0 0
      %2046 = vmatprep.subr.bf16.mxu0 0
      %2047 = vmatpush1.bf16.msra.mxu0 0
      %2048 = vmatprep.subr.bf16.mxu0 0
      %2049 = vmatpush1.bf16.msra.mxu0 0
      %2050 = vmatprep.mubr.bf16.mxu0 0
      %2051 = vmatmul.mubr.bf16.gmra.mrb[0].mxu0 %v2016
      %v2052 = vpop.f32.mrb[0].mxu0
      %v2053 = vadd.f32 %v2013, %v2052
      %v2054 = vpop.f32.mrb[0].mxu0
      %v2055 = vpop.f32.mrb[0].mxu0
      %v2056 = vpop.f32.mrb[0].mxu0
      %2057 = vdwg.mxu0
      %2059 = vrot.lane.b32.xlu0 %v2053, 120
      %v2060 = vpop.permute.xlu0 %2059
      %2062 = vrot.lane.b32.xlu0 %v2053, 112
      %v2063 = vpop.permute.xlu0 %2062
      %2065 = vrot.lane.b32.xlu0 %v2053, 104
      %v2066 = vpop.permute.xlu0 %2065
      %v2068 = vcombine.low %v2053, %v2063
      %v2069 = vcombine.high %v2053, %v2063
      %v2071 = vunpack.c.l.s4 1983009808
      %v2072 = vunpack.c.0.s8 %v2071
      %v2073 = vlaneseq
      %v2074 = vshrl.u32 %v2073, 7
      %v2075 = vsub.s32 %v2072, %v2074
      %v2076 = vrot.slane %v2068, %v2075
      %v2078 = vunpack.c.l.s4 1983009808
      %v2079 = vunpack.c.0.s8 %v2078
      %v2080 = vlaneseq
      %v2081 = vshrl.u32 %v2080, 7
      %v2082 = vsub.s32 %v2079, %v2081
      %v2083 = vrot.slane %v2069, %v2082
      %v2084 = vcombine.low %v2060, %v2066
      %v2085 = vcombine.high %v2060, %v2066
      %v2087 = vunpack.c.l.s4 1983009808
      %v2088 = vunpack.c.0.s8 %v2087
      %v2089 = vlaneseq
      %v2090 = vshrl.u32 %v2089, 7
      %v2091 = vsub.s32 %v2088, %v2090
      %v2092 = vrot.slane %v2084, %v2091
      %v2094 = vunpack.c.l.s4 1983009808
      %v2095 = vunpack.c.0.s8 %v2094
      %v2096 = vlaneseq
      %v2097 = vshrl.u32 %v2096, 7
      %v2098 = vsub.s32 %v2095, %v2097
      %v2099 = vrot.slane %v2085, %v2098
      %v2100 = vcombine.low %v2076, %v2092
      %v2101 = vcombine.high %v2076, %v2092
      %v2103 = vunpack.c.l.s4 1934713408
      %v2104 = vunpack.c.0.s8 %v2103
      %v2105 = vlaneseq
      %v2106 = vshrl.u32 %v2105, 7
      %v2107 = vsub.s32 %v2104, %v2106
      %v2108 = vrot.slane %v2100, %v2107
      %v2110 = vunpack.c.l.s4 1934713408
      %v2111 = vunpack.c.0.s8 %v2110
      %v2112 = vlaneseq
      %v2113 = vshrl.u32 %v2112, 7
      %v2114 = vsub.s32 %v2111, %v2113
      %v2115 = vrot.slane %v2101, %v2114
      %v2116 = vcombine.low %v2083, %v2099
      %v2117 = vcombine.high %v2083, %v2099
      %v2119 = vunpack.c.l.s4 1934713408
      %v2120 = vunpack.c.0.s8 %v2119
      %v2121 = vlaneseq
      %v2122 = vshrl.u32 %v2121, 7
      %v2123 = vsub.s32 %v2120, %v2122
      %v2124 = vrot.slane %v2116, %v2123
      %v2126 = vunpack.c.l.s4 1934713408
      %v2127 = vunpack.c.0.s8 %v2126
      %v2128 = vlaneseq
      %v2129 = vshrl.u32 %v2128, 7
      %v2130 = vsub.s32 %v2127, %v2129
      %v2131 = vrot.slane %v2117, %v2130
      %v2132 = vcombine.high %v2108, 0.0
      %v2133 = vcombine.high %v2115, 0.0
      %v2134 = vcombine.high %v2124, 0.0
      %v2135 = vcombine.high %v2131, 0.0
      %v2136 = vcombine.low %v2108, %v2115
      %v2138 = vunpack.c.l.s4 1983009808
      %v2139 = vunpack.c.0.s8 %v2138
      %v2140 = vlaneseq
      %v2141 = vshrl.u32 %v2140, 7
      %v2142 = vsub.s32 %v2139, %v2141
      %v2143 = vrot.slane %v2136, %v2142
      %v2144 = vcombine.low %v2132, %v2133
      %v2146 = vunpack.c.l.s4 1983009808
      %v2147 = vunpack.c.0.s8 %v2146
      %v2148 = vlaneseq
      %v2149 = vshrl.u32 %v2148, 7
      %v2150 = vsub.s32 %v2147, %v2149
      %v2151 = vrot.slane %v2144, %v2150
      %v2152 = vcombine.low %v2124, %v2131
      %v2154 = vunpack.c.l.s4 1983009808
      %v2155 = vunpack.c.0.s8 %v2154
      %v2156 = vlaneseq
      %v2157 = vshrl.u32 %v2156, 7
      %v2158 = vsub.s32 %v2155, %v2157
      %v2159 = vrot.slane %v2152, %v2158
      %v2160 = vcombine.low %v2134, %v2135
      %v2162 = vunpack.c.l.s4 1983009808
      %v2163 = vunpack.c.0.s8 %v2162
      %v2164 = vlaneseq
      %v2165 = vshrl.u32 %v2164, 7
      %v2166 = vsub.s32 %v2163, %v2165
      %v2167 = vrot.slane %v2160, %v2166
      %v2168 = vcombine.low %v2143, %v2151
      %v2169 = vcombine.high %v2143, %v2151
      %v2171 = vunpack.c.l.s4 1934713408
      %v2172 = vunpack.c.0.s8 %v2171
      %v2173 = vlaneseq
      %v2174 = vshrl.u32 %v2173, 7
      %v2175 = vsub.s32 %v2172, %v2174
      %v2176 = vrot.slane %v2168, %v2175
      %v2178 = vunpack.c.l.s4 1934713408
      %v2179 = vunpack.c.0.s8 %v2178
      %v2180 = vlaneseq
      %v2181 = vshrl.u32 %v2180, 7
      %v2182 = vsub.s32 %v2179, %v2181
      %v2183 = vrot.slane %v2169, %v2182
      %v2184 = vcombine.low %v2159, %v2167
      %v2185 = vcombine.high %v2159, %v2167
      %v2187 = vunpack.c.l.s4 1934713408
      %v2188 = vunpack.c.0.s8 %v2187
      %v2189 = vlaneseq
      %v2190 = vshrl.u32 %v2189, 7
      %v2191 = vsub.s32 %v2188, %v2190
      %v2192 = vrot.slane %v2184, %v2191
      %v2194 = vunpack.c.l.s4 1934713408
      %v2195 = vunpack.c.0.s8 %v2194
      %v2196 = vlaneseq
      %v2197 = vshrl.u32 %v2196, 7
      %v2198 = vsub.s32 %v2195, %v2197
      %v2199 = vrot.slane %v2185, %v2198
      %v2200 = vcombine.low %v2176, %v2192
      %v2201 = vcombine.high %v2176, %v2192
      %v2202 = vcombine.low %v2183, %v2199
      %v2203 = vcombine.high %v2183, %v2199
      %v2204 = vld [vmem:[%s14] sm:$0xff]
      %v2205 = vld [vmem:[%s14 + $0x8] sm:$0xff]
      %v2206 = vld [vmem:[%s14 + $0x10] sm:$0xff]
      %v2207 = vld [vmem:[%s14 + $0x18] sm:$0xff]
      %v2208 = vld [vmem:[%s15] sm:$0x1]
      %v2209 = vpack.c.bf16 %v787, %v786
      %v2210 = vpack.c.bf16 %v2205, %v2204
      %v2211 = vpack.c.bf16 %v2207, %v2206
      %v2213 = vlaneseq
      %v2214 = vshrl.u32 %v2213, 7
      %v2215 = vsub.s32 0, %v2214
      %v2216 = vrot.slane %v2208, %v2215
      %v2219 = vsel %vm792, %v2209, 0
      %2221 = vmatprep.subr.bf16.mxu0 0
      %2222 = vmatpush1.bf16.msra.mxu0 %v2210
      %2223 = vmatprep.subr.bf16.mxu0 0
      %2224 = vmatpush1.bf16.msra.mxu0 %v2211
      %2225 = vmatprep.subr.bf16.mxu0 0
      %2226 = vmatpush1.bf16.msra.mxu0 0
      %2227 = vmatprep.subr.bf16.mxu0 0
      %2228 = vmatpush1.bf16.msra.mxu0 0
      %2229 = vmatprep.subr.bf16.mxu0 0
      %2230 = vmatpush1.bf16.msra.mxu0 0
      %2231 = vmatprep.subr.bf16.mxu0 0
      %2232 = vmatpush1.bf16.msra.mxu0 0
      %2233 = vmatprep.subr.bf16.mxu0 0
      %2234 = vmatpush1.bf16.msra.mxu0 0
      %2235 = vmatprep.subr.bf16.mxu0 0
      %2236 = vmatpush1.bf16.msra.mxu0 0
      %2237 = vmatprep.subr.bf16.mxu0 0
      %2238 = vmatpush1.bf16.msra.mxu0 0
      %2239 = vmatprep.subr.bf16.mxu0 0
      %2240 = vmatpush1.bf16.msra.mxu0 0
      %2241 = vmatprep.subr.bf16.mxu0 0
      %2242 = vmatpush1.bf16.msra.mxu0 0
      %2243 = vmatprep.subr.bf16.mxu0 0
      %2244 = vmatpush1.bf16.msra.mxu0 0
      %2245 = vmatprep.subr.bf16.mxu0 0
      %2246 = vmatpush1.bf16.msra.mxu0 0
      %2247 = vmatprep.subr.bf16.mxu0 0
      %2248 = vmatpush1.bf16.msra.mxu0 0
      %2249 = vmatprep.subr.bf16.mxu0 0
      %2250 = vmatpush1.bf16.msra.mxu0 0
      %2251 = vmatprep.subr.bf16.mxu0 0
      %2252 = vmatpush1.bf16.msra.mxu0 0
      %2253 = vmatprep.mubr.bf16.mxu0 0
      %2254 = vmatmul.mubr.bf16.gmra.mrb[0].mxu0 %v2219
      %v2255 = vpop.f32.mrb[0].mxu0
      %v2256 = vadd.f32 %v2216, %v2255
      %v2257 = vpop.f32.mrb[0].mxu0
      %v2258 = vpop.f32.mrb[0].mxu0
      %v2259 = vadd.f32 %v2216, %v2258
      %v2260 = vpop.f32.mrb[0].mxu0
      %2261 = vdwg.mxu0
      %2264 = vrot.lane.b32.xlu0 %v2256, 120
      %v2265 = vpop.permute.xlu0 %2264
      %2266 = vrot.lane.b32.xlu0 %v2259, 120
      %v2267 = vpop.permute.xlu0 %2266
      %2270 = vrot.lane.b32.xlu0 %v2256, 112
      %v2271 = vpop.permute.xlu0 %2270
      %2272 = vrot.lane.b32.xlu0 %v2259, 112
      %v2273 = vpop.permute.xlu0 %2272
      %2276 = vrot.lane.b32.xlu0 %v2256, 104
      %v2277 = vpop.permute.xlu0 %2276
      %2278 = vrot.lane.b32.xlu0 %v2259, 104
      %v2279 = vpop.permute.xlu0 %2278
      %v2282 = vcombine.low %v2256, %v2271
      %v2283 = vcombine.high %v2256, %v2271
      %v2285 = vunpack.c.l.s4 1983009808
      %v2286 = vunpack.c.0.s8 %v2285
      %v2287 = vlaneseq
      %v2288 = vshrl.u32 %v2287, 7
      %v2289 = vsub.s32 %v2286, %v2288
      %v2290 = vrot.slane %v2282, %v2289
      %v2292 = vunpack.c.l.s4 1983009808
      %v2293 = vunpack.c.0.s8 %v2292
      %v2294 = vlaneseq
      %v2295 = vshrl.u32 %v2294, 7
      %v2296 = vsub.s32 %v2293, %v2295
      %v2297 = vrot.slane %v2283, %v2296
      %v2298 = vcombine.low %v2265, %v2277
      %v2299 = vcombine.high %v2265, %v2277
      %v2301 = vunpack.c.l.s4 1983009808
      %v2302 = vunpack.c.0.s8 %v2301
      %v2303 = vlaneseq
      %v2304 = vshrl.u32 %v2303, 7
      %v2305 = vsub.s32 %v2302, %v2304
      %v2306 = vrot.slane %v2298, %v2305
      %v2308 = vunpack.c.l.s4 1983009808
      %v2309 = vunpack.c.0.s8 %v2308
      %v2310 = vlaneseq
      %v2311 = vshrl.u32 %v2310, 7
      %v2312 = vsub.s32 %v2309, %v2311
      %v2313 = vrot.slane %v2299, %v2312
      %v2314 = vcombine.low %v2290, %v2306
      %v2315 = vcombine.high %v2290, %v2306
      %v2317 = vunpack.c.l.s4 1934713408
      %v2318 = vunpack.c.0.s8 %v2317
      %v2319 = vlaneseq
      %v2320 = vshrl.u32 %v2319, 7
      %v2321 = vsub.s32 %v2318, %v2320
      %v2322 = vrot.slane %v2314, %v2321
      %v2324 = vunpack.c.l.s4 1934713408
      %v2325 = vunpack.c.0.s8 %v2324
      %v2326 = vlaneseq
      %v2327 = vshrl.u32 %v2326, 7
      %v2328 = vsub.s32 %v2325, %v2327
      %v2329 = vrot.slane %v2315, %v2328
      %v2330 = vcombine.low %v2297, %v2313
      %v2331 = vcombine.high %v2297, %v2313
      %v2333 = vunpack.c.l.s4 1934713408
      %v2334 = vunpack.c.0.s8 %v2333
      %v2335 = vlaneseq
      %v2336 = vshrl.u32 %v2335, 7
      %v2337 = vsub.s32 %v2334, %v2336
      %v2338 = vrot.slane %v2330, %v2337
      %v2340 = vunpack.c.l.s4 1934713408
      %v2341 = vunpack.c.0.s8 %v2340
      %v2342 = vlaneseq
      %v2343 = vshrl.u32 %v2342, 7
      %v2344 = vsub.s32 %v2341, %v2343
      %v2345 = vrot.slane %v2331, %v2344
      %v2346 = vcombine.high %v2322, 0.0
      %v2347 = vcombine.high %v2329, 0.0
      %v2348 = vcombine.high %v2338, 0.0
      %v2349 = vcombine.high %v2345, 0.0
      %v2350 = vcombine.low %v2259, %v2273
      %v2351 = vcombine.high %v2259, %v2273
      %v2353 = vunpack.c.l.s4 1983009808
      %v2354 = vunpack.c.0.s8 %v2353
      %v2355 = vlaneseq
      %v2356 = vshrl.u32 %v2355, 7
      %v2357 = vsub.s32 %v2354, %v2356
      %v2358 = vrot.slane %v2350, %v2357
      %v2360 = vunpack.c.l.s4 1983009808
      %v2361 = vunpack.c.0.s8 %v2360
      %v2362 = vlaneseq
      %v2363 = vshrl.u32 %v2362, 7
      %v2364 = vsub.s32 %v2361, %v2363
      %v2365 = vrot.slane %v2351, %v2364
      %v2366 = vcombine.low %v2267, %v2279
      %v2367 = vcombine.high %v2267, %v2279
      %v2369 = vunpack.c.l.s4 1983009808
      %v2370 = vunpack.c.0.s8 %v2369
      %v2371 = vlaneseq
      %v2372 = vshrl.u32 %v2371, 7
      %v2373 = vsub.s32 %v2370, %v2372
      %v2374 = vrot.slane %v2366, %v2373
      %v2376 = vunpack.c.l.s4 1983009808
      %v2377 = vunpack.c.0.s8 %v2376
      %v2378 = vlaneseq
      %v2379 = vshrl.u32 %v2378, 7
      %v2380 = vsub.s32 %v2377, %v2379
      %v2381 = vrot.slane %v2367, %v2380
      %v2382 = vcombine.low %v2358, %v2374
      %v2383 = vcombine.high %v2358, %v2374
      %v2385 = vunpack.c.l.s4 1934713408
      %v2386 = vunpack.c.0.s8 %v2385
      %v2387 = vlaneseq
      %v2388 = vshrl.u32 %v2387, 7
      %v2389 = vsub.s32 %v2386, %v2388
      %v2390 = vrot.slane %v2382, %v2389
      %v2392 = vunpack.c.l.s4 1934713408
      %v2393 = vunpack.c.0.s8 %v2392
      %v2394 = vlaneseq
      %v2395 = vshrl.u32 %v2394, 7
      %v2396 = vsub.s32 %v2393, %v2395
      %v2397 = vrot.slane %v2383, %v2396
      %v2398 = vcombine.low %v2365, %v2381
      %v2399 = vcombine.high %v2365, %v2381
      %v2401 = vunpack.c.l.s4 1934713408
      %v2402 = vunpack.c.0.s8 %v2401
      %v2403 = vlaneseq
      %v2404 = vshrl.u32 %v2403, 7
      %v2405 = vsub.s32 %v2402, %v2404
      %v2406 = vrot.slane %v2398, %v2405
      %v2408 = vunpack.c.l.s4 1934713408
      %v2409 = vunpack.c.0.s8 %v2408
      %v2410 = vlaneseq
      %v2411 = vshrl.u32 %v2410, 7
      %v2412 = vsub.s32 %v2409, %v2411
      %v2413 = vrot.slane %v2399, %v2412
      %v2414 = vcombine.high %v2390, 0.0
      %v2415 = vcombine.high %v2397, 0.0
      %v2416 = vcombine.high %v2406, 0.0
      %v2417 = vcombine.high %v2413, 0.0
      %v2418 = vcombine.low %v2322, %v2329
      %v2420 = vunpack.c.l.s4 1983009808
      %v2421 = vunpack.c.0.s8 %v2420
      %v2422 = vlaneseq
      %v2423 = vshrl.u32 %v2422, 7
      %v2424 = vsub.s32 %v2421, %v2423
      %v2425 = vrot.slane %v2418, %v2424
      %v2426 = vcombine.low %v2346, %v2347
      %v2428 = vunpack.c.l.s4 1983009808
      %v2429 = vunpack.c.0.s8 %v2428
      %v2430 = vlaneseq
      %v2431 = vshrl.u32 %v2430, 7
      %v2432 = vsub.s32 %v2429, %v2431
      %v2433 = vrot.slane %v2426, %v2432
      %v2434 = vcombine.low %v2338, %v2345
      %v2436 = vunpack.c.l.s4 1983009808
      %v2437 = vunpack.c.0.s8 %v2436
      %v2438 = vlaneseq
      %v2439 = vshrl.u32 %v2438, 7
      %v2440 = vsub.s32 %v2437, %v2439
      %v2441 = vrot.slane %v2434, %v2440
      %v2442 = vcombine.low %v2348, %v2349
      %v2444 = vunpack.c.l.s4 1983009808
      %v2445 = vunpack.c.0.s8 %v2444
      %v2446 = vlaneseq
      %v2447 = vshrl.u32 %v2446, 7
      %v2448 = vsub.s32 %v2445, %v2447
      %v2449 = vrot.slane %v2442, %v2448
      %v2450 = vcombine.low %v2425, %v2433
      %v2451 = vcombine.high %v2425, %v2433
      %v2453 = vunpack.c.l.s4 1934713408
      %v2454 = vunpack.c.0.s8 %v2453
      %v2455 = vlaneseq
      %v2456 = vshrl.u32 %v2455, 7
      %v2457 = vsub.s32 %v2454, %v2456
      %v2458 = vrot.slane %v2450, %v2457
      %v2460 = vunpack.c.l.s4 1934713408
      %v2461 = vunpack.c.0.s8 %v2460
      %v2462 = vlaneseq
      %v2463 = vshrl.u32 %v2462, 7
      %v2464 = vsub.s32 %v2461, %v2463
      %v2465 = vrot.slane %v2451, %v2464
      %v2466 = vcombine.low %v2441, %v2449
      %v2467 = vcombine.high %v2441, %v2449
      %v2469 = vunpack.c.l.s4 1934713408
      %v2470 = vunpack.c.0.s8 %v2469
      %v2471 = vlaneseq
      %v2472 = vshrl.u32 %v2471, 7
      %v2473 = vsub.s32 %v2470, %v2472
      %v2474 = vrot.slane %v2466, %v2473
      %v2476 = vunpack.c.l.s4 1934713408
      %v2477 = vunpack.c.0.s8 %v2476
      %v2478 = vlaneseq
      %v2479 = vshrl.u32 %v2478, 7
      %v2480 = vsub.s32 %v2477, %v2479
      %v2481 = vrot.slane %v2467, %v2480
      %v2482 = vcombine.low %v2458, %v2474
      %v2483 = vcombine.high %v2458, %v2474
      %v2484 = vcombine.low %v2465, %v2481
      %v2485 = vcombine.high %v2465, %v2481
      %v2486 = vcombine.low %v2390, %v2397
      %v2488 = vunpack.c.l.s4 1983009808
      %v2489 = vunpack.c.0.s8 %v2488
      %v2490 = vlaneseq
      %v2491 = vshrl.u32 %v2490, 7
      %v2492 = vsub.s32 %v2489, %v2491
      %v2493 = vrot.slane %v2486, %v2492
      %v2494 = vcombine.low %v2414, %v2415
      %v2496 = vunpack.c.l.s4 1983009808
      %v2497 = vunpack.c.0.s8 %v2496
      %v2498 = vlaneseq
      %v2499 = vshrl.u32 %v2498, 7
      %v2500 = vsub.s32 %v2497, %v2499
      %v2501 = vrot.slane %v2494, %v2500
      %v2502 = vcombine.low %v2406, %v2413
      %v2504 = vunpack.c.l.s4 1983009808
      %v2505 = vunpack.c.0.s8 %v2504
      %v2506 = vlaneseq
      %v2507 = vshrl.u32 %v2506, 7
      %v2508 = vsub.s32 %v2505, %v2507
      %v2509 = vrot.slane %v2502, %v2508
      %v2510 = vcombine.low %v2416, %v2417
      %v2512 = vunpack.c.l.s4 1983009808
      %v2513 = vunpack.c.0.s8 %v2512
      %v2514 = vlaneseq
      %v2515 = vshrl.u32 %v2514, 7
      %v2516 = vsub.s32 %v2513, %v2515
      %v2517 = vrot.slane %v2510, %v2516
      %v2518 = vcombine.low %v2493, %v2501
      %v2519 = vcombine.high %v2493, %v2501
      %v2521 = vunpack.c.l.s4 1934713408
      %v2522 = vunpack.c.0.s8 %v2521
      %v2523 = vlaneseq
      %v2524 = vshrl.u32 %v2523, 7
      %v2525 = vsub.s32 %v2522, %v2524
      %v2526 = vrot.slane %v2518, %v2525
      %v2528 = vunpack.c.l.s4 1934713408
      %v2529 = vunpack.c.0.s8 %v2528
      %v2530 = vlaneseq
      %v2531 = vshrl.u32 %v2530, 7
      %v2532 = vsub.s32 %v2529, %v2531
      %v2533 = vrot.slane %v2519, %v2532
      %v2534 = vcombine.low %v2509, %v2517
      %v2535 = vcombine.high %v2509, %v2517
      %v2537 = vunpack.c.l.s4 1934713408
      %v2538 = vunpack.c.0.s8 %v2537
      %v2539 = vlaneseq
      %v2540 = vshrl.u32 %v2539, 7
      %v2541 = vsub.s32 %v2538, %v2540
      %v2542 = vrot.slane %v2534, %v2541
      %v2544 = vunpack.c.l.s4 1934713408
      %v2545 = vunpack.c.0.s8 %v2544
      %v2546 = vlaneseq
      %v2547 = vshrl.u32 %v2546, 7
      %v2548 = vsub.s32 %v2545, %v2547
      %v2549 = vrot.slane %v2535, %v2548
      %v2550 = vcombine.low %v2526, %v2542
      %v2551 = vcombine.high %v2526, %v2542
      %v2552 = vcombine.low %v2533, %v2549
      %v2553 = vcombine.high %v2533, %v2549
      %2554 = vrot.lane.b32.xlu0 %v2256, 96
      %v2555 = vpop.permute.xlu0 %2554
      %2556 = vrot.lane.b32.xlu0 %v2259, 96
      %v2557 = vpop.permute.xlu0 %2556
      %2558 = vrot.lane.b32.xlu0 %v2265, 96
      %v2559 = vpop.permute.xlu0 %2558
      %2560 = vrot.lane.b32.xlu0 %v2267, 96
      %v2561 = vpop.permute.xlu0 %2560
      %2562 = vrot.lane.b32.xlu0 %v2271, 96
      %v2563 = vpop.permute.xlu0 %2562
      %2564 = vrot.lane.b32.xlu0 %v2273, 96
      %v2565 = vpop.permute.xlu0 %2564
      %2566 = vrot.lane.b32.xlu0 %v2277, 96
      %v2567 = vpop.permute.xlu0 %2566
      %2568 = vrot.lane.b32.xlu0 %v2279, 96
      %v2569 = vpop.permute.xlu0 %2568
      %v2578 = vcombine.low %v2555, %v2563
      %v2579 = vcombine.high %v2555, %v2563
      %v2581 = vunpack.c.l.s4 1983009808
      %v2582 = vunpack.c.0.s8 %v2581
      %v2583 = vlaneseq
      %v2584 = vshrl.u32 %v2583, 7
      %v2585 = vsub.s32 %v2582, %v2584
      %v2586 = vrot.slane %v2578, %v2585
      %v2588 = vunpack.c.l.s4 1983009808
      %v2589 = vunpack.c.0.s8 %v2588
      %v2590 = vlaneseq
      %v2591 = vshrl.u32 %v2590, 7
      %v2592 = vsub.s32 %v2589, %v2591
      %v2593 = vrot.slane %v2579, %v2592
      %v2594 = vcombine.low %v2559, %v2567
      %v2595 = vcombine.high %v2559, %v2567
      %v2597 = vunpack.c.l.s4 1983009808
      %v2598 = vunpack.c.0.s8 %v2597
      %v2599 = vlaneseq
      %v2600 = vshrl.u32 %v2599, 7
      %v2601 = vsub.s32 %v2598, %v2600
      %v2602 = vrot.slane %v2594, %v2601
      %v2604 = vunpack.c.l.s4 1983009808
      %v2605 = vunpack.c.0.s8 %v2604
      %v2606 = vlaneseq
      %v2607 = vshrl.u32 %v2606, 7
      %v2608 = vsub.s32 %v2605, %v2607
      %v2609 = vrot.slane %v2595, %v2608
      %v2610 = vcombine.low %v2586, %v2602
      %v2611 = vcombine.high %v2586, %v2602
      %v2613 = vunpack.c.l.s4 1934713408
      %v2614 = vunpack.c.0.s8 %v2613
      %v2615 = vlaneseq
      %v2616 = vshrl.u32 %v2615, 7
      %v2617 = vsub.s32 %v2614, %v2616
      %v2618 = vrot.slane %v2610, %v2617
      %v2620 = vunpack.c.l.s4 1934713408
      %v2621 = vunpack.c.0.s8 %v2620
      %v2622 = vlaneseq
      %v2623 = vshrl.u32 %v2622, 7
      %v2624 = vsub.s32 %v2621, %v2623
      %v2625 = vrot.slane %v2611, %v2624
      %v2626 = vcombine.low %v2593, %v2609
      %v2627 = vcombine.high %v2593, %v2609
      %v2629 = vunpack.c.l.s4 1934713408
      %v2630 = vunpack.c.0.s8 %v2629
      %v2631 = vlaneseq
      %v2632 = vshrl.u32 %v2631, 7
      %v2633 = vsub.s32 %v2630, %v2632
      %v2634 = vrot.slane %v2626, %v2633
      %v2636 = vunpack.c.l.s4 1934713408
      %v2637 = vunpack.c.0.s8 %v2636
      %v2638 = vlaneseq
      %v2639 = vshrl.u32 %v2638, 7
      %v2640 = vsub.s32 %v2637, %v2639
      %v2641 = vrot.slane %v2627, %v2640
      %v2642 = vcombine.high %v2618, 0.0
      %v2643 = vcombine.high %v2625, 0.0
      %v2644 = vcombine.high %v2634, 0.0
      %v2645 = vcombine.high %v2641, 0.0
      %v2646 = vcombine.low %v2557, %v2565
      %v2647 = vcombine.high %v2557, %v2565
      %v2649 = vunpack.c.l.s4 1983009808
      %v2650 = vunpack.c.0.s8 %v2649
      %v2651 = vlaneseq
      %v2652 = vshrl.u32 %v2651, 7
      %v2653 = vsub.s32 %v2650, %v2652
      %v2654 = vrot.slane %v2646, %v2653
      %v2656 = vunpack.c.l.s4 1983009808
      %v2657 = vunpack.c.0.s8 %v2656
      %v2658 = vlaneseq
      %v2659 = vshrl.u32 %v2658, 7
      %v2660 = vsub.s32 %v2657, %v2659
      %v2661 = vrot.slane %v2647, %v2660
      %v2662 = vcombine.low %v2561, %v2569
      %v2663 = vcombine.high %v2561, %v2569
      %v2665 = vunpack.c.l.s4 1983009808
      %v2666 = vunpack.c.0.s8 %v2665
      %v2667 = vlaneseq
      %v2668 = vshrl.u32 %v2667, 7
      %v2669 = vsub.s32 %v2666, %v2668
      %v2670 = vrot.slane %v2662, %v2669
      %v2672 = vunpack.c.l.s4 1983009808
      %v2673 = vunpack.c.0.s8 %v2672
      %v2674 = vlaneseq
      %v2675 = vshrl.u32 %v2674, 7
      %v2676 = vsub.s32 %v2673, %v2675
      %v2677 = vrot.slane %v2663, %v2676
      %v2678 = vcombine.low %v2654, %v2670
      %v2679 = vcombine.high %v2654, %v2670
      %v2681 = vunpack.c.l.s4 1934713408
      %v2682 = vunpack.c.0.s8 %v2681
      %v2683 = vlaneseq
      %v2684 = vshrl.u32 %v2683, 7
      %v2685 = vsub.s32 %v2682, %v2684
      %v2686 = vrot.slane %v2678, %v2685
      %v2688 = vunpack.c.l.s4 1934713408
      %v2689 = vunpack.c.0.s8 %v2688
      %v2690 = vlaneseq
      %v2691 = vshrl.u32 %v2690, 7
      %v2692 = vsub.s32 %v2689, %v2691
      %v2693 = vrot.slane %v2679, %v2692
      %v2694 = vcombine.low %v2661, %v2677
      %v2695 = vcombine.high %v2661, %v2677
      %v2697 = vunpack.c.l.s4 1934713408
      %v2698 = vunpack.c.0.s8 %v2697
      %v2699 = vlaneseq
      %v2700 = vshrl.u32 %v2699, 7
      %v2701 = vsub.s32 %v2698, %v2700
      %v2702 = vrot.slane %v2694, %v2701
      %v2704 = vunpack.c.l.s4 1934713408
      %v2705 = vunpack.c.0.s8 %v2704
      %v2706 = vlaneseq
      %v2707 = vshrl.u32 %v2706, 7
      %v2708 = vsub.s32 %v2705, %v2707
      %v2709 = vrot.slane %v2695, %v2708
      %v2710 = vcombine.high %v2686, 0.0
      %v2711 = vcombine.high %v2693, 0.0
      %v2712 = vcombine.high %v2702, 0.0
      %v2713 = vcombine.high %v2709, 0.0
      %v2714 = vcombine.low %v2618, %v2625
      %v2716 = vunpack.c.l.s4 1983009808
      %v2717 = vunpack.c.0.s8 %v2716
      %v2718 = vlaneseq
      %v2719 = vshrl.u32 %v2718, 7
      %v2720 = vsub.s32 %v2717, %v2719
      %v2721 = vrot.slane %v2714, %v2720
      %v2722 = vcombine.low %v2642, %v2643
      %v2724 = vunpack.c.l.s4 1983009808
      %v2725 = vunpack.c.0.s8 %v2724
      %v2726 = vlaneseq
      %v2727 = vshrl.u32 %v2726, 7
      %v2728 = vsub.s32 %v2725, %v2727
      %v2729 = vrot.slane %v2722, %v2728
      %v2730 = vcombine.low %v2634, %v2641
      %v2732 = vunpack.c.l.s4 1983009808
      %v2733 = vunpack.c.0.s8 %v2732
      %v2734 = vlaneseq
      %v2735 = vshrl.u32 %v2734, 7
      %v2736 = vsub.s32 %v2733, %v2735
      %v2737 = vrot.slane %v2730, %v2736
      %v2738 = vcombine.low %v2644, %v2645
      %v2740 = vunpack.c.l.s4 1983009808
      %v2741 = vunpack.c.0.s8 %v2740
      %v2742 = vlaneseq
      %v2743 = vshrl.u32 %v2742, 7
      %v2744 = vsub.s32 %v2741, %v2743
      %v2745 = vrot.slane %v2738, %v2744
      %v2746 = vcombine.low %v2721, %v2729
      %v2747 = vcombine.high %v2721, %v2729
      %v2749 = vunpack.c.l.s4 1934713408
      %v2750 = vunpack.c.0.s8 %v2749
      %v2751 = vlaneseq
      %v2752 = vshrl.u32 %v2751, 7
      %v2753 = vsub.s32 %v2750, %v2752
      %v2754 = vrot.slane %v2746, %v2753
      %v2756 = vunpack.c.l.s4 1934713408
      %v2757 = vunpack.c.0.s8 %v2756
      %v2758 = vlaneseq
      %v2759 = vshrl.u32 %v2758, 7
      %v2760 = vsub.s32 %v2757, %v2759
      %v2761 = vrot.slane %v2747, %v2760
      %v2762 = vcombine.low %v2737, %v2745
      %v2763 = vcombine.high %v2737, %v2745
      %v2765 = vunpack.c.l.s4 1934713408
      %v2766 = vunpack.c.0.s8 %v2765
      %v2767 = vlaneseq
      %v2768 = vshrl.u32 %v2767, 7
      %v2769 = vsub.s32 %v2766, %v2768
      %v2770 = vrot.slane %v2762, %v2769
      %v2772 = vunpack.c.l.s4 1934713408
      %v2773 = vunpack.c.0.s8 %v2772
      %v2774 = vlaneseq
      %v2775 = vshrl.u32 %v2774, 7
      %v2776 = vsub.s32 %v2773, %v2775
      %v2777 = vrot.slane %v2763, %v2776
      %v2778 = vcombine.low %v2754, %v2770
      %v2779 = vcombine.high %v2754, %v2770
      %v2780 = vcombine.low %v2761, %v2777
      %v2781 = vcombine.high %v2761, %v2777
      %v2782 = vcombine.low %v2686, %v2693
      %v2784 = vunpack.c.l.s4 1983009808
      %v2785 = vunpack.c.0.s8 %v2784
      %v2786 = vlaneseq
      %v2787 = vshrl.u32 %v2786, 7
      %v2788 = vsub.s32 %v2785, %v2787
      %v2789 = vrot.slane %v2782, %v2788
      %v2790 = vcombine.low %v2710, %v2711
      %v2792 = vunpack.c.l.s4 1983009808
      %v2793 = vunpack.c.0.s8 %v2792
      %v2794 = vlaneseq
      %v2795 = vshrl.u32 %v2794, 7
      %v2796 = vsub.s32 %v2793, %v2795
      %v2797 = vrot.slane %v2790, %v2796
      %v2798 = vcombine.low %v2702, %v2709
      %v2800 = vunpack.c.l.s4 1983009808
      %v2801 = vunpack.c.0.s8 %v2800
      %v2802 = vlaneseq
      %v2803 = vshrl.u32 %v2802, 7
      %v2804 = vsub.s32 %v2801, %v2803
      %v2805 = vrot.slane %v2798, %v2804
      %v2806 = vcombine.low %v2712, %v2713
      %v2808 = vunpack.c.l.s4 1983009808
      %v2809 = vunpack.c.0.s8 %v2808
      %v2810 = vlaneseq
      %v2811 = vshrl.u32 %v2810, 7
      %v2812 = vsub.s32 %v2809, %v2811
      %v2813 = vrot.slane %v2806, %v2812
      %v2814 = vcombine.low %v2789, %v2797
      %v2815 = vcombine.high %v2789, %v2797
      %v2817 = vunpack.c.l.s4 1934713408
      %v2818 = vunpack.c.0.s8 %v2817
      %v2819 = vlaneseq
      %v2820 = vshrl.u32 %v2819, 7
      %v2821 = vsub.s32 %v2818, %v2820
      %v2822 = vrot.slane %v2814, %v2821
      %v2824 = vunpack.c.l.s4 1934713408
      %v2825 = vunpack.c.0.s8 %v2824
      %v2826 = vlaneseq
      %v2827 = vshrl.u32 %v2826, 7
      %v2828 = vsub.s32 %v2825, %v2827
      %v2829 = vrot.slane %v2815, %v2828
      %v2830 = vcombine.low %v2805, %v2813
      %v2831 = vcombine.high %v2805, %v2813
      %v2833 = vunpack.c.l.s4 1934713408
      %v2834 = vunpack.c.0.s8 %v2833
      %v2835 = vlaneseq
      %v2836 = vshrl.u32 %v2835, 7
      %v2837 = vsub.s32 %v2834, %v2836
      %v2838 = vrot.slane %v2830, %v2837
      %v2840 = vunpack.c.l.s4 1934713408
      %v2841 = vunpack.c.0.s8 %v2840
      %v2842 = vlaneseq
      %v2843 = vshrl.u32 %v2842, 7
      %v2844 = vsub.s32 %v2841, %v2843
      %v2845 = vrot.slane %v2831, %v2844
      %v2846 = vcombine.low %v2822, %v2838
      %v2847 = vcombine.high %v2822, %v2838
      %v2848 = vcombine.low %v2829, %v2845
      %v2849 = vcombine.high %v2829, %v2845
      %v2850 = vpack.c.bf16 %v2200, %v2200
      %v2851 = vpack.c.bf16 %v2201, %v2201
      %v2852 = vpack.c.bf16 %v2202, %v2202
      %v2853 = vpack.c.bf16 %v2203, %v2203
      %v2854 = vpack.c.bf16 %v2550, %v2482
      %v2855 = vpack.c.bf16 %v2551, %v2483
      %v2856 = vpack.c.bf16 %v2552, %v2484
      %v2857 = vpack.c.bf16 %v2553, %v2485
      %v2859 = vsel %vm1328, %v2850, 0
      %v2862 = vsel %vm1328, %v2854, 0
      %2864 = vmatprep.subr.bf16.mxu0 0
      %2865 = vmatpush1.bf16.xpose.msra.mxu0 %v2862
      %2866 = vmatprep.subr.bf16.mxu0 0
      %2867 = vmatpush1.bf16.xpose.msra.mxu0 0
      %2868 = vmatprep.subr.bf16.mxu0 0
      %2869 = vmatpush1.bf16.xpose.msra.mxu0 0
      %2870 = vmatprep.subr.bf16.mxu0 0
      %2871 = vmatpush1.bf16.xpose.msra.mxu0 0
      %2872 = vmatprep.subr.bf16.mxu0 0
      %2873 = vmatpush1.bf16.xpose.msra.mxu0 0
      %2874 = vmatprep.subr.bf16.mxu0 0
      %2875 = vmatpush1.bf16.xpose.msra.mxu0 0
      %2876 = vmatprep.subr.bf16.mxu0 0
      %2877 = vmatpush1.bf16.xpose.msra.mxu0 0
      %2878 = vmatprep.subr.bf16.mxu0 0
      %2879 = vmatpush1.bf16.xpose.msra.mxu0 0
      %2880 = vmatprep.subr.bf16.mxu0 0
      %2881 = vmatpush1.bf16.xpose.msra.mxu0 0
      %2882 = vmatprep.subr.bf16.mxu0 0
      %2883 = vmatpush1.bf16.xpose.msra.mxu0 0
      %2884 = vmatprep.subr.bf16.mxu0 0
      %2885 = vmatpush1.bf16.xpose.msra.mxu0 0
      %2886 = vmatprep.subr.bf16.mxu0 0
      %2887 = vmatpush1.bf16.xpose.msra.mxu0 0
      %2888 = vmatprep.subr.bf16.mxu0 0
      %2889 = vmatpush1.bf16.xpose.msra.mxu0 0
      %2890 = vmatprep.subr.bf16.mxu0 0
      %2891 = vmatpush1.bf16.xpose.msra.mxu0 0
      %2892 = vmatprep.subr.bf16.mxu0 0
      %2893 = vmatpush1.bf16.xpose.msra.mxu0 0
      %2894 = vmatprep.subr.bf16.mxu0 0
      %2895 = vmatpush1.bf16.xpose.msra.mxu0 0
      %2896 = vmatprep.mubr.bf16.mxu0 0
      %2897 = vmatmul.mubr.bf16.gmra.mrb[0].mxu0 %v2859
      %v2898 = vpop.f32.mrb[0].mxu0
      %v2899 = vadd.f32 0.0, %v2898
      %v2900 = vpop.f32.mrb[0].mxu0
      %v2901 = vpop.f32.mrb[0].mxu0
      %v2902 = vpop.f32.mrb[0].mxu0
      %2903 = vdwg.mxu0
      %v2905 = vsel %vm1328, %v2851, 0
      %v2908 = vsel %vm1328, %v2855, 0
      %2910 = vmatprep.subr.bf16.mxu0 0
      %2911 = vmatpush1.bf16.xpose.msra.mxu0 %v2908
      %2912 = vmatprep.subr.bf16.mxu0 0
      %2913 = vmatpush1.bf16.xpose.msra.mxu0 0
      %2914 = vmatprep.subr.bf16.mxu0 0
      %2915 = vmatpush1.bf16.xpose.msra.mxu0 0
      %2916 = vmatprep.subr.bf16.mxu0 0
      %2917 = vmatpush1.bf16.xpose.msra.mxu0 0
      %2918 = vmatprep.subr.bf16.mxu0 0
      %2919 = vmatpush1.bf16.xpose.msra.mxu0 0
      %2920 = vmatprep.subr.bf16.mxu0 0
      %2921 = vmatpush1.bf16.xpose.msra.mxu0 0
      %2922 = vmatprep.subr.bf16.mxu0 0
      %2923 = vmatpush1.bf16.xpose.msra.mxu0 0
      %2924 = vmatprep.subr.bf16.mxu0 0
      %2925 = vmatpush1.bf16.xpose.msra.mxu0 0
      %2926 = vmatprep.subr.bf16.mxu0 0
      %2927 = vmatpush1.bf16.xpose.msra.mxu0 0
      %2928 = vmatprep.subr.bf16.mxu0 0
      %2929 = vmatpush1.bf16.xpose.msra.mxu0 0
      %2930 = vmatprep.subr.bf16.mxu0 0
      %2931 = vmatpush1.bf16.xpose.msra.mxu0 0
      %2932 = vmatprep.subr.bf16.mxu0 0
      %2933 = vmatpush1.bf16.xpose.msra.mxu0 0
      %2934 = vmatprep.subr.bf16.mxu0 0
      %2935 = vmatpush1.bf16.xpose.msra.mxu0 0
      %2936 = vmatprep.subr.bf16.mxu0 0
      %2937 = vmatpush1.bf16.xpose.msra.mxu0 0
      %2938 = vmatprep.subr.bf16.mxu0 0
      %2939 = vmatpush1.bf16.xpose.msra.mxu0 0
      %2940 = vmatprep.subr.bf16.mxu0 0
      %2941 = vmatpush1.bf16.xpose.msra.mxu0 0
      %2942 = vmatprep.mubr.bf16.mxu0 0
      %2943 = vmatmul.mubr.bf16.gmra.mrb[0].mxu0 %v2905
      %v2944 = vpop.f32.mrb[0].mxu0
      %v2945 = vadd.f32 0.0, %v2944
      %v2946 = vpop.f32.mrb[0].mxu0
      %v2947 = vpop.f32.mrb[0].mxu0
      %v2948 = vpop.f32.mrb[0].mxu0
      %2949 = vdwg.mxu0
      %v2951 = vsel %vm1328, %v2852, 0
      %v2954 = vsel %vm1328, %v2856, 0
      %2956 = vmatprep.subr.bf16.mxu0 0
      %2957 = vmatpush1.bf16.xpose.msra.mxu0 %v2954
      %2958 = vmatprep.subr.bf16.mxu0 0
      %2959 = vmatpush1.bf16.xpose.msra.mxu0 0
      %2960 = vmatprep.subr.bf16.mxu0 0
      %2961 = vmatpush1.bf16.xpose.msra.mxu0 0
      %2962 = vmatprep.subr.bf16.mxu0 0
      %2963 = vmatpush1.bf16.xpose.msra.mxu0 0
      %2964 = vmatprep.subr.bf16.mxu0 0
      %2965 = vmatpush1.bf16.xpose.msra.mxu0 0
      %2966 = vmatprep.subr.bf16.mxu0 0
      %2967 = vmatpush1.bf16.xpose.msra.mxu0 0
      %2968 = vmatprep.subr.bf16.mxu0 0
      %2969 = vmatpush1.bf16.xpose.msra.mxu0 0
      %2970 = vmatprep.subr.bf16.mxu0 0
      %2971 = vmatpush1.bf16.xpose.msra.mxu0 0
      %2972 = vmatprep.subr.bf16.mxu0 0
      %2973 = vmatpush1.bf16.xpose.msra.mxu0 0
      %2974 = vmatprep.subr.bf16.mxu0 0
      %2975 = vmatpush1.bf16.xpose.msra.mxu0 0
      %2976 = vmatprep.subr.bf16.mxu0 0
      %2977 = vmatpush1.bf16.xpose.msra.mxu0 0
      %2978 = vmatprep.subr.bf16.mxu0 0
      %2979 = vmatpush1.bf16.xpose.msra.mxu0 0
      %2980 = vmatprep.subr.bf16.mxu0 0
      %2981 = vmatpush1.bf16.xpose.msra.mxu0 0
      %2982 = vmatprep.subr.bf16.mxu0 0
      %2983 = vmatpush1.bf16.xpose.msra.mxu0 0
      %2984 = vmatprep.subr.bf16.mxu0 0
      %2985 = vmatpush1.bf16.xpose.msra.mxu0 0
      %2986 = vmatprep.subr.bf16.mxu0 0
      %2987 = vmatpush1.bf16.xpose.msra.mxu0 0
      %2988 = vmatprep.mubr.bf16.mxu0 0
      %2989 = vmatmul.mubr.bf16.gmra.mrb[0].mxu0 %v2951
      %v2990 = vpop.f32.mrb[0].mxu0
      %v2991 = vadd.f32 0.0, %v2990
      %v2992 = vpop.f32.mrb[0].mxu0
      %v2993 = vpop.f32.mrb[0].mxu0
      %v2994 = vpop.f32.mrb[0].mxu0
      %2995 = vdwg.mxu0
      %v2997 = vsel %vm1328, %v2853, 0
      %v3000 = vsel %vm1328, %v2857, 0
      %3002 = vmatprep.subr.bf16.mxu0 0
      %3003 = vmatpush1.bf16.xpose.msra.mxu0 %v3000
      %3004 = vmatprep.subr.bf16.mxu0 0
      %3005 = vmatpush1.bf16.xpose.msra.mxu0 0
      %3006 = vmatprep.subr.bf16.mxu0 0
      %3007 = vmatpush1.bf16.xpose.msra.mxu0 0
      %3008 = vmatprep.subr.bf16.mxu0 0
      %3009 = vmatpush1.bf16.xpose.msra.mxu0 0
      %3010 = vmatprep.subr.bf16.mxu0 0
      %3011 = vmatpush1.bf16.xpose.msra.mxu0 0
      %3012 = vmatprep.subr.bf16.mxu0 0
      %3013 = vmatpush1.bf16.xpose.msra.mxu0 0
      %3014 = vmatprep.subr.bf16.mxu0 0
      %3015 = vmatpush1.bf16.xpose.msra.mxu0 0
      %3016 = vmatprep.subr.bf16.mxu0 0
      %3017 = vmatpush1.bf16.xpose.msra.mxu0 0
      %3018 = vmatprep.subr.bf16.mxu0 0
      %3019 = vmatpush1.bf16.xpose.msra.mxu0 0
      %3020 = vmatprep.subr.bf16.mxu0 0
      %3021 = vmatpush1.bf16.xpose.msra.mxu0 0
      %3022 = vmatprep.subr.bf16.mxu0 0
      %3023 = vmatpush1.bf16.xpose.msra.mxu0 0
      %3024 = vmatprep.subr.bf16.mxu0 0
      %3025 = vmatpush1.bf16.xpose.msra.mxu0 0
      %3026 = vmatprep.subr.bf16.mxu0 0
      %3027 = vmatpush1.bf16.xpose.msra.mxu0 0
      %3028 = vmatprep.subr.bf16.mxu0 0
      %3029 = vmatpush1.bf16.xpose.msra.mxu0 0
      %3030 = vmatprep.subr.bf16.mxu0 0
      %3031 = vmatpush1.bf16.xpose.msra.mxu0 0
      %3032 = vmatprep.subr.bf16.mxu0 0
      %3033 = vmatpush1.bf16.xpose.msra.mxu0 0
      %3034 = vmatprep.mubr.bf16.mxu0 0
      %3035 = vmatmul.mubr.bf16.gmra.mrb[0].mxu0 %v2997
      %v3036 = vpop.f32.mrb[0].mxu0
      %v3037 = vadd.f32 0.0, %v3036
      %v3038 = vpop.f32.mrb[0].mxu0
      %v3039 = vpop.f32.mrb[0].mxu0
      %v3040 = vpop.f32.mrb[0].mxu0
      %3041 = vdwg.mxu0
      %v3042 = vmul.f32 %v2899, 0.35355338
      %v3043 = vmul.f32 %v2945, 0.35355338
      %v3044 = vmul.f32 %v2991, 0.35355338
      %v3045 = vmul.f32 %v3037, 0.35355338
      %vm3046 = vcmp.gt.f32.partialorder %v789, 0.0
      %v3047 = vsel %vm3046, 1, 0
      %v3048 = vlaneseq
      %v3049 = vshrl.u32 %v3048, 7
      %v3050 = vsub.s32 0, %v3049
      %v3051 = vrot.slane %v3047, %v3050
      %vm3052 = vcmp.eq.s32.totalorder %v3051, 1
      %v3053 = vsel %vm3052, %v3042, -1e+09
      %v3054 = vsel %vm3052, %v3043, -1e+09
      %v3055 = vsel %vm3052, %v3044, -1e+09
      %v3056 = vsel %vm3052, %v3045, -1e+09
      %v3057 = vsel %vm1910, %v3053, -inf
      %3058 = vmax.xlane.f32.xlu0 %v3057
      %v3059 = vpop.xlane.xlu0 %3058
      %v3060 = vsel %vm1910, %v3054, -inf
      %3061 = vmax.xlane.f32.xlu0 %v3060
      %v3062 = vpop.xlane.xlu0 %3061
      %v3063 = vsel %vm1910, %v3055, -inf
      %3064 = vmax.xlane.f32.xlu0 %v3063
      %v3065 = vpop.xlane.xlu0 %3064
      %v3066 = vsel %vm1910, %v3056, -inf
      %3067 = vmax.xlane.f32.xlu0 %v3066
      %v3068 = vpop.xlane.xlu0 %3067
      %v3069 = vsub.f32 %v3053, %v3059
      %v3070 = vsub.f32 %v3054, %v3062
      %v3071 = vsub.f32 %v3055, %v3065
      %v3072 = vsub.f32 %v3056, %v3068
      %v3073 = vmul.f32 %v3069, 1.442695
      %v3074 = vpow.pop %v3073
      %v3075 = vmul.f32 %v3070, 1.442695
      %v3076 = vpow.pop %v3075
      %v3077 = vmul.f32 %v3071, 1.442695
      %v3078 = vpow.pop %v3077
      %v3079 = vmul.f32 %v3072, 1.442695
      %v3080 = vpow.pop %v3079
      %v3081 = vsel %vm1910, %v3074, 0.0
      %3082 = vadd.xlane.f32.xlu0 %v3081
      %v3083 = vpop.xlane.xlu0 %3082
      %v3084 = vsel %vm1910, %v3076, 0.0
      %3085 = vadd.xlane.f32.xlu0 %v3084
      %v3086 = vpop.xlane.xlu0 %3085
      %v3087 = vsel %vm1910, %v3078, 0.0
      %3088 = vadd.xlane.f32.xlu0 %v3087
      %v3089 = vpop.xlane.xlu0 %3088
      %v3090 = vsel %vm1910, %v3080, 0.0
      %3091 = vadd.xlane.f32.xlu0 %v3090
      %v3092 = vpop.xlane.xlu0 %3091
      %v3093 = vrcp.pop %v3083
      %v3094 = vrcp.pop %v3086
      %v3095 = vrcp.pop %v3089
      %v3096 = vrcp.pop %v3092
      %v3097 = vmul.f32 %v3074, %v3093
      %v3098 = vmul.f32 %v3076, %v3094
      %v3099 = vmul.f32 %v3078, %v3095
      %v3100 = vmul.f32 %v3080, %v3096
      %v3101 = vpack.c.bf16 %v3097, %v3097
      %v3102 = vpack.c.bf16 %v3098, %v3098
      %v3103 = vpack.c.bf16 %v3099, %v3099
      %v3104 = vpack.c.bf16 %v3100, %v3100
      %v3105 = vpack.c.bf16 %v2846, %v2778
      %v3106 = vpack.c.bf16 %v2847, %v2779
      %v3107 = vpack.c.bf16 %v2848, %v2780
      %v3108 = vpack.c.bf16 %v2849, %v2781
      %v3110 = vsel %vm1910, %v3101, 0
      %3112 = vmatprep.subr.bf16.mxu0 0
      %3113 = vmatpush1.bf16.msra.mxu0 %v3105
      %3114 = vmatprep.subr.bf16.mxu0 0
      %3115 = vmatpush1.bf16.msra.mxu0 0
      %3116 = vmatprep.subr.bf16.mxu0 0
      %3117 = vmatpush1.bf16.msra.mxu0 0
      %3118 = vmatprep.subr.bf16.mxu0 0
      %3119 = vmatpush1.bf16.msra.mxu0 0
      %3120 = vmatprep.subr.bf16.mxu0 0
      %3121 = vmatpush1.bf16.msra.mxu0 0
      %3122 = vmatprep.subr.bf16.mxu0 0
      %3123 = vmatpush1.bf16.msra.mxu0 0
      %3124 = vmatprep.subr.bf16.mxu0 0
      %3125 = vmatpush1.bf16.msra.mxu0 0
      %3126 = vmatprep.subr.bf16.mxu0 0
      %3127 = vmatpush1.bf16.msra.mxu0 0
      %3128 = vmatprep.subr.bf16.mxu0 0
      %3129 = vmatpush1.bf16.msra.mxu0 0
      %3130 = vmatprep.subr.bf16.mxu0 0
      %3131 = vmatpush1.bf16.msra.mxu0 0
      %3132 = vmatprep.subr.bf16.mxu0 0
      %3133 = vmatpush1.bf16.msra.mxu0 0
      %3134 = vmatprep.subr.bf16.mxu0 0
      %3135 = vmatpush1.bf16.msra.mxu0 0
      %3136 = vmatprep.subr.bf16.mxu0 0
      %3137 = vmatpush1.bf16.msra.mxu0 0
      %3138 = vmatprep.subr.bf16.mxu0 0
      %3139 = vmatpush1.bf16.msra.mxu0 0
      %3140 = vmatprep.subr.bf16.mxu0 0
      %3141 = vmatpush1.bf16.msra.mxu0 0
      %3142 = vmatprep.subr.bf16.mxu0 0
      %3143 = vmatpush1.bf16.msra.mxu0 0
      %3144 = vmatprep.mubr.bf16.mxu0 0
      %3145 = vmatmul.mubr.bf16.gmra.mrb[0].mxu0 %v3110
      %v3146 = vpop.f32.mrb[0].mxu0
      %v3147 = vadd.f32 0.0, %v3146
      %v3148 = vpop.f32.mrb[0].mxu0
      %v3149 = vpop.f32.mrb[0].mxu0
      %v3150 = vpop.f32.mrb[0].mxu0
      %3151 = vdwg.mxu0
      %v3153 = vsel %vm1910, %v3102, 0
      %3155 = vmatprep.subr.bf16.mxu0 0
      %3156 = vmatpush1.bf16.msra.mxu0 %v3106
      %3157 = vmatprep.subr.bf16.mxu0 0
      %3158 = vmatpush1.bf16.msra.mxu0 0
      %3159 = vmatprep.subr.bf16.mxu0 0
      %3160 = vmatpush1.bf16.msra.mxu0 0
      %3161 = vmatprep.subr.bf16.mxu0 0
      %3162 = vmatpush1.bf16.msra.mxu0 0
      %3163 = vmatprep.subr.bf16.mxu0 0
      %3164 = vmatpush1.bf16.msra.mxu0 0
      %3165 = vmatprep.subr.bf16.mxu0 0
      %3166 = vmatpush1.bf16.msra.mxu0 0
      %3167 = vmatprep.subr.bf16.mxu0 0
      %3168 = vmatpush1.bf16.msra.mxu0 0
      %3169 = vmatprep.subr.bf16.mxu0 0
      %3170 = vmatpush1.bf16.msra.mxu0 0
      %3171 = vmatprep.subr.bf16.mxu0 0
      %3172 = vmatpush1.bf16.msra.mxu0 0
      %3173 = vmatprep.subr.bf16.mxu0 0
      %3174 = vmatpush1.bf16.msra.mxu0 0
      %3175 = vmatprep.subr.bf16.mxu0 0
      %3176 = vmatpush1.bf16.msra.mxu0 0
      %3177 = vmatprep.subr.bf16.mxu0 0
      %3178 = vmatpush1.bf16.msra.mxu0 0
      %3179 = vmatprep.subr.bf16.mxu0 0
      %3180 = vmatpush1.bf16.msra.mxu0 0
      %3181 = vmatprep.subr.bf16.mxu0 0
      %3182 = vmatpush1.bf16.msra.mxu0 0
      %3183 = vmatprep.subr.bf16.mxu0 0
      %3184 = vmatpush1.bf16.msra.mxu0 0
      %3185 = vmatprep.subr.bf16.mxu0 0
      %3186 = vmatpush1.bf16.msra.mxu0 0
      %3187 = vmatprep.mubr.bf16.mxu0 0
      %3188 = vmatmul.mubr.bf16.gmra.mrb[0].mxu0 %v3153
      %v3189 = vpop.f32.mrb[0].mxu0
      %v3190 = vadd.f32 0.0, %v3189
      %v3191 = vpop.f32.mrb[0].mxu0
      %v3192 = vpop.f32.mrb[0].mxu0
      %v3193 = vpop.f32.mrb[0].mxu0
      %3194 = vdwg.mxu0
      %v3196 = vsel %vm1910, %v3103, 0
      %3198 = vmatprep.subr.bf16.mxu0 0
      %3199 = vmatpush1.bf16.msra.mxu0 %v3107
      %3200 = vmatprep.subr.bf16.mxu0 0
      %3201 = vmatpush1.bf16.msra.mxu0 0
      %3202 = vmatprep.subr.bf16.mxu0 0
      %3203 = vmatpush1.bf16.msra.mxu0 0
      %3204 = vmatprep.subr.bf16.mxu0 0
      %3205 = vmatpush1.bf16.msra.mxu0 0
      %3206 = vmatprep.subr.bf16.mxu0 0
      %3207 = vmatpush1.bf16.msra.mxu0 0
      %3208 = vmatprep.subr.bf16.mxu0 0
      %3209 = vmatpush1.bf16.msra.mxu0 0
      %3210 = vmatprep.subr.bf16.mxu0 0
      %3211 = vmatpush1.bf16.msra.mxu0 0
      %3212 = vmatprep.subr.bf16.mxu0 0
      %3213 = vmatpush1.bf16.msra.mxu0 0
      %3214 = vmatprep.subr.bf16.mxu0 0
      %3215 = vmatpush1.bf16.msra.mxu0 0
      %3216 = vmatprep.subr.bf16.mxu0 0
      %3217 = vmatpush1.bf16.msra.mxu0 0
      %3218 = vmatprep.subr.bf16.mxu0 0
      %3219 = vmatpush1.bf16.msra.mxu0 0
      %3220 = vmatprep.subr.bf16.mxu0 0
      %3221 = vmatpush1.bf16.msra.mxu0 0
      %3222 = vmatprep.subr.bf16.mxu0 0
      %3223 = vmatpush1.bf16.msra.mxu0 0
      %3224 = vmatprep.subr.bf16.mxu0 0
      %3225 = vmatpush1.bf16.msra.mxu0 0
      %3226 = vmatprep.subr.bf16.mxu0 0
      %3227 = vmatpush1.bf16.msra.mxu0 0
      %3228 = vmatprep.subr.bf16.mxu0 0
      %3229 = vmatpush1.bf16.msra.mxu0 0
      %3230 = vmatprep.mubr.bf16.mxu0 0
      %3231 = vmatmul.mubr.bf16.gmra.mrb[0].mxu0 %v3196
      %v3232 = vpop.f32.mrb[0].mxu0
      %v3233 = vadd.f32 0.0, %v3232
      %v3234 = vpop.f32.mrb[0].mxu0
      %v3235 = vpop.f32.mrb[0].mxu0
      %v3236 = vpop.f32.mrb[0].mxu0
      %3237 = vdwg.mxu0
      %v3239 = vsel %vm1910, %v3104, 0
      %3241 = vmatprep.subr.bf16.mxu0 0
      %3242 = vmatpush1.bf16.msra.mxu0 %v3108
      %3243 = vmatprep.subr.bf16.mxu0 0
      %3244 = vmatpush1.bf16.msra.mxu0 0
      %3245 = vmatprep.subr.bf16.mxu0 0
      %3246 = vmatpush1.bf16.msra.mxu0 0
      %3247 = vmatprep.subr.bf16.mxu0 0
      %3248 = vmatpush1.bf16.msra.mxu0 0
      %3249 = vmatprep.subr.bf16.mxu0 0
      %3250 = vmatpush1.bf16.msra.mxu0 0
      %3251 = vmatprep.subr.bf16.mxu0 0
      %3252 = vmatpush1.bf16.msra.mxu0 0
      %3253 = vmatprep.subr.bf16.mxu0 0
      %3254 = vmatpush1.bf16.msra.mxu0 0
      %3255 = vmatprep.subr.bf16.mxu0 0
      %3256 = vmatpush1.bf16.msra.mxu0 0
      %3257 = vmatprep.subr.bf16.mxu0 0
      %3258 = vmatpush1.bf16.msra.mxu0 0
      %3259 = vmatprep.subr.bf16.mxu0 0
      %3260 = vmatpush1.bf16.msra.mxu0 0
      %3261 = vmatprep.subr.bf16.mxu0 0
      %3262 = vmatpush1.bf16.msra.mxu0 0
      %3263 = vmatprep.subr.bf16.mxu0 0
      %3264 = vmatpush1.bf16.msra.mxu0 0
      %3265 = vmatprep.subr.bf16.mxu0 0
      %3266 = vmatpush1.bf16.msra.mxu0 0
      %3267 = vmatprep.subr.bf16.mxu0 0
      %3268 = vmatpush1.bf16.msra.mxu0 0
      %3269 = vmatprep.subr.bf16.mxu0 0
      %3270 = vmatpush1.bf16.msra.mxu0 0
      %3271 = vmatprep.subr.bf16.mxu0 0
      %3272 = vmatpush1.bf16.msra.mxu0 0
      %3273 = vmatprep.mubr.bf16.mxu0 0
      %3274 = vmatmul.mubr.bf16.gmra.mrb[0].mxu0 %v3239
      %v3275 = vpop.f32.mrb[0].mxu0
      %v3276 = vadd.f32 0.0, %v3275
      %v3277 = vpop.f32.mrb[0].mxu0
      %v3278 = vpop.f32.mrb[0].mxu0
      %v3279 = vpop.f32.mrb[0].mxu0
      %3280 = vdwg.mxu0
      %v3281 = vcombine.low %v3147, %v3233
      %v3282 = vcombine.high %v3147, %v3233
      %v3284 = vunpack.c.l.s4 1983009808
      %v3285 = vunpack.c.0.s8 %v3284
      %v3286 = vlaneseq
      %v3287 = vshrl.u32 %v3286, 7
      %v3288 = vsub.s32 %v3285, %v3287
      %v3289 = vrot.slane %v3281, %v3288
      %v3291 = vunpack.c.l.s4 1983009808
      %v3292 = vunpack.c.0.s8 %v3291
      %v3293 = vlaneseq
      %v3294 = vshrl.u32 %v3293, 7
      %v3295 = vsub.s32 %v3292, %v3294
      %v3296 = vrot.slane %v3282, %v3295
      %v3297 = vcombine.low %v3190, %v3276
      %v3298 = vcombine.high %v3190, %v3276
      %v3300 = vunpack.c.l.s4 1983009808
      %v3301 = vunpack.c.0.s8 %v3300
      %v3302 = vlaneseq
      %v3303 = vshrl.u32 %v3302, 7
      %v3304 = vsub.s32 %v3301, %v3303
      %v3305 = vrot.slane %v3297, %v3304
      %v3307 = vunpack.c.l.s4 1983009808
      %v3308 = vunpack.c.0.s8 %v3307
      %v3309 = vlaneseq
      %v3310 = vshrl.u32 %v3309, 7
      %v3311 = vsub.s32 %v3308, %v3310
      %v3312 = vrot.slane %v3298, %v3311
      %v3313 = vcombine.low %v3289, %v3305
      %v3314 = vcombine.high %v3289, %v3305
      %v3316 = vunpack.c.l.s4 1934713408
      %v3317 = vunpack.c.0.s8 %v3316
      %v3318 = vlaneseq
      %v3319 = vshrl.u32 %v3318, 7
      %v3320 = vsub.s32 %v3317, %v3319
      %v3321 = vrot.slane %v3313, %v3320
      %v3323 = vunpack.c.l.s4 1934713408
      %v3324 = vunpack.c.0.s8 %v3323
      %v3325 = vlaneseq
      %v3326 = vshrl.u32 %v3325, 7
      %v3327 = vsub.s32 %v3324, %v3326
      %v3328 = vrot.slane %v3314, %v3327
      %v3329 = vcombine.low %v3296, %v3312
      %v3330 = vcombine.high %v3296, %v3312
      %v3332 = vunpack.c.l.s4 1934713408
      %v3333 = vunpack.c.0.s8 %v3332
      %v3334 = vlaneseq
      %v3335 = vshrl.u32 %v3334, 7
      %v3336 = vsub.s32 %v3333, %v3335
      %v3337 = vrot.slane %v3329, %v3336
      %v3339 = vunpack.c.l.s4 1934713408
      %v3340 = vunpack.c.0.s8 %v3339
      %v3341 = vlaneseq
      %v3342 = vshrl.u32 %v3341, 7
      %v3343 = vsub.s32 %v3340, %v3342
      %v3344 = vrot.slane %v3330, %v3343
      %v3345 = vcombine.high %v3321, 0.0
      %v3346 = vcombine.high %v3328, 0.0
      %v3347 = vcombine.high %v3337, 0.0
      %v3348 = vcombine.high %v3344, 0.0
      %v3349 = vcombine.low %v3321, %v3328
      %v3351 = vunpack.c.l.s4 1983009808
      %v3352 = vunpack.c.0.s8 %v3351
      %v3353 = vlaneseq
      %v3354 = vshrl.u32 %v3353, 7
      %v3355 = vsub.s32 %v3352, %v3354
      %v3356 = vrot.slane %v3349, %v3355
      %v3357 = vcombine.low %v3345, %v3346
      %v3359 = vunpack.c.l.s4 1983009808
      %v3360 = vunpack.c.0.s8 %v3359
      %v3361 = vlaneseq
      %v3362 = vshrl.u32 %v3361, 7
      %v3363 = vsub.s32 %v3360, %v3362
      %v3364 = vrot.slane %v3357, %v3363
      %v3365 = vcombine.low %v3337, %v3344
      %v3367 = vunpack.c.l.s4 1983009808
      %v3368 = vunpack.c.0.s8 %v3367
      %v3369 = vlaneseq
      %v3370 = vshrl.u32 %v3369, 7
      %v3371 = vsub.s32 %v3368, %v3370
      %v3372 = vrot.slane %v3365, %v3371
      %v3373 = vcombine.low %v3347, %v3348
      %v3375 = vunpack.c.l.s4 1983009808
      %v3376 = vunpack.c.0.s8 %v3375
      %v3377 = vlaneseq
      %v3378 = vshrl.u32 %v3377, 7
      %v3379 = vsub.s32 %v3376, %v3378
      %v3380 = vrot.slane %v3373, %v3379
      %v3381 = vcombine.low %v3356, %v3364
      %v3382 = vcombine.high %v3356, %v3364
      %v3384 = vunpack.c.l.s4 1934713408
      %v3385 = vunpack.c.0.s8 %v3384
      %v3386 = vlaneseq
      %v3387 = vshrl.u32 %v3386, 7
      %v3388 = vsub.s32 %v3385, %v3387
      %v3389 = vrot.slane %v3381, %v3388
      %v3391 = vunpack.c.l.s4 1934713408
      %v3392 = vunpack.c.0.s8 %v3391
      %v3393 = vlaneseq
      %v3394 = vshrl.u32 %v3393, 7
      %v3395 = vsub.s32 %v3392, %v3394
      %v3396 = vrot.slane %v3382, %v3395
      %v3397 = vcombine.low %v3372, %v3380
      %v3398 = vcombine.high %v3372, %v3380
      %v3400 = vunpack.c.l.s4 1934713408
      %v3401 = vunpack.c.0.s8 %v3400
      %v3402 = vlaneseq
      %v3403 = vshrl.u32 %v3402, 7
      %v3404 = vsub.s32 %v3401, %v3403
      %v3405 = vrot.slane %v3397, %v3404
      %v3407 = vunpack.c.l.s4 1934713408
      %v3408 = vunpack.c.0.s8 %v3407
      %v3409 = vlaneseq
      %v3410 = vshrl.u32 %v3409, 7
      %v3411 = vsub.s32 %v3408, %v3410
      %v3412 = vrot.slane %v3398, %v3411
      %v3413 = vcombine.low %v3389, %v3405
      %v3414 = vcombine.high %v3389, %v3405
      %v3415 = vcombine.low %v3396, %v3412
      %v3416 = vcombine.high %v3396, %v3412
      %3418 = vrot.lane.b32.xlu0 %v3414, 8
      %v3419 = vpop.permute.xlu0 %3418
      %3422 = vrot.lane.b32.xlu0 %v3415, 16
      %v3423 = vpop.permute.xlu0 %3422
      %3426 = vrot.lane.b32.xlu0 %v3416, 24
      %v3427 = vpop.permute.xlu0 %3426
      %v3429 = vsel %vm1328, %v3413, %v3419
      %v3430 = vsel %vm1910, %v3429, %v3423
      %v3431 = vsel %vm1912, %v3430, %v3427
      %v3432 = vld [vmem:[%s16] sm:$0xff]
      %v3433 = vld [vmem:[%s16 + $0x8] sm:$0xff]
      %v3434 = vld [vmem:[%s16 + $0x10] sm:$0xff]
      %v3435 = vld [vmem:[%s16 + $0x18] sm:$0xff]
      %v3436 = vld [vmem:[%s17] sm:$0x1]
      %v3437 = vpack.c.bf16 %v3431, %v3431
      %v3438 = vpack.c.bf16 %v3433, %v3432
      %v3439 = vpack.c.bf16 %v3435, %v3434
      %v3441 = vlaneseq
      %v3442 = vshrl.u32 %v3441, 7
      %v3443 = vsub.s32 0, %v3442
      %v3444 = vrot.slane %v3436, %v3443
      %v3447 = vsel %vm792, %v3437, 0
      %3449 = vmatprep.subr.bf16.mxu0 0
      %3450 = vmatpush1.bf16.msra.mxu0 %v3438
      %3451 = vmatprep.subr.bf16.mxu0 0
      %3452 = vmatpush1.bf16.msra.mxu0 %v3439
      %3453 = vmatprep.subr.bf16.mxu0 0
      %3454 = vmatpush1.bf16.msra.mxu0 0
      %3455 = vmatprep.subr.bf16.mxu0 0
      %3456 = vmatpush1.bf16.msra.mxu0 0
      %3457 = vmatprep.subr.bf16.mxu0 0
      %3458 = vmatpush1.bf16.msra.mxu0 0
      %3459 = vmatprep.subr.bf16.mxu0 0
      %3460 = vmatpush1.bf16.msra.mxu0 0
      %3461 = vmatprep.subr.bf16.mxu0 0
      %3462 = vmatpush1.bf16.msra.mxu0 0
      %3463 = vmatprep.subr.bf16.mxu0 0
      %3464 = vmatpush1.bf16.msra.mxu0 0
      %3465 = vmatprep.subr.bf16.mxu0 0
      %3466 = vmatpush1.bf16.msra.mxu0 0
      %3467 = vmatprep.subr.bf16.mxu0 0
      %3468 = vmatpush1.bf16.msra.mxu0 0
      %3469 = vmatprep.subr.bf16.mxu0 0
      %3470 = vmatpush1.bf16.msra.mxu0 0
      %3471 = vmatprep.subr.bf16.mxu0 0
      %3472 = vmatpush1.bf16.msra.mxu0 0
      %3473 = vmatprep.subr.bf16.mxu0 0
      %3474 = vmatpush1.bf16.msra.mxu0 0
      %3475 = vmatprep.subr.bf16.mxu0 0
      %3476 = vmatpush1.bf16.msra.mxu0 0
      %3477 = vmatprep.subr.bf16.mxu0 0
      %3478 = vmatpush1.bf16.msra.mxu0 0
      %3479 = vmatprep.subr.bf16.mxu0 0
      %3480 = vmatpush1.bf16.msra.mxu0 0
      %3481 = vmatprep.mubr.bf16.mxu0 0
      %3482 = vmatmul.mubr.bf16.gmra.mrb[0].mxu0 %v3447
      %v3483 = vpop.f32.mrb[0].mxu0
      %v3484 = vadd.f32 %v3444, %v3483
      %v3485 = vpop.f32.mrb[0].mxu0
      %v3486 = vpop.f32.mrb[0].mxu0
      %v3487 = vpop.f32.mrb[0].mxu0
      %3488 = vdwg.mxu0
      %v3489 = vadd.f32 %v1971, %v3484
      %v3490 = vld [vmem:[%s18] sm:$0x1]
      %v3491 = vld [vmem:[%s19] sm:$0x1]
      %v3492 = vsel %vm792, %v3489, 0.0
      %3493 = vadd.xlane.f32.xlu0 %v3492
      %v3494 = vpop.xlane.xlu0 %3493
      %v3495 = vmul.f32 %v3494, %v796
      %v3496 = vsub.f32 %v3489, %v3495
      %v3497 = vmul.f32 %v3496, %v3496
      %v3498 = vsel %vm792, %v3497, 0.0
      %3499 = vadd.xlane.f32.xlu0 %v3498
      %v3500 = vpop.xlane.xlu0 %3499
      %v3501 = vmul.f32 %v3500, %v796
      %v3502 = vadd.f32 %v3501, 1e-05
      %v3503 = vrsqrt.pop %v3502
      %v3504 = vmul.f32 %v3496, %v3503
      %v3506 = vlaneseq
      %v3507 = vshrl.u32 %v3506, 7
      %v3508 = vsub.s32 0, %v3507
      %v3509 = vrot.slane %v3490, %v3508
      %v3511 = vmul.f32 %v3504, %v3509
      %v3513 = vlaneseq
      %v3514 = vshrl.u32 %v3513, 7
      %v3515 = vsub.s32 0, %v3514
      %v3516 = vrot.slane %v3491, %v3515
      %v3518 = vadd.f32 %v3511, %v3516
      %v3519 = vld [vmem:[%s20] sm:$0xff]
      %v3520 = vld [vmem:[%s20 + $0x8] sm:$0xff]
      %v3521 = vld [vmem:[%s20 + $0x10] sm:$0xff]
      %v3522 = vld [vmem:[%s20 + $0x18] sm:$0xff]
      %v3523 = vld [vmem:[%s21] sm:$0x1]
      %v3524 = vpack.c.bf16 %v3518, %v3518
      %v3525 = vpack.c.bf16 %v3520, %v3519
      %v3526 = vpack.c.bf16 %v3522, %v3521
      %v3528 = vlaneseq
      %v3529 = vshrl.u32 %v3528, 7
      %v3530 = vsub.s32 0, %v3529
      %v3531 = vrot.slane %v3523, %v3530
      %v3534 = vsel %vm792, %v3524, 0
      %3536 = vmatprep.subr.bf16.mxu0 0
      %3537 = vmatpush1.bf16.msra.mxu0 %v3525
      %3538 = vmatprep.subr.bf16.mxu0 0
      %3539 = vmatpush1.bf16.msra.mxu0 %v3526
      %3540 = vmatprep.subr.bf16.mxu0 0
      %3541 = vmatpush1.bf16.msra.mxu0 0
      %3542 = vmatprep.subr.bf16.mxu0 0
      %3543 = vmatpush1.bf16.msra.mxu0 0
      %3544 = vmatprep.subr.bf16.mxu0 0
      %3545 = vmatpush1.bf16.msra.mxu0 0
      %3546 = vmatprep.subr.bf16.mxu0 0
      %3547 = vmatpush1.bf16.msra.mxu0 0
      %3548 = vmatprep.subr.bf16.mxu0 0
      %3549 = vmatpush1.bf16.msra.mxu0 0
      %3550 = vmatprep.subr.bf16.mxu0 0
      %3551 = vmatpush1.bf16.msra.mxu0 0
      %3552 = vmatprep.subr.bf16.mxu0 0
      %3553 = vmatpush1.bf16.msra.mxu0 0
      %3554 = vmatprep.subr.bf16.mxu0 0
      %3555 = vmatpush1.bf16.msra.mxu0 0
      %3556 = vmatprep.subr.bf16.mxu0 0
      %3557 = vmatpush1.bf16.msra.mxu0 0
      %3558 = vmatprep.subr.bf16.mxu0 0
      %3559 = vmatpush1.bf16.msra.mxu0 0
      %3560 = vmatprep.subr.bf16.mxu0 0
      %3561 = vmatpush1.bf16.msra.mxu0 0
      %3562 = vmatprep.subr.bf16.mxu0 0
      %3563 = vmatpush1.bf16.msra.mxu0 0
      %3564 = vmatprep.subr.bf16.mxu0 0
      %3565 = vmatpush1.bf16.msra.mxu0 0
      %3566 = vmatprep.subr.bf16.mxu0 0
      %3567 = vmatpush1.bf16.msra.mxu0 0
      %3568 = vmatprep.mubr.bf16.mxu0 0
      %3569 = vmatmul.mubr.bf16.gmra.mrb[0].mxu0 %v3534
      %v3570 = vpop.f32.mrb[0].mxu0
      %v3571 = vadd.f32 %v3531, %v3570
      %v3572 = vpop.f32.mrb[0].mxu0
      %v3573 = vpop.f32.mrb[0].mxu0
      %v3574 = vpop.f32.mrb[0].mxu0
      %3575 = vdwg.mxu0
      %v3576 = vmax.f32 %v3571, 0.0
      %v3577 = vld [vmem:[%s22] sm:$0xff]
      %v3578 = vld [vmem:[%s22 + $0x8] sm:$0xff]
      %v3579 = vld [vmem:[%s22 + $0x10] sm:$0xff]
      %v3580 = vld [vmem:[%s22 + $0x18] sm:$0xff]
      %v3581 = vld [vmem:[%s22 + $0x20] sm:$0xff]
      %v3582 = vld [vmem:[%s22 + $0x28] sm:$0xff]
      %v3583 = vld [vmem:[%s22 + $0x30] sm:$0xff]
      %v3584 = vld [vmem:[%s22 + $0x38] sm:$0xff]
      %v3585 = vld [vmem:[%s23] sm:$0x1]
      %v3586 = vpack.c.bf16 %v3576, %v3576
      %v3587 = vpack.c.bf16 %v3578, %v3577
      %v3588 = vpack.c.bf16 %v3580, %v3579
      %v3589 = vpack.c.bf16 %v3582, %v3581
      %v3590 = vpack.c.bf16 %v3584, %v3583
      %v3592 = vlaneseq
      %v3593 = vshrl.u32 %v3592, 7
      %v3594 = vsub.s32 0, %v3593
      %v3595 = vrot.slane %v3585, %v3594
      %vm3597 = vcmask 523264
      %v3599 = vsel %vm3597, %v3586, 0
      %3601 = vmatprep.subr.bf16.mxu0 0
      %3602 = vmatpush1.bf16.msra.mxu0 %v3587
      %3603 = vmatprep.subr.bf16.mxu0 0
      %3604 = vmatpush1.bf16.msra.mxu0 %v3588
      %3605 = vmatprep.subr.bf16.mxu0 0
      %3606 = vmatpush1.bf16.msra.mxu0 %v3589
      %3607 = vmatprep.subr.bf16.mxu0 0
      %3608 = vmatpush1.bf16.msra.mxu0 %v3590
      %3609 = vmatprep.subr.bf16.mxu0 0
      %3610 = vmatpush1.bf16.msra.mxu0 0
      %3611 = vmatprep.subr.bf16.mxu0 0
      %3612 = vmatpush1.bf16.msra.mxu0 0
      %3613 = vmatprep.subr.bf16.mxu0 0
      %3614 = vmatpush1.bf16.msra.mxu0 0
      %3615 = vmatprep.subr.bf16.mxu0 0
      %3616 = vmatpush1.bf16.msra.mxu0 0
      %3617 = vmatprep.subr.bf16.mxu0 0
      %3618 = vmatpush1.bf16.msra.mxu0 0
      %3619 = vmatprep.subr.bf16.mxu0 0
      %3620 = vmatpush1.bf16.msra.mxu0 0
      %3621 = vmatprep.subr.bf16.mxu0 0
      %3622 = vmatpush1.bf16.msra.mxu0 0
      %3623 = vmatprep.subr.bf16.mxu0 0
      %3624 = vmatpush1.bf16.msra.mxu0 0
      %3625 = vmatprep.subr.bf16.mxu0 0
      %3626 = vmatpush1.bf16.msra.mxu0 0
      %3627 = vmatprep.subr.bf16.mxu0 0
      %3628 = vmatpush1.bf16.msra.mxu0 0
      %3629 = vmatprep.subr.bf16.mxu0 0
      %3630 = vmatpush1.bf16.msra.mxu0 0
      %3631 = vmatprep.subr.bf16.mxu0 0
      %3632 = vmatpush1.bf16.msra.mxu0 0
      %3633 = vmatprep.mubr.bf16.mxu0 0
      %3634 = vmatmul.mubr.bf16.gmra.mrb[0].mxu0 %v3599
      %v3635 = vpop.f32.mrb[0].mxu0
      %v3636 = vadd.f32 %v3595, %v3635
      %v3637 = vpop.f32.mrb[0].mxu0
      %v3638 = vpop.f32.mrb[0].mxu0
      %v3639 = vpop.f32.mrb[0].mxu0
      %3640 = vdwg.mxu0
      %v3641 = vadd.f32 %v3489, %v3636
      %3642 = vst.msk [vmem:[%s783] sm:$0xff] %vm792, %v3641
      %p3643 = scmp.lt.s32.totalorder %s35, 1
      %s3644 = scalar_select %p3643, %s35, 1
      %s3645 = smul.addr %s3644, 8
      %s3646 = scalar_lea.vmem %s24, %s3645
      // Predicated region
      $region117: #{model_forward.7} parent=115 // pred_check
        %p3647 = pneg %p577
      $region118: #{model_forward.7} parent=115 // pred_check_branch
        %3649 = sbr.rel (%p3647) target = $region120
      $region119: #{model_forward.7} parent=115 // pred_region
        _
      $region120: #{model_forward.7} parent=115 // pred_fallthru
        _
    $region116: #{model_forward.7} parent=5 // pred_fallthru
      _
    %p3650 = scmp.le.s32.totalorder 2, %s30
    // Predicated region
    $region121: #{model_forward.7} parent=5 // pred_check
      %p3651 = pneg %p3650
    $region122: #{model_forward.7} parent=5 // pred_check_branch
      %3653 = sbr.rel (%p3651) target = $region124
    $region123: #{model_forward.7} parent=5 // pred_region
      %s3654 = ssub.s32 %s30, 2
      // Predicated region
      $region125: #{model_forward.7} parent=123 // pred_check
        %p3655 = pneg %p583
      $region126: #{model_forward.7} parent=123 // pred_check_branch
        %3657 = sbr.rel (%p3655) target = $region128
      $region127: #{model_forward.7} parent=123 // pred_region
        %p3658 = scmp.lt.s32.totalorder %s36, 1
        %s3659 = scalar_select %p3658, %s36, 1
        %s3660 = smul.addr %s3659, 8
        %s3661 = scalar_lea.vmem %s24, %s3660
      $region128: #{model_forward.7} parent=123 // pred_fallthru
        _
    $region124: #{model_forward.7} parent=5 // pred_fallthru
      _
  $region6: #{model_forward.7} parent=0 // loop_footer
    %s34 = sadd.s32 1, %s30
  $region7: #{model_forward.7} parent=0 // loop_footer_branch
    %29 = sbr.rel target = $region3
  $region8: #{model_forward.7} parent=0 // loop_exit
    _

</llo_original>
